<compile_context>
chip_gen: v7x
topology: tpu7x:2x2x1
jax: 0.10.0
libtpu: 0.0.40
codegen_flags: <defaults>
</compile_context>

<pallas_src>
import functools

import jax
import jax.numpy as jnp
from jax.experimental import pallas as pl
from jax.experimental.pallas import tpu as pltpu


# ----------------------------------------------------------------------------
# Fixed architecture constants (from the PyTorch module).
# ----------------------------------------------------------------------------
C_IN, C1, C2, C3 = 3, 8, 16, 32
K1, K2, K3 = 5, 5, 3
DIL3 = 3
LIN_SIZES = (864, 512, 256, 128, 128)   # Linear in/out chain (last -> output_dim)


def _conv_lengths(l_in):
    l1 = (l_in - K1) // 2 + 1            # conv1 (stride 2)
    l1p = l1 // 2                        # pool1
    l2 = (l1p - K2) // 2 + 1             # conv2 (stride 2)
    l2p = l2 // 2                        # pool2
    l3 = l2p - DIL3 * (K3 - 1)           # conv3 (stride 1, dilation 3)
    l3p = l3 // 2                        # pool3
    return l1, l1p, l2, l2p, l3, l3p


# ----------------------------------------------------------------------------
# The fused Pallas kernel: whole forward pass for one batch element per grid step.
# ----------------------------------------------------------------------------
def _dqn_kernel(xt_ref, w1_ref, b1_ref, w2_ref, b2_ref, p2e_ref, p2o_ref,
                w3_ref, b3_ref, p3e_ref, p3o_ref, rmat_ref, fmask_ref,
                l1w_ref, l1b_ref, l2w_ref, l2b_ref, l3w_ref, l3b_ref,
                l4w_ref, l4b_ref, l5w_ref, l5b_ref, out_ref):
    f32 = jnp.float32
    dot = functools.partial(jnp.dot, preferred_element_type=f32)
    relu = lambda v: jnp.maximum(v, 0.0)

    l2 = p2e_ref.shape[0]     # 120: conv2 output length
    l3 = p3e_ref.shape[0]     # 54 : conv3 output length

    # ---- conv1 (k=5, stride 2) in 4 output phases, fused ReLU + MaxPool1d(2,2) ----
    # xt_ref[0, 5*r + k] holds x[:, 8*t + 2*r + k]  -> y1_phase_r[:, t] = conv1 @ (4t+r)
    b1 = b1_ref[...]                                           # (8, 1)
    y1 = []
    for r in range(4):
        acc = dot(w1_ref[0], xt_ref[0, 5 * r + 0])
        for k in range(1, 5):
            acc = acc + dot(w1_ref[k], xt_ref[0, 5 * r + k])
        y1.append(relu(acc + b1))                              # (8, T)
    p1_e = jnp.maximum(y1[0], y1[1])                           # pool1[:, 2t]    (8, T)
    p1_o = jnp.maximum(y1[2], y1[3])                           # pool1[:, 2t+1]  (8, T)

    # ---- conv2 (k=5, stride 2): taps are contiguous lane slices of the pooled phases ----
    taps2 = (p1_e[:, 0:l2], p1_o[:, 0:l2], p1_e[:, 1:l2 + 1],
             p1_o[:, 1:l2 + 1], p1_e[:, 2:l2 + 2])
    acc2 = dot(w2_ref[0], taps2[0])
    for k in range(1, 5):
        acc2 = acc2 + dot(w2_ref[k], taps2[k])
    y2 = relu(acc2 + b2_ref[...])                              # (16, 120)
    # MaxPool1d(2,2) via 0/1 selection matmuls (keeps L on lanes; no strided loads)
    p2 = jnp.maximum(dot(y2, p2e_ref[...]), dot(y2, p2o_ref[...]))     # (16, 60)

    # ---- conv3 (k=3, stride 1, dilation 3) + ReLU + MaxPool1d(2,2) ----
    acc3 = dot(w3_ref[0], p2[:, 0:l3])
    acc3 = acc3 + dot(w3_ref[1], p2[:, DIL3:DIL3 + l3])
    acc3 = acc3 + dot(w3_ref[2], p2[:, 2 * DIL3:2 * DIL3 + l3])
    y3 = relu(acc3 + b3_ref[...])                              # (32, 54)
    p3 = jnp.maximum(dot(y3, p3e_ref[...]), dot(y3, p3o_ref[...]))     # (32, 27)

    # ---- channel-major flatten (== torch.flatten(x, 1)) into a lane-dense (1, 864) row ----
    rep = dot(p3, rmat_ref[...])                               # (32, 864): rep[c, j] = p3[c, j % 27]
    flat = jnp.sum(rep * fmask_ref[...], axis=0, keepdims=True)        # (1, 864)

    # ---- 5 Linear layers chained without leaving VMEM ----
    h = relu(dot(flat, l1w_ref[...]) + l1b_ref[...])           # (1, 512)
    h = relu(dot(h, l2w_ref[...]) + l2b_ref[...])              # (1, 256)
    h = relu(dot(h, l3w_ref[...]) + l3b_ref[...])              # (1, 128)
    h = relu(dot(h, l4w_ref[...]) + l4b_ref[...])              # (1, 128)
    out_ref[0] = dot(h, l5w_ref[...]) + l5b_ref[...]           # (1, output_dim)


# ----------------------------------------------------------------------------
# One-time parameter repacking (torch layouts -> kernel layouts + selection mats)
# ----------------------------------------------------------------------------
def _pool_selectors(n_in):
    n_out = n_in // 2
    j = jnp.arange(n_in)[:, None]
    m = jnp.arange(n_out)[None, :]
    even = (j == 2 * m).astype(jnp.float32)
    odd = (j == 2 * m + 1).astype(jnp.float32)
    return even, odd


def prepare_params(params, l_in):
    _, _, l2, _, l3, l3p = _conv_lengths(l_in)
    flat_dim = C3 * l3p
    assert flat_dim == LIN_SIZES[0], (flat_dim, LIN_SIZES[0])

    p2e, p2o = _pool_selectors(l2)                    # (120, 60)
    p3e, p3o = _pool_selectors(l3)                    # (54, 27)
    j = jnp.arange(flat_dim)[None, :]
    rmat = (jnp.arange(l3p)[:, None] == j % l3p).astype(jnp.float32)    # (27, 864)
    fmask = (jnp.arange(C3)[:, None] == j // l3p).astype(jnp.float32)   # (32, 864)

    return {
        "w1": jnp.transpose(params["conv1_w"], (2, 0, 1)),    # (5, 8, 3)
        "b1": params["conv1_b"].reshape(C1, 1),
        "w2": jnp.transpose(params["conv2_w"], (2, 0, 1)),    # (5, 16, 8)
        "b2": params["conv2_b"].reshape(C2, 1),
        "w3": jnp.transpose(params["conv3_w"], (2, 0, 1)),    # (3, 32, 16)
        "b3": params["conv3_b"].reshape(C3, 1),
        "p2e": p2e, "p2o": p2o, "p3e": p3e, "p3o": p3o,
        "rmat": rmat, "fmask": fmask,
        "l1w": params["lin1_w"].T, "l1b": params["lin1_b"].reshape(1, -1),
        "l2w": params["lin2_w"].T, "l2b": params["lin2_b"].reshape(1, -1),
        "l3w": params["lin3_w"].T, "l3b": params["lin3_b"].reshape(1, -1),
        "l4w": params["lin4_w"].T, "l4b": params["lin4_b"].reshape(1, -1),
        "l5w": params["out_w"].T, "l5b": params["out_b"].reshape(1, -1),
    }


# ----------------------------------------------------------------------------
# Input pre-phasing (tiny plain-JAX gather on the raw input only)
# ----------------------------------------------------------------------------
def _conv1_taps(x_ncl):
    """xt[b, 5*r + k, c, t] = x[b, c, 8*t + 2*r + k]   (4 conv1-output phases x 5 taps)."""
    bsz, _, l_in = x_ncl.shape
    _, l1p, _, _, _, _ = _conv_lengths(l_in)
    t_len = (l1p + 1) // 2                                     # 122
    pad = max(0, 8 * (t_len - 1) + 2 * 3 + (K1 - 1) + 1 - l_in)
    x_pad = jnp.pad(x_ncl, ((0, 0), (0, 0), (0, pad)))
    idx = (8 * jnp.arange(t_len)[None, None, :]
           + 2 * jnp.arange(4)[:, None, None]
           + jnp.arange(K1)[None, :, None])                    # (4, 5, T)
    taps = x_pad[:, :, idx]                                    # (B, 3, 4, 5, T)
    taps = jnp.transpose(taps, (0, 2, 3, 1, 4))                # (B, 4, 5, 3, T)
    return taps.reshape(bsz, 4 * K1, C_IN, t_len)


# ----------------------------------------------------------------------------
# Forward pass: one fused pallas_call over grid=(B,)
# ----------------------------------------------------------------------------
_ARG_ORDER = ("w1", "b1", "w2", "b2", "p2e", "p2o", "w3", "b3", "p3e", "p3o",
              "rmat", "fmask", "l1w", "l1b", "l2w", "l2b", "l3w", "l3b",
              "l4w", "l4b", "l5w", "l5b")


def _full_spec(shape):
    nd = len(shape)
    return pl.BlockSpec(shape, lambda b, _nd=nd: (0,) * _nd)


@jax.jit
def dqn_forward(prep, x_ncl):
    bsz = x_ncl.shape[0]
    out_dim = prep["l5b"].shape[-1]
    xt = _conv1_taps(x_ncl)                                    # (B, 20, 3, T)
    consts = [prep[name] for name in _ARG_ORDER]

    in_specs = [pl.BlockSpec((1,) + xt.shape[1:], lambda b: (b, 0, 0, 0))]
    in_specs += [_full_spec(a.shape) for a in consts]

    l2 = prep["p2e"].shape[0]
    l3 = prep["p3e"].shape[0]
    flat_dim = prep["rmat"].shape[-1]
    lin_macs = sum(a * b for a, b in zip(LIN_SIZES[:-1], LIN_SIZES[1:]))
    lin_macs += LIN_SIZES[-1] * out_dim
    macs = (20 * C1 * C_IN * xt.shape[-1]
            + 5 * C2 * C1 * l2 + 2 * C2 * l2 * (l2 // 2)
            + 3 * C3 * C2 * l3 + 2 * C3 * l3 * (l3 // 2)
            + C3 * (l3 // 2) * flat_dim + lin_macs)
    cost = pl.CostEstimate(
        flops=2 * bsz * macs,
        transcendentals=0,
        bytes_accessed=4 * (int(xt.size) + sum(int(a.size) for a in consts)
                            + bsz * out_dim))

    out = pl.pallas_call(
        _dqn_kernel,
        grid=(bsz,),
        in_specs=in_specs,
        out_specs=pl.BlockSpec((1, 1, out_dim), lambda b: (b, 0, 0)),
        out_shape=jax.ShapeDtypeStruct((bsz, 1, out_dim), jnp.float32),
        compiler_params=pltpu.CompilerParams(dimension_semantics=("parallel",)),
        cost_estimate=cost,
    )(xt, *consts)
    return out.reshape(bsz, out_dim)


# ----------------------------------------------------------------------------
# Pure-JAX reference (lax convs, independent of the Pallas path)
# ----------------------------------------------------------------------------
def dqn_forward_ref(params, x):
    relu = lambda v: jnp.maximum(v, 0.0)

    def conv(v, w, b, stride, dilation):
        y = jax.lax.conv_general_dilated(
            v, w, window_strides=(stride,), padding="VALID",
            rhs_dilation=(dilation,), dimension_numbers=("NCH", "OIH", "NCH"))
        return y + b[None, :, None]

    def pool(v):  # NCL MaxPool1d(2,2)
        lo = v.shape[2] // 2
        return jnp.maximum(v[:, :, 0:2 * lo:2], v[:, :, 1:2 * lo:2])

    x = pool(relu(conv(x, params["conv1_w"], params["conv1_b"], 2, 1)))
    x = pool(relu(conv(x, params["conv2_w"], params["conv2_b"], 2, 1)))
    x = pool(relu(conv(x, params["conv3_w"], params["conv3_b"], 1, 3)))
    x = x.reshape(x.shape[0], -1)
    x = relu(x @ params["lin1_w"].T + params["lin1_b"])
    x = relu(x @ params["lin2_w"].T + params["lin2_b"])
    x = relu(x @ params["lin3_w"].T + params["lin3_b"])
    x = relu(x @ params["lin4_w"].T + params["lin4_b"])
    return x @ params["out_w"].T + params["out_b"]


# ----------------------------------------------------------------------------
# Deterministic synthetic parameters (torch layouts: Conv1d (O,I,K), Linear (O,I))
# ----------------------------------------------------------------------------
def init_params(key, output_dim):
    ks = jax.random.split(key, 18)

    def rnd(k, shape, scale):
        return (scale * jax.random.normal(k, shape)).astype(jnp.float32)

    return {
        "conv1_w": rnd(ks[0], (8, 3, 5), 0.10),   "conv1_b": rnd(ks[1], (8,), 0.10),
        "conv2_w": rnd(ks[2], (16, 8, 5), 0.10),  "conv2_b": rnd(ks[3], (16,), 0.10),
        "conv3_w": rnd(ks[4], (32, 16, 3), 0.10), "conv3_b": rnd(ks[5], (32,), 0.10),
        "lin1_w": rnd(ks[6], (512, 864), 0.03),   "lin1_b": rnd(ks[7], (512,), 0.03),
        "lin2_w": rnd(ks[8], (256, 512), 0.03),   "lin2_b": rnd(ks[9], (256,), 0.03),
        "lin3_w": rnd(ks[10], (128, 256), 0.05),  "lin3_b": rnd(ks[11], (128,), 0.05),
        "lin4_w": rnd(ks[12], (128, 128), 0.05),  "lin4_b": rnd(ks[13], (128,), 0.05),
        "out_w": rnd(ks[14], (output_dim, 128), 0.05),
        "out_b": rnd(ks[15], (output_dim,), 0.05),
    }


if __name__ == "__main__":
    key = jax.random.PRNGKey(0)
    kx, kp = jax.random.split(key)

    OUTPUT_DIM = 4
    # L=976 is (close to) the smallest input length consistent with nn.Linear(864, 512):
    # 976 -conv1-> 486 -pool-> 243 -conv2-> 120 -pool-> 60 -conv3-> 54 -pool-> 27, 32*27=864.
    B, L_IN = 2, 976
    x = jax.random.normal(kx, (B, C_IN, L_IN), dtype=jnp.float32)
    params = init_params(kp, OUTPUT_DIM)
    prep = prepare_params(params, L_IN)

    out = jax.block_until_ready(dqn_forward(prep, x))
    ref = dqn_forward_ref(params, x)

    assert out.shape == (B, OUTPUT_DIM), out.shape
    max_err = float(jnp.max(jnp.abs(out - ref)))
    if not bool(jnp.allclose(out, ref, rtol=1e-4, atol=1e-4)):
        raise SystemExit(f"mismatch vs reference, max abs err = {max_err:e}")
    print("KERNEL_OK")
</pallas_src>

<mosaic_0001>
module attributes {stable_mosaic.version = 11 : i64} {
  func.func @_dqn_kernel(%arg0: i32, %arg1: memref<1x20x3x122xf32, #tpu.memory_space<vmem>>, %arg2: memref<5x8x3xf32, #tpu.memory_space<vmem>>, %arg3: memref<8x1xf32, #tpu.memory_space<vmem>>, %arg4: memref<5x16x8xf32, #tpu.memory_space<vmem>>, %arg5: memref<16x1xf32, #tpu.memory_space<vmem>>, %arg6: memref<120x60xf32, #tpu.memory_space<vmem>>, %arg7: memref<120x60xf32, #tpu.memory_space<vmem>>, %arg8: memref<3x32x16xf32, #tpu.memory_space<vmem>>, %arg9: memref<32x1xf32, #tpu.memory_space<vmem>>, %arg10: memref<54x27xf32, #tpu.memory_space<vmem>>, %arg11: memref<54x27xf32, #tpu.memory_space<vmem>>, %arg12: memref<27x864xf32, #tpu.memory_space<vmem>>, %arg13: memref<32x864xf32, #tpu.memory_space<vmem>>, %arg14: memref<864x512xf32, #tpu.memory_space<vmem>>, %arg15: memref<1x512xf32, #tpu.memory_space<vmem>>, %arg16: memref<512x256xf32, #tpu.memory_space<vmem>>, %arg17: memref<1x256xf32, #tpu.memory_space<vmem>>, %arg18: memref<256x128xf32, #tpu.memory_space<vmem>>, %arg19: memref<1x128xf32, #tpu.memory_space<vmem>>, %arg20: memref<128x128xf32, #tpu.memory_space<vmem>>, %arg21: memref<1x128xf32, #tpu.memory_space<vmem>>, %arg22: memref<128x4xf32, #tpu.memory_space<vmem>>, %arg23: memref<1x4xf32, #tpu.memory_space<vmem>>, %arg24: memref<1x1x4xf32, #tpu.memory_space<vmem>>) attributes {dimension_semantics = [#tpu.dimension_semantics<parallel>], iteration_bounds = array<i64: 2>, scalar_prefetch = 0 : i64, scratch_operands = 0 : i64, tpu.core_type = #tpu.core_type<tc>, window_params = [{transform_indices = @transform_0, window_bounds = array<i64: 1, 20, 3, 122>}, {pipeline_mode = #tpu.pipeline_mode<synchronous>, transform_indices = @transform_1, window_bounds = array<i64: 5, 8, 3>}, {pipeline_mode = #tpu.pipeline_mode<synchronous>, transform_indices = @transform_2, window_bounds = array<i64: 8, 1>}, {pipeline_mode = #tpu.pipeline_mode<synchronous>, transform_indices = @transform_3, window_bounds = array<i64: 5, 16, 8>}, {pipeline_mode = #tpu.pipeline_mode<synchronous>, transform_indices = @transform_4, window_bounds = array<i64: 16, 1>}, {pipeline_mode = #tpu.pipeline_mode<synchronous>, transform_indices = @transform_5, window_bounds = array<i64: 120, 60>}, {pipeline_mode = #tpu.pipeline_mode<synchronous>, transform_indices = @transform_6, window_bounds = array<i64: 120, 60>}, {pipeline_mode = #tpu.pipeline_mode<synchronous>, transform_indices = @transform_7, window_bounds = array<i64: 3, 32, 16>}, {pipeline_mode = #tpu.pipeline_mode<synchronous>, transform_indices = @transform_8, window_bounds = array<i64: 32, 1>}, {pipeline_mode = #tpu.pipeline_mode<synchronous>, transform_indices = @transform_9, window_bounds = array<i64: 54, 27>}, {pipeline_mode = #tpu.pipeline_mode<synchronous>, transform_indices = @transform_10, window_bounds = array<i64: 54, 27>}, {pipeline_mode = #tpu.pipeline_mode<synchronous>, transform_indices = @transform_11, window_bounds = array<i64: 27, 864>}, {pipeline_mode = #tpu.pipeline_mode<synchronous>, transform_indices = @transform_12, window_bounds = array<i64: 32, 864>}, {pipeline_mode = #tpu.pipeline_mode<synchronous>, transform_indices = @transform_13, window_bounds = array<i64: 864, 512>}, {pipeline_mode = #tpu.pipeline_mode<synchronous>, transform_indices = @transform_14, window_bounds = array<i64: 1, 512>}, {pipeline_mode = #tpu.pipeline_mode<synchronous>, transform_indices = @transform_15, window_bounds = array<i64: 512, 256>}, {pipeline_mode = #tpu.pipeline_mode<synchronous>, transform_indices = @transform_16, window_bounds = array<i64: 1, 256>}, {pipeline_mode = #tpu.pipeline_mode<synchronous>, transform_indices = @transform_17, window_bounds = array<i64: 256, 128>}, {pipeline_mode = #tpu.pipeline_mode<synchronous>, transform_indices = @transform_18, window_bounds = array<i64: 1, 128>}, {pipeline_mode = #tpu.pipeline_mode<synchronous>, transform_indices = @transform_19, window_bounds = array<i64: 128, 128>}, {pipeline_mode = #tpu.pipeline_mode<synchronous>, transform_indices = @transform_20, window_bounds = array<i64: 1, 128>}, {pipeline_mode = #tpu.pipeline_mode<synchronous>, transform_indices = @transform_21, window_bounds = array<i64: 128, 4>}, {pipeline_mode = #tpu.pipeline_mode<synchronous>, transform_indices = @transform_22, window_bounds = array<i64: 1, 4>}, {transform_indices = @transform_23, window_bounds = array<i64: 1, 1, 4>}]} {
    %c0 = arith.constant 0 : index
    %c0_0 = arith.constant 0 : index
    %0 = vector.load %arg3[%c0, %c0_0] : memref<8x1xf32, #tpu.memory_space<vmem>>, vector<8x1xf32>
    %c0_1 = arith.constant 0 : index
    %c0_2 = arith.constant 0 : index
    %c0_3 = arith.constant 0 : index
    %1 = vector.load %arg2[%c0_1, %c0_2, %c0_3] : memref<5x8x3xf32, #tpu.memory_space<vmem>>, vector<1x8x3xf32>
    %2 = vector.shape_cast %1 : vector<1x8x3xf32> to vector<8x3xf32>
    %c0_4 = arith.constant 0 : index
    %c0_5 = arith.constant 0 : index
    %c0_6 = arith.constant 0 : index
    %c0_7 = arith.constant 0 : index
    %3 = vector.load %arg1[%c0_4, %c0_5, %c0_6, %c0_7] : memref<1x20x3x122xf32, #tpu.memory_space<vmem>>, vector<1x1x3x122xf32>
    %4 = vector.shape_cast %3 : vector<1x1x3x122xf32> to vector<3x122xf32>
    %cst = arith.constant dense<0.000000e+00> : vector<8x122xf32>
    %5 = tpu.matmul %2, %4, %cst {dimension_numbers = #tpu.dot_dimension_numbers<[1], [0], [0], [1], [0, 0, 1, 1], [], []>} : vector<8x3xf32>, vector<3x122xf32>, vector<8x122xf32> -> vector<8x122xf32>
    %c1 = arith.constant 1 : index
    %c0_8 = arith.constant 0 : index
    %c0_9 = arith.constant 0 : index
    %6 = vector.load %arg2[%c1, %c0_8, %c0_9] : memref<5x8x3xf32, #tpu.memory_space<vmem>>, vector<1x8x3xf32>
    %7 = vector.shape_cast %6 : vector<1x8x3xf32> to vector<8x3xf32>
    %c0_10 = arith.constant 0 : index
    %c1_11 = arith.constant 1 : index
    %c0_12 = arith.constant 0 : index
    %c0_13 = arith.constant 0 : index
    %8 = vector.load %arg1[%c0_10, %c1_11, %c0_12, %c0_13] : memref<1x20x3x122xf32, #tpu.memory_space<vmem>>, vector<1x1x3x122xf32>
    %9 = vector.shape_cast %8 : vector<1x1x3x122xf32> to vector<3x122xf32>
    %cst_14 = arith.constant dense<0.000000e+00> : vector<8x122xf32>
    %10 = tpu.matmul %7, %9, %cst_14 {dimension_numbers = #tpu.dot_dimension_numbers<[1], [0], [0], [1], [0, 0, 1, 1], [], []>} : vector<8x3xf32>, vector<3x122xf32>, vector<8x122xf32> -> vector<8x122xf32>
    %11 = arith.addf %5, %10 : vector<8x122xf32>
    %c2 = arith.constant 2 : index
    %c0_15 = arith.constant 0 : index
    %c0_16 = arith.constant 0 : index
    %12 = vector.load %arg2[%c2, %c0_15, %c0_16] : memref<5x8x3xf32, #tpu.memory_space<vmem>>, vector<1x8x3xf32>
    %13 = vector.shape_cast %12 : vector<1x8x3xf32> to vector<8x3xf32>
    %c0_17 = arith.constant 0 : index
    %c2_18 = arith.constant 2 : index
    %c0_19 = arith.constant 0 : index
    %c0_20 = arith.constant 0 : index
    %14 = vector.load %arg1[%c0_17, %c2_18, %c0_19, %c0_20] : memref<1x20x3x122xf32, #tpu.memory_space<vmem>>, vector<1x1x3x122xf32>
    %15 = vector.shape_cast %14 : vector<1x1x3x122xf32> to vector<3x122xf32>
    %cst_21 = arith.constant dense<0.000000e+00> : vector<8x122xf32>
    %16 = tpu.matmul %13, %15, %cst_21 {dimension_numbers = #tpu.dot_dimension_numbers<[1], [0], [0], [1], [0, 0, 1, 1], [], []>} : vector<8x3xf32>, vector<3x122xf32>, vector<8x122xf32> -> vector<8x122xf32>
    %17 = arith.addf %11, %16 : vector<8x122xf32>
    %c3 = arith.constant 3 : index
    %c0_22 = arith.constant 0 : index
    %c0_23 = arith.constant 0 : index
    %18 = vector.load %arg2[%c3, %c0_22, %c0_23] : memref<5x8x3xf32, #tpu.memory_space<vmem>>, vector<1x8x3xf32>
    %19 = vector.shape_cast %18 : vector<1x8x3xf32> to vector<8x3xf32>
    %c0_24 = arith.constant 0 : index
    %c3_25 = arith.constant 3 : index
    %c0_26 = arith.constant 0 : index
    %c0_27 = arith.constant 0 : index
    %20 = vector.load %arg1[%c0_24, %c3_25, %c0_26, %c0_27] : memref<1x20x3x122xf32, #tpu.memory_space<vmem>>, vector<1x1x3x122xf32>
    %21 = vector.shape_cast %20 : vector<1x1x3x122xf32> to vector<3x122xf32>
    %cst_28 = arith.constant dense<0.000000e+00> : vector<8x122xf32>
    %22 = tpu.matmul %19, %21, %cst_28 {dimension_numbers = #tpu.dot_dimension_numbers<[1], [0], [0], [1], [0, 0, 1, 1], [], []>} : vector<8x3xf32>, vector<3x122xf32>, vector<8x122xf32> -> vector<8x122xf32>
    %23 = arith.addf %17, %22 : vector<8x122xf32>
    %c4 = arith.constant 4 : index
    %c0_29 = arith.constant 0 : index
    %c0_30 = arith.constant 0 : index
    %24 = vector.load %arg2[%c4, %c0_29, %c0_30] : memref<5x8x3xf32, #tpu.memory_space<vmem>>, vector<1x8x3xf32>
    %25 = vector.shape_cast %24 : vector<1x8x3xf32> to vector<8x3xf32>
    %c0_31 = arith.constant 0 : index
    %c4_32 = arith.constant 4 : index
    %c0_33 = arith.constant 0 : index
    %c0_34 = arith.constant 0 : index
    %26 = vector.load %arg1[%c0_31, %c4_32, %c0_33, %c0_34] : memref<1x20x3x122xf32, #tpu.memory_space<vmem>>, vector<1x1x3x122xf32>
    %27 = vector.shape_cast %26 : vector<1x1x3x122xf32> to vector<3x122xf32>
    %cst_35 = arith.constant dense<0.000000e+00> : vector<8x122xf32>
    %28 = tpu.matmul %25, %27, %cst_35 {dimension_numbers = #tpu.dot_dimension_numbers<[1], [0], [0], [1], [0, 0, 1, 1], [], []>} : vector<8x3xf32>, vector<3x122xf32>, vector<8x122xf32> -> vector<8x122xf32>
    %29 = arith.addf %23, %28 : vector<8x122xf32>
    %30 = vector.broadcast %0 : vector<8x1xf32> to vector<8x122xf32>
    %31 = arith.addf %29, %30 : vector<8x122xf32>
    %cst_36 = arith.constant 0.000000e+00 : f32
    %32 = vector.broadcast %cst_36 : f32 to vector<8x122xf32>
    %33 = arith.maximumf %31, %32 : vector<8x122xf32>
    %c0_37 = arith.constant 0 : index
    %c0_38 = arith.constant 0 : index
    %c0_39 = arith.constant 0 : index
    %34 = vector.load %arg2[%c0_37, %c0_38, %c0_39] : memref<5x8x3xf32, #tpu.memory_space<vmem>>, vector<1x8x3xf32>
    %35 = vector.shape_cast %34 : vector<1x8x3xf32> to vector<8x3xf32>
    %c0_40 = arith.constant 0 : index
    %c5 = arith.constant 5 : index
    %c0_41 = arith.constant 0 : index
    %c0_42 = arith.constant 0 : index
    %36 = vector.load %arg1[%c0_40, %c5, %c0_41, %c0_42] : memref<1x20x3x122xf32, #tpu.memory_space<vmem>>, vector<1x1x3x122xf32>
    %37 = vector.shape_cast %36 : vector<1x1x3x122xf32> to vector<3x122xf32>
    %cst_43 = arith.constant dense<0.000000e+00> : vector<8x122xf32>
    %38 = tpu.matmul %35, %37, %cst_43 {dimension_numbers = #tpu.dot_dimension_numbers<[1], [0], [0], [1], [0, 0, 1, 1], [], []>} : vector<8x3xf32>, vector<3x122xf32>, vector<8x122xf32> -> vector<8x122xf32>
    %c1_44 = arith.constant 1 : index
    %c0_45 = arith.constant 0 : index
    %c0_46 = arith.constant 0 : index
    %39 = vector.load %arg2[%c1_44, %c0_45, %c0_46] : memref<5x8x3xf32, #tpu.memory_space<vmem>>, vector<1x8x3xf32>
    %40 = vector.shape_cast %39 : vector<1x8x3xf32> to vector<8x3xf32>
    %c0_47 = arith.constant 0 : index
    %c6 = arith.constant 6 : index
    %c0_48 = arith.constant 0 : index
    %c0_49 = arith.constant 0 : index
    %41 = vector.load %arg1[%c0_47, %c6, %c0_48, %c0_49] : memref<1x20x3x122xf32, #tpu.memory_space<vmem>>, vector<1x1x3x122xf32>
    %42 = vector.shape_cast %41 : vector<1x1x3x122xf32> to vector<3x122xf32>
    %cst_50 = arith.constant dense<0.000000e+00> : vector<8x122xf32>
    %43 = tpu.matmul %40, %42, %cst_50 {dimension_numbers = #tpu.dot_dimension_numbers<[1], [0], [0], [1], [0, 0, 1, 1], [], []>} : vector<8x3xf32>, vector<3x122xf32>, vector<8x122xf32> -> vector<8x122xf32>
    %44 = arith.addf %38, %43 : vector<8x122xf32>
    %c2_51 = arith.constant 2 : index
    %c0_52 = arith.constant 0 : index
    %c0_53 = arith.constant 0 : index
    %45 = vector.load %arg2[%c2_51, %c0_52, %c0_53] : memref<5x8x3xf32, #tpu.memory_space<vmem>>, vector<1x8x3xf32>
    %46 = vector.shape_cast %45 : vector<1x8x3xf32> to vector<8x3xf32>
    %c0_54 = arith.constant 0 : index
    %c7 = arith.constant 7 : index
    %c0_55 = arith.constant 0 : index
    %c0_56 = arith.constant 0 : index
    %47 = vector.load %arg1[%c0_54, %c7, %c0_55, %c0_56] : memref<1x20x3x122xf32, #tpu.memory_space<vmem>>, vector<1x1x3x122xf32>
    %48 = vector.shape_cast %47 : vector<1x1x3x122xf32> to vector<3x122xf32>
    %cst_57 = arith.constant dense<0.000000e+00> : vector<8x122xf32>
    %49 = tpu.matmul %46, %48, %cst_57 {dimension_numbers = #tpu.dot_dimension_numbers<[1], [0], [0], [1], [0, 0, 1, 1], [], []>} : vector<8x3xf32>, vector<3x122xf32>, vector<8x122xf32> -> vector<8x122xf32>
    %50 = arith.addf %44, %49 : vector<8x122xf32>
    %c3_58 = arith.constant 3 : index
    %c0_59 = arith.constant 0 : index
    %c0_60 = arith.constant 0 : index
    %51 = vector.load %arg2[%c3_58, %c0_59, %c0_60] : memref<5x8x3xf32, #tpu.memory_space<vmem>>, vector<1x8x3xf32>
    %52 = vector.shape_cast %51 : vector<1x8x3xf32> to vector<8x3xf32>
    %c0_61 = arith.constant 0 : index
    %c8 = arith.constant 8 : index
    %c0_62 = arith.constant 0 : index
    %c0_63 = arith.constant 0 : index
    %53 = vector.load %arg1[%c0_61, %c8, %c0_62, %c0_63] : memref<1x20x3x122xf32, #tpu.memory_space<vmem>>, vector<1x1x3x122xf32>
    %54 = vector.shape_cast %53 : vector<1x1x3x122xf32> to vector<3x122xf32>
    %cst_64 = arith.constant dense<0.000000e+00> : vector<8x122xf32>
    %55 = tpu.matmul %52, %54, %cst_64 {dimension_numbers = #tpu.dot_dimension_numbers<[1], [0], [0], [1], [0, 0, 1, 1], [], []>} : vector<8x3xf32>, vector<3x122xf32>, vector<8x122xf32> -> vector<8x122xf32>
    %56 = arith.addf %50, %55 : vector<8x122xf32>
    %c4_65 = arith.constant 4 : index
    %c0_66 = arith.constant 0 : index
    %c0_67 = arith.constant 0 : index
    %57 = vector.load %arg2[%c4_65, %c0_66, %c0_67] : memref<5x8x3xf32, #tpu.memory_space<vmem>>, vector<1x8x3xf32>
    %58 = vector.shape_cast %57 : vector<1x8x3xf32> to vector<8x3xf32>
    %c0_68 = arith.constant 0 : index
    %c9 = arith.constant 9 : index
    %c0_69 = arith.constant 0 : index
    %c0_70 = arith.constant 0 : index
    %59 = vector.load %arg1[%c0_68, %c9, %c0_69, %c0_70] : memref<1x20x3x122xf32, #tpu.memory_space<vmem>>, vector<1x1x3x122xf32>
    %60 = vector.shape_cast %59 : vector<1x1x3x122xf32> to vector<3x122xf32>
    %cst_71 = arith.constant dense<0.000000e+00> : vector<8x122xf32>
    %61 = tpu.matmul %58, %60, %cst_71 {dimension_numbers = #tpu.dot_dimension_numbers<[1], [0], [0], [1], [0, 0, 1, 1], [], []>} : vector<8x3xf32>, vector<3x122xf32>, vector<8x122xf32> -> vector<8x122xf32>
    %62 = arith.addf %56, %61 : vector<8x122xf32>
    %63 = vector.broadcast %0 : vector<8x1xf32> to vector<8x122xf32>
    %64 = arith.addf %62, %63 : vector<8x122xf32>
    %cst_72 = arith.constant 0.000000e+00 : f32
    %65 = vector.broadcast %cst_72 : f32 to vector<8x122xf32>
    %66 = arith.maximumf %64, %65 : vector<8x122xf32>
    %c0_73 = arith.constant 0 : index
    %c0_74 = arith.constant 0 : index
    %c0_75 = arith.constant 0 : index
    %67 = vector.load %arg2[%c0_73, %c0_74, %c0_75] : memref<5x8x3xf32, #tpu.memory_space<vmem>>, vector<1x8x3xf32>
    %68 = vector.shape_cast %67 : vector<1x8x3xf32> to vector<8x3xf32>
    %c0_76 = arith.constant 0 : index
    %c10 = arith.constant 10 : index
    %c0_77 = arith.constant 0 : index
    %c0_78 = arith.constant 0 : index
    %69 = vector.load %arg1[%c0_76, %c10, %c0_77, %c0_78] : memref<1x20x3x122xf32, #tpu.memory_space<vmem>>, vector<1x1x3x122xf32>
    %70 = vector.shape_cast %69 : vector<1x1x3x122xf32> to vector<3x122xf32>
    %cst_79 = arith.constant dense<0.000000e+00> : vector<8x122xf32>
    %71 = tpu.matmul %68, %70, %cst_79 {dimension_numbers = #tpu.dot_dimension_numbers<[1], [0], [0], [1], [0, 0, 1, 1], [], []>} : vector<8x3xf32>, vector<3x122xf32>, vector<8x122xf32> -> vector<8x122xf32>
    %c1_80 = arith.constant 1 : index
    %c0_81 = arith.constant 0 : index
    %c0_82 = arith.constant 0 : index
    %72 = vector.load %arg2[%c1_80, %c0_81, %c0_82] : memref<5x8x3xf32, #tpu.memory_space<vmem>>, vector<1x8x3xf32>
    %73 = vector.shape_cast %72 : vector<1x8x3xf32> to vector<8x3xf32>
    %c0_83 = arith.constant 0 : index
    %c11 = arith.constant 11 : index
    %c0_84 = arith.constant 0 : index
    %c0_85 = arith.constant 0 : index
    %74 = vector.load %arg1[%c0_83, %c11, %c0_84, %c0_85] : memref<1x20x3x122xf32, #tpu.memory_space<vmem>>, vector<1x1x3x122xf32>
    %75 = vector.shape_cast %74 : vector<1x1x3x122xf32> to vector<3x122xf32>
    %cst_86 = arith.constant dense<0.000000e+00> : vector<8x122xf32>
    %76 = tpu.matmul %73, %75, %cst_86 {dimension_numbers = #tpu.dot_dimension_numbers<[1], [0], [0], [1], [0, 0, 1, 1], [], []>} : vector<8x3xf32>, vector<3x122xf32>, vector<8x122xf32> -> vector<8x122xf32>
    %77 = arith.addf %71, %76 : vector<8x122xf32>
    %c2_87 = arith.constant 2 : index
    %c0_88 = arith.constant 0 : index
    %c0_89 = arith.constant 0 : index
    %78 = vector.load %arg2[%c2_87, %c0_88, %c0_89] : memref<5x8x3xf32, #tpu.memory_space<vmem>>, vector<1x8x3xf32>
    %79 = vector.shape_cast %78 : vector<1x8x3xf32> to vector<8x3xf32>
    %c0_90 = arith.constant 0 : index
    %c12 = arith.constant 12 : index
    %c0_91 = arith.constant 0 : index
    %c0_92 = arith.constant 0 : index
    %80 = vector.load %arg1[%c0_90, %c12, %c0_91, %c0_92] : memref<1x20x3x122xf32, #tpu.memory_space<vmem>>, vector<1x1x3x122xf32>
    %81 = vector.shape_cast %80 : vector<1x1x3x122xf32> to vector<3x122xf32>
    %cst_93 = arith.constant dense<0.000000e+00> : vector<8x122xf32>
    %82 = tpu.matmul %79, %81, %cst_93 {dimension_numbers = #tpu.dot_dimension_numbers<[1], [0], [0], [1], [0, 0, 1, 1], [], []>} : vector<8x3xf32>, vector<3x122xf32>, vector<8x122xf32> -> vector<8x122xf32>
    %83 = arith.addf %77, %82 : vector<8x122xf32>
    %c3_94 = arith.constant 3 : index
    %c0_95 = arith.constant 0 : index
    %c0_96 = arith.constant 0 : index
    %84 = vector.load %arg2[%c3_94, %c0_95, %c0_96] : memref<5x8x3xf32, #tpu.memory_space<vmem>>, vector<1x8x3xf32>
    %85 = vector.shape_cast %84 : vector<1x8x3xf32> to vector<8x3xf32>
    %c0_97 = arith.constant 0 : index
    %c13 = arith.constant 13 : index
    %c0_98 = arith.constant 0 : index
    %c0_99 = arith.constant 0 : index
    %86 = vector.load %arg1[%c0_97, %c13, %c0_98, %c0_99] : memref<1x20x3x122xf32, #tpu.memory_space<vmem>>, vector<1x1x3x122xf32>
    %87 = vector.shape_cast %86 : vector<1x1x3x122xf32> to vector<3x122xf32>
    %cst_100 = arith.constant dense<0.000000e+00> : vector<8x122xf32>
    %88 = tpu.matmul %85, %87, %cst_100 {dimension_numbers = #tpu.dot_dimension_numbers<[1], [0], [0], [1], [0, 0, 1, 1], [], []>} : vector<8x3xf32>, vector<3x122xf32>, vector<8x122xf32> -> vector<8x122xf32>
    %89 = arith.addf %83, %88 : vector<8x122xf32>
    %c4_101 = arith.constant 4 : index
    %c0_102 = arith.constant 0 : index
    %c0_103 = arith.constant 0 : index
    %90 = vector.load %arg2[%c4_101, %c0_102, %c0_103] : memref<5x8x3xf32, #tpu.memory_space<vmem>>, vector<1x8x3xf32>
    %91 = vector.shape_cast %90 : vector<1x8x3xf32> to vector<8x3xf32>
    %c0_104 = arith.constant 0 : index
    %c14 = arith.constant 14 : index
    %c0_105 = arith.constant 0 : index
    %c0_106 = arith.constant 0 : index
    %92 = vector.load %arg1[%c0_104, %c14, %c0_105, %c0_106] : memref<1x20x3x122xf32, #tpu.memory_space<vmem>>, vector<1x1x3x122xf32>
    %93 = vector.shape_cast %92 : vector<1x1x3x122xf32> to vector<3x122xf32>
    %cst_107 = arith.constant dense<0.000000e+00> : vector<8x122xf32>
    %94 = tpu.matmul %91, %93, %cst_107 {dimension_numbers = #tpu.dot_dimension_numbers<[1], [0], [0], [1], [0, 0, 1, 1], [], []>} : vector<8x3xf32>, vector<3x122xf32>, vector<8x122xf32> -> vector<8x122xf32>
    %95 = arith.addf %89, %94 : vector<8x122xf32>
    %96 = vector.broadcast %0 : vector<8x1xf32> to vector<8x122xf32>
    %97 = arith.addf %95, %96 : vector<8x122xf32>
    %cst_108 = arith.constant 0.000000e+00 : f32
    %98 = vector.broadcast %cst_108 : f32 to vector<8x122xf32>
    %99 = arith.maximumf %97, %98 : vector<8x122xf32>
    %c0_109 = arith.constant 0 : index
    %c0_110 = arith.constant 0 : index
    %c0_111 = arith.constant 0 : index
    %100 = vector.load %arg2[%c0_109, %c0_110, %c0_111] : memref<5x8x3xf32, #tpu.memory_space<vmem>>, vector<1x8x3xf32>
    %101 = vector.shape_cast %100 : vector<1x8x3xf32> to vector<8x3xf32>
    %c0_112 = arith.constant 0 : index
    %c15 = arith.constant 15 : index
    %c0_113 = arith.constant 0 : index
    %c0_114 = arith.constant 0 : index
    %102 = vector.load %arg1[%c0_112, %c15, %c0_113, %c0_114] : memref<1x20x3x122xf32, #tpu.memory_space<vmem>>, vector<1x1x3x122xf32>
    %103 = vector.shape_cast %102 : vector<1x1x3x122xf32> to vector<3x122xf32>
    %cst_115 = arith.constant dense<0.000000e+00> : vector<8x122xf32>
    %104 = tpu.matmul %101, %103, %cst_115 {dimension_numbers = #tpu.dot_dimension_numbers<[1], [0], [0], [1], [0, 0, 1, 1], [], []>} : vector<8x3xf32>, vector<3x122xf32>, vector<8x122xf32> -> vector<8x122xf32>
    %c1_116 = arith.constant 1 : index
    %c0_117 = arith.constant 0 : index
    %c0_118 = arith.constant 0 : index
    %105 = vector.load %arg2[%c1_116, %c0_117, %c0_118] : memref<5x8x3xf32, #tpu.memory_space<vmem>>, vector<1x8x3xf32>
    %106 = vector.shape_cast %105 : vector<1x8x3xf32> to vector<8x3xf32>
    %c0_119 = arith.constant 0 : index
    %c16 = arith.constant 16 : index
    %c0_120 = arith.constant 0 : index
    %c0_121 = arith.constant 0 : index
    %107 = vector.load %arg1[%c0_119, %c16, %c0_120, %c0_121] : memref<1x20x3x122xf32, #tpu.memory_space<vmem>>, vector<1x1x3x122xf32>
    %108 = vector.shape_cast %107 : vector<1x1x3x122xf32> to vector<3x122xf32>
    %cst_122 = arith.constant dense<0.000000e+00> : vector<8x122xf32>
    %109 = tpu.matmul %106, %108, %cst_122 {dimension_numbers = #tpu.dot_dimension_numbers<[1], [0], [0], [1], [0, 0, 1, 1], [], []>} : vector<8x3xf32>, vector<3x122xf32>, vector<8x122xf32> -> vector<8x122xf32>
    %110 = arith.addf %104, %109 : vector<8x122xf32>
    %c2_123 = arith.constant 2 : index
    %c0_124 = arith.constant 0 : index
    %c0_125 = arith.constant 0 : index
    %111 = vector.load %arg2[%c2_123, %c0_124, %c0_125] : memref<5x8x3xf32, #tpu.memory_space<vmem>>, vector<1x8x3xf32>
    %112 = vector.shape_cast %111 : vector<1x8x3xf32> to vector<8x3xf32>
    %c0_126 = arith.constant 0 : index
    %c17 = arith.constant 17 : index
    %c0_127 = arith.constant 0 : index
    %c0_128 = arith.constant 0 : index
    %113 = vector.load %arg1[%c0_126, %c17, %c0_127, %c0_128] : memref<1x20x3x122xf32, #tpu.memory_space<vmem>>, vector<1x1x3x122xf32>
    %114 = vector.shape_cast %113 : vector<1x1x3x122xf32> to vector<3x122xf32>
    %cst_129 = arith.constant dense<0.000000e+00> : vector<8x122xf32>
    %115 = tpu.matmul %112, %114, %cst_129 {dimension_numbers = #tpu.dot_dimension_numbers<[1], [0], [0], [1], [0, 0, 1, 1], [], []>} : vector<8x3xf32>, vector<3x122xf32>, vector<8x122xf32> -> vector<8x122xf32>
    %116 = arith.addf %110, %115 : vector<8x122xf32>
    %c3_130 = arith.constant 3 : index
    %c0_131 = arith.constant 0 : index
    %c0_132 = arith.constant 0 : index
    %117 = vector.load %arg2[%c3_130, %c0_131, %c0_132] : memref<5x8x3xf32, #tpu.memory_space<vmem>>, vector<1x8x3xf32>
    %118 = vector.shape_cast %117 : vector<1x8x3xf32> to vector<8x3xf32>
    %c0_133 = arith.constant 0 : index
    %c18 = arith.constant 18 : index
    %c0_134 = arith.constant 0 : index
    %c0_135 = arith.constant 0 : index
    %119 = vector.load %arg1[%c0_133, %c18, %c0_134, %c0_135] : memref<1x20x3x122xf32, #tpu.memory_space<vmem>>, vector<1x1x3x122xf32>
    %120 = vector.shape_cast %119 : vector<1x1x3x122xf32> to vector<3x122xf32>
    %cst_136 = arith.constant dense<0.000000e+00> : vector<8x122xf32>
    %121 = tpu.matmul %118, %120, %cst_136 {dimension_numbers = #tpu.dot_dimension_numbers<[1], [0], [0], [1], [0, 0, 1, 1], [], []>} : vector<8x3xf32>, vector<3x122xf32>, vector<8x122xf32> -> vector<8x122xf32>
    %122 = arith.addf %116, %121 : vector<8x122xf32>
    %c4_137 = arith.constant 4 : index
    %c0_138 = arith.constant 0 : index
    %c0_139 = arith.constant 0 : index
    %123 = vector.load %arg2[%c4_137, %c0_138, %c0_139] : memref<5x8x3xf32, #tpu.memory_space<vmem>>, vector<1x8x3xf32>
    %124 = vector.shape_cast %123 : vector<1x8x3xf32> to vector<8x3xf32>
    %c0_140 = arith.constant 0 : index
    %c19 = arith.constant 19 : index
    %c0_141 = arith.constant 0 : index
    %c0_142 = arith.constant 0 : index
    %125 = vector.load %arg1[%c0_140, %c19, %c0_141, %c0_142] : memref<1x20x3x122xf32, #tpu.memory_space<vmem>>, vector<1x1x3x122xf32>
    %126 = vector.shape_cast %125 : vector<1x1x3x122xf32> to vector<3x122xf32>
    %cst_143 = arith.constant dense<0.000000e+00> : vector<8x122xf32>
    %127 = tpu.matmul %124, %126, %cst_143 {dimension_numbers = #tpu.dot_dimension_numbers<[1], [0], [0], [1], [0, 0, 1, 1], [], []>} : vector<8x3xf32>, vector<3x122xf32>, vector<8x122xf32> -> vector<8x122xf32>
    %128 = arith.addf %122, %127 : vector<8x122xf32>
    %129 = vector.broadcast %0 : vector<8x1xf32> to vector<8x122xf32>
    %130 = arith.addf %128, %129 : vector<8x122xf32>
    %cst_144 = arith.constant 0.000000e+00 : f32
    %131 = vector.broadcast %cst_144 : f32 to vector<8x122xf32>
    %132 = arith.maximumf %130, %131 : vector<8x122xf32>
    %133 = arith.maximumf %33, %66 : vector<8x122xf32>
    %134 = arith.maximumf %99, %132 : vector<8x122xf32>
    %135 = vector.extract_strided_slice %133 {offsets = [0, 0], sizes = [8, 120], strides = [1, 1]} : vector<8x122xf32> to vector<8x120xf32>
    %136 = vector.extract_strided_slice %134 {offsets = [0, 0], sizes = [8, 120], strides = [1, 1]} : vector<8x122xf32> to vector<8x120xf32>
    %137 = vector.extract_strided_slice %133 {offsets = [0, 1], sizes = [8, 120], strides = [1, 1]} : vector<8x122xf32> to vector<8x120xf32>
    %138 = vector.extract_strided_slice %134 {offsets = [0, 1], sizes = [8, 120], strides = [1, 1]} : vector<8x122xf32> to vector<8x120xf32>
    %139 = vector.extract_strided_slice %133 {offsets = [0, 2], sizes = [8, 120], strides = [1, 1]} : vector<8x122xf32> to vector<8x120xf32>
    %c0_145 = arith.constant 0 : index
    %c0_146 = arith.constant 0 : index
    %c0_147 = arith.constant 0 : index
    %140 = vector.load %arg4[%c0_145, %c0_146, %c0_147] : memref<5x16x8xf32, #tpu.memory_space<vmem>>, vector<1x16x8xf32>
    %141 = vector.shape_cast %140 : vector<1x16x8xf32> to vector<16x8xf32>
    %cst_148 = arith.constant dense<0.000000e+00> : vector<16x120xf32>
    %142 = tpu.matmul %141, %135, %cst_148 {dimension_numbers = #tpu.dot_dimension_numbers<[1], [0], [0], [1], [0, 0, 1, 1], [], []>} : vector<16x8xf32>, vector<8x120xf32>, vector<16x120xf32> -> vector<16x120xf32>
    %c1_149 = arith.constant 1 : index
    %c0_150 = arith.constant 0 : index
    %c0_151 = arith.constant 0 : index
    %143 = vector.load %arg4[%c1_149, %c0_150, %c0_151] : memref<5x16x8xf32, #tpu.memory_space<vmem>>, vector<1x16x8xf32>
    %144 = vector.shape_cast %143 : vector<1x16x8xf32> to vector<16x8xf32>
    %cst_152 = arith.constant dense<0.000000e+00> : vector<16x120xf32>
    %145 = tpu.matmul %144, %136, %cst_152 {dimension_numbers = #tpu.dot_dimension_numbers<[1], [0], [0], [1], [0, 0, 1, 1], [], []>} : vector<16x8xf32>, vector<8x120xf32>, vector<16x120xf32> -> vector<16x120xf32>
    %146 = arith.addf %142, %145 : vector<16x120xf32>
    %c2_153 = arith.constant 2 : index
    %c0_154 = arith.constant 0 : index
    %c0_155 = arith.constant 0 : index
    %147 = vector.load %arg4[%c2_153, %c0_154, %c0_155] : memref<5x16x8xf32, #tpu.memory_space<vmem>>, vector<1x16x8xf32>
    %148 = vector.shape_cast %147 : vector<1x16x8xf32> to vector<16x8xf32>
    %cst_156 = arith.constant dense<0.000000e+00> : vector<16x120xf32>
    %149 = tpu.matmul %148, %137, %cst_156 {dimension_numbers = #tpu.dot_dimension_numbers<[1], [0], [0], [1], [0, 0, 1, 1], [], []>} : vector<16x8xf32>, vector<8x120xf32>, vector<16x120xf32> -> vector<16x120xf32>
    %150 = arith.addf %146, %149 : vector<16x120xf32>
    %c3_157 = arith.constant 3 : index
    %c0_158 = arith.constant 0 : index
    %c0_159 = arith.constant 0 : index
    %151 = vector.load %arg4[%c3_157, %c0_158, %c0_159] : memref<5x16x8xf32, #tpu.memory_space<vmem>>, vector<1x16x8xf32>
    %152 = vector.shape_cast %151 : vector<1x16x8xf32> to vector<16x8xf32>
    %cst_160 = arith.constant dense<0.000000e+00> : vector<16x120xf32>
    %153 = tpu.matmul %152, %138, %cst_160 {dimension_numbers = #tpu.dot_dimension_numbers<[1], [0], [0], [1], [0, 0, 1, 1], [], []>} : vector<16x8xf32>, vector<8x120xf32>, vector<16x120xf32> -> vector<16x120xf32>
    %154 = arith.addf %150, %153 : vector<16x120xf32>
    %c4_161 = arith.constant 4 : index
    %c0_162 = arith.constant 0 : index
    %c0_163 = arith.constant 0 : index
    %155 = vector.load %arg4[%c4_161, %c0_162, %c0_163] : memref<5x16x8xf32, #tpu.memory_space<vmem>>, vector<1x16x8xf32>
    %156 = vector.shape_cast %155 : vector<1x16x8xf32> to vector<16x8xf32>
    %cst_164 = arith.constant dense<0.000000e+00> : vector<16x120xf32>
    %157 = tpu.matmul %156, %139, %cst_164 {dimension_numbers = #tpu.dot_dimension_numbers<[1], [0], [0], [1], [0, 0, 1, 1], [], []>} : vector<16x8xf32>, vector<8x120xf32>, vector<16x120xf32> -> vector<16x120xf32>
    %158 = arith.addf %154, %157 : vector<16x120xf32>
    %c0_165 = arith.constant 0 : index
    %c0_166 = arith.constant 0 : index
    %159 = vector.load %arg5[%c0_165, %c0_166] : memref<16x1xf32, #tpu.memory_space<vmem>>, vector<16x1xf32>
    %160 = vector.broadcast %159 : vector<16x1xf32> to vector<16x120xf32>
    %161 = arith.addf %158, %160 : vector<16x120xf32>
    %cst_167 = arith.constant 0.000000e+00 : f32
    %162 = vector.broadcast %cst_167 : f32 to vector<16x120xf32>
    %163 = arith.maximumf %161, %162 : vector<16x120xf32>
    %c0_168 = arith.constant 0 : index
    %c0_169 = arith.constant 0 : index
    %164 = vector.load %arg6[%c0_168, %c0_169] : memref<120x60xf32, #tpu.memory_space<vmem>>, vector<120x60xf32>
    %cst_170 = arith.constant dense<0.000000e+00> : vector<16x60xf32>
    %165 = tpu.matmul %163, %164, %cst_170 {dimension_numbers = #tpu.dot_dimension_numbers<[1], [0], [0], [1], [0, 0, 1, 1], [], []>} : vector<16x120xf32>, vector<120x60xf32>, vector<16x60xf32> -> vector<16x60xf32>
    %c0_171 = arith.constant 0 : index
    %c0_172 = arith.constant 0 : index
    %166 = vector.load %arg7[%c0_171, %c0_172] : memref<120x60xf32, #tpu.memory_space<vmem>>, vector<120x60xf32>
    %cst_173 = arith.constant dense<0.000000e+00> : vector<16x60xf32>
    %167 = tpu.matmul %163, %166, %cst_173 {dimension_numbers = #tpu.dot_dimension_numbers<[1], [0], [0], [1], [0, 0, 1, 1], [], []>} : vector<16x120xf32>, vector<120x60xf32>, vector<16x60xf32> -> vector<16x60xf32>
    %168 = arith.maximumf %165, %167 : vector<16x60xf32>
    %c0_174 = arith.constant 0 : index
    %c0_175 = arith.constant 0 : index
    %c0_176 = arith.constant 0 : index
    %169 = vector.load %arg8[%c0_174, %c0_175, %c0_176] : memref<3x32x16xf32, #tpu.memory_space<vmem>>, vector<1x32x16xf32>
    %170 = vector.shape_cast %169 : vector<1x32x16xf32> to vector<32x16xf32>
    %171 = vector.extract_strided_slice %168 {offsets = [0, 0], sizes = [16, 54], strides = [1, 1]} : vector<16x60xf32> to vector<16x54xf32>
    %cst_177 = arith.constant dense<0.000000e+00> : vector<32x54xf32>
    %172 = tpu.matmul %170, %171, %cst_177 {dimension_numbers = #tpu.dot_dimension_numbers<[1], [0], [0], [1], [0, 0, 1, 1], [], []>} : vector<32x16xf32>, vector<16x54xf32>, vector<32x54xf32> -> vector<32x54xf32>
    %c1_178 = arith.constant 1 : index
    %c0_179 = arith.constant 0 : index
    %c0_180 = arith.constant 0 : index
    %173 = vector.load %arg8[%c1_178, %c0_179, %c0_180] : memref<3x32x16xf32, #tpu.memory_space<vmem>>, vector<1x32x16xf32>
    %174 = vector.shape_cast %173 : vector<1x32x16xf32> to vector<32x16xf32>
    %175 = vector.extract_strided_slice %168 {offsets = [0, 3], sizes = [16, 54], strides = [1, 1]} : vector<16x60xf32> to vector<16x54xf32>
    %cst_181 = arith.constant dense<0.000000e+00> : vector<32x54xf32>
    %176 = tpu.matmul %174, %175, %cst_181 {dimension_numbers = #tpu.dot_dimension_numbers<[1], [0], [0], [1], [0, 0, 1, 1], [], []>} : vector<32x16xf32>, vector<16x54xf32>, vector<32x54xf32> -> vector<32x54xf32>
    %177 = arith.addf %172, %176 : vector<32x54xf32>
    %c2_182 = arith.constant 2 : index
    %c0_183 = arith.constant 0 : index
    %c0_184 = arith.constant 0 : index
    %178 = vector.load %arg8[%c2_182, %c0_183, %c0_184] : memref<3x32x16xf32, #tpu.memory_space<vmem>>, vector<1x32x16xf32>
    %179 = vector.shape_cast %178 : vector<1x32x16xf32> to vector<32x16xf32>
    %180 = vector.extract_strided_slice %168 {offsets = [0, 6], sizes = [16, 54], strides = [1, 1]} : vector<16x60xf32> to vector<16x54xf32>
    %cst_185 = arith.constant dense<0.000000e+00> : vector<32x54xf32>
    %181 = tpu.matmul %179, %180, %cst_185 {dimension_numbers = #tpu.dot_dimension_numbers<[1], [0], [0], [1], [0, 0, 1, 1], [], []>} : vector<32x16xf32>, vector<16x54xf32>, vector<32x54xf32> -> vector<32x54xf32>
    %182 = arith.addf %177, %181 : vector<32x54xf32>
    %c0_186 = arith.constant 0 : index
    %c0_187 = arith.constant 0 : index
    %183 = vector.load %arg9[%c0_186, %c0_187] : memref<32x1xf32, #tpu.memory_space<vmem>>, vector<32x1xf32>
    %184 = vector.broadcast %183 : vector<32x1xf32> to vector<32x54xf32>
    %185 = arith.addf %182, %184 : vector<32x54xf32>
    %cst_188 = arith.constant 0.000000e+00 : f32
    %186 = vector.broadcast %cst_188 : f32 to vector<32x54xf32>
    %187 = arith.maximumf %185, %186 : vector<32x54xf32>
    %c0_189 = arith.constant 0 : index
    %c0_190 = arith.constant 0 : index
    %188 = vector.load %arg10[%c0_189, %c0_190] : memref<54x27xf32, #tpu.memory_space<vmem>>, vector<54x27xf32>
    %cst_191 = arith.constant dense<0.000000e+00> : vector<32x27xf32>
    %189 = tpu.matmul %187, %188, %cst_191 {dimension_numbers = #tpu.dot_dimension_numbers<[1], [0], [0], [1], [0, 0, 1, 1], [], []>} : vector<32x54xf32>, vector<54x27xf32>, vector<32x27xf32> -> vector<32x27xf32>
    %c0_192 = arith.constant 0 : index
    %c0_193 = arith.constant 0 : index
    %190 = vector.load %arg11[%c0_192, %c0_193] : memref<54x27xf32, #tpu.memory_space<vmem>>, vector<54x27xf32>
    %cst_194 = arith.constant dense<0.000000e+00> : vector<32x27xf32>
    %191 = tpu.matmul %187, %190, %cst_194 {dimension_numbers = #tpu.dot_dimension_numbers<[1], [0], [0], [1], [0, 0, 1, 1], [], []>} : vector<32x54xf32>, vector<54x27xf32>, vector<32x27xf32> -> vector<32x27xf32>
    %192 = arith.maximumf %189, %191 : vector<32x27xf32>
    %c0_195 = arith.constant 0 : index
    %c0_196 = arith.constant 0 : index
    %193 = vector.load %arg12[%c0_195, %c0_196] : memref<27x864xf32, #tpu.memory_space<vmem>>, vector<27x864xf32>
    %cst_197 = arith.constant dense<0.000000e+00> : vector<32x864xf32>
    %194 = tpu.matmul %192, %193, %cst_197 {dimension_numbers = #tpu.dot_dimension_numbers<[1], [0], [0], [1], [0, 0, 1, 1], [], []>} : vector<32x27xf32>, vector<27x864xf32>, vector<32x864xf32> -> vector<32x864xf32>
    %c0_198 = arith.constant 0 : index
    %c0_199 = arith.constant 0 : index
    %195 = vector.load %arg13[%c0_198, %c0_199] : memref<32x864xf32, #tpu.memory_space<vmem>>, vector<32x864xf32>
    %196 = arith.mulf %194, %195 : vector<32x864xf32>
    %cst_200 = arith.constant dense<0.000000e+00> : vector<864xf32>
    %197 = vector.multi_reduction <add>, %196, %cst_200 [0] : vector<32x864xf32> to vector<864xf32>
    %198 = vector.shape_cast %197 : vector<864xf32> to vector<1x864xf32>
    %c0_201 = arith.constant 0 : index
    %c0_202 = arith.constant 0 : index
    %199 = vector.load %arg14[%c0_201, %c0_202] : memref<864x512xf32, #tpu.memory_space<vmem>>, vector<864x512xf32>
    %cst_203 = arith.constant dense<0.000000e+00> : vector<1x512xf32>
    %200 = tpu.matmul %198, %199, %cst_203 {dimension_numbers = #tpu.dot_dimension_numbers<[1], [0], [0], [1], [0, 0, 1, 1], [], []>} : vector<1x864xf32>, vector<864x512xf32>, vector<1x512xf32> -> vector<1x512xf32>
    %c0_204 = arith.constant 0 : index
    %c0_205 = arith.constant 0 : index
    %201 = vector.load %arg15[%c0_204, %c0_205] : memref<1x512xf32, #tpu.memory_space<vmem>>, vector<1x512xf32>
    %202 = arith.addf %200, %201 : vector<1x512xf32>
    %cst_206 = arith.constant 0.000000e+00 : f32
    %203 = vector.broadcast %cst_206 : f32 to vector<1x512xf32>
    %204 = arith.maximumf %202, %203 : vector<1x512xf32>
    %c0_207 = arith.constant 0 : index
    %c0_208 = arith.constant 0 : index
    %205 = vector.load %arg16[%c0_207, %c0_208] : memref<512x256xf32, #tpu.memory_space<vmem>>, vector<512x256xf32>
    %cst_209 = arith.constant dense<0.000000e+00> : vector<1x256xf32>
    %206 = tpu.matmul %204, %205, %cst_209 {dimension_numbers = #tpu.dot_dimension_numbers<[1], [0], [0], [1], [0, 0, 1, 1], [], []>} : vector<1x512xf32>, vector<512x256xf32>, vector<1x256xf32> -> vector<1x256xf32>
    %c0_210 = arith.constant 0 : index
    %c0_211 = arith.constant 0 : index
    %207 = vector.load %arg17[%c0_210, %c0_211] : memref<1x256xf32, #tpu.memory_space<vmem>>, vector<1x256xf32>
    %208 = arith.addf %206, %207 : vector<1x256xf32>
    %cst_212 = arith.constant 0.000000e+00 : f32
    %209 = vector.broadcast %cst_212 : f32 to vector<1x256xf32>
    %210 = arith.maximumf %208, %209 : vector<1x256xf32>
    %c0_213 = arith.constant 0 : index
    %c0_214 = arith.constant 0 : index
    %211 = vector.load %arg18[%c0_213, %c0_214] : memref<256x128xf32, #tpu.memory_space<vmem>>, vector<256x128xf32>
    %cst_215 = arith.constant dense<0.000000e+00> : vector<1x128xf32>
    %212 = tpu.matmul %210, %211, %cst_215 {dimension_numbers = #tpu.dot_dimension_numbers<[1], [0], [0], [1], [0, 0, 1, 1], [], []>} : vector<1x256xf32>, vector<256x128xf32>, vector<1x128xf32> -> vector<1x128xf32>
    %c0_216 = arith.constant 0 : index
    %c0_217 = arith.constant 0 : index
    %213 = vector.load %arg19[%c0_216, %c0_217] : memref<1x128xf32, #tpu.memory_space<vmem>>, vector<1x128xf32>
    %214 = arith.addf %212, %213 : vector<1x128xf32>
    %cst_218 = arith.constant 0.000000e+00 : f32
    %215 = vector.broadcast %cst_218 : f32 to vector<1x128xf32>
    %216 = arith.maximumf %214, %215 : vector<1x128xf32>
    %c0_219 = arith.constant 0 : index
    %c0_220 = arith.constant 0 : index
    %217 = vector.load %arg20[%c0_219, %c0_220] : memref<128x128xf32, #tpu.memory_space<vmem>>, vector<128x128xf32>
    %cst_221 = arith.constant dense<0.000000e+00> : vector<1x128xf32>
    %218 = tpu.matmul %216, %217, %cst_221 {dimension_numbers = #tpu.dot_dimension_numbers<[1], [0], [0], [1], [0, 0, 1, 1], [], []>} : vector<1x128xf32>, vector<128x128xf32>, vector<1x128xf32> -> vector<1x128xf32>
    %c0_222 = arith.constant 0 : index
    %c0_223 = arith.constant 0 : index
    %219 = vector.load %arg21[%c0_222, %c0_223] : memref<1x128xf32, #tpu.memory_space<vmem>>, vector<1x128xf32>
    %220 = arith.addf %218, %219 : vector<1x128xf32>
    %cst_224 = arith.constant 0.000000e+00 : f32
    %221 = vector.broadcast %cst_224 : f32 to vector<1x128xf32>
    %222 = arith.maximumf %220, %221 : vector<1x128xf32>
    %c0_225 = arith.constant 0 : index
    %c0_226 = arith.constant 0 : index
    %223 = vector.load %arg22[%c0_225, %c0_226] : memref<128x4xf32, #tpu.memory_space<vmem>>, vector<128x4xf32>
    %cst_227 = arith.constant dense<0.000000e+00> : vector<1x4xf32>
    %224 = tpu.matmul %222, %223, %cst_227 {dimension_numbers = #tpu.dot_dimension_numbers<[1], [0], [0], [1], [0, 0, 1, 1], [], []>} : vector<1x128xf32>, vector<128x4xf32>, vector<1x4xf32> -> vector<1x4xf32>
    %c0_228 = arith.constant 0 : index
    %c0_229 = arith.constant 0 : index
    %225 = vector.load %arg23[%c0_228, %c0_229] : memref<1x4xf32, #tpu.memory_space<vmem>>, vector<1x4xf32>
    %226 = arith.addf %224, %225 : vector<1x4xf32>
    %c0_230 = arith.constant 0 : index
    %c0_231 = arith.constant 0 : index
    %c0_232 = arith.constant 0 : index
    %227 = vector.load %arg24[%c0_230, %c0_231, %c0_232] : memref<1x1x4xf32, #tpu.memory_space<vmem>>, vector<1x1x4xf32>
    %228 = vector.shape_cast %227 : vector<1x1x4xf32> to vector<1x4xf32>
    %229 = vector.shape_cast %226 : vector<1x4xf32> to vector<1x1x4xf32>
    tpu.vector_store %arg24[%c0_230, %c0_231, %c0_232], %229 {strides = array<i32>} : memref<1x1x4xf32, #tpu.memory_space<vmem>>, vector<1x1x4xf32>,
    return
  }
  func.func @transform_0(%arg0: i32) -> (i32, i32, i32, i32) {
    %c0_i32 = arith.constant 0 : i32
    %c0_i32_0 = arith.constant 0 : i32
    %c0_i32_1 = arith.constant 0 : i32
    %c0_i32_2 = arith.constant 0 : i32
    return %arg0, %c0_i32, %c0_i32_0, %c0_i32_1 : i32, i32, i32, i32
  }
  func.func @transform_1(%arg0: i32) -> (i32, i32, i32) {
    %c0_i32 = arith.constant 0 : i32
    %c0_i32_0 = arith.constant 0 : i32
    %c0_i32_1 = arith.constant 0 : i32
    %c0_i32_2 = arith.constant 0 : i32
    return %c0_i32, %c0_i32_0, %c0_i32_1 : i32, i32, i32
  }
  func.func @transform_2(%arg0: i32) -> (i32, i32) {
    %c0_i32 = arith.constant 0 : i32
    %c0_i32_0 = arith.constant 0 : i32
    %c0_i32_1 = arith.constant 0 : i32
    return %c0_i32, %c0_i32_0 : i32, i32
  }
  func.func @transform_3(%arg0: i32) -> (i32, i32, i32) {
    %c0_i32 = arith.constant 0 : i32
    %c0_i32_0 = arith.constant 0 : i32
    %c0_i32_1 = arith.constant 0 : i32
    %c0_i32_2 = arith.constant 0 : i32
    return %c0_i32, %c0_i32_0, %c0_i32_1 : i32, i32, i32
  }
  func.func @transform_4(%arg0: i32) -> (i32, i32) {
    %c0_i32 = arith.constant 0 : i32
    %c0_i32_0 = arith.constant 0 : i32
    %c0_i32_1 = arith.constant 0 : i32
    return %c0_i32, %c0_i32_0 : i32, i32
  }
  func.func @transform_5(%arg0: i32) -> (i32, i32) {
    %c0_i32 = arith.constant 0 : i32
    %c0_i32_0 = arith.constant 0 : i32
    %c0_i32_1 = arith.constant 0 : i32
    return %c0_i32, %c0_i32_0 : i32, i32
  }
  func.func @transform_6(%arg0: i32) -> (i32, i32) {
    %c0_i32 = arith.constant 0 : i32
    %c0_i32_0 = arith.constant 0 : i32
    %c0_i32_1 = arith.constant 0 : i32
    return %c0_i32, %c0_i32_0 : i32, i32
  }
  func.func @transform_7(%arg0: i32) -> (i32, i32, i32) {
    %c0_i32 = arith.constant 0 : i32
    %c0_i32_0 = arith.constant 0 : i32
    %c0_i32_1 = arith.constant 0 : i32
    %c0_i32_2 = arith.constant 0 : i32
    return %c0_i32, %c0_i32_0, %c0_i32_1 : i32, i32, i32
  }
  func.func @transform_8(%arg0: i32) -> (i32, i32) {
    %c0_i32 = arith.constant 0 : i32
    %c0_i32_0 = arith.constant 0 : i32
    %c0_i32_1 = arith.constant 0 : i32
    return %c0_i32, %c0_i32_0 : i32, i32
  }
  func.func @transform_9(%arg0: i32) -> (i32, i32) {
    %c0_i32 = arith.constant 0 : i32
    %c0_i32_0 = arith.constant 0 : i32
    %c0_i32_1 = arith.constant 0 : i32
    return %c0_i32, %c0_i32_0 : i32, i32
  }
  func.func @transform_10(%arg0: i32) -> (i32, i32) {
    %c0_i32 = arith.constant 0 : i32
    %c0_i32_0 = arith.constant 0 : i32
    %c0_i32_1 = arith.constant 0 : i32
    return %c0_i32, %c0_i32_0 : i32, i32
  }
  func.func @transform_11(%arg0: i32) -> (i32, i32) {
    %c0_i32 = arith.constant 0 : i32
    %c0_i32_0 = arith.constant 0 : i32
    %c0_i32_1 = arith.constant 0 : i32
    return %c0_i32, %c0_i32_0 : i32, i32
  }
  func.func @transform_12(%arg0: i32) -> (i32, i32) {
    %c0_i32 = arith.constant 0 : i32
    %c0_i32_0 = arith.constant 0 : i32
    %c0_i32_1 = arith.constant 0 : i32
    return %c0_i32, %c0_i32_0 : i32, i32
  }
  func.func @transform_13(%arg0: i32) -> (i32, i32) {
    %c0_i32 = arith.constant 0 : i32
    %c0_i32_0 = arith.constant 0 : i32
    %c0_i32_1 = arith.constant 0 : i32
    return %c0_i32, %c0_i32_0 : i32, i32
  }
  func.func @transform_14(%arg0: i32) -> (i32, i32) {
    %c0_i32 = arith.constant 0 : i32
    %c0_i32_0 = arith.constant 0 : i32
    %c0_i32_1 = arith.constant 0 : i32
    return %c0_i32, %c0_i32_0 : i32, i32
  }
  func.func @transform_15(%arg0: i32) -> (i32, i32) {
    %c0_i32 = arith.constant 0 : i32
    %c0_i32_0 = arith.constant 0 : i32
    %c0_i32_1 = arith.constant 0 : i32
    return %c0_i32, %c0_i32_0 : i32, i32
  }
  func.func @transform_16(%arg0: i32) -> (i32, i32) {
    %c0_i32 = arith.constant 0 : i32
    %c0_i32_0 = arith.constant 0 : i32
    %c0_i32_1 = arith.constant 0 : i32
    return %c0_i32, %c0_i32_0 : i32, i32
  }
  func.func @transform_17(%arg0: i32) -> (i32, i32) {
    %c0_i32 = arith.constant 0 : i32
    %c0_i32_0 = arith.constant 0 : i32
    %c0_i32_1 = arith.constant 0 : i32
    return %c0_i32, %c0_i32_0 : i32, i32
  }
  func.func @transform_18(%arg0: i32) -> (i32, i32) {
    %c0_i32 = arith.constant 0 : i32
    %c0_i32_0 = arith.constant 0 : i32
    %c0_i32_1 = arith.constant 0 : i32
    return %c0_i32, %c0_i32_0 : i32, i32
  }
  func.func @transform_19(%arg0: i32) -> (i32, i32) {
    %c0_i32 = arith.constant 0 : i32
    %c0_i32_0 = arith.constant 0 : i32
    %c0_i32_1 = arith.constant 0 : i32
    return %c0_i32, %c0_i32_0 : i32, i32
  }
  func.func @transform_20(%arg0: i32) -> (i32, i32) {
    %c0_i32 = arith.constant 0 : i32
    %c0_i32_0 = arith.constant 0 : i32
    %c0_i32_1 = arith.constant 0 : i32
    return %c0_i32, %c0_i32_0 : i32, i32
  }
  func.func @transform_21(%arg0: i32) -> (i32, i32) {
    %c0_i32 = arith.constant 0 : i32
    %c0_i32_0 = arith.constant 0 : i32
    %c0_i32_1 = arith.constant 0 : i32
    return %c0_i32, %c0_i32_0 : i32, i32
  }
  func.func @transform_22(%arg0: i32) -> (i32, i32) {
    %c0_i32 = arith.constant 0 : i32
    %c0_i32_0 = arith.constant 0 : i32
    %c0_i32_1 = arith.constant 0 : i32
    return %c0_i32, %c0_i32_0 : i32, i32
  }
  func.func @transform_23(%arg0: i32) -> (i32, i32, i32) {
    %c0_i32 = arith.constant 0 : i32
    %c0_i32_0 = arith.constant 0 : i32
    %c0_i32_1 = arith.constant 0 : i32
    return %arg0, %c0_i32, %c0_i32_0 : i32, i32, i32
  }
}

</mosaic_0001>

<llo_original>
// kernel: dqn_forward.1
$region0: #{dqn_forward.1}
  #allocation0 [shape = 'u32[]', space=smem, size = 0x4, offset = 0x4, fixed_abs, tag = 'smem constant byte address 0x4 - core index']
  #allocation1 [shape = 'u32[144,128]{1,0:T(1,128)}', space=vmem, size = 0x12000, scoped, tag = 'internal scratch']
  %s0 = inlined_call_operand.vmem [shape: f32[2,20,3,122], index: 0, kind: input, shape index: {}]
  %s1 = inlined_call_operand.vmem [shape: f32[5,8,3], index: 1, kind: input, shape index: {}]
  %s2 = inlined_call_operand.vmem [shape: f32[8,1], index: 2, kind: input, shape index: {}]
  %s3 = inlined_call_operand.vmem [shape: f32[5,16,8], index: 3, kind: input, shape index: {}]
  %s4 = inlined_call_operand.vmem [shape: f32[16,1], index: 4, kind: input, shape index: {}]
  %s5 = inlined_call_operand.vmem [shape: f32[120,60], index: 5, kind: input, shape index: {}]
  %s6 = inlined_call_operand.vmem [shape: f32[120,60], index: 6, kind: input, shape index: {}]
  %s7 = inlined_call_operand.vmem [shape: f32[3,32,16], index: 7, kind: input, shape index: {}]
  %s8 = inlined_call_operand.vmem [shape: f32[32,1], index: 8, kind: input, shape index: {}]
  %s9 = inlined_call_operand.vmem [shape: f32[54,27], index: 9, kind: input, shape index: {}]
  %s10 = inlined_call_operand.vmem [shape: f32[54,27], index: 10, kind: input, shape index: {}]
  %s11 = inlined_call_operand.vmem [shape: f32[27,864], index: 11, kind: input, shape index: {}]
  %s12 = inlined_call_operand.vmem [shape: f32[32,864], index: 12, kind: input, shape index: {}]
  %s13 = inlined_call_operand.vmem [shape: f32[864,512], index: 13, kind: input, shape index: {}]
  %s14 = inlined_call_operand.vmem [shape: f32[1,512], index: 14, kind: input, shape index: {}]
  %s15 = inlined_call_operand.vmem [shape: f32[512,256], index: 15, kind: input, shape index: {}]
  %s16 = inlined_call_operand.vmem [shape: f32[1,256], index: 16, kind: input, shape index: {}]
  %s17 = inlined_call_operand.vmem [shape: f32[256,128], index: 17, kind: input, shape index: {}]
  %s18 = inlined_call_operand.vmem [shape: f32[1,128], index: 18, kind: input, shape index: {}]
  %s19 = inlined_call_operand.vmem [shape: f32[128,128], index: 19, kind: input, shape index: {}]
  %s20 = inlined_call_operand.vmem [shape: f32[1,128], index: 20, kind: input, shape index: {}]
  %s21 = inlined_call_operand.vmem [shape: f32[128,4], index: 21, kind: input, shape index: {}]
  %s22 = inlined_call_operand.vmem [shape: f32[1,4], index: 22, kind: input, shape index: {}]
  %s23 = inlined_call_operand.hbm [shape: f32[2,1,4], index: 23, kind: output, shape index: {}]
  %s24 = sld [smem:[#allocation0]]
  $region125: #{dqn_forward.1} parent=0
    _
  %s26 = ssub.s32 1, %s24
  %s27 = scalar_select 0, %s26, %s24
  $region1: #{dqn_forward.1} parent=0
    #allocation2 [shape = 'u8[1024]{0}', space=vmem, size = 0x400, scoped, tag = 'output window, operand 0']
    #allocation3 [shape = 's32[2]{0}', space=sflag, size = 0x8, scoped, tag = 'scoped memory for dqn_forward.1']
    %28 = vsyncpa [#allocation3], 0
    %s29 = scalar_lea.sflag [#allocation3], 1
    %30 = vsyncpa %s29, 0
    loop: start=0, step=1, limit=4
    $region2: #{dqn_forward.1} parent=1 // loop_pre_header
      _
    $region3: #{dqn_forward.1} parent=1 // loop_header
      %s32 = sphi 0, %s36
      %p33 = scmp.ge.s32.totalorder %s32, 4
      %s42 = sphi 0, %s44
      %s45 = sphi 0, %s42
      %s46 = sphi 0, %s45
      %s62 = sphi 0, %s46
      %s66 = sphi 0, %s66
      %s68 = sphi 0, %s66
      %s69 = sphi 0, %s68
      %s83 = sphi 0, %s69
      %s87 = sphi 0, %s87
      %s89 = sphi 0, %s87
      %s90 = sphi 0, %s89
      %s104 = sphi 0, %s90
      %s108 = sphi 0, %s108
      %s110 = sphi 0, %s108
      %s111 = sphi 0, %s110
      %s125 = sphi 0, %s111
      %s129 = sphi 0, %s129
      %s131 = sphi 0, %s129
      %s132 = sphi 0, %s131
      %s146 = sphi 0, %s132
      %s150 = sphi 0, %s150
      %s152 = sphi 0, %s150
      %s153 = sphi 0, %s152
      %s167 = sphi 0, %s153
      %s171 = sphi 0, %s171
      %s173 = sphi 0, %s171
      %s174 = sphi 0, %s173
      %s188 = sphi 0, %s174
      %s192 = sphi 0, %s192
      %s194 = sphi 0, %s192
      %s195 = sphi 0, %s194
      %s209 = sphi 0, %s195
      %s213 = sphi 0, %s213
      %s215 = sphi 0, %s213
      %s216 = sphi 0, %s215
      %s230 = sphi 0, %s216
      %s234 = sphi 0, %s234
      %s236 = sphi 0, %s234
      %s237 = sphi 0, %s236
      %s251 = sphi 0, %s237
      %s255 = sphi 0, %s255
      %s257 = sphi 0, %s255
      %s258 = sphi 0, %s257
      %s272 = sphi 0, %s258
      %s276 = sphi 0, %s276
      %s278 = sphi 0, %s276
      %s279 = sphi 0, %s278
      %s293 = sphi 0, %s279
      %s297 = sphi 0, %s297
      %s299 = sphi 0, %s297
      %s300 = sphi 0, %s299
      %s314 = sphi 0, %s300
      %s318 = sphi 0, %s318
      %s320 = sphi 0, %s318
      %s321 = sphi 0, %s320
      %s335 = sphi 0, %s321
      %s339 = sphi 0, %s339
      %s341 = sphi 0, %s339
      %s342 = sphi 0, %s341
      %s356 = sphi 0, %s342
      %s360 = sphi 0, %s360
      %s362 = sphi 0, %s360
      %s363 = sphi 0, %s362
      %s377 = sphi 0, %s363
      %s381 = sphi 0, %s381
      %s383 = sphi 0, %s381
      %s384 = sphi 0, %s383
      %s398 = sphi 0, %s384
      %s402 = sphi 0, %s402
      %s404 = sphi 0, %s402
      %s405 = sphi 0, %s404
      %s419 = sphi 0, %s405
      %s423 = sphi 0, %s423
      %s425 = sphi 0, %s423
      %s426 = sphi 0, %s425
      %s440 = sphi 0, %s426
      %s444 = sphi 0, %s444
      %s446 = sphi 0, %s444
      %s447 = sphi 0, %s446
      %s461 = sphi 0, %s447
      %s465 = sphi 0, %s465
      %s467 = sphi 0, %s465
      %s468 = sphi 0, %s467
      %s482 = sphi 0, %s468
      %s486 = sphi 0, %s486
      %s488 = sphi 0, %s486
      %s489 = sphi 0, %s488
      %s503 = sphi 0, %s489
      %s507 = sphi 0, %s507
      %s509 = sphi 0, %s507
      %s510 = sphi 0, %s509
      %s524 = sphi 0, %s510
      %s530 = sphi 0, %s532
      %s533 = sphi 0, %s530
      %s534 = sphi 0, %s533
      %s550 = sphi 0, %s534
    $region4: #{dqn_forward.1} parent=1 // loop_header_branch
      %35 = sbr.rel (%p33) target = $region8
    $region5: #{dqn_forward.1} parent=1 // loop_body
      %s37 = ssub.s32 %s32, 1
      %s38 = ssub.s32 %s32, 2
      %s39 = sadd.s32 %s32, 1
      %s40 = ssub.s32 %s32, %s39
      %p41 = scmp.eq.s32.totalorder %s40, 0
      %s43 = sadd.s32 %s42, 1
      %s44 = scalar_select %p41, %s42, %s43
      %p47 = pneg %p41
      %p48 = scmp.eq.s32.totalorder %s32, 1
      %p49 = por %p47, %p48
      %p50 = scmp.ne.s32.totalorder %s42, %s45
      %p51 = scmp.eq.s32.totalorder %s32, 0
      %p52 = por %p50, %p51
      %p53 = scmp.ne.s32.totalorder %s42, %s45
      %p54 = scmp.eq.s32.totalorder %s37, 1
      %p55 = por %p53, %p54
      %p56 = scmp.ne.s32.totalorder %s45, %s46
      %p57 = scmp.eq.s32.totalorder %s37, 0
      %p58 = por %p56, %p57
      %p59 = scmp.ne.s32.totalorder %s45, %s46
      %p60 = scmp.eq.s32.totalorder %s38, 1
      %p61 = por %p59, %p60
      %p63 = scmp.ne.s32.totalorder %s46, %s62
      %p64 = scmp.eq.s32.totalorder %s38, 0
      %p65 = por %p63, %p64
      %s67 = sadd.s32 %s66, 1
      %p70 = scmp.eq.s32.totalorder %s32, 1
      %p71 = scmp.ne.s32.totalorder %s66, %s68
      %p72 = scmp.eq.s32.totalorder %s32, 0
      %p73 = por %p71, %p72
      %p74 = scmp.ne.s32.totalorder %s66, %s68
      %p75 = scmp.eq.s32.totalorder %s37, 1
      %p76 = por %p74, %p75
      %p77 = scmp.ne.s32.totalorder %s68, %s69
      %p78 = scmp.eq.s32.totalorder %s37, 0
      %p79 = por %p77, %p78
      %p80 = scmp.ne.s32.totalorder %s68, %s69
      %p81 = scmp.eq.s32.totalorder %s38, 1
      %p82 = por %p80, %p81
      %p84 = scmp.ne.s32.totalorder %s69, %s83
      %p85 = scmp.eq.s32.totalorder %s38, 0
      %p86 = por %p84, %p85
      %s88 = sadd.s32 %s87, 1
      %p91 = scmp.eq.s32.totalorder %s32, 1
      %p92 = scmp.ne.s32.totalorder %s87, %s89
      %p93 = scmp.eq.s32.totalorder %s32, 0
      %p94 = por %p92, %p93
      %p95 = scmp.ne.s32.totalorder %s87, %s89
      %p96 = scmp.eq.s32.totalorder %s37, 1
      %p97 = por %p95, %p96
      %p98 = scmp.ne.s32.totalorder %s89, %s90
      %p99 = scmp.eq.s32.totalorder %s37, 0
      %p100 = por %p98, %p99
      %p101 = scmp.ne.s32.totalorder %s89, %s90
      %p102 = scmp.eq.s32.totalorder %s38, 1
      %p103 = por %p101, %p102
      %p105 = scmp.ne.s32.totalorder %s90, %s104
      %p106 = scmp.eq.s32.totalorder %s38, 0
      %p107 = por %p105, %p106
      %s109 = sadd.s32 %s108, 1
      %p112 = scmp.eq.s32.totalorder %s32, 1
      %p113 = scmp.ne.s32.totalorder %s108, %s110
      %p114 = scmp.eq.s32.totalorder %s32, 0
      %p115 = por %p113, %p114
      %p116 = scmp.ne.s32.totalorder %s108, %s110
      %p117 = scmp.eq.s32.totalorder %s37, 1
      %p118 = por %p116, %p117
      %p119 = scmp.ne.s32.totalorder %s110, %s111
      %p120 = scmp.eq.s32.totalorder %s37, 0
      %p121 = por %p119, %p120
      %p122 = scmp.ne.s32.totalorder %s110, %s111
      %p123 = scmp.eq.s32.totalorder %s38, 1
      %p124 = por %p122, %p123
      %p126 = scmp.ne.s32.totalorder %s111, %s125
      %p127 = scmp.eq.s32.totalorder %s38, 0
      %p128 = por %p126, %p127
      %s130 = sadd.s32 %s129, 1
      %p133 = scmp.eq.s32.totalorder %s32, 1
      %p134 = scmp.ne.s32.totalorder %s129, %s131
      %p135 = scmp.eq.s32.totalorder %s32, 0
      %p136 = por %p134, %p135
      %p137 = scmp.ne.s32.totalorder %s129, %s131
      %p138 = scmp.eq.s32.totalorder %s37, 1
      %p139 = por %p137, %p138
      %p140 = scmp.ne.s32.totalorder %s131, %s132
      %p141 = scmp.eq.s32.totalorder %s37, 0
      %p142 = por %p140, %p141
      %p143 = scmp.ne.s32.totalorder %s131, %s132
      %p144 = scmp.eq.s32.totalorder %s38, 1
      %p145 = por %p143, %p144
      %p147 = scmp.ne.s32.totalorder %s132, %s146
      %p148 = scmp.eq.s32.totalorder %s38, 0
      %p149 = por %p147, %p148
      %s151 = sadd.s32 %s150, 1
      %p154 = scmp.eq.s32.totalorder %s32, 1
      %p155 = scmp.ne.s32.totalorder %s150, %s152
      %p156 = scmp.eq.s32.totalorder %s32, 0
      %p157 = por %p155, %p156
      %p158 = scmp.ne.s32.totalorder %s150, %s152
      %p159 = scmp.eq.s32.totalorder %s37, 1
      %p160 = por %p158, %p159
      %p161 = scmp.ne.s32.totalorder %s152, %s153
      %p162 = scmp.eq.s32.totalorder %s37, 0
      %p163 = por %p161, %p162
      %p164 = scmp.ne.s32.totalorder %s152, %s153
      %p165 = scmp.eq.s32.totalorder %s38, 1
      %p166 = por %p164, %p165
      %p168 = scmp.ne.s32.totalorder %s153, %s167
      %p169 = scmp.eq.s32.totalorder %s38, 0
      %p170 = por %p168, %p169
      %s172 = sadd.s32 %s171, 1
      %p175 = scmp.eq.s32.totalorder %s32, 1
      %p176 = scmp.ne.s32.totalorder %s171, %s173
      %p177 = scmp.eq.s32.totalorder %s32, 0
      %p178 = por %p176, %p177
      %p179 = scmp.ne.s32.totalorder %s171, %s173
      %p180 = scmp.eq.s32.totalorder %s37, 1
      %p181 = por %p179, %p180
      %p182 = scmp.ne.s32.totalorder %s173, %s174
      %p183 = scmp.eq.s32.totalorder %s37, 0
      %p184 = por %p182, %p183
      %p185 = scmp.ne.s32.totalorder %s173, %s174
      %p186 = scmp.eq.s32.totalorder %s38, 1
      %p187 = por %p185, %p186
      %p189 = scmp.ne.s32.totalorder %s174, %s188
      %p190 = scmp.eq.s32.totalorder %s38, 0
      %p191 = por %p189, %p190
      %s193 = sadd.s32 %s192, 1
      %p196 = scmp.eq.s32.totalorder %s32, 1
      %p197 = scmp.ne.s32.totalorder %s192, %s194
      %p198 = scmp.eq.s32.totalorder %s32, 0
      %p199 = por %p197, %p198
      %p200 = scmp.ne.s32.totalorder %s192, %s194
      %p201 = scmp.eq.s32.totalorder %s37, 1
      %p202 = por %p200, %p201
      %p203 = scmp.ne.s32.totalorder %s194, %s195
      %p204 = scmp.eq.s32.totalorder %s37, 0
      %p205 = por %p203, %p204
      %p206 = scmp.ne.s32.totalorder %s194, %s195
      %p207 = scmp.eq.s32.totalorder %s38, 1
      %p208 = por %p206, %p207
      %p210 = scmp.ne.s32.totalorder %s195, %s209
      %p211 = scmp.eq.s32.totalorder %s38, 0
      %p212 = por %p210, %p211
      %s214 = sadd.s32 %s213, 1
      %p217 = scmp.eq.s32.totalorder %s32, 1
      %p218 = scmp.ne.s32.totalorder %s213, %s215
      %p219 = scmp.eq.s32.totalorder %s32, 0
      %p220 = por %p218, %p219
      %p221 = scmp.ne.s32.totalorder %s213, %s215
      %p222 = scmp.eq.s32.totalorder %s37, 1
      %p223 = por %p221, %p222
      %p224 = scmp.ne.s32.totalorder %s215, %s216
      %p225 = scmp.eq.s32.totalorder %s37, 0
      %p226 = por %p224, %p225
      %p227 = scmp.ne.s32.totalorder %s215, %s216
      %p228 = scmp.eq.s32.totalorder %s38, 1
      %p229 = por %p227, %p228
      %p231 = scmp.ne.s32.totalorder %s216, %s230
      %p232 = scmp.eq.s32.totalorder %s38, 0
      %p233 = por %p231, %p232
      %s235 = sadd.s32 %s234, 1
      %p238 = scmp.eq.s32.totalorder %s32, 1
      %p239 = scmp.ne.s32.totalorder %s234, %s236
      %p240 = scmp.eq.s32.totalorder %s32, 0
      %p241 = por %p239, %p240
      %p242 = scmp.ne.s32.totalorder %s234, %s236
      %p243 = scmp.eq.s32.totalorder %s37, 1
      %p244 = por %p242, %p243
      %p245 = scmp.ne.s32.totalorder %s236, %s237
      %p246 = scmp.eq.s32.totalorder %s37, 0
      %p247 = por %p245, %p246
      %p248 = scmp.ne.s32.totalorder %s236, %s237
      %p249 = scmp.eq.s32.totalorder %s38, 1
      %p250 = por %p248, %p249
      %p252 = scmp.ne.s32.totalorder %s237, %s251
      %p253 = scmp.eq.s32.totalorder %s38, 0
      %p254 = por %p252, %p253
      %s256 = sadd.s32 %s255, 1
      %p259 = scmp.eq.s32.totalorder %s32, 1
      %p260 = scmp.ne.s32.totalorder %s255, %s257
      %p261 = scmp.eq.s32.totalorder %s32, 0
      %p262 = por %p260, %p261
      %p263 = scmp.ne.s32.totalorder %s255, %s257
      %p264 = scmp.eq.s32.totalorder %s37, 1
      %p265 = por %p263, %p264
      %p266 = scmp.ne.s32.totalorder %s257, %s258
      %p267 = scmp.eq.s32.totalorder %s37, 0
      %p268 = por %p266, %p267
      %p269 = scmp.ne.s32.totalorder %s257, %s258
      %p270 = scmp.eq.s32.totalorder %s38, 1
      %p271 = por %p269, %p270
      %p273 = scmp.ne.s32.totalorder %s258, %s272
      %p274 = scmp.eq.s32.totalorder %s38, 0
      %p275 = por %p273, %p274
      %s277 = sadd.s32 %s276, 1
      %p280 = scmp.eq.s32.totalorder %s32, 1
      %p281 = scmp.ne.s32.totalorder %s276, %s278
      %p282 = scmp.eq.s32.totalorder %s32, 0
      %p283 = por %p281, %p282
      %p284 = scmp.ne.s32.totalorder %s276, %s278
      %p285 = scmp.eq.s32.totalorder %s37, 1
      %p286 = por %p284, %p285
      %p287 = scmp.ne.s32.totalorder %s278, %s279
      %p288 = scmp.eq.s32.totalorder %s37, 0
      %p289 = por %p287, %p288
      %p290 = scmp.ne.s32.totalorder %s278, %s279
      %p291 = scmp.eq.s32.totalorder %s38, 1
      %p292 = por %p290, %p291
      %p294 = scmp.ne.s32.totalorder %s279, %s293
      %p295 = scmp.eq.s32.totalorder %s38, 0
      %p296 = por %p294, %p295
      %s298 = sadd.s32 %s297, 1
      %p301 = scmp.eq.s32.totalorder %s32, 1
      %p302 = scmp.ne.s32.totalorder %s297, %s299
      %p303 = scmp.eq.s32.totalorder %s32, 0
      %p304 = por %p302, %p303
      %p305 = scmp.ne.s32.totalorder %s297, %s299
      %p306 = scmp.eq.s32.totalorder %s37, 1
      %p307 = por %p305, %p306
      %p308 = scmp.ne.s32.totalorder %s299, %s300
      %p309 = scmp.eq.s32.totalorder %s37, 0
      %p310 = por %p308, %p309
      %p311 = scmp.ne.s32.totalorder %s299, %s300
      %p312 = scmp.eq.s32.totalorder %s38, 1
      %p313 = por %p311, %p312
      %p315 = scmp.ne.s32.totalorder %s300, %s314
      %p316 = scmp.eq.s32.totalorder %s38, 0
      %p317 = por %p315, %p316
      %s319 = sadd.s32 %s318, 1
      %p322 = scmp.eq.s32.totalorder %s32, 1
      %p323 = scmp.ne.s32.totalorder %s318, %s320
      %p324 = scmp.eq.s32.totalorder %s32, 0
      %p325 = por %p323, %p324
      %p326 = scmp.ne.s32.totalorder %s318, %s320
      %p327 = scmp.eq.s32.totalorder %s37, 1
      %p328 = por %p326, %p327
      %p329 = scmp.ne.s32.totalorder %s320, %s321
      %p330 = scmp.eq.s32.totalorder %s37, 0
      %p331 = por %p329, %p330
      %p332 = scmp.ne.s32.totalorder %s320, %s321
      %p333 = scmp.eq.s32.totalorder %s38, 1
      %p334 = por %p332, %p333
      %p336 = scmp.ne.s32.totalorder %s321, %s335
      %p337 = scmp.eq.s32.totalorder %s38, 0
      %p338 = por %p336, %p337
      %s340 = sadd.s32 %s339, 1
      %p343 = scmp.eq.s32.totalorder %s32, 1
      %p344 = scmp.ne.s32.totalorder %s339, %s341
      %p345 = scmp.eq.s32.totalorder %s32, 0
      %p346 = por %p344, %p345
      %p347 = scmp.ne.s32.totalorder %s339, %s341
      %p348 = scmp.eq.s32.totalorder %s37, 1
      %p349 = por %p347, %p348
      %p350 = scmp.ne.s32.totalorder %s341, %s342
      %p351 = scmp.eq.s32.totalorder %s37, 0
      %p352 = por %p350, %p351
      %p353 = scmp.ne.s32.totalorder %s341, %s342
      %p354 = scmp.eq.s32.totalorder %s38, 1
      %p355 = por %p353, %p354
      %p357 = scmp.ne.s32.totalorder %s342, %s356
      %p358 = scmp.eq.s32.totalorder %s38, 0
      %p359 = por %p357, %p358
      %s361 = sadd.s32 %s360, 1
      %p364 = scmp.eq.s32.totalorder %s32, 1
      %p365 = scmp.ne.s32.totalorder %s360, %s362
      %p366 = scmp.eq.s32.totalorder %s32, 0
      %p367 = por %p365, %p366
      %p368 = scmp.ne.s32.totalorder %s360, %s362
      %p369 = scmp.eq.s32.totalorder %s37, 1
      %p370 = por %p368, %p369
      %p371 = scmp.ne.s32.totalorder %s362, %s363
      %p372 = scmp.eq.s32.totalorder %s37, 0
      %p373 = por %p371, %p372
      %p374 = scmp.ne.s32.totalorder %s362, %s363
      %p375 = scmp.eq.s32.totalorder %s38, 1
      %p376 = por %p374, %p375
      %p378 = scmp.ne.s32.totalorder %s363, %s377
      %p379 = scmp.eq.s32.totalorder %s38, 0
      %p380 = por %p378, %p379
      %s382 = sadd.s32 %s381, 1
      %p385 = scmp.eq.s32.totalorder %s32, 1
      %p386 = scmp.ne.s32.totalorder %s381, %s383
      %p387 = scmp.eq.s32.totalorder %s32, 0
      %p388 = por %p386, %p387
      %p389 = scmp.ne.s32.totalorder %s381, %s383
      %p390 = scmp.eq.s32.totalorder %s37, 1
      %p391 = por %p389, %p390
      %p392 = scmp.ne.s32.totalorder %s383, %s384
      %p393 = scmp.eq.s32.totalorder %s37, 0
      %p394 = por %p392, %p393
      %p395 = scmp.ne.s32.totalorder %s383, %s384
      %p396 = scmp.eq.s32.totalorder %s38, 1
      %p397 = por %p395, %p396
      %p399 = scmp.ne.s32.totalorder %s384, %s398
      %p400 = scmp.eq.s32.totalorder %s38, 0
      %p401 = por %p399, %p400
      %s403 = sadd.s32 %s402, 1
      %p406 = scmp.eq.s32.totalorder %s32, 1
      %p407 = scmp.ne.s32.totalorder %s402, %s404
      %p408 = scmp.eq.s32.totalorder %s32, 0
      %p409 = por %p407, %p408
      %p410 = scmp.ne.s32.totalorder %s402, %s404
      %p411 = scmp.eq.s32.totalorder %s37, 1
      %p412 = por %p410, %p411
      %p413 = scmp.ne.s32.totalorder %s404, %s405
      %p414 = scmp.eq.s32.totalorder %s37, 0
      %p415 = por %p413, %p414
      %p416 = scmp.ne.s32.totalorder %s404, %s405
      %p417 = scmp.eq.s32.totalorder %s38, 1
      %p418 = por %p416, %p417
      %p420 = scmp.ne.s32.totalorder %s405, %s419
      %p421 = scmp.eq.s32.totalorder %s38, 0
      %p422 = por %p420, %p421
      %s424 = sadd.s32 %s423, 1
      %p427 = scmp.eq.s32.totalorder %s32, 1
      %p428 = scmp.ne.s32.totalorder %s423, %s425
      %p429 = scmp.eq.s32.totalorder %s32, 0
      %p430 = por %p428, %p429
      %p431 = scmp.ne.s32.totalorder %s423, %s425
      %p432 = scmp.eq.s32.totalorder %s37, 1
      %p433 = por %p431, %p432
      %p434 = scmp.ne.s32.totalorder %s425, %s426
      %p435 = scmp.eq.s32.totalorder %s37, 0
      %p436 = por %p434, %p435
      %p437 = scmp.ne.s32.totalorder %s425, %s426
      %p438 = scmp.eq.s32.totalorder %s38, 1
      %p439 = por %p437, %p438
      %p441 = scmp.ne.s32.totalorder %s426, %s440
      %p442 = scmp.eq.s32.totalorder %s38, 0
      %p443 = por %p441, %p442
      %s445 = sadd.s32 %s444, 1
      %p448 = scmp.eq.s32.totalorder %s32, 1
      %p449 = scmp.ne.s32.totalorder %s444, %s446
      %p450 = scmp.eq.s32.totalorder %s32, 0
      %p451 = por %p449, %p450
      %p452 = scmp.ne.s32.totalorder %s444, %s446
      %p453 = scmp.eq.s32.totalorder %s37, 1
      %p454 = por %p452, %p453
      %p455 = scmp.ne.s32.totalorder %s446, %s447
      %p456 = scmp.eq.s32.totalorder %s37, 0
      %p457 = por %p455, %p456
      %p458 = scmp.ne.s32.totalorder %s446, %s447
      %p459 = scmp.eq.s32.totalorder %s38, 1
      %p460 = por %p458, %p459
      %p462 = scmp.ne.s32.totalorder %s447, %s461
      %p463 = scmp.eq.s32.totalorder %s38, 0
      %p464 = por %p462, %p463
      %s466 = sadd.s32 %s465, 1
      %p469 = scmp.eq.s32.totalorder %s32, 1
      %p470 = scmp.ne.s32.totalorder %s465, %s467
      %p471 = scmp.eq.s32.totalorder %s32, 0
      %p472 = por %p470, %p471
      %p473 = scmp.ne.s32.totalorder %s465, %s467
      %p474 = scmp.eq.s32.totalorder %s37, 1
      %p475 = por %p473, %p474
      %p476 = scmp.ne.s32.totalorder %s467, %s468
      %p477 = scmp.eq.s32.totalorder %s37, 0
      %p478 = por %p476, %p477
      %p479 = scmp.ne.s32.totalorder %s467, %s468
      %p480 = scmp.eq.s32.totalorder %s38, 1
      %p481 = por %p479, %p480
      %p483 = scmp.ne.s32.totalorder %s468, %s482
      %p484 = scmp.eq.s32.totalorder %s38, 0
      %p485 = por %p483, %p484
      %s487 = sadd.s32 %s486, 1
      %p490 = scmp.eq.s32.totalorder %s32, 1
      %p491 = scmp.ne.s32.totalorder %s486, %s488
      %p492 = scmp.eq.s32.totalorder %s32, 0
      %p493 = por %p491, %p492
      %p494 = scmp.ne.s32.totalorder %s486, %s488
      %p495 = scmp.eq.s32.totalorder %s37, 1
      %p496 = por %p494, %p495
      %p497 = scmp.ne.s32.totalorder %s488, %s489
      %p498 = scmp.eq.s32.totalorder %s37, 0
      %p499 = por %p497, %p498
      %p500 = scmp.ne.s32.totalorder %s488, %s489
      %p501 = scmp.eq.s32.totalorder %s38, 1
      %p502 = por %p500, %p501
      %p504 = scmp.ne.s32.totalorder %s489, %s503
      %p505 = scmp.eq.s32.totalorder %s38, 0
      %p506 = por %p504, %p505
      %s508 = sadd.s32 %s507, 1
      %p511 = scmp.eq.s32.totalorder %s32, 1
      %p512 = scmp.ne.s32.totalorder %s507, %s509
      %p513 = scmp.eq.s32.totalorder %s32, 0
      %p514 = por %p512, %p513
      %p515 = scmp.ne.s32.totalorder %s507, %s509
      %p516 = scmp.eq.s32.totalorder %s37, 1
      %p517 = por %p515, %p516
      %p518 = scmp.ne.s32.totalorder %s509, %s510
      %p519 = scmp.eq.s32.totalorder %s37, 0
      %p520 = por %p518, %p519
      %p521 = scmp.ne.s32.totalorder %s509, %s510
      %p522 = scmp.eq.s32.totalorder %s38, 1
      %p523 = por %p521, %p522
      %p525 = scmp.ne.s32.totalorder %s510, %s524
      %p526 = scmp.eq.s32.totalorder %s38, 0
      %p527 = por %p525, %p526
      %s528 = ssub.s32 %s32, %s39
      %p529 = scmp.eq.s32.totalorder %s528, 0
      %s531 = sadd.s32 %s530, 1
      %s532 = scalar_select %p529, %s530, %s531
      %p535 = pneg %p529
      %p536 = scmp.eq.s32.totalorder %s32, 1
      %p537 = por %p535, %p536
      %p538 = scmp.ne.s32.totalorder %s530, %s533
      %p539 = scmp.eq.s32.totalorder %s32, 0
      %p540 = por %p538, %p539
      %p541 = scmp.ne.s32.totalorder %s530, %s533
      %p542 = scmp.eq.s32.totalorder %s37, 1
      %p543 = por %p541, %p542
      %p544 = scmp.ne.s32.totalorder %s533, %s534
      %p545 = scmp.eq.s32.totalorder %s37, 0
      %p546 = por %p544, %p545
      %p547 = scmp.ne.s32.totalorder %s533, %s534
      %p548 = scmp.eq.s32.totalorder %s38, 1
      %p549 = por %p547, %p548
      %p551 = scmp.ne.s32.totalorder %s534, %s550
      %p552 = scmp.eq.s32.totalorder %s38, 0
      %p553 = por %p551, %p552
      %p554 = scmp.le.s32.totalorder 1, %s32
      %p555 = scmp.lt.s32.totalorder %s32, 3
      %p556 = pnand %p554, %p555
      %p557 = pneg %p556
      // Predicated region
      $region9: #{dqn_forward.1} parent=5 // pred_check
        _
      $region10: #{dqn_forward.1} parent=5 // pred_check_branch
        %559 = sbr.rel (%p556) target = $region12
      $region11: #{dqn_forward.1} parent=5 // pred_region
        %s560 = ssub.s32 %s32, 1
        // Predicated region
        $region13: #{dqn_forward.1} parent=11 // pred_check
          %p561 = pneg %p79
        $region14: #{dqn_forward.1} parent=11 // pred_check_branch
          %563 = sbr.rel (%p561) target = $region16
        $region15: #{dqn_forward.1} parent=11 // pred_region
          _
        $region16: #{dqn_forward.1} parent=11 // pred_fallthru
          _
        // Predicated region
        $region17: #{dqn_forward.1} parent=11 // pred_check
          %p564 = pneg %p100
        $region18: #{dqn_forward.1} parent=11 // pred_check_branch
          %566 = sbr.rel (%p564) target = $region20
        $region19: #{dqn_forward.1} parent=11 // pred_region
          _
        $region20: #{dqn_forward.1} parent=11 // pred_fallthru
          _
        // Predicated region
        $region21: #{dqn_forward.1} parent=11 // pred_check
          %p567 = pneg %p121
        $region22: #{dqn_forward.1} parent=11 // pred_check_branch
          %569 = sbr.rel (%p567) target = $region24
        $region23: #{dqn_forward.1} parent=11 // pred_region
          _
        $region24: #{dqn_forward.1} parent=11 // pred_fallthru
          _
        // Predicated region
        $region25: #{dqn_forward.1} parent=11 // pred_check
          %p570 = pneg %p142
        $region26: #{dqn_forward.1} parent=11 // pred_check_branch
          %572 = sbr.rel (%p570) target = $region28
        $region27: #{dqn_forward.1} parent=11 // pred_region
          _
        $region28: #{dqn_forward.1} parent=11 // pred_fallthru
          _
        // Predicated region
        $region29: #{dqn_forward.1} parent=11 // pred_check
          %p573 = pneg %p163
        $region30: #{dqn_forward.1} parent=11 // pred_check_branch
          %575 = sbr.rel (%p573) target = $region32
        $region31: #{dqn_forward.1} parent=11 // pred_region
          _
        $region32: #{dqn_forward.1} parent=11 // pred_fallthru
          _
        // Predicated region
        $region33: #{dqn_forward.1} parent=11 // pred_check
          %p576 = pneg %p184
        $region34: #{dqn_forward.1} parent=11 // pred_check_branch
          %578 = sbr.rel (%p576) target = $region36
        $region35: #{dqn_forward.1} parent=11 // pred_region
          _
        $region36: #{dqn_forward.1} parent=11 // pred_fallthru
          _
        // Predicated region
        $region37: #{dqn_forward.1} parent=11 // pred_check
          %p579 = pneg %p205
        $region38: #{dqn_forward.1} parent=11 // pred_check_branch
          %581 = sbr.rel (%p579) target = $region40
        $region39: #{dqn_forward.1} parent=11 // pred_region
          _
        $region40: #{dqn_forward.1} parent=11 // pred_fallthru
          _
        // Predicated region
        $region41: #{dqn_forward.1} parent=11 // pred_check
          %p582 = pneg %p226
        $region42: #{dqn_forward.1} parent=11 // pred_check_branch
          %584 = sbr.rel (%p582) target = $region44
        $region43: #{dqn_forward.1} parent=11 // pred_region
          _
        $region44: #{dqn_forward.1} parent=11 // pred_fallthru
          _
        // Predicated region
        $region45: #{dqn_forward.1} parent=11 // pred_check
          %p585 = pneg %p247
        $region46: #{dqn_forward.1} parent=11 // pred_check_branch
          %587 = sbr.rel (%p585) target = $region48
        $region47: #{dqn_forward.1} parent=11 // pred_region
          _
        $region48: #{dqn_forward.1} parent=11 // pred_fallthru
          _
        // Predicated region
        $region49: #{dqn_forward.1} parent=11 // pred_check
          %p588 = pneg %p268
        $region50: #{dqn_forward.1} parent=11 // pred_check_branch
          %590 = sbr.rel (%p588) target = $region52
        $region51: #{dqn_forward.1} parent=11 // pred_region
          _
        $region52: #{dqn_forward.1} parent=11 // pred_fallthru
          _
        // Predicated region
        $region53: #{dqn_forward.1} parent=11 // pred_check
          %p591 = pneg %p289
        $region54: #{dqn_forward.1} parent=11 // pred_check_branch
          %593 = sbr.rel (%p591) target = $region56
        $region55: #{dqn_forward.1} parent=11 // pred_region
          _
        $region56: #{dqn_forward.1} parent=11 // pred_fallthru
          _
        // Predicated region
        $region57: #{dqn_forward.1} parent=11 // pred_check
          %p594 = pneg %p310
        $region58: #{dqn_forward.1} parent=11 // pred_check_branch
          %596 = sbr.rel (%p594) target = $region60
        $region59: #{dqn_forward.1} parent=11 // pred_region
          _
        $region60: #{dqn_forward.1} parent=11 // pred_fallthru
          _
        // Predicated region
        $region61: #{dqn_forward.1} parent=11 // pred_check
          %p597 = pneg %p331
        $region62: #{dqn_forward.1} parent=11 // pred_check_branch
          %599 = sbr.rel (%p597) target = $region64
        $region63: #{dqn_forward.1} parent=11 // pred_region
          _
        $region64: #{dqn_forward.1} parent=11 // pred_fallthru
          _
        // Predicated region
        $region65: #{dqn_forward.1} parent=11 // pred_check
          %p600 = pneg %p352
        $region66: #{dqn_forward.1} parent=11 // pred_check_branch
          %602 = sbr.rel (%p600) target = $region68
        $region67: #{dqn_forward.1} parent=11 // pred_region
          _
        $region68: #{dqn_forward.1} parent=11 // pred_fallthru
          _
        // Predicated region
        $region69: #{dqn_forward.1} parent=11 // pred_check
          %p603 = pneg %p373
        $region70: #{dqn_forward.1} parent=11 // pred_check_branch
          %605 = sbr.rel (%p603) target = $region72
        $region71: #{dqn_forward.1} parent=11 // pred_region
          _
        $region72: #{dqn_forward.1} parent=11 // pred_fallthru
          _
        // Predicated region
        $region73: #{dqn_forward.1} parent=11 // pred_check
          %p606 = pneg %p394
        $region74: #{dqn_forward.1} parent=11 // pred_check_branch
          %608 = sbr.rel (%p606) target = $region76
        $region75: #{dqn_forward.1} parent=11 // pred_region
          _
        $region76: #{dqn_forward.1} parent=11 // pred_fallthru
          _
        // Predicated region
        $region77: #{dqn_forward.1} parent=11 // pred_check
          %p609 = pneg %p415
        $region78: #{dqn_forward.1} parent=11 // pred_check_branch
          %611 = sbr.rel (%p609) target = $region80
        $region79: #{dqn_forward.1} parent=11 // pred_region
          _
        $region80: #{dqn_forward.1} parent=11 // pred_fallthru
          _
        // Predicated region
        $region81: #{dqn_forward.1} parent=11 // pred_check
          %p612 = pneg %p436
        $region82: #{dqn_forward.1} parent=11 // pred_check_branch
          %614 = sbr.rel (%p612) target = $region84
        $region83: #{dqn_forward.1} parent=11 // pred_region
          _
        $region84: #{dqn_forward.1} parent=11 // pred_fallthru
          _
        // Predicated region
        $region85: #{dqn_forward.1} parent=11 // pred_check
          %p615 = pneg %p457
        $region86: #{dqn_forward.1} parent=11 // pred_check_branch
          %617 = sbr.rel (%p615) target = $region88
        $region87: #{dqn_forward.1} parent=11 // pred_region
          _
        $region88: #{dqn_forward.1} parent=11 // pred_fallthru
          _
        // Predicated region
        $region89: #{dqn_forward.1} parent=11 // pred_check
          %p618 = pneg %p478
        $region90: #{dqn_forward.1} parent=11 // pred_check_branch
          %620 = sbr.rel (%p618) target = $region92
        $region91: #{dqn_forward.1} parent=11 // pred_region
          _
        $region92: #{dqn_forward.1} parent=11 // pred_fallthru
          _
        // Predicated region
        $region93: #{dqn_forward.1} parent=11 // pred_check
          %p621 = pneg %p499
        $region94: #{dqn_forward.1} parent=11 // pred_check_branch
          %623 = sbr.rel (%p621) target = $region96
        $region95: #{dqn_forward.1} parent=11 // pred_region
          _
        $region96: #{dqn_forward.1} parent=11 // pred_fallthru
          _
        // Predicated region
        $region97: #{dqn_forward.1} parent=11 // pred_check
          %p624 = pneg %p520
        $region98: #{dqn_forward.1} parent=11 // pred_check_branch
          %626 = sbr.rel (%p624) target = $region100
        $region99: #{dqn_forward.1} parent=11 // pred_region
          _
        $region100: #{dqn_forward.1} parent=11 // pred_fallthru
          _
      $region12: #{dqn_forward.1} parent=5 // pred_fallthru
        _
      %p627 = scmp.lt.s32.totalorder %s32, 2
      // Predicated region
      $region101: #{dqn_forward.1} parent=5 // pred_check
        %p628 = pneg %p627
      $region102: #{dqn_forward.1} parent=5 // pred_check_branch
        %630 = sbr.rel (%p628) target = $region104
      $region103: #{dqn_forward.1} parent=5 // pred_region
        // Predicated region
        $region105: #{dqn_forward.1} parent=103 // pred_check
          %p631 = pneg %p52
        $region106: #{dqn_forward.1} parent=103 // pred_check_branch
          %633 = sbr.rel (%p631) target = $region108
        $region107: #{dqn_forward.1} parent=103 // pred_region
          %p634 = scmp.lt.s32.totalorder %s32, 1
          %s635 = scalar_select %p634, %s32, 1
          %s636 = smul.addr %s635, 20
          %s637 = smul.addr %s636, 4
          %s638 = scalar_lea.vmem %s0, %s637
        $region108: #{dqn_forward.1} parent=103 // pred_fallthru
          _
      $region104: #{dqn_forward.1} parent=5 // pred_fallthru
        _
      %p639 = scmp.le.s32.totalorder 1, %s32
      %p640 = scmp.lt.s32.totalorder %s32, 3
      %p641 = pnand %p639, %p640
      %p642 = pneg %p641
      // Predicated region
      $region109: #{dqn_forward.1} parent=5 // pred_check
        _
      $region110: #{dqn_forward.1} parent=5 // pred_check_branch
        %644 = sbr.rel (%p641) target = $region112
      $region111: #{dqn_forward.1} parent=5 // pred_region
        %s645 = ssub.s32 %s32, 1
        %p646 = scmp.lt.s32.totalorder %s37, 1
        %s647 = scalar_select %p646, %s37, 1
        %s648 = smul.addr %s647, 20
        %s649 = smul.addr %s648, 4
        %s650 = scalar_lea.vmem %s0, %s649
        %p651 = pneg %p58
        %p652 = pneg %p55
        %p653 = pneg %p79
        %p654 = pneg %p76
        %p655 = pneg %p100
        %p656 = pneg %p97
        %p657 = pneg %p121
        %p658 = pneg %p118
        %p659 = pneg %p142
        %p660 = pneg %p139
        %p661 = pneg %p163
        %p662 = pneg %p160
        %p663 = pneg %p184
        %p664 = pneg %p181
        %p665 = pneg %p205
        %p666 = pneg %p202
        %p667 = pneg %p226
        %p668 = pneg %p223
        %p669 = pneg %p247
        %p670 = pneg %p244
        %p671 = pneg %p268
        %p672 = pneg %p265
        %p673 = pneg %p289
        %p674 = pneg %p286
        %p675 = pneg %p310
        %p676 = pneg %p307
        %p677 = pneg %p331
        %p678 = pneg %p328
        %p679 = pneg %p352
        %p680 = pneg %p349
        %p681 = pneg %p373
        %p682 = pneg %p370
        %p683 = pneg %p394
        %p684 = pneg %p391
        %p685 = pneg %p415
        %p686 = pneg %p412
        %p687 = pneg %p436
        %p688 = pneg %p433
        %p689 = pneg %p457
        %p690 = pneg %p454
        %p691 = pneg %p478
        %p692 = pneg %p475
        %p693 = pneg %p499
        %p694 = pneg %p496
        %p695 = pneg %p520
        %p696 = pneg %p517
        %p697 = pneg %p546
        %p698 = pneg %p543
        %s699 = sand.u32 %s533, 1
        %s700 = scalar_lea.sflag [#allocation3], %s699
        %s701 = sand.u32 %s533, 1
        %s702 = scalar_lea.vmem [#allocation2], %s701
        %p703 = scmp.lt.s32.totalorder %s37, 1
        %s704 = scalar_select %p703, %s37, 1
        %s705 = smul.addr %s704, 20
        %s706 = smul.addr %s705, 4
        %s707 = scalar_lea.vmem %s0, %s706
        %v708 = vld [vmem:[%s2] sm:$0xff]
        %v709 = vld [vmem:[%s1] sm:$0xff]
        %v710 = vld [vmem:[%s707] sm:$0x7]
        %s711 = scalar_lea.vmem %s1, 8
        %v712 = vld [vmem:[%s711] sm:$0xff]
        %s713 = scalar_lea.vmem %s707, 4
        %v714 = vld [vmem:[%s713] sm:$0x7]
        %vm715 = vcmask 23552
        %v717 = vsel %vm715, %v712, 0
        %vm719 = vcmask 1042432
        %v721 = vsel %vm719, %v714, 0
        %723 = vmatprep.subr.mxu0 0.0
        %724 = vmatpush1.msra.mxu0 %v721
        %725 = vmatprep.subr.mxu0 0.0
        %726 = vmatpush1.msra.mxu0 0.0
        %727 = vmatprep.subr.mxu0 0.0
        %728 = vmatpush1.msra.mxu0 0.0
        %729 = vmatprep.subr.mxu0 0.0
        %730 = vmatpush1.msra.mxu0 0.0
        %731 = vmatprep.subr.mxu0 0.0
        %732 = vmatpush1.msra.mxu0 0.0
        %733 = vmatprep.subr.mxu0 0.0
        %734 = vmatpush1.msra.mxu0 0.0
        %735 = vmatprep.subr.mxu0 0.0
        %736 = vmatpush1.msra.mxu0 0.0
        %737 = vmatprep.subr.mxu0 0.0
        %738 = vmatpush1.msra.mxu0 0.0
        %739 = vmatprep.subr.mxu0 0.0
        %740 = vmatpush1.msra.mxu0 0.0
        %741 = vmatprep.subr.mxu0 0.0
        %742 = vmatpush1.msra.mxu0 0.0
        %743 = vmatprep.subr.mxu0 0.0
        %744 = vmatpush1.msra.mxu0 0.0
        %745 = vmatprep.subr.mxu0 0.0
        %746 = vmatpush1.msra.mxu0 0.0
        %747 = vmatprep.subr.mxu0 0.0
        %748 = vmatpush1.msra.mxu0 0.0
        %749 = vmatprep.subr.mxu0 0.0
        %750 = vmatpush1.msra.mxu0 0.0
        %751 = vmatprep.subr.mxu0 0.0
        %752 = vmatpush1.msra.mxu0 0.0
        %753 = vmatprep.subr.mxu0 0.0
        %754 = vmatpush1.msra.mxu0 0.0
        %755 = vmatprep.subr.mxu0 0.0
        %756 = vmatpush1.msra.mxu0 0.0
        %757 = vmatprep.subr.mxu0 0.0
        %758 = vmatpush1.msra.mxu0 0.0
        %759 = vmatprep.subr.mxu0 0.0
        %760 = vmatpush1.msra.mxu0 0.0
        %761 = vmatprep.subr.mxu0 0.0
        %762 = vmatpush1.msra.mxu0 0.0
        %763 = vmatprep.subr.mxu0 0.0
        %764 = vmatpush1.msra.mxu0 0.0
        %765 = vmatprep.subr.mxu0 0.0
        %766 = vmatpush1.msra.mxu0 0.0
        %767 = vmatprep.subr.mxu0 0.0
        %768 = vmatpush1.msra.mxu0 0.0
        %769 = vmatprep.subr.mxu0 0.0
        %770 = vmatpush1.msra.mxu0 0.0
        %771 = vmatprep.subr.mxu0 0.0
        %772 = vmatpush1.msra.mxu0 0.0
        %773 = vmatprep.subr.mxu0 0.0
        %774 = vmatpush1.msra.mxu0 0.0
        %775 = vmatprep.subr.mxu0 0.0
        %776 = vmatpush1.msra.mxu0 0.0
        %777 = vmatprep.subr.mxu0 0.0
        %778 = vmatpush1.msra.mxu0 0.0
        %779 = vmatprep.subr.mxu0 0.0
        %780 = vmatpush1.msra.mxu0 0.0
        %781 = vmatprep.subr.mxu0 0.0
        %782 = vmatpush1.msra.mxu0 0.0
        %783 = vmatprep.subr.mxu0 0.0
        %784 = vmatpush1.msra.mxu0 0.0
        %785 = vmatprep.subr.mxu0 0.0
        %786 = vmatpush1.msra.mxu0 0.0
        %787 = vmatprep.mubr.f32.mxu0 0.0
        %788 = vmatmul.mubr.f32.gmra.mrb[0].mxu0 %v717
        %v789 = vpop.f32.mrb[0].mxu0
        %v790 = vadd.f32 0.0, %v789
        %v791 = vpop.f32.mrb[0].mxu0
        %792 = vdwg.mxu0
        %v794 = vsel %vm715, %v709, 0
        %v797 = vsel %vm719, %v710, 0
        %799 = vmatprep.subr.mxu0 0.0
        %800 = vmatpush1.msra.mxu0 %v797
        %801 = vmatprep.subr.mxu0 0.0
        %802 = vmatpush1.msra.mxu0 0.0
        %803 = vmatprep.subr.mxu0 0.0
        %804 = vmatpush1.msra.mxu0 0.0
        %805 = vmatprep.subr.mxu0 0.0
        %806 = vmatpush1.msra.mxu0 0.0
        %807 = vmatprep.subr.mxu0 0.0
        %808 = vmatpush1.msra.mxu0 0.0
        %809 = vmatprep.subr.mxu0 0.0
        %810 = vmatpush1.msra.mxu0 0.0
        %811 = vmatprep.subr.mxu0 0.0
        %812 = vmatpush1.msra.mxu0 0.0
        %813 = vmatprep.subr.mxu0 0.0
        %814 = vmatpush1.msra.mxu0 0.0
        %815 = vmatprep.subr.mxu0 0.0
        %816 = vmatpush1.msra.mxu0 0.0
        %817 = vmatprep.subr.mxu0 0.0
        %818 = vmatpush1.msra.mxu0 0.0
        %819 = vmatprep.subr.mxu0 0.0
        %820 = vmatpush1.msra.mxu0 0.0
        %821 = vmatprep.subr.mxu0 0.0
        %822 = vmatpush1.msra.mxu0 0.0
        %823 = vmatprep.subr.mxu0 0.0
        %824 = vmatpush1.msra.mxu0 0.0
        %825 = vmatprep.subr.mxu0 0.0
        %826 = vmatpush1.msra.mxu0 0.0
        %827 = vmatprep.subr.mxu0 0.0
        %828 = vmatpush1.msra.mxu0 0.0
        %829 = vmatprep.subr.mxu0 0.0
        %830 = vmatpush1.msra.mxu0 0.0
        %831 = vmatprep.subr.mxu0 0.0
        %832 = vmatpush1.msra.mxu0 0.0
        %833 = vmatprep.subr.mxu0 0.0
        %834 = vmatpush1.msra.mxu0 0.0
        %835 = vmatprep.subr.mxu0 0.0
        %836 = vmatpush1.msra.mxu0 0.0
        %837 = vmatprep.subr.mxu0 0.0
        %838 = vmatpush1.msra.mxu0 0.0
        %839 = vmatprep.subr.mxu0 0.0
        %840 = vmatpush1.msra.mxu0 0.0
        %841 = vmatprep.subr.mxu0 0.0
        %842 = vmatpush1.msra.mxu0 0.0
        %843 = vmatprep.subr.mxu0 0.0
        %844 = vmatpush1.msra.mxu0 0.0
        %845 = vmatprep.subr.mxu0 0.0
        %846 = vmatpush1.msra.mxu0 0.0
        %847 = vmatprep.subr.mxu0 0.0
        %848 = vmatpush1.msra.mxu0 0.0
        %849 = vmatprep.subr.mxu0 0.0
        %850 = vmatpush1.msra.mxu0 0.0
        %851 = vmatprep.subr.mxu0 0.0
        %852 = vmatpush1.msra.mxu0 0.0
        %853 = vmatprep.subr.mxu0 0.0
        %854 = vmatpush1.msra.mxu0 0.0
        %855 = vmatprep.subr.mxu0 0.0
        %856 = vmatpush1.msra.mxu0 0.0
        %857 = vmatprep.subr.mxu0 0.0
        %858 = vmatpush1.msra.mxu0 0.0
        %859 = vmatprep.subr.mxu0 0.0
        %860 = vmatpush1.msra.mxu0 0.0
        %861 = vmatprep.subr.mxu0 0.0
        %862 = vmatpush1.msra.mxu0 0.0
        %863 = vmatprep.mubr.f32.mxu0 0.0
        %864 = vmatmul.mubr.f32.gmra.mrb[0].mxu0 %v794
        %v865 = vpop.f32.mrb[0].mxu0
        %v866 = vadd.f32 %v790, %v865
        %v867 = vpop.f32.mrb[0].mxu0
        %868 = vdwg.mxu0
        %s869 = scalar_lea.vmem %s1, 16
        %v870 = vld [vmem:[%s869] sm:$0xff]
        %s871 = scalar_lea.vmem %s707, 8
        %v872 = vld [vmem:[%s871] sm:$0x7]
        %v874 = vsel %vm715, %v870, 0
        %v877 = vsel %vm719, %v872, 0
        %879 = vmatprep.subr.mxu0 0.0
        %880 = vmatpush1.msra.mxu0 %v877
        %881 = vmatprep.subr.mxu0 0.0
        %882 = vmatpush1.msra.mxu0 0.0
        %883 = vmatprep.subr.mxu0 0.0
        %884 = vmatpush1.msra.mxu0 0.0
        %885 = vmatprep.subr.mxu0 0.0
        %886 = vmatpush1.msra.mxu0 0.0
        %887 = vmatprep.subr.mxu0 0.0
        %888 = vmatpush1.msra.mxu0 0.0
        %889 = vmatprep.subr.mxu0 0.0
        %890 = vmatpush1.msra.mxu0 0.0
        %891 = vmatprep.subr.mxu0 0.0
        %892 = vmatpush1.msra.mxu0 0.0
        %893 = vmatprep.subr.mxu0 0.0
        %894 = vmatpush1.msra.mxu0 0.0
        %895 = vmatprep.subr.mxu0 0.0
        %896 = vmatpush1.msra.mxu0 0.0
        %897 = vmatprep.subr.mxu0 0.0
        %898 = vmatpush1.msra.mxu0 0.0
        %899 = vmatprep.subr.mxu0 0.0
        %900 = vmatpush1.msra.mxu0 0.0
        %901 = vmatprep.subr.mxu0 0.0
        %902 = vmatpush1.msra.mxu0 0.0
        %903 = vmatprep.subr.mxu0 0.0
        %904 = vmatpush1.msra.mxu0 0.0
        %905 = vmatprep.subr.mxu0 0.0
        %906 = vmatpush1.msra.mxu0 0.0
        %907 = vmatprep.subr.mxu0 0.0
        %908 = vmatpush1.msra.mxu0 0.0
        %909 = vmatprep.subr.mxu0 0.0
        %910 = vmatpush1.msra.mxu0 0.0
        %911 = vmatprep.subr.mxu0 0.0
        %912 = vmatpush1.msra.mxu0 0.0
        %913 = vmatprep.subr.mxu0 0.0
        %914 = vmatpush1.msra.mxu0 0.0
        %915 = vmatprep.subr.mxu0 0.0
        %916 = vmatpush1.msra.mxu0 0.0
        %917 = vmatprep.subr.mxu0 0.0
        %918 = vmatpush1.msra.mxu0 0.0
        %919 = vmatprep.subr.mxu0 0.0
        %920 = vmatpush1.msra.mxu0 0.0
        %921 = vmatprep.subr.mxu0 0.0
        %922 = vmatpush1.msra.mxu0 0.0
        %923 = vmatprep.subr.mxu0 0.0
        %924 = vmatpush1.msra.mxu0 0.0
        %925 = vmatprep.subr.mxu0 0.0
        %926 = vmatpush1.msra.mxu0 0.0
        %927 = vmatprep.subr.mxu0 0.0
        %928 = vmatpush1.msra.mxu0 0.0
        %929 = vmatprep.subr.mxu0 0.0
        %930 = vmatpush1.msra.mxu0 0.0
        %931 = vmatprep.subr.mxu0 0.0
        %932 = vmatpush1.msra.mxu0 0.0
        %933 = vmatprep.subr.mxu0 0.0
        %934 = vmatpush1.msra.mxu0 0.0
        %935 = vmatprep.subr.mxu0 0.0
        %936 = vmatpush1.msra.mxu0 0.0
        %937 = vmatprep.subr.mxu0 0.0
        %938 = vmatpush1.msra.mxu0 0.0
        %939 = vmatprep.subr.mxu0 0.0
        %940 = vmatpush1.msra.mxu0 0.0
        %941 = vmatprep.subr.mxu0 0.0
        %942 = vmatpush1.msra.mxu0 0.0
        %943 = vmatprep.mubr.f32.mxu0 0.0
        %944 = vmatmul.mubr.f32.gmra.mrb[0].mxu0 %v874
        %v945 = vpop.f32.mrb[0].mxu0
        %v946 = vadd.f32 0.0, %v945
        %v947 = vpop.f32.mrb[0].mxu0
        %948 = vdwg.mxu0
        %v949 = vadd.f32 %v866, %v946
        %s950 = scalar_lea.vmem %s1, 24
        %v951 = vld [vmem:[%s950] sm:$0xff]
        %s952 = scalar_lea.vmem %s707, 12
        %v953 = vld [vmem:[%s952] sm:$0x7]
        %v955 = vsel %vm715, %v951, 0
        %v958 = vsel %vm719, %v953, 0
        %960 = vmatprep.subr.mxu0 0.0
        %961 = vmatpush1.msra.mxu0 %v958
        %962 = vmatprep.subr.mxu0 0.0
        %963 = vmatpush1.msra.mxu0 0.0
        %964 = vmatprep.subr.mxu0 0.0
        %965 = vmatpush1.msra.mxu0 0.0
        %966 = vmatprep.subr.mxu0 0.0
        %967 = vmatpush1.msra.mxu0 0.0
        %968 = vmatprep.subr.mxu0 0.0
        %969 = vmatpush1.msra.mxu0 0.0
        %970 = vmatprep.subr.mxu0 0.0
        %971 = vmatpush1.msra.mxu0 0.0
        %972 = vmatprep.subr.mxu0 0.0
        %973 = vmatpush1.msra.mxu0 0.0
        %974 = vmatprep.subr.mxu0 0.0
        %975 = vmatpush1.msra.mxu0 0.0
        %976 = vmatprep.subr.mxu0 0.0
        %977 = vmatpush1.msra.mxu0 0.0
        %978 = vmatprep.subr.mxu0 0.0
        %979 = vmatpush1.msra.mxu0 0.0
        %980 = vmatprep.subr.mxu0 0.0
        %981 = vmatpush1.msra.mxu0 0.0
        %982 = vmatprep.subr.mxu0 0.0
        %983 = vmatpush1.msra.mxu0 0.0
        %984 = vmatprep.subr.mxu0 0.0
        %985 = vmatpush1.msra.mxu0 0.0
        %986 = vmatprep.subr.mxu0 0.0
        %987 = vmatpush1.msra.mxu0 0.0
        %988 = vmatprep.subr.mxu0 0.0
        %989 = vmatpush1.msra.mxu0 0.0
        %990 = vmatprep.subr.mxu0 0.0
        %991 = vmatpush1.msra.mxu0 0.0
        %992 = vmatprep.subr.mxu0 0.0
        %993 = vmatpush1.msra.mxu0 0.0
        %994 = vmatprep.subr.mxu0 0.0
        %995 = vmatpush1.msra.mxu0 0.0
        %996 = vmatprep.subr.mxu0 0.0
        %997 = vmatpush1.msra.mxu0 0.0
        %998 = vmatprep.subr.mxu0 0.0
        %999 = vmatpush1.msra.mxu0 0.0
        %1000 = vmatprep.subr.mxu0 0.0
        %1001 = vmatpush1.msra.mxu0 0.0
        %1002 = vmatprep.subr.mxu0 0.0
        %1003 = vmatpush1.msra.mxu0 0.0
        %1004 = vmatprep.subr.mxu0 0.0
        %1005 = vmatpush1.msra.mxu0 0.0
        %1006 = vmatprep.subr.mxu0 0.0
        %1007 = vmatpush1.msra.mxu0 0.0
        %1008 = vmatprep.subr.mxu0 0.0
        %1009 = vmatpush1.msra.mxu0 0.0
        %1010 = vmatprep.subr.mxu0 0.0
        %1011 = vmatpush1.msra.mxu0 0.0
        %1012 = vmatprep.subr.mxu0 0.0
        %1013 = vmatpush1.msra.mxu0 0.0
        %1014 = vmatprep.subr.mxu0 0.0
        %1015 = vmatpush1.msra.mxu0 0.0
        %1016 = vmatprep.subr.mxu0 0.0
        %1017 = vmatpush1.msra.mxu0 0.0
        %1018 = vmatprep.subr.mxu0 0.0
        %1019 = vmatpush1.msra.mxu0 0.0
        %1020 = vmatprep.subr.mxu0 0.0
        %1021 = vmatpush1.msra.mxu0 0.0
        %1022 = vmatprep.subr.mxu0 0.0
        %1023 = vmatpush1.msra.mxu0 0.0
        %1024 = vmatprep.mubr.f32.mxu0 0.0
        %1025 = vmatmul.mubr.f32.gmra.mrb[0].mxu0 %v955
        %v1026 = vpop.f32.mrb[0].mxu0
        %v1027 = vadd.f32 0.0, %v1026
        %v1028 = vpop.f32.mrb[0].mxu0
        %1029 = vdwg.mxu0
        %v1030 = vadd.f32 %v949, %v1027
        %s1031 = scalar_lea.vmem %s1, 32
        %v1032 = vld [vmem:[%s1031] sm:$0xff]
        %s1033 = scalar_lea.vmem %s707, 16
        %v1034 = vld [vmem:[%s1033] sm:$0x7]
        %v1036 = vsel %vm715, %v1032, 0
        %v1039 = vsel %vm719, %v1034, 0
        %1041 = vmatprep.subr.mxu0 0.0
        %1042 = vmatpush1.msra.mxu0 %v1039
        %1043 = vmatprep.subr.mxu0 0.0
        %1044 = vmatpush1.msra.mxu0 0.0
        %1045 = vmatprep.subr.mxu0 0.0
        %1046 = vmatpush1.msra.mxu0 0.0
        %1047 = vmatprep.subr.mxu0 0.0
        %1048 = vmatpush1.msra.mxu0 0.0
        %1049 = vmatprep.subr.mxu0 0.0
        %1050 = vmatpush1.msra.mxu0 0.0
        %1051 = vmatprep.subr.mxu0 0.0
        %1052 = vmatpush1.msra.mxu0 0.0
        %1053 = vmatprep.subr.mxu0 0.0
        %1054 = vmatpush1.msra.mxu0 0.0
        %1055 = vmatprep.subr.mxu0 0.0
        %1056 = vmatpush1.msra.mxu0 0.0
        %1057 = vmatprep.subr.mxu0 0.0
        %1058 = vmatpush1.msra.mxu0 0.0
        %1059 = vmatprep.subr.mxu0 0.0
        %1060 = vmatpush1.msra.mxu0 0.0
        %1061 = vmatprep.subr.mxu0 0.0
        %1062 = vmatpush1.msra.mxu0 0.0
        %1063 = vmatprep.subr.mxu0 0.0
        %1064 = vmatpush1.msra.mxu0 0.0
        %1065 = vmatprep.subr.mxu0 0.0
        %1066 = vmatpush1.msra.mxu0 0.0
        %1067 = vmatprep.subr.mxu0 0.0
        %1068 = vmatpush1.msra.mxu0 0.0
        %1069 = vmatprep.subr.mxu0 0.0
        %1070 = vmatpush1.msra.mxu0 0.0
        %1071 = vmatprep.subr.mxu0 0.0
        %1072 = vmatpush1.msra.mxu0 0.0
        %1073 = vmatprep.subr.mxu0 0.0
        %1074 = vmatpush1.msra.mxu0 0.0
        %1075 = vmatprep.subr.mxu0 0.0
        %1076 = vmatpush1.msra.mxu0 0.0
        %1077 = vmatprep.subr.mxu0 0.0
        %1078 = vmatpush1.msra.mxu0 0.0
        %1079 = vmatprep.subr.mxu0 0.0
        %1080 = vmatpush1.msra.mxu0 0.0
        %1081 = vmatprep.subr.mxu0 0.0
        %1082 = vmatpush1.msra.mxu0 0.0
        %1083 = vmatprep.subr.mxu0 0.0
        %1084 = vmatpush1.msra.mxu0 0.0
        %1085 = vmatprep.subr.mxu0 0.0
        %1086 = vmatpush1.msra.mxu0 0.0
        %1087 = vmatprep.subr.mxu0 0.0
        %1088 = vmatpush1.msra.mxu0 0.0
        %1089 = vmatprep.subr.mxu0 0.0
        %1090 = vmatpush1.msra.mxu0 0.0
        %1091 = vmatprep.subr.mxu0 0.0
        %1092 = vmatpush1.msra.mxu0 0.0
        %1093 = vmatprep.subr.mxu0 0.0
        %1094 = vmatpush1.msra.mxu0 0.0
        %1095 = vmatprep.subr.mxu0 0.0
        %1096 = vmatpush1.msra.mxu0 0.0
        %1097 = vmatprep.subr.mxu0 0.0
        %1098 = vmatpush1.msra.mxu0 0.0
        %1099 = vmatprep.subr.mxu0 0.0
        %1100 = vmatpush1.msra.mxu0 0.0
        %1101 = vmatprep.subr.mxu0 0.0
        %1102 = vmatpush1.msra.mxu0 0.0
        %1103 = vmatprep.subr.mxu0 0.0
        %1104 = vmatpush1.msra.mxu0 0.0
        %1105 = vmatprep.mubr.f32.mxu0 0.0
        %1106 = vmatmul.mubr.f32.gmra.mrb[0].mxu0 %v1036
        %v1107 = vpop.f32.mrb[0].mxu0
        %v1108 = vadd.f32 0.0, %v1107
        %v1109 = vpop.f32.mrb[0].mxu0
        %1110 = vdwg.mxu0
        %v1111 = vadd.f32 %v1030, %v1108
        %1113 = vset.pattern.permute.xlu0 0
        %1114 = vperm.xlu0 %1113, %v708
        %v1115 = vpop.permute.xlu0 %1114
        %v1117 = vadd.f32 %v1111, %v1115
        %v1118 = vmax.f32 %v1117, 0.0
        %s1119 = scalar_lea.vmem %s707, 20
        %v1120 = vld [vmem:[%s1119] sm:$0x7]
        %s1121 = scalar_lea.vmem %s707, 24
        %v1122 = vld [vmem:[%s1121] sm:$0x7]
        %v1124 = vsel %vm719, %v1122, 0
        %1126 = vmatprep.subr.mxu0 0.0
        %1127 = vmatpush1.msra.mxu0 %v1124
        %1128 = vmatprep.subr.mxu0 0.0
        %1129 = vmatpush1.msra.mxu0 0.0
        %1130 = vmatprep.subr.mxu0 0.0
        %1131 = vmatpush1.msra.mxu0 0.0
        %1132 = vmatprep.subr.mxu0 0.0
        %1133 = vmatpush1.msra.mxu0 0.0
        %1134 = vmatprep.subr.mxu0 0.0
        %1135 = vmatpush1.msra.mxu0 0.0
        %1136 = vmatprep.subr.mxu0 0.0
        %1137 = vmatpush1.msra.mxu0 0.0
        %1138 = vmatprep.subr.mxu0 0.0
        %1139 = vmatpush1.msra.mxu0 0.0
        %1140 = vmatprep.subr.mxu0 0.0
        %1141 = vmatpush1.msra.mxu0 0.0
        %1142 = vmatprep.subr.mxu0 0.0
        %1143 = vmatpush1.msra.mxu0 0.0
        %1144 = vmatprep.subr.mxu0 0.0
        %1145 = vmatpush1.msra.mxu0 0.0
        %1146 = vmatprep.subr.mxu0 0.0
        %1147 = vmatpush1.msra.mxu0 0.0
        %1148 = vmatprep.subr.mxu0 0.0
        %1149 = vmatpush1.msra.mxu0 0.0
        %1150 = vmatprep.subr.mxu0 0.0
        %1151 = vmatpush1.msra.mxu0 0.0
        %1152 = vmatprep.subr.mxu0 0.0
        %1153 = vmatpush1.msra.mxu0 0.0
        %1154 = vmatprep.subr.mxu0 0.0
        %1155 = vmatpush1.msra.mxu0 0.0
        %1156 = vmatprep.subr.mxu0 0.0
        %1157 = vmatpush1.msra.mxu0 0.0
        %1158 = vmatprep.subr.mxu0 0.0
        %1159 = vmatpush1.msra.mxu0 0.0
        %1160 = vmatprep.subr.mxu0 0.0
        %1161 = vmatpush1.msra.mxu0 0.0
        %1162 = vmatprep.subr.mxu0 0.0
        %1163 = vmatpush1.msra.mxu0 0.0
        %1164 = vmatprep.subr.mxu0 0.0
        %1165 = vmatpush1.msra.mxu0 0.0
        %1166 = vmatprep.subr.mxu0 0.0
        %1167 = vmatpush1.msra.mxu0 0.0
        %1168 = vmatprep.subr.mxu0 0.0
        %1169 = vmatpush1.msra.mxu0 0.0
        %1170 = vmatprep.subr.mxu0 0.0
        %1171 = vmatpush1.msra.mxu0 0.0
        %1172 = vmatprep.subr.mxu0 0.0
        %1173 = vmatpush1.msra.mxu0 0.0
        %1174 = vmatprep.subr.mxu0 0.0
        %1175 = vmatpush1.msra.mxu0 0.0
        %1176 = vmatprep.subr.mxu0 0.0
        %1177 = vmatpush1.msra.mxu0 0.0
        %1178 = vmatprep.subr.mxu0 0.0
        %1179 = vmatpush1.msra.mxu0 0.0
        %1180 = vmatprep.subr.mxu0 0.0
        %1181 = vmatpush1.msra.mxu0 0.0
        %1182 = vmatprep.subr.mxu0 0.0
        %1183 = vmatpush1.msra.mxu0 0.0
        %1184 = vmatprep.subr.mxu0 0.0
        %1185 = vmatpush1.msra.mxu0 0.0
        %1186 = vmatprep.subr.mxu0 0.0
        %1187 = vmatpush1.msra.mxu0 0.0
        %1188 = vmatprep.subr.mxu0 0.0
        %1189 = vmatpush1.msra.mxu0 0.0
        %1190 = vmatprep.mubr.f32.mxu0 0.0
        %1191 = vmatmul.mubr.f32.gmra.mrb[0].mxu0 %v717
        %v1192 = vpop.f32.mrb[0].mxu0
        %v1193 = vadd.f32 0.0, %v1192
        %v1194 = vpop.f32.mrb[0].mxu0
        %1195 = vdwg.mxu0
        %v1197 = vsel %vm719, %v1120, 0
        %1199 = vmatprep.subr.mxu0 0.0
        %1200 = vmatpush1.msra.mxu0 %v1197
        %1201 = vmatprep.subr.mxu0 0.0
        %1202 = vmatpush1.msra.mxu0 0.0
        %1203 = vmatprep.subr.mxu0 0.0
        %1204 = vmatpush1.msra.mxu0 0.0
        %1205 = vmatprep.subr.mxu0 0.0
        %1206 = vmatpush1.msra.mxu0 0.0
        %1207 = vmatprep.subr.mxu0 0.0
        %1208 = vmatpush1.msra.mxu0 0.0
        %1209 = vmatprep.subr.mxu0 0.0
        %1210 = vmatpush1.msra.mxu0 0.0
        %1211 = vmatprep.subr.mxu0 0.0
        %1212 = vmatpush1.msra.mxu0 0.0
        %1213 = vmatprep.subr.mxu0 0.0
        %1214 = vmatpush1.msra.mxu0 0.0
        %1215 = vmatprep.subr.mxu0 0.0
        %1216 = vmatpush1.msra.mxu0 0.0
        %1217 = vmatprep.subr.mxu0 0.0
        %1218 = vmatpush1.msra.mxu0 0.0
        %1219 = vmatprep.subr.mxu0 0.0
        %1220 = vmatpush1.msra.mxu0 0.0
        %1221 = vmatprep.subr.mxu0 0.0
        %1222 = vmatpush1.msra.mxu0 0.0
        %1223 = vmatprep.subr.mxu0 0.0
        %1224 = vmatpush1.msra.mxu0 0.0
        %1225 = vmatprep.subr.mxu0 0.0
        %1226 = vmatpush1.msra.mxu0 0.0
        %1227 = vmatprep.subr.mxu0 0.0
        %1228 = vmatpush1.msra.mxu0 0.0
        %1229 = vmatprep.subr.mxu0 0.0
        %1230 = vmatpush1.msra.mxu0 0.0
        %1231 = vmatprep.subr.mxu0 0.0
        %1232 = vmatpush1.msra.mxu0 0.0
        %1233 = vmatprep.subr.mxu0 0.0
        %1234 = vmatpush1.msra.mxu0 0.0
        %1235 = vmatprep.subr.mxu0 0.0
        %1236 = vmatpush1.msra.mxu0 0.0
        %1237 = vmatprep.subr.mxu0 0.0
        %1238 = vmatpush1.msra.mxu0 0.0
        %1239 = vmatprep.subr.mxu0 0.0
        %1240 = vmatpush1.msra.mxu0 0.0
        %1241 = vmatprep.subr.mxu0 0.0
        %1242 = vmatpush1.msra.mxu0 0.0
        %1243 = vmatprep.subr.mxu0 0.0
        %1244 = vmatpush1.msra.mxu0 0.0
        %1245 = vmatprep.subr.mxu0 0.0
        %1246 = vmatpush1.msra.mxu0 0.0
        %1247 = vmatprep.subr.mxu0 0.0
        %1248 = vmatpush1.msra.mxu0 0.0
        %1249 = vmatprep.subr.mxu0 0.0
        %1250 = vmatpush1.msra.mxu0 0.0
        %1251 = vmatprep.subr.mxu0 0.0
        %1252 = vmatpush1.msra.mxu0 0.0
        %1253 = vmatprep.subr.mxu0 0.0
        %1254 = vmatpush1.msra.mxu0 0.0
        %1255 = vmatprep.subr.mxu0 0.0
        %1256 = vmatpush1.msra.mxu0 0.0
        %1257 = vmatprep.subr.mxu0 0.0
        %1258 = vmatpush1.msra.mxu0 0.0
        %1259 = vmatprep.subr.mxu0 0.0
        %1260 = vmatpush1.msra.mxu0 0.0
        %1261 = vmatprep.subr.mxu0 0.0
        %1262 = vmatpush1.msra.mxu0 0.0
        %1263 = vmatprep.mubr.f32.mxu0 0.0
        %1264 = vmatmul.mubr.f32.gmra.mrb[0].mxu0 %v794
        %v1265 = vpop.f32.mrb[0].mxu0
        %v1266 = vadd.f32 %v1193, %v1265
        %v1267 = vpop.f32.mrb[0].mxu0
        %1268 = vdwg.mxu0
        %s1269 = scalar_lea.vmem %s707, 28
        %v1270 = vld [vmem:[%s1269] sm:$0x7]
        %v1272 = vsel %vm719, %v1270, 0
        %1274 = vmatprep.subr.mxu0 0.0
        %1275 = vmatpush1.msra.mxu0 %v1272
        %1276 = vmatprep.subr.mxu0 0.0
        %1277 = vmatpush1.msra.mxu0 0.0
        %1278 = vmatprep.subr.mxu0 0.0
        %1279 = vmatpush1.msra.mxu0 0.0
        %1280 = vmatprep.subr.mxu0 0.0
        %1281 = vmatpush1.msra.mxu0 0.0
        %1282 = vmatprep.subr.mxu0 0.0
        %1283 = vmatpush1.msra.mxu0 0.0
        %1284 = vmatprep.subr.mxu0 0.0
        %1285 = vmatpush1.msra.mxu0 0.0
        %1286 = vmatprep.subr.mxu0 0.0
        %1287 = vmatpush1.msra.mxu0 0.0
        %1288 = vmatprep.subr.mxu0 0.0
        %1289 = vmatpush1.msra.mxu0 0.0
        %1290 = vmatprep.subr.mxu0 0.0
        %1291 = vmatpush1.msra.mxu0 0.0
        %1292 = vmatprep.subr.mxu0 0.0
        %1293 = vmatpush1.msra.mxu0 0.0
        %1294 = vmatprep.subr.mxu0 0.0
        %1295 = vmatpush1.msra.mxu0 0.0
        %1296 = vmatprep.subr.mxu0 0.0
        %1297 = vmatpush1.msra.mxu0 0.0
        %1298 = vmatprep.subr.mxu0 0.0
        %1299 = vmatpush1.msra.mxu0 0.0
        %1300 = vmatprep.subr.mxu0 0.0
        %1301 = vmatpush1.msra.mxu0 0.0
        %1302 = vmatprep.subr.mxu0 0.0
        %1303 = vmatpush1.msra.mxu0 0.0
        %1304 = vmatprep.subr.mxu0 0.0
        %1305 = vmatpush1.msra.mxu0 0.0
        %1306 = vmatprep.subr.mxu0 0.0
        %1307 = vmatpush1.msra.mxu0 0.0
        %1308 = vmatprep.subr.mxu0 0.0
        %1309 = vmatpush1.msra.mxu0 0.0
        %1310 = vmatprep.subr.mxu0 0.0
        %1311 = vmatpush1.msra.mxu0 0.0
        %1312 = vmatprep.subr.mxu0 0.0
        %1313 = vmatpush1.msra.mxu0 0.0
        %1314 = vmatprep.subr.mxu0 0.0
        %1315 = vmatpush1.msra.mxu0 0.0
        %1316 = vmatprep.subr.mxu0 0.0
        %1317 = vmatpush1.msra.mxu0 0.0
        %1318 = vmatprep.subr.mxu0 0.0
        %1319 = vmatpush1.msra.mxu0 0.0
        %1320 = vmatprep.subr.mxu0 0.0
        %1321 = vmatpush1.msra.mxu0 0.0
        %1322 = vmatprep.subr.mxu0 0.0
        %1323 = vmatpush1.msra.mxu0 0.0
        %1324 = vmatprep.subr.mxu0 0.0
        %1325 = vmatpush1.msra.mxu0 0.0
        %1326 = vmatprep.subr.mxu0 0.0
        %1327 = vmatpush1.msra.mxu0 0.0
        %1328 = vmatprep.subr.mxu0 0.0
        %1329 = vmatpush1.msra.mxu0 0.0
        %1330 = vmatprep.subr.mxu0 0.0
        %1331 = vmatpush1.msra.mxu0 0.0
        %1332 = vmatprep.subr.mxu0 0.0
        %1333 = vmatpush1.msra.mxu0 0.0
        %1334 = vmatprep.subr.mxu0 0.0
        %1335 = vmatpush1.msra.mxu0 0.0
        %1336 = vmatprep.subr.mxu0 0.0
        %1337 = vmatpush1.msra.mxu0 0.0
        %1338 = vmatprep.mubr.f32.mxu0 0.0
        %1339 = vmatmul.mubr.f32.gmra.mrb[0].mxu0 %v874
        %v1340 = vpop.f32.mrb[0].mxu0
        %v1341 = vadd.f32 0.0, %v1340
        %v1342 = vpop.f32.mrb[0].mxu0
        %1343 = vdwg.mxu0
        %v1344 = vadd.f32 %v1266, %v1341
        %s1345 = scalar_lea.vmem %s707, 32
        %v1346 = vld [vmem:[%s1345] sm:$0x7]
        %v1348 = vsel %vm719, %v1346, 0
        %1350 = vmatprep.subr.mxu0 0.0
        %1351 = vmatpush1.msra.mxu0 %v1348
        %1352 = vmatprep.subr.mxu0 0.0
        %1353 = vmatpush1.msra.mxu0 0.0
        %1354 = vmatprep.subr.mxu0 0.0
        %1355 = vmatpush1.msra.mxu0 0.0
        %1356 = vmatprep.subr.mxu0 0.0
        %1357 = vmatpush1.msra.mxu0 0.0
        %1358 = vmatprep.subr.mxu0 0.0
        %1359 = vmatpush1.msra.mxu0 0.0
        %1360 = vmatprep.subr.mxu0 0.0
        %1361 = vmatpush1.msra.mxu0 0.0
        %1362 = vmatprep.subr.mxu0 0.0
        %1363 = vmatpush1.msra.mxu0 0.0
        %1364 = vmatprep.subr.mxu0 0.0
        %1365 = vmatpush1.msra.mxu0 0.0
        %1366 = vmatprep.subr.mxu0 0.0
        %1367 = vmatpush1.msra.mxu0 0.0
        %1368 = vmatprep.subr.mxu0 0.0
        %1369 = vmatpush1.msra.mxu0 0.0
        %1370 = vmatprep.subr.mxu0 0.0
        %1371 = vmatpush1.msra.mxu0 0.0
        %1372 = vmatprep.subr.mxu0 0.0
        %1373 = vmatpush1.msra.mxu0 0.0
        %1374 = vmatprep.subr.mxu0 0.0
        %1375 = vmatpush1.msra.mxu0 0.0
        %1376 = vmatprep.subr.mxu0 0.0
        %1377 = vmatpush1.msra.mxu0 0.0
        %1378 = vmatprep.subr.mxu0 0.0
        %1379 = vmatpush1.msra.mxu0 0.0
        %1380 = vmatprep.subr.mxu0 0.0
        %1381 = vmatpush1.msra.mxu0 0.0
        %1382 = vmatprep.subr.mxu0 0.0
        %1383 = vmatpush1.msra.mxu0 0.0
        %1384 = vmatprep.subr.mxu0 0.0
        %1385 = vmatpush1.msra.mxu0 0.0
        %1386 = vmatprep.subr.mxu0 0.0
        %1387 = vmatpush1.msra.mxu0 0.0
        %1388 = vmatprep.subr.mxu0 0.0
        %1389 = vmatpush1.msra.mxu0 0.0
        %1390 = vmatprep.subr.mxu0 0.0
        %1391 = vmatpush1.msra.mxu0 0.0
        %1392 = vmatprep.subr.mxu0 0.0
        %1393 = vmatpush1.msra.mxu0 0.0
        %1394 = vmatprep.subr.mxu0 0.0
        %1395 = vmatpush1.msra.mxu0 0.0
        %1396 = vmatprep.subr.mxu0 0.0
        %1397 = vmatpush1.msra.mxu0 0.0
        %1398 = vmatprep.subr.mxu0 0.0
        %1399 = vmatpush1.msra.mxu0 0.0
        %1400 = vmatprep.subr.mxu0 0.0
        %1401 = vmatpush1.msra.mxu0 0.0
        %1402 = vmatprep.subr.mxu0 0.0
        %1403 = vmatpush1.msra.mxu0 0.0
        %1404 = vmatprep.subr.mxu0 0.0
        %1405 = vmatpush1.msra.mxu0 0.0
        %1406 = vmatprep.subr.mxu0 0.0
        %1407 = vmatpush1.msra.mxu0 0.0
        %1408 = vmatprep.subr.mxu0 0.0
        %1409 = vmatpush1.msra.mxu0 0.0
        %1410 = vmatprep.subr.mxu0 0.0
        %1411 = vmatpush1.msra.mxu0 0.0
        %1412 = vmatprep.subr.mxu0 0.0
        %1413 = vmatpush1.msra.mxu0 0.0
        %1414 = vmatprep.mubr.f32.mxu0 0.0
        %1415 = vmatmul.mubr.f32.gmra.mrb[0].mxu0 %v955
        %v1416 = vpop.f32.mrb[0].mxu0
        %v1417 = vadd.f32 0.0, %v1416
        %v1418 = vpop.f32.mrb[0].mxu0
        %1419 = vdwg.mxu0
        %v1420 = vadd.f32 %v1344, %v1417
        %s1421 = scalar_lea.vmem %s707, 36
        %v1422 = vld [vmem:[%s1421] sm:$0x7]
        %v1424 = vsel %vm719, %v1422, 0
        %1426 = vmatprep.subr.mxu0 0.0
        %1427 = vmatpush1.msra.mxu0 %v1424
        %1428 = vmatprep.subr.mxu0 0.0
        %1429 = vmatpush1.msra.mxu0 0.0
        %1430 = vmatprep.subr.mxu0 0.0
        %1431 = vmatpush1.msra.mxu0 0.0
        %1432 = vmatprep.subr.mxu0 0.0
        %1433 = vmatpush1.msra.mxu0 0.0
        %1434 = vmatprep.subr.mxu0 0.0
        %1435 = vmatpush1.msra.mxu0 0.0
        %1436 = vmatprep.subr.mxu0 0.0
        %1437 = vmatpush1.msra.mxu0 0.0
        %1438 = vmatprep.subr.mxu0 0.0
        %1439 = vmatpush1.msra.mxu0 0.0
        %1440 = vmatprep.subr.mxu0 0.0
        %1441 = vmatpush1.msra.mxu0 0.0
        %1442 = vmatprep.subr.mxu0 0.0
        %1443 = vmatpush1.msra.mxu0 0.0
        %1444 = vmatprep.subr.mxu0 0.0
        %1445 = vmatpush1.msra.mxu0 0.0
        %1446 = vmatprep.subr.mxu0 0.0
        %1447 = vmatpush1.msra.mxu0 0.0
        %1448 = vmatprep.subr.mxu0 0.0
        %1449 = vmatpush1.msra.mxu0 0.0
        %1450 = vmatprep.subr.mxu0 0.0
        %1451 = vmatpush1.msra.mxu0 0.0
        %1452 = vmatprep.subr.mxu0 0.0
        %1453 = vmatpush1.msra.mxu0 0.0
        %1454 = vmatprep.subr.mxu0 0.0
        %1455 = vmatpush1.msra.mxu0 0.0
        %1456 = vmatprep.subr.mxu0 0.0
        %1457 = vmatpush1.msra.mxu0 0.0
        %1458 = vmatprep.subr.mxu0 0.0
        %1459 = vmatpush1.msra.mxu0 0.0
        %1460 = vmatprep.subr.mxu0 0.0
        %1461 = vmatpush1.msra.mxu0 0.0
        %1462 = vmatprep.subr.mxu0 0.0
        %1463 = vmatpush1.msra.mxu0 0.0
        %1464 = vmatprep.subr.mxu0 0.0
        %1465 = vmatpush1.msra.mxu0 0.0
        %1466 = vmatprep.subr.mxu0 0.0
        %1467 = vmatpush1.msra.mxu0 0.0
        %1468 = vmatprep.subr.mxu0 0.0
        %1469 = vmatpush1.msra.mxu0 0.0
        %1470 = vmatprep.subr.mxu0 0.0
        %1471 = vmatpush1.msra.mxu0 0.0
        %1472 = vmatprep.subr.mxu0 0.0
        %1473 = vmatpush1.msra.mxu0 0.0
        %1474 = vmatprep.subr.mxu0 0.0
        %1475 = vmatpush1.msra.mxu0 0.0
        %1476 = vmatprep.subr.mxu0 0.0
        %1477 = vmatpush1.msra.mxu0 0.0
        %1478 = vmatprep.subr.mxu0 0.0
        %1479 = vmatpush1.msra.mxu0 0.0
        %1480 = vmatprep.subr.mxu0 0.0
        %1481 = vmatpush1.msra.mxu0 0.0
        %1482 = vmatprep.subr.mxu0 0.0
        %1483 = vmatpush1.msra.mxu0 0.0
        %1484 = vmatprep.subr.mxu0 0.0
        %1485 = vmatpush1.msra.mxu0 0.0
        %1486 = vmatprep.subr.mxu0 0.0
        %1487 = vmatpush1.msra.mxu0 0.0
        %1488 = vmatprep.subr.mxu0 0.0
        %1489 = vmatpush1.msra.mxu0 0.0
        %1490 = vmatprep.mubr.f32.mxu0 0.0
        %1491 = vmatmul.mubr.f32.gmra.mrb[0].mxu0 %v1036
        %v1492 = vpop.f32.mrb[0].mxu0
        %v1493 = vadd.f32 0.0, %v1492
        %v1494 = vpop.f32.mrb[0].mxu0
        %1495 = vdwg.mxu0
        %v1496 = vadd.f32 %v1420, %v1493
        %v1497 = vadd.f32 %v1496, %v1115
        %v1498 = vmax.f32 %v1497, 0.0
        %s1499 = scalar_lea.vmem %s707, 40
        %v1500 = vld [vmem:[%s1499] sm:$0x7]
        %s1501 = scalar_lea.vmem %s707, 44
        %v1502 = vld [vmem:[%s1501] sm:$0x7]
        %v1504 = vsel %vm719, %v1502, 0
        %1506 = vmatprep.subr.mxu0 0.0
        %1507 = vmatpush1.msra.mxu0 %v1504
        %1508 = vmatprep.subr.mxu0 0.0
        %1509 = vmatpush1.msra.mxu0 0.0
        %1510 = vmatprep.subr.mxu0 0.0
        %1511 = vmatpush1.msra.mxu0 0.0
        %1512 = vmatprep.subr.mxu0 0.0
        %1513 = vmatpush1.msra.mxu0 0.0
        %1514 = vmatprep.subr.mxu0 0.0
        %1515 = vmatpush1.msra.mxu0 0.0
        %1516 = vmatprep.subr.mxu0 0.0
        %1517 = vmatpush1.msra.mxu0 0.0
        %1518 = vmatprep.subr.mxu0 0.0
        %1519 = vmatpush1.msra.mxu0 0.0
        %1520 = vmatprep.subr.mxu0 0.0
        %1521 = vmatpush1.msra.mxu0 0.0
        %1522 = vmatprep.subr.mxu0 0.0
        %1523 = vmatpush1.msra.mxu0 0.0
        %1524 = vmatprep.subr.mxu0 0.0
        %1525 = vmatpush1.msra.mxu0 0.0
        %1526 = vmatprep.subr.mxu0 0.0
        %1527 = vmatpush1.msra.mxu0 0.0
        %1528 = vmatprep.subr.mxu0 0.0
        %1529 = vmatpush1.msra.mxu0 0.0
        %1530 = vmatprep.subr.mxu0 0.0
        %1531 = vmatpush1.msra.mxu0 0.0
        %1532 = vmatprep.subr.mxu0 0.0
        %1533 = vmatpush1.msra.mxu0 0.0
        %1534 = vmatprep.subr.mxu0 0.0
        %1535 = vmatpush1.msra.mxu0 0.0
        %1536 = vmatprep.subr.mxu0 0.0
        %1537 = vmatpush1.msra.mxu0 0.0
        %1538 = vmatprep.subr.mxu0 0.0
        %1539 = vmatpush1.msra.mxu0 0.0
        %1540 = vmatprep.subr.mxu0 0.0
        %1541 = vmatpush1.msra.mxu0 0.0
        %1542 = vmatprep.subr.mxu0 0.0
        %1543 = vmatpush1.msra.mxu0 0.0
        %1544 = vmatprep.subr.mxu0 0.0
        %1545 = vmatpush1.msra.mxu0 0.0
        %1546 = vmatprep.subr.mxu0 0.0
        %1547 = vmatpush1.msra.mxu0 0.0
        %1548 = vmatprep.subr.mxu0 0.0
        %1549 = vmatpush1.msra.mxu0 0.0
        %1550 = vmatprep.subr.mxu0 0.0
        %1551 = vmatpush1.msra.mxu0 0.0
        %1552 = vmatprep.subr.mxu0 0.0
        %1553 = vmatpush1.msra.mxu0 0.0
        %1554 = vmatprep.subr.mxu0 0.0
        %1555 = vmatpush1.msra.mxu0 0.0
        %1556 = vmatprep.subr.mxu0 0.0
        %1557 = vmatpush1.msra.mxu0 0.0
        %1558 = vmatprep.subr.mxu0 0.0
        %1559 = vmatpush1.msra.mxu0 0.0
        %1560 = vmatprep.subr.mxu0 0.0
        %1561 = vmatpush1.msra.mxu0 0.0
        %1562 = vmatprep.subr.mxu0 0.0
        %1563 = vmatpush1.msra.mxu0 0.0
        %1564 = vmatprep.subr.mxu0 0.0
        %1565 = vmatpush1.msra.mxu0 0.0
        %1566 = vmatprep.subr.mxu0 0.0
        %1567 = vmatpush1.msra.mxu0 0.0
        %1568 = vmatprep.subr.mxu0 0.0
        %1569 = vmatpush1.msra.mxu0 0.0
        %1570 = vmatprep.mubr.f32.mxu0 0.0
        %1571 = vmatmul.mubr.f32.gmra.mrb[0].mxu0 %v717
        %v1572 = vpop.f32.mrb[0].mxu0
        %v1573 = vadd.f32 0.0, %v1572
        %v1574 = vpop.f32.mrb[0].mxu0
        %1575 = vdwg.mxu0
        %v1577 = vsel %vm719, %v1500, 0
        %1579 = vmatprep.subr.mxu0 0.0
        %1580 = vmatpush1.msra.mxu0 %v1577
        %1581 = vmatprep.subr.mxu0 0.0
        %1582 = vmatpush1.msra.mxu0 0.0
        %1583 = vmatprep.subr.mxu0 0.0
        %1584 = vmatpush1.msra.mxu0 0.0
        %1585 = vmatprep.subr.mxu0 0.0
        %1586 = vmatpush1.msra.mxu0 0.0
        %1587 = vmatprep.subr.mxu0 0.0
        %1588 = vmatpush1.msra.mxu0 0.0
        %1589 = vmatprep.subr.mxu0 0.0
        %1590 = vmatpush1.msra.mxu0 0.0
        %1591 = vmatprep.subr.mxu0 0.0
        %1592 = vmatpush1.msra.mxu0 0.0
        %1593 = vmatprep.subr.mxu0 0.0
        %1594 = vmatpush1.msra.mxu0 0.0
        %1595 = vmatprep.subr.mxu0 0.0
        %1596 = vmatpush1.msra.mxu0 0.0
        %1597 = vmatprep.subr.mxu0 0.0
        %1598 = vmatpush1.msra.mxu0 0.0
        %1599 = vmatprep.subr.mxu0 0.0
        %1600 = vmatpush1.msra.mxu0 0.0
        %1601 = vmatprep.subr.mxu0 0.0
        %1602 = vmatpush1.msra.mxu0 0.0
        %1603 = vmatprep.subr.mxu0 0.0
        %1604 = vmatpush1.msra.mxu0 0.0
        %1605 = vmatprep.subr.mxu0 0.0
        %1606 = vmatpush1.msra.mxu0 0.0
        %1607 = vmatprep.subr.mxu0 0.0
        %1608 = vmatpush1.msra.mxu0 0.0
        %1609 = vmatprep.subr.mxu0 0.0
        %1610 = vmatpush1.msra.mxu0 0.0
        %1611 = vmatprep.subr.mxu0 0.0
        %1612 = vmatpush1.msra.mxu0 0.0
        %1613 = vmatprep.subr.mxu0 0.0
        %1614 = vmatpush1.msra.mxu0 0.0
        %1615 = vmatprep.subr.mxu0 0.0
        %1616 = vmatpush1.msra.mxu0 0.0
        %1617 = vmatprep.subr.mxu0 0.0
        %1618 = vmatpush1.msra.mxu0 0.0
        %1619 = vmatprep.subr.mxu0 0.0
        %1620 = vmatpush1.msra.mxu0 0.0
        %1621 = vmatprep.subr.mxu0 0.0
        %1622 = vmatpush1.msra.mxu0 0.0
        %1623 = vmatprep.subr.mxu0 0.0
        %1624 = vmatpush1.msra.mxu0 0.0
        %1625 = vmatprep.subr.mxu0 0.0
        %1626 = vmatpush1.msra.mxu0 0.0
        %1627 = vmatprep.subr.mxu0 0.0
        %1628 = vmatpush1.msra.mxu0 0.0
        %1629 = vmatprep.subr.mxu0 0.0
        %1630 = vmatpush1.msra.mxu0 0.0
        %1631 = vmatprep.subr.mxu0 0.0
        %1632 = vmatpush1.msra.mxu0 0.0
        %1633 = vmatprep.subr.mxu0 0.0
        %1634 = vmatpush1.msra.mxu0 0.0
        %1635 = vmatprep.subr.mxu0 0.0
        %1636 = vmatpush1.msra.mxu0 0.0
        %1637 = vmatprep.subr.mxu0 0.0
        %1638 = vmatpush1.msra.mxu0 0.0
        %1639 = vmatprep.subr.mxu0 0.0
        %1640 = vmatpush1.msra.mxu0 0.0
        %1641 = vmatprep.subr.mxu0 0.0
        %1642 = vmatpush1.msra.mxu0 0.0
        %1643 = vmatprep.mubr.f32.mxu0 0.0
        %1644 = vmatmul.mubr.f32.gmra.mrb[0].mxu0 %v794
        %v1645 = vpop.f32.mrb[0].mxu0
        %v1646 = vadd.f32 %v1573, %v1645
        %v1647 = vpop.f32.mrb[0].mxu0
        %1648 = vdwg.mxu0
        %s1649 = scalar_lea.vmem %s707, 48
        %v1650 = vld [vmem:[%s1649] sm:$0x7]
        %v1652 = vsel %vm719, %v1650, 0
        %1654 = vmatprep.subr.mxu0 0.0
        %1655 = vmatpush1.msra.mxu0 %v1652
        %1656 = vmatprep.subr.mxu0 0.0
        %1657 = vmatpush1.msra.mxu0 0.0
        %1658 = vmatprep.subr.mxu0 0.0
        %1659 = vmatpush1.msra.mxu0 0.0
        %1660 = vmatprep.subr.mxu0 0.0
        %1661 = vmatpush1.msra.mxu0 0.0
        %1662 = vmatprep.subr.mxu0 0.0
        %1663 = vmatpush1.msra.mxu0 0.0
        %1664 = vmatprep.subr.mxu0 0.0
        %1665 = vmatpush1.msra.mxu0 0.0
        %1666 = vmatprep.subr.mxu0 0.0
        %1667 = vmatpush1.msra.mxu0 0.0
        %1668 = vmatprep.subr.mxu0 0.0
        %1669 = vmatpush1.msra.mxu0 0.0
        %1670 = vmatprep.subr.mxu0 0.0
        %1671 = vmatpush1.msra.mxu0 0.0
        %1672 = vmatprep.subr.mxu0 0.0
        %1673 = vmatpush1.msra.mxu0 0.0
        %1674 = vmatprep.subr.mxu0 0.0
        %1675 = vmatpush1.msra.mxu0 0.0
        %1676 = vmatprep.subr.mxu0 0.0
        %1677 = vmatpush1.msra.mxu0 0.0
        %1678 = vmatprep.subr.mxu0 0.0
        %1679 = vmatpush1.msra.mxu0 0.0
        %1680 = vmatprep.subr.mxu0 0.0
        %1681 = vmatpush1.msra.mxu0 0.0
        %1682 = vmatprep.subr.mxu0 0.0
        %1683 = vmatpush1.msra.mxu0 0.0
        %1684 = vmatprep.subr.mxu0 0.0
        %1685 = vmatpush1.msra.mxu0 0.0
        %1686 = vmatprep.subr.mxu0 0.0
        %1687 = vmatpush1.msra.mxu0 0.0
        %1688 = vmatprep.subr.mxu0 0.0
        %1689 = vmatpush1.msra.mxu0 0.0
        %1690 = vmatprep.subr.mxu0 0.0
        %1691 = vmatpush1.msra.mxu0 0.0
        %1692 = vmatprep.subr.mxu0 0.0
        %1693 = vmatpush1.msra.mxu0 0.0
        %1694 = vmatprep.subr.mxu0 0.0
        %1695 = vmatpush1.msra.mxu0 0.0
        %1696 = vmatprep.subr.mxu0 0.0
        %1697 = vmatpush1.msra.mxu0 0.0
        %1698 = vmatprep.subr.mxu0 0.0
        %1699 = vmatpush1.msra.mxu0 0.0
        %1700 = vmatprep.subr.mxu0 0.0
        %1701 = vmatpush1.msra.mxu0 0.0
        %1702 = vmatprep.subr.mxu0 0.0
        %1703 = vmatpush1.msra.mxu0 0.0
        %1704 = vmatprep.subr.mxu0 0.0
        %1705 = vmatpush1.msra.mxu0 0.0
        %1706 = vmatprep.subr.mxu0 0.0
        %1707 = vmatpush1.msra.mxu0 0.0
        %1708 = vmatprep.subr.mxu0 0.0
        %1709 = vmatpush1.msra.mxu0 0.0
        %1710 = vmatprep.subr.mxu0 0.0
        %1711 = vmatpush1.msra.mxu0 0.0
        %1712 = vmatprep.subr.mxu0 0.0
        %1713 = vmatpush1.msra.mxu0 0.0
        %1714 = vmatprep.subr.mxu0 0.0
        %1715 = vmatpush1.msra.mxu0 0.0
        %1716 = vmatprep.subr.mxu0 0.0
        %1717 = vmatpush1.msra.mxu0 0.0
        %1718 = vmatprep.mubr.f32.mxu0 0.0
        %1719 = vmatmul.mubr.f32.gmra.mrb[0].mxu0 %v874
        %v1720 = vpop.f32.mrb[0].mxu0
        %v1721 = vadd.f32 0.0, %v1720
        %v1722 = vpop.f32.mrb[0].mxu0
        %1723 = vdwg.mxu0
        %v1724 = vadd.f32 %v1646, %v1721
        %s1725 = scalar_lea.vmem %s707, 52
        %v1726 = vld [vmem:[%s1725] sm:$0x7]
        %v1728 = vsel %vm719, %v1726, 0
        %1730 = vmatprep.subr.mxu0 0.0
        %1731 = vmatpush1.msra.mxu0 %v1728
        %1732 = vmatprep.subr.mxu0 0.0
        %1733 = vmatpush1.msra.mxu0 0.0
        %1734 = vmatprep.subr.mxu0 0.0
        %1735 = vmatpush1.msra.mxu0 0.0
        %1736 = vmatprep.subr.mxu0 0.0
        %1737 = vmatpush1.msra.mxu0 0.0
        %1738 = vmatprep.subr.mxu0 0.0
        %1739 = vmatpush1.msra.mxu0 0.0
        %1740 = vmatprep.subr.mxu0 0.0
        %1741 = vmatpush1.msra.mxu0 0.0
        %1742 = vmatprep.subr.mxu0 0.0
        %1743 = vmatpush1.msra.mxu0 0.0
        %1744 = vmatprep.subr.mxu0 0.0
        %1745 = vmatpush1.msra.mxu0 0.0
        %1746 = vmatprep.subr.mxu0 0.0
        %1747 = vmatpush1.msra.mxu0 0.0
        %1748 = vmatprep.subr.mxu0 0.0
        %1749 = vmatpush1.msra.mxu0 0.0
        %1750 = vmatprep.subr.mxu0 0.0
        %1751 = vmatpush1.msra.mxu0 0.0
        %1752 = vmatprep.subr.mxu0 0.0
        %1753 = vmatpush1.msra.mxu0 0.0
        %1754 = vmatprep.subr.mxu0 0.0
        %1755 = vmatpush1.msra.mxu0 0.0
        %1756 = vmatprep.subr.mxu0 0.0
        %1757 = vmatpush1.msra.mxu0 0.0
        %1758 = vmatprep.subr.mxu0 0.0
        %1759 = vmatpush1.msra.mxu0 0.0
        %1760 = vmatprep.subr.mxu0 0.0
        %1761 = vmatpush1.msra.mxu0 0.0
        %1762 = vmatprep.subr.mxu0 0.0
        %1763 = vmatpush1.msra.mxu0 0.0
        %1764 = vmatprep.subr.mxu0 0.0
        %1765 = vmatpush1.msra.mxu0 0.0
        %1766 = vmatprep.subr.mxu0 0.0
        %1767 = vmatpush1.msra.mxu0 0.0
        %1768 = vmatprep.subr.mxu0 0.0
        %1769 = vmatpush1.msra.mxu0 0.0
        %1770 = vmatprep.subr.mxu0 0.0
        %1771 = vmatpush1.msra.mxu0 0.0
        %1772 = vmatprep.subr.mxu0 0.0
        %1773 = vmatpush1.msra.mxu0 0.0
        %1774 = vmatprep.subr.mxu0 0.0
        %1775 = vmatpush1.msra.mxu0 0.0
        %1776 = vmatprep.subr.mxu0 0.0
        %1777 = vmatpush1.msra.mxu0 0.0
        %1778 = vmatprep.subr.mxu0 0.0
        %1779 = vmatpush1.msra.mxu0 0.0
        %1780 = vmatprep.subr.mxu0 0.0
        %1781 = vmatpush1.msra.mxu0 0.0
        %1782 = vmatprep.subr.mxu0 0.0
        %1783 = vmatpush1.msra.mxu0 0.0
        %1784 = vmatprep.subr.mxu0 0.0
        %1785 = vmatpush1.msra.mxu0 0.0
        %1786 = vmatprep.subr.mxu0 0.0
        %1787 = vmatpush1.msra.mxu0 0.0
        %1788 = vmatprep.subr.mxu0 0.0
        %1789 = vmatpush1.msra.mxu0 0.0
        %1790 = vmatprep.subr.mxu0 0.0
        %1791 = vmatpush1.msra.mxu0 0.0
        %1792 = vmatprep.subr.mxu0 0.0
        %1793 = vmatpush1.msra.mxu0 0.0
        %1794 = vmatprep.mubr.f32.mxu0 0.0
        %1795 = vmatmul.mubr.f32.gmra.mrb[0].mxu0 %v955
        %v1796 = vpop.f32.mrb[0].mxu0
        %v1797 = vadd.f32 0.0, %v1796
        %v1798 = vpop.f32.mrb[0].mxu0
        %1799 = vdwg.mxu0
        %v1800 = vadd.f32 %v1724, %v1797
        %s1801 = scalar_lea.vmem %s707, 56
        %v1802 = vld [vmem:[%s1801] sm:$0x7]
        %v1804 = vsel %vm719, %v1802, 0
        %1806 = vmatprep.subr.mxu0 0.0
        %1807 = vmatpush1.msra.mxu0 %v1804
        %1808 = vmatprep.subr.mxu0 0.0
        %1809 = vmatpush1.msra.mxu0 0.0
        %1810 = vmatprep.subr.mxu0 0.0
        %1811 = vmatpush1.msra.mxu0 0.0
        %1812 = vmatprep.subr.mxu0 0.0
        %1813 = vmatpush1.msra.mxu0 0.0
        %1814 = vmatprep.subr.mxu0 0.0
        %1815 = vmatpush1.msra.mxu0 0.0
        %1816 = vmatprep.subr.mxu0 0.0
        %1817 = vmatpush1.msra.mxu0 0.0
        %1818 = vmatprep.subr.mxu0 0.0
        %1819 = vmatpush1.msra.mxu0 0.0
        %1820 = vmatprep.subr.mxu0 0.0
        %1821 = vmatpush1.msra.mxu0 0.0
        %1822 = vmatprep.subr.mxu0 0.0
        %1823 = vmatpush1.msra.mxu0 0.0
        %1824 = vmatprep.subr.mxu0 0.0
        %1825 = vmatpush1.msra.mxu0 0.0
        %1826 = vmatprep.subr.mxu0 0.0
        %1827 = vmatpush1.msra.mxu0 0.0
        %1828 = vmatprep.subr.mxu0 0.0
        %1829 = vmatpush1.msra.mxu0 0.0
        %1830 = vmatprep.subr.mxu0 0.0
        %1831 = vmatpush1.msra.mxu0 0.0
        %1832 = vmatprep.subr.mxu0 0.0
        %1833 = vmatpush1.msra.mxu0 0.0
        %1834 = vmatprep.subr.mxu0 0.0
        %1835 = vmatpush1.msra.mxu0 0.0
        %1836 = vmatprep.subr.mxu0 0.0
        %1837 = vmatpush1.msra.mxu0 0.0
        %1838 = vmatprep.subr.mxu0 0.0
        %1839 = vmatpush1.msra.mxu0 0.0
        %1840 = vmatprep.subr.mxu0 0.0
        %1841 = vmatpush1.msra.mxu0 0.0
        %1842 = vmatprep.subr.mxu0 0.0
        %1843 = vmatpush1.msra.mxu0 0.0
        %1844 = vmatprep.subr.mxu0 0.0
        %1845 = vmatpush1.msra.mxu0 0.0
        %1846 = vmatprep.subr.mxu0 0.0
        %1847 = vmatpush1.msra.mxu0 0.0
        %1848 = vmatprep.subr.mxu0 0.0
        %1849 = vmatpush1.msra.mxu0 0.0
        %1850 = vmatprep.subr.mxu0 0.0
        %1851 = vmatpush1.msra.mxu0 0.0
        %1852 = vmatprep.subr.mxu0 0.0
        %1853 = vmatpush1.msra.mxu0 0.0
        %1854 = vmatprep.subr.mxu0 0.0
        %1855 = vmatpush1.msra.mxu0 0.0
        %1856 = vmatprep.subr.mxu0 0.0
        %1857 = vmatpush1.msra.mxu0 0.0
        %1858 = vmatprep.subr.mxu0 0.0
        %1859 = vmatpush1.msra.mxu0 0.0
        %1860 = vmatprep.subr.mxu0 0.0
        %1861 = vmatpush1.msra.mxu0 0.0
        %1862 = vmatprep.subr.mxu0 0.0
        %1863 = vmatpush1.msra.mxu0 0.0
        %1864 = vmatprep.subr.mxu0 0.0
        %1865 = vmatpush1.msra.mxu0 0.0
        %1866 = vmatprep.subr.mxu0 0.0
        %1867 = vmatpush1.msra.mxu0 0.0
        %1868 = vmatprep.subr.mxu0 0.0
        %1869 = vmatpush1.msra.mxu0 0.0
        %1870 = vmatprep.mubr.f32.mxu0 0.0
        %1871 = vmatmul.mubr.f32.gmra.mrb[0].mxu0 %v1036
        %v1872 = vpop.f32.mrb[0].mxu0
        %v1873 = vadd.f32 0.0, %v1872
        %v1874 = vpop.f32.mrb[0].mxu0
        %1875 = vdwg.mxu0
        %v1876 = vadd.f32 %v1800, %v1873
        %v1877 = vadd.f32 %v1876, %v1115
        %v1878 = vmax.f32 %v1877, 0.0
        %s1879 = scalar_lea.vmem %s707, 60
        %v1880 = vld [vmem:[%s1879] sm:$0x7]
        %s1881 = scalar_lea.vmem %s707, 64
        %v1882 = vld [vmem:[%s1881] sm:$0x7]
        %v1884 = vsel %vm719, %v1882, 0
        %1886 = vmatprep.subr.mxu0 0.0
        %1887 = vmatpush1.msra.mxu0 %v1884
        %1888 = vmatprep.subr.mxu0 0.0
        %1889 = vmatpush1.msra.mxu0 0.0
        %1890 = vmatprep.subr.mxu0 0.0
        %1891 = vmatpush1.msra.mxu0 0.0
        %1892 = vmatprep.subr.mxu0 0.0
        %1893 = vmatpush1.msra.mxu0 0.0
        %1894 = vmatprep.subr.mxu0 0.0
        %1895 = vmatpush1.msra.mxu0 0.0
        %1896 = vmatprep.subr.mxu0 0.0
        %1897 = vmatpush1.msra.mxu0 0.0
        %1898 = vmatprep.subr.mxu0 0.0
        %1899 = vmatpush1.msra.mxu0 0.0
        %1900 = vmatprep.subr.mxu0 0.0
        %1901 = vmatpush1.msra.mxu0 0.0
        %1902 = vmatprep.subr.mxu0 0.0
        %1903 = vmatpush1.msra.mxu0 0.0
        %1904 = vmatprep.subr.mxu0 0.0
        %1905 = vmatpush1.msra.mxu0 0.0
        %1906 = vmatprep.subr.mxu0 0.0
        %1907 = vmatpush1.msra.mxu0 0.0
        %1908 = vmatprep.subr.mxu0 0.0
        %1909 = vmatpush1.msra.mxu0 0.0
        %1910 = vmatprep.subr.mxu0 0.0
        %1911 = vmatpush1.msra.mxu0 0.0
        %1912 = vmatprep.subr.mxu0 0.0
        %1913 = vmatpush1.msra.mxu0 0.0
        %1914 = vmatprep.subr.mxu0 0.0
        %1915 = vmatpush1.msra.mxu0 0.0
        %1916 = vmatprep.subr.mxu0 0.0
        %1917 = vmatpush1.msra.mxu0 0.0
        %1918 = vmatprep.subr.mxu0 0.0
        %1919 = vmatpush1.msra.mxu0 0.0
        %1920 = vmatprep.subr.mxu0 0.0
        %1921 = vmatpush1.msra.mxu0 0.0
        %1922 = vmatprep.subr.mxu0 0.0
        %1923 = vmatpush1.msra.mxu0 0.0
        %1924 = vmatprep.subr.mxu0 0.0
        %1925 = vmatpush1.msra.mxu0 0.0
        %1926 = vmatprep.subr.mxu0 0.0
        %1927 = vmatpush1.msra.mxu0 0.0
        %1928 = vmatprep.subr.mxu0 0.0
        %1929 = vmatpush1.msra.mxu0 0.0
        %1930 = vmatprep.subr.mxu0 0.0
        %1931 = vmatpush1.msra.mxu0 0.0
        %1932 = vmatprep.subr.mxu0 0.0
        %1933 = vmatpush1.msra.mxu0 0.0
        %1934 = vmatprep.subr.mxu0 0.0
        %1935 = vmatpush1.msra.mxu0 0.0
        %1936 = vmatprep.subr.mxu0 0.0
        %1937 = vmatpush1.msra.mxu0 0.0
        %1938 = vmatprep.subr.mxu0 0.0
        %1939 = vmatpush1.msra.mxu0 0.0
        %1940 = vmatprep.subr.mxu0 0.0
        %1941 = vmatpush1.msra.mxu0 0.0
        %1942 = vmatprep.subr.mxu0 0.0
        %1943 = vmatpush1.msra.mxu0 0.0
        %1944 = vmatprep.subr.mxu0 0.0
        %1945 = vmatpush1.msra.mxu0 0.0
        %1946 = vmatprep.subr.mxu0 0.0
        %1947 = vmatpush1.msra.mxu0 0.0
        %1948 = vmatprep.subr.mxu0 0.0
        %1949 = vmatpush1.msra.mxu0 0.0
        %1950 = vmatprep.mubr.f32.mxu0 0.0
        %1951 = vmatmul.mubr.f32.gmra.mrb[0].mxu0 %v717
        %v1952 = vpop.f32.mrb[0].mxu0
        %v1953 = vadd.f32 0.0, %v1952
        %v1954 = vpop.f32.mrb[0].mxu0
        %1955 = vdwg.mxu0
        %v1957 = vsel %vm719, %v1880, 0
        %1959 = vmatprep.subr.mxu0 0.0
        %1960 = vmatpush1.msra.mxu0 %v1957
        %1961 = vmatprep.subr.mxu0 0.0
        %1962 = vmatpush1.msra.mxu0 0.0
        %1963 = vmatprep.subr.mxu0 0.0
        %1964 = vmatpush1.msra.mxu0 0.0
        %1965 = vmatprep.subr.mxu0 0.0
        %1966 = vmatpush1.msra.mxu0 0.0
        %1967 = vmatprep.subr.mxu0 0.0
        %1968 = vmatpush1.msra.mxu0 0.0
        %1969 = vmatprep.subr.mxu0 0.0
        %1970 = vmatpush1.msra.mxu0 0.0
        %1971 = vmatprep.subr.mxu0 0.0
        %1972 = vmatpush1.msra.mxu0 0.0
        %1973 = vmatprep.subr.mxu0 0.0
        %1974 = vmatpush1.msra.mxu0 0.0
        %1975 = vmatprep.subr.mxu0 0.0
        %1976 = vmatpush1.msra.mxu0 0.0
        %1977 = vmatprep.subr.mxu0 0.0
        %1978 = vmatpush1.msra.mxu0 0.0
        %1979 = vmatprep.subr.mxu0 0.0
        %1980 = vmatpush1.msra.mxu0 0.0
        %1981 = vmatprep.subr.mxu0 0.0
        %1982 = vmatpush1.msra.mxu0 0.0
        %1983 = vmatprep.subr.mxu0 0.0
        %1984 = vmatpush1.msra.mxu0 0.0
        %1985 = vmatprep.subr.mxu0 0.0
        %1986 = vmatpush1.msra.mxu0 0.0
        %1987 = vmatprep.subr.mxu0 0.0
        %1988 = vmatpush1.msra.mxu0 0.0
        %1989 = vmatprep.subr.mxu0 0.0
        %1990 = vmatpush1.msra.mxu0 0.0
        %1991 = vmatprep.subr.mxu0 0.0
        %1992 = vmatpush1.msra.mxu0 0.0
        %1993 = vmatprep.subr.mxu0 0.0
        %1994 = vmatpush1.msra.mxu0 0.0
        %1995 = vmatprep.subr.mxu0 0.0
        %1996 = vmatpush1.msra.mxu0 0.0
        %1997 = vmatprep.subr.mxu0 0.0
        %1998 = vmatpush1.msra.mxu0 0.0
        %1999 = vmatprep.subr.mxu0 0.0
        %2000 = vmatpush1.msra.mxu0 0.0
        %2001 = vmatprep.subr.mxu0 0.0
        %2002 = vmatpush1.msra.mxu0 0.0
        %2003 = vmatprep.subr.mxu0 0.0
        %2004 = vmatpush1.msra.mxu0 0.0
        %2005 = vmatprep.subr.mxu0 0.0
        %2006 = vmatpush1.msra.mxu0 0.0
        %2007 = vmatprep.subr.mxu0 0.0
        %2008 = vmatpush1.msra.mxu0 0.0
        %2009 = vmatprep.subr.mxu0 0.0
        %2010 = vmatpush1.msra.mxu0 0.0
        %2011 = vmatprep.subr.mxu0 0.0
        %2012 = vmatpush1.msra.mxu0 0.0
        %2013 = vmatprep.subr.mxu0 0.0
        %2014 = vmatpush1.msra.mxu0 0.0
        %2015 = vmatprep.subr.mxu0 0.0
        %2016 = vmatpush1.msra.mxu0 0.0
        %2017 = vmatprep.subr.mxu0 0.0
        %2018 = vmatpush1.msra.mxu0 0.0
        %2019 = vmatprep.subr.mxu0 0.0
        %2020 = vmatpush1.msra.mxu0 0.0
        %2021 = vmatprep.subr.mxu0 0.0
        %2022 = vmatpush1.msra.mxu0 0.0
        %2023 = vmatprep.mubr.f32.mxu0 0.0
        %2024 = vmatmul.mubr.f32.gmra.mrb[0].mxu0 %v794
        %v2025 = vpop.f32.mrb[0].mxu0
        %v2026 = vadd.f32 %v1953, %v2025
        %v2027 = vpop.f32.mrb[0].mxu0
        %2028 = vdwg.mxu0
        %s2029 = scalar_lea.vmem %s707, 68
        %v2030 = vld [vmem:[%s2029] sm:$0x7]
        %v2032 = vsel %vm719, %v2030, 0
        %2034 = vmatprep.subr.mxu0 0.0
        %2035 = vmatpush1.msra.mxu0 %v2032
        %2036 = vmatprep.subr.mxu0 0.0
        %2037 = vmatpush1.msra.mxu0 0.0
        %2038 = vmatprep.subr.mxu0 0.0
        %2039 = vmatpush1.msra.mxu0 0.0
        %2040 = vmatprep.subr.mxu0 0.0
        %2041 = vmatpush1.msra.mxu0 0.0
        %2042 = vmatprep.subr.mxu0 0.0
        %2043 = vmatpush1.msra.mxu0 0.0
        %2044 = vmatprep.subr.mxu0 0.0
        %2045 = vmatpush1.msra.mxu0 0.0
        %2046 = vmatprep.subr.mxu0 0.0
        %2047 = vmatpush1.msra.mxu0 0.0
        %2048 = vmatprep.subr.mxu0 0.0
        %2049 = vmatpush1.msra.mxu0 0.0
        %2050 = vmatprep.subr.mxu0 0.0
        %2051 = vmatpush1.msra.mxu0 0.0
        %2052 = vmatprep.subr.mxu0 0.0
        %2053 = vmatpush1.msra.mxu0 0.0
        %2054 = vmatprep.subr.mxu0 0.0
        %2055 = vmatpush1.msra.mxu0 0.0
        %2056 = vmatprep.subr.mxu0 0.0
        %2057 = vmatpush1.msra.mxu0 0.0
        %2058 = vmatprep.subr.mxu0 0.0
        %2059 = vmatpush1.msra.mxu0 0.0
        %2060 = vmatprep.subr.mxu0 0.0
        %2061 = vmatpush1.msra.mxu0 0.0
        %2062 = vmatprep.subr.mxu0 0.0
        %2063 = vmatpush1.msra.mxu0 0.0
        %2064 = vmatprep.subr.mxu0 0.0
        %2065 = vmatpush1.msra.mxu0 0.0
        %2066 = vmatprep.subr.mxu0 0.0
        %2067 = vmatpush1.msra.mxu0 0.0
        %2068 = vmatprep.subr.mxu0 0.0
        %2069 = vmatpush1.msra.mxu0 0.0
        %2070 = vmatprep.subr.mxu0 0.0
        %2071 = vmatpush1.msra.mxu0 0.0
        %2072 = vmatprep.subr.mxu0 0.0
        %2073 = vmatpush1.msra.mxu0 0.0
        %2074 = vmatprep.subr.mxu0 0.0
        %2075 = vmatpush1.msra.mxu0 0.0
        %2076 = vmatprep.subr.mxu0 0.0
        %2077 = vmatpush1.msra.mxu0 0.0
        %2078 = vmatprep.subr.mxu0 0.0
        %2079 = vmatpush1.msra.mxu0 0.0
        %2080 = vmatprep.subr.mxu0 0.0
        %2081 = vmatpush1.msra.mxu0 0.0
        %2082 = vmatprep.subr.mxu0 0.0
        %2083 = vmatpush1.msra.mxu0 0.0
        %2084 = vmatprep.subr.mxu0 0.0
        %2085 = vmatpush1.msra.mxu0 0.0
        %2086 = vmatprep.subr.mxu0 0.0
        %2087 = vmatpush1.msra.mxu0 0.0
        %2088 = vmatprep.subr.mxu0 0.0
        %2089 = vmatpush1.msra.mxu0 0.0
        %2090 = vmatprep.subr.mxu0 0.0
        %2091 = vmatpush1.msra.mxu0 0.0
        %2092 = vmatprep.subr.mxu0 0.0
        %2093 = vmatpush1.msra.mxu0 0.0
        %2094 = vmatprep.subr.mxu0 0.0
        %2095 = vmatpush1.msra.mxu0 0.0
        %2096 = vmatprep.subr.mxu0 0.0
        %2097 = vmatpush1.msra.mxu0 0.0
        %2098 = vmatprep.mubr.f32.mxu0 0.0
        %2099 = vmatmul.mubr.f32.gmra.mrb[0].mxu0 %v874
        %v2100 = vpop.f32.mrb[0].mxu0
        %v2101 = vadd.f32 0.0, %v2100
        %v2102 = vpop.f32.mrb[0].mxu0
        %2103 = vdwg.mxu0
        %v2104 = vadd.f32 %v2026, %v2101
        %s2105 = scalar_lea.vmem %s707, 72
        %v2106 = vld [vmem:[%s2105] sm:$0x7]
        %v2108 = vsel %vm719, %v2106, 0
        %2110 = vmatprep.subr.mxu0 0.0
        %2111 = vmatpush1.msra.mxu0 %v2108
        %2112 = vmatprep.subr.mxu0 0.0
        %2113 = vmatpush1.msra.mxu0 0.0
        %2114 = vmatprep.subr.mxu0 0.0
        %2115 = vmatpush1.msra.mxu0 0.0
        %2116 = vmatprep.subr.mxu0 0.0
        %2117 = vmatpush1.msra.mxu0 0.0
        %2118 = vmatprep.subr.mxu0 0.0
        %2119 = vmatpush1.msra.mxu0 0.0
        %2120 = vmatprep.subr.mxu0 0.0
        %2121 = vmatpush1.msra.mxu0 0.0
        %2122 = vmatprep.subr.mxu0 0.0
        %2123 = vmatpush1.msra.mxu0 0.0
        %2124 = vmatprep.subr.mxu0 0.0
        %2125 = vmatpush1.msra.mxu0 0.0
        %2126 = vmatprep.subr.mxu0 0.0
        %2127 = vmatpush1.msra.mxu0 0.0
        %2128 = vmatprep.subr.mxu0 0.0
        %2129 = vmatpush1.msra.mxu0 0.0
        %2130 = vmatprep.subr.mxu0 0.0
        %2131 = vmatpush1.msra.mxu0 0.0
        %2132 = vmatprep.subr.mxu0 0.0
        %2133 = vmatpush1.msra.mxu0 0.0
        %2134 = vmatprep.subr.mxu0 0.0
        %2135 = vmatpush1.msra.mxu0 0.0
        %2136 = vmatprep.subr.mxu0 0.0
        %2137 = vmatpush1.msra.mxu0 0.0
        %2138 = vmatprep.subr.mxu0 0.0
        %2139 = vmatpush1.msra.mxu0 0.0
        %2140 = vmatprep.subr.mxu0 0.0
        %2141 = vmatpush1.msra.mxu0 0.0
        %2142 = vmatprep.subr.mxu0 0.0
        %2143 = vmatpush1.msra.mxu0 0.0
        %2144 = vmatprep.subr.mxu0 0.0
        %2145 = vmatpush1.msra.mxu0 0.0
        %2146 = vmatprep.subr.mxu0 0.0
        %2147 = vmatpush1.msra.mxu0 0.0
        %2148 = vmatprep.subr.mxu0 0.0
        %2149 = vmatpush1.msra.mxu0 0.0
        %2150 = vmatprep.subr.mxu0 0.0
        %2151 = vmatpush1.msra.mxu0 0.0
        %2152 = vmatprep.subr.mxu0 0.0
        %2153 = vmatpush1.msra.mxu0 0.0
        %2154 = vmatprep.subr.mxu0 0.0
        %2155 = vmatpush1.msra.mxu0 0.0
        %2156 = vmatprep.subr.mxu0 0.0
        %2157 = vmatpush1.msra.mxu0 0.0
        %2158 = vmatprep.subr.mxu0 0.0
        %2159 = vmatpush1.msra.mxu0 0.0
        %2160 = vmatprep.subr.mxu0 0.0
        %2161 = vmatpush1.msra.mxu0 0.0
        %2162 = vmatprep.subr.mxu0 0.0
        %2163 = vmatpush1.msra.mxu0 0.0
        %2164 = vmatprep.subr.mxu0 0.0
        %2165 = vmatpush1.msra.mxu0 0.0
        %2166 = vmatprep.subr.mxu0 0.0
        %2167 = vmatpush1.msra.mxu0 0.0
        %2168 = vmatprep.subr.mxu0 0.0
        %2169 = vmatpush1.msra.mxu0 0.0
        %2170 = vmatprep.subr.mxu0 0.0
        %2171 = vmatpush1.msra.mxu0 0.0
        %2172 = vmatprep.subr.mxu0 0.0
        %2173 = vmatpush1.msra.mxu0 0.0
        %2174 = vmatprep.mubr.f32.mxu0 0.0
        %2175 = vmatmul.mubr.f32.gmra.mrb[0].mxu0 %v955
        %v2176 = vpop.f32.mrb[0].mxu0
        %v2177 = vadd.f32 0.0, %v2176
        %v2178 = vpop.f32.mrb[0].mxu0
        %2179 = vdwg.mxu0
        %v2180 = vadd.f32 %v2104, %v2177
        %s2181 = scalar_lea.vmem %s707, 76
        %v2182 = vld [vmem:[%s2181] sm:$0x7]
        %v2184 = vsel %vm719, %v2182, 0
        %2186 = vmatprep.subr.mxu0 0.0
        %2187 = vmatpush1.msra.mxu0 %v2184
        %2188 = vmatprep.subr.mxu0 0.0
        %2189 = vmatpush1.msra.mxu0 0.0
        %2190 = vmatprep.subr.mxu0 0.0
        %2191 = vmatpush1.msra.mxu0 0.0
        %2192 = vmatprep.subr.mxu0 0.0
        %2193 = vmatpush1.msra.mxu0 0.0
        %2194 = vmatprep.subr.mxu0 0.0
        %2195 = vmatpush1.msra.mxu0 0.0
        %2196 = vmatprep.subr.mxu0 0.0
        %2197 = vmatpush1.msra.mxu0 0.0
        %2198 = vmatprep.subr.mxu0 0.0
        %2199 = vmatpush1.msra.mxu0 0.0
        %2200 = vmatprep.subr.mxu0 0.0
        %2201 = vmatpush1.msra.mxu0 0.0
        %2202 = vmatprep.subr.mxu0 0.0
        %2203 = vmatpush1.msra.mxu0 0.0
        %2204 = vmatprep.subr.mxu0 0.0
        %2205 = vmatpush1.msra.mxu0 0.0
        %2206 = vmatprep.subr.mxu0 0.0
        %2207 = vmatpush1.msra.mxu0 0.0
        %2208 = vmatprep.subr.mxu0 0.0
        %2209 = vmatpush1.msra.mxu0 0.0
        %2210 = vmatprep.subr.mxu0 0.0
        %2211 = vmatpush1.msra.mxu0 0.0
        %2212 = vmatprep.subr.mxu0 0.0
        %2213 = vmatpush1.msra.mxu0 0.0
        %2214 = vmatprep.subr.mxu0 0.0
        %2215 = vmatpush1.msra.mxu0 0.0
        %2216 = vmatprep.subr.mxu0 0.0
        %2217 = vmatpush1.msra.mxu0 0.0
        %2218 = vmatprep.subr.mxu0 0.0
        %2219 = vmatpush1.msra.mxu0 0.0
        %2220 = vmatprep.subr.mxu0 0.0
        %2221 = vmatpush1.msra.mxu0 0.0
        %2222 = vmatprep.subr.mxu0 0.0
        %2223 = vmatpush1.msra.mxu0 0.0
        %2224 = vmatprep.subr.mxu0 0.0
        %2225 = vmatpush1.msra.mxu0 0.0
        %2226 = vmatprep.subr.mxu0 0.0
        %2227 = vmatpush1.msra.mxu0 0.0
        %2228 = vmatprep.subr.mxu0 0.0
        %2229 = vmatpush1.msra.mxu0 0.0
        %2230 = vmatprep.subr.mxu0 0.0
        %2231 = vmatpush1.msra.mxu0 0.0
        %2232 = vmatprep.subr.mxu0 0.0
        %2233 = vmatpush1.msra.mxu0 0.0
        %2234 = vmatprep.subr.mxu0 0.0
        %2235 = vmatpush1.msra.mxu0 0.0
        %2236 = vmatprep.subr.mxu0 0.0
        %2237 = vmatpush1.msra.mxu0 0.0
        %2238 = vmatprep.subr.mxu0 0.0
        %2239 = vmatpush1.msra.mxu0 0.0
        %2240 = vmatprep.subr.mxu0 0.0
        %2241 = vmatpush1.msra.mxu0 0.0
        %2242 = vmatprep.subr.mxu0 0.0
        %2243 = vmatpush1.msra.mxu0 0.0
        %2244 = vmatprep.subr.mxu0 0.0
        %2245 = vmatpush1.msra.mxu0 0.0
        %2246 = vmatprep.subr.mxu0 0.0
        %2247 = vmatpush1.msra.mxu0 0.0
        %2248 = vmatprep.subr.mxu0 0.0
        %2249 = vmatpush1.msra.mxu0 0.0
        %2250 = vmatprep.mubr.f32.mxu0 0.0
        %2251 = vmatmul.mubr.f32.gmra.mrb[0].mxu0 %v1036
        %v2252 = vpop.f32.mrb[0].mxu0
        %v2253 = vadd.f32 0.0, %v2252
        %v2254 = vpop.f32.mrb[0].mxu0
        %2255 = vdwg.mxu0
        %v2256 = vadd.f32 %v2180, %v2253
        %v2257 = vadd.f32 %v2256, %v1115
        %v2258 = vmax.f32 %v2257, 0.0
        %v2259 = vmax.f32 %v1118, %v1498
        %v2260 = vmax.f32 %v1878, %v2258
        %v2261 = vld [vmem:[%s3] sm:$0xff]
        %v2262 = vld [vmem:[%s3 + $0x8] sm:$0xff]
        %s2263 = scalar_lea.vmem %s3, 16
        %v2264 = vld [vmem:[%s2263] sm:$0xff]
        %v2265 = vld [vmem:[%s2263 + $0x8] sm:$0xff]
        %vm2266 = vcmask 64512
        %v2268 = vsel %vm2266, %v2264, 0
        %v2271 = vsel %vm2266, %v2265, 0
        %2273 = vmatprep.subr.mxu0 0.0
        %2274 = vmatpush1.msra.mxu0 %v2260
        %2275 = vmatprep.subr.mxu0 0.0
        %2276 = vmatpush1.msra.mxu0 0.0
        %2277 = vmatprep.subr.mxu0 0.0
        %2278 = vmatpush1.msra.mxu0 0.0
        %2279 = vmatprep.subr.mxu0 0.0
        %2280 = vmatpush1.msra.mxu0 0.0
        %2281 = vmatprep.subr.mxu0 0.0
        %2282 = vmatpush1.msra.mxu0 0.0
        %2283 = vmatprep.subr.mxu0 0.0
        %2284 = vmatpush1.msra.mxu0 0.0
        %2285 = vmatprep.subr.mxu0 0.0
        %2286 = vmatpush1.msra.mxu0 0.0
        %2287 = vmatprep.subr.mxu0 0.0
        %2288 = vmatpush1.msra.mxu0 0.0
        %2289 = vmatprep.subr.mxu0 0.0
        %2290 = vmatpush1.msra.mxu0 0.0
        %2291 = vmatprep.subr.mxu0 0.0
        %2292 = vmatpush1.msra.mxu0 0.0
        %2293 = vmatprep.subr.mxu0 0.0
        %2294 = vmatpush1.msra.mxu0 0.0
        %2295 = vmatprep.subr.mxu0 0.0
        %2296 = vmatpush1.msra.mxu0 0.0
        %2297 = vmatprep.subr.mxu0 0.0
        %2298 = vmatpush1.msra.mxu0 0.0
        %2299 = vmatprep.subr.mxu0 0.0
        %2300 = vmatpush1.msra.mxu0 0.0
        %2301 = vmatprep.subr.mxu0 0.0
        %2302 = vmatpush1.msra.mxu0 0.0
        %2303 = vmatprep.subr.mxu0 0.0
        %2304 = vmatpush1.msra.mxu0 0.0
        %2305 = vmatprep.subr.mxu0 0.0
        %2306 = vmatpush1.msra.mxu0 0.0
        %2307 = vmatprep.subr.mxu0 0.0
        %2308 = vmatpush1.msra.mxu0 0.0
        %2309 = vmatprep.subr.mxu0 0.0
        %2310 = vmatpush1.msra.mxu0 0.0
        %2311 = vmatprep.subr.mxu0 0.0
        %2312 = vmatpush1.msra.mxu0 0.0
        %2313 = vmatprep.subr.mxu0 0.0
        %2314 = vmatpush1.msra.mxu0 0.0
        %2315 = vmatprep.subr.mxu0 0.0
        %2316 = vmatpush1.msra.mxu0 0.0
        %2317 = vmatprep.subr.mxu0 0.0
        %2318 = vmatpush1.msra.mxu0 0.0
        %2319 = vmatprep.subr.mxu0 0.0
        %2320 = vmatpush1.msra.mxu0 0.0
        %2321 = vmatprep.subr.mxu0 0.0
        %2322 = vmatpush1.msra.mxu0 0.0
        %2323 = vmatprep.subr.mxu0 0.0
        %2324 = vmatpush1.msra.mxu0 0.0
        %2325 = vmatprep.subr.mxu0 0.0
        %2326 = vmatpush1.msra.mxu0 0.0
        %2327 = vmatprep.subr.mxu0 0.0
        %2328 = vmatpush1.msra.mxu0 0.0
        %2329 = vmatprep.subr.mxu0 0.0
        %2330 = vmatpush1.msra.mxu0 0.0
        %2331 = vmatprep.subr.mxu0 0.0
        %2332 = vmatpush1.msra.mxu0 0.0
        %2333 = vmatprep.subr.mxu0 0.0
        %2334 = vmatpush1.msra.mxu0 0.0
        %2335 = vmatprep.subr.mxu0 0.0
        %2336 = vmatpush1.msra.mxu0 0.0
        %2337 = vmatprep.mubr.f32.mxu0 0.0
        %2338 = vmatmul.mubr.f32.gmra.mrb[0].mxu0 %v2268
        %v2339 = vpop.f32.mrb[0].mxu0
        %v2340 = vadd.f32 0.0, %v2339
        %v2341 = vpop.f32.mrb[0].mxu0
        %2342 = vmatprep.mubr.f32.mxu0 0.0
        %2343 = vmatmul.mubr.f32.gmra.mrb[0].mxu0 %v2271
        %v2344 = vpop.f32.mrb[0].mxu0
        %v2345 = vadd.f32 0.0, %v2344
        %v2346 = vpop.f32.mrb[0].mxu0
        %2347 = vdwg.mxu0
        %v2349 = vsel %vm2266, %v2261, 0
        %v2352 = vsel %vm2266, %v2262, 0
        %2354 = vmatprep.subr.mxu0 0.0
        %2355 = vmatpush1.msra.mxu0 %v2259
        %2356 = vmatprep.subr.mxu0 0.0
        %2357 = vmatpush1.msra.mxu0 0.0
        %2358 = vmatprep.subr.mxu0 0.0
        %2359 = vmatpush1.msra.mxu0 0.0
        %2360 = vmatprep.subr.mxu0 0.0
        %2361 = vmatpush1.msra.mxu0 0.0
        %2362 = vmatprep.subr.mxu0 0.0
        %2363 = vmatpush1.msra.mxu0 0.0
        %2364 = vmatprep.subr.mxu0 0.0
        %2365 = vmatpush1.msra.mxu0 0.0
        %2366 = vmatprep.subr.mxu0 0.0
        %2367 = vmatpush1.msra.mxu0 0.0
        %2368 = vmatprep.subr.mxu0 0.0
        %2369 = vmatpush1.msra.mxu0 0.0
        %2370 = vmatprep.subr.mxu0 0.0
        %2371 = vmatpush1.msra.mxu0 0.0
        %2372 = vmatprep.subr.mxu0 0.0
        %2373 = vmatpush1.msra.mxu0 0.0
        %2374 = vmatprep.subr.mxu0 0.0
        %2375 = vmatpush1.msra.mxu0 0.0
        %2376 = vmatprep.subr.mxu0 0.0
        %2377 = vmatpush1.msra.mxu0 0.0
        %2378 = vmatprep.subr.mxu0 0.0
        %2379 = vmatpush1.msra.mxu0 0.0
        %2380 = vmatprep.subr.mxu0 0.0
        %2381 = vmatpush1.msra.mxu0 0.0
        %2382 = vmatprep.subr.mxu0 0.0
        %2383 = vmatpush1.msra.mxu0 0.0
        %2384 = vmatprep.subr.mxu0 0.0
        %2385 = vmatpush1.msra.mxu0 0.0
        %2386 = vmatprep.subr.mxu0 0.0
        %2387 = vmatpush1.msra.mxu0 0.0
        %2388 = vmatprep.subr.mxu0 0.0
        %2389 = vmatpush1.msra.mxu0 0.0
        %2390 = vmatprep.subr.mxu0 0.0
        %2391 = vmatpush1.msra.mxu0 0.0
        %2392 = vmatprep.subr.mxu0 0.0
        %2393 = vmatpush1.msra.mxu0 0.0
        %2394 = vmatprep.subr.mxu0 0.0
        %2395 = vmatpush1.msra.mxu0 0.0
        %2396 = vmatprep.subr.mxu0 0.0
        %2397 = vmatpush1.msra.mxu0 0.0
        %2398 = vmatprep.subr.mxu0 0.0
        %2399 = vmatpush1.msra.mxu0 0.0
        %2400 = vmatprep.subr.mxu0 0.0
        %2401 = vmatpush1.msra.mxu0 0.0
        %2402 = vmatprep.subr.mxu0 0.0
        %2403 = vmatpush1.msra.mxu0 0.0
        %2404 = vmatprep.subr.mxu0 0.0
        %2405 = vmatpush1.msra.mxu0 0.0
        %2406 = vmatprep.subr.mxu0 0.0
        %2407 = vmatpush1.msra.mxu0 0.0
        %2408 = vmatprep.subr.mxu0 0.0
        %2409 = vmatpush1.msra.mxu0 0.0
        %2410 = vmatprep.subr.mxu0 0.0
        %2411 = vmatpush1.msra.mxu0 0.0
        %2412 = vmatprep.subr.mxu0 0.0
        %2413 = vmatpush1.msra.mxu0 0.0
        %2414 = vmatprep.subr.mxu0 0.0
        %2415 = vmatpush1.msra.mxu0 0.0
        %2416 = vmatprep.subr.mxu0 0.0
        %2417 = vmatpush1.msra.mxu0 0.0
        %2418 = vmatprep.mubr.f32.mxu0 0.0
        %2419 = vmatmul.mubr.f32.gmra.mrb[0].mxu0 %v2349
        %v2420 = vpop.f32.mrb[0].mxu0
        %v2421 = vadd.f32 %v2340, %v2420
        %v2422 = vpop.f32.mrb[0].mxu0
        %2423 = vmatprep.mubr.f32.mxu0 0.0
        %2424 = vmatmul.mubr.f32.gmra.mrb[0].mxu0 %v2352
        %v2425 = vpop.f32.mrb[0].mxu0
        %v2426 = vadd.f32 %v2345, %v2425
        %v2427 = vpop.f32.mrb[0].mxu0
        %2428 = vdwg.mxu0
        %s2429 = scalar_lea.vmem %s3, 32
        %v2430 = vld [vmem:[%s2429] sm:$0xff]
        %v2431 = vld [vmem:[%s2429 + $0x8] sm:$0xff]
        %2433 = vrot.lane.b32.xlu0 %v2259, 127
        %v2434 = vpop.permute.xlu0 %2433
        %v2437 = vsel %vm2266, %v2430, 0
        %v2440 = vsel %vm2266, %v2431, 0
        %2442 = vmatprep.subr.mxu0 0.0
        %2443 = vmatpush1.msra.mxu0 %v2434
        %2444 = vmatprep.subr.mxu0 0.0
        %2445 = vmatpush1.msra.mxu0 0.0
        %2446 = vmatprep.subr.mxu0 0.0
        %2447 = vmatpush1.msra.mxu0 0.0
        %2448 = vmatprep.subr.mxu0 0.0
        %2449 = vmatpush1.msra.mxu0 0.0
        %2450 = vmatprep.subr.mxu0 0.0
        %2451 = vmatpush1.msra.mxu0 0.0
        %2452 = vmatprep.subr.mxu0 0.0
        %2453 = vmatpush1.msra.mxu0 0.0
        %2454 = vmatprep.subr.mxu0 0.0
        %2455 = vmatpush1.msra.mxu0 0.0
        %2456 = vmatprep.subr.mxu0 0.0
        %2457 = vmatpush1.msra.mxu0 0.0
        %2458 = vmatprep.subr.mxu0 0.0
        %2459 = vmatpush1.msra.mxu0 0.0
        %2460 = vmatprep.subr.mxu0 0.0
        %2461 = vmatpush1.msra.mxu0 0.0
        %2462 = vmatprep.subr.mxu0 0.0
        %2463 = vmatpush1.msra.mxu0 0.0
        %2464 = vmatprep.subr.mxu0 0.0
        %2465 = vmatpush1.msra.mxu0 0.0
        %2466 = vmatprep.subr.mxu0 0.0
        %2467 = vmatpush1.msra.mxu0 0.0
        %2468 = vmatprep.subr.mxu0 0.0
        %2469 = vmatpush1.msra.mxu0 0.0
        %2470 = vmatprep.subr.mxu0 0.0
        %2471 = vmatpush1.msra.mxu0 0.0
        %2472 = vmatprep.subr.mxu0 0.0
        %2473 = vmatpush1.msra.mxu0 0.0
        %2474 = vmatprep.subr.mxu0 0.0
        %2475 = vmatpush1.msra.mxu0 0.0
        %2476 = vmatprep.subr.mxu0 0.0
        %2477 = vmatpush1.msra.mxu0 0.0
        %2478 = vmatprep.subr.mxu0 0.0
        %2479 = vmatpush1.msra.mxu0 0.0
        %2480 = vmatprep.subr.mxu0 0.0
        %2481 = vmatpush1.msra.mxu0 0.0
        %2482 = vmatprep.subr.mxu0 0.0
        %2483 = vmatpush1.msra.mxu0 0.0
        %2484 = vmatprep.subr.mxu0 0.0
        %2485 = vmatpush1.msra.mxu0 0.0
        %2486 = vmatprep.subr.mxu0 0.0
        %2487 = vmatpush1.msra.mxu0 0.0
        %2488 = vmatprep.subr.mxu0 0.0
        %2489 = vmatpush1.msra.mxu0 0.0
        %2490 = vmatprep.subr.mxu0 0.0
        %2491 = vmatpush1.msra.mxu0 0.0
        %2492 = vmatprep.subr.mxu0 0.0
        %2493 = vmatpush1.msra.mxu0 0.0
        %2494 = vmatprep.subr.mxu0 0.0
        %2495 = vmatpush1.msra.mxu0 0.0
        %2496 = vmatprep.subr.mxu0 0.0
        %2497 = vmatpush1.msra.mxu0 0.0
        %2498 = vmatprep.subr.mxu0 0.0
        %2499 = vmatpush1.msra.mxu0 0.0
        %2500 = vmatprep.subr.mxu0 0.0
        %2501 = vmatpush1.msra.mxu0 0.0
        %2502 = vmatprep.subr.mxu0 0.0
        %2503 = vmatpush1.msra.mxu0 0.0
        %2504 = vmatprep.subr.mxu0 0.0
        %2505 = vmatpush1.msra.mxu0 0.0
        %2506 = vmatprep.mubr.f32.mxu0 0.0
        %2507 = vmatmul.mubr.f32.gmra.mrb[0].mxu0 %v2437
        %v2508 = vpop.f32.mrb[0].mxu0
        %v2509 = vadd.f32 0.0, %v2508
        %v2510 = vpop.f32.mrb[0].mxu0
        %2511 = vmatprep.mubr.f32.mxu0 0.0
        %2512 = vmatmul.mubr.f32.gmra.mrb[0].mxu0 %v2440
        %v2513 = vpop.f32.mrb[0].mxu0
        %v2514 = vadd.f32 0.0, %v2513
        %v2515 = vpop.f32.mrb[0].mxu0
        %2516 = vdwg.mxu0
        %v2517 = vadd.f32 %v2421, %v2509
        %v2518 = vadd.f32 %v2426, %v2514
        %s2519 = scalar_lea.vmem %s3, 48
        %v2520 = vld [vmem:[%s2519] sm:$0xff]
        %v2521 = vld [vmem:[%s2519 + $0x8] sm:$0xff]
        %2523 = vrot.lane.b32.xlu0 %v2260, 127
        %v2524 = vpop.permute.xlu0 %2523
        %v2527 = vsel %vm2266, %v2520, 0
        %v2530 = vsel %vm2266, %v2521, 0
        %2532 = vmatprep.subr.mxu0 0.0
        %2533 = vmatpush1.msra.mxu0 %v2524
        %2534 = vmatprep.subr.mxu0 0.0
        %2535 = vmatpush1.msra.mxu0 0.0
        %2536 = vmatprep.subr.mxu0 0.0
        %2537 = vmatpush1.msra.mxu0 0.0
        %2538 = vmatprep.subr.mxu0 0.0
        %2539 = vmatpush1.msra.mxu0 0.0
        %2540 = vmatprep.subr.mxu0 0.0
        %2541 = vmatpush1.msra.mxu0 0.0
        %2542 = vmatprep.subr.mxu0 0.0
        %2543 = vmatpush1.msra.mxu0 0.0
        %2544 = vmatprep.subr.mxu0 0.0
        %2545 = vmatpush1.msra.mxu0 0.0
        %2546 = vmatprep.subr.mxu0 0.0
        %2547 = vmatpush1.msra.mxu0 0.0
        %2548 = vmatprep.subr.mxu0 0.0
        %2549 = vmatpush1.msra.mxu0 0.0
        %2550 = vmatprep.subr.mxu0 0.0
        %2551 = vmatpush1.msra.mxu0 0.0
        %2552 = vmatprep.subr.mxu0 0.0
        %2553 = vmatpush1.msra.mxu0 0.0
        %2554 = vmatprep.subr.mxu0 0.0
        %2555 = vmatpush1.msra.mxu0 0.0
        %2556 = vmatprep.subr.mxu0 0.0
        %2557 = vmatpush1.msra.mxu0 0.0
        %2558 = vmatprep.subr.mxu0 0.0
        %2559 = vmatpush1.msra.mxu0 0.0
        %2560 = vmatprep.subr.mxu0 0.0
        %2561 = vmatpush1.msra.mxu0 0.0
        %2562 = vmatprep.subr.mxu0 0.0
        %2563 = vmatpush1.msra.mxu0 0.0
        %2564 = vmatprep.subr.mxu0 0.0
        %2565 = vmatpush1.msra.mxu0 0.0
        %2566 = vmatprep.subr.mxu0 0.0
        %2567 = vmatpush1.msra.mxu0 0.0
        %2568 = vmatprep.subr.mxu0 0.0
        %2569 = vmatpush1.msra.mxu0 0.0
        %2570 = vmatprep.subr.mxu0 0.0
        %2571 = vmatpush1.msra.mxu0 0.0
        %2572 = vmatprep.subr.mxu0 0.0
        %2573 = vmatpush1.msra.mxu0 0.0
        %2574 = vmatprep.subr.mxu0 0.0
        %2575 = vmatpush1.msra.mxu0 0.0
        %2576 = vmatprep.subr.mxu0 0.0
        %2577 = vmatpush1.msra.mxu0 0.0
        %2578 = vmatprep.subr.mxu0 0.0
        %2579 = vmatpush1.msra.mxu0 0.0
        %2580 = vmatprep.subr.mxu0 0.0
        %2581 = vmatpush1.msra.mxu0 0.0
        %2582 = vmatprep.subr.mxu0 0.0
        %2583 = vmatpush1.msra.mxu0 0.0
        %2584 = vmatprep.subr.mxu0 0.0
        %2585 = vmatpush1.msra.mxu0 0.0
        %2586 = vmatprep.subr.mxu0 0.0
        %2587 = vmatpush1.msra.mxu0 0.0
        %2588 = vmatprep.subr.mxu0 0.0
        %2589 = vmatpush1.msra.mxu0 0.0
        %2590 = vmatprep.subr.mxu0 0.0
        %2591 = vmatpush1.msra.mxu0 0.0
        %2592 = vmatprep.subr.mxu0 0.0
        %2593 = vmatpush1.msra.mxu0 0.0
        %2594 = vmatprep.subr.mxu0 0.0
        %2595 = vmatpush1.msra.mxu0 0.0
        %2596 = vmatprep.mubr.f32.mxu0 0.0
        %2597 = vmatmul.mubr.f32.gmra.mrb[0].mxu0 %v2527
        %v2598 = vpop.f32.mrb[0].mxu0
        %v2599 = vadd.f32 0.0, %v2598
        %v2600 = vpop.f32.mrb[0].mxu0
        %2601 = vmatprep.mubr.f32.mxu0 0.0
        %2602 = vmatmul.mubr.f32.gmra.mrb[0].mxu0 %v2530
        %v2603 = vpop.f32.mrb[0].mxu0
        %v2604 = vadd.f32 0.0, %v2603
        %v2605 = vpop.f32.mrb[0].mxu0
        %2606 = vdwg.mxu0
        %v2607 = vadd.f32 %v2517, %v2599
        %v2608 = vadd.f32 %v2518, %v2604
        %s2609 = scalar_lea.vmem %s3, 64
        %v2610 = vld [vmem:[%s2609] sm:$0xff]
        %v2611 = vld [vmem:[%s2609 + $0x8] sm:$0xff]
        %2612 = vrot.lane.b32.xlu0 %v2259, 126
        %v2613 = vpop.permute.xlu0 %2612
        %v2616 = vsel %vm2266, %v2610, 0
        %v2619 = vsel %vm2266, %v2611, 0
        %2621 = vmatprep.subr.mxu0 0.0
        %2622 = vmatpush1.msra.mxu0 %v2613
        %2623 = vmatprep.subr.mxu0 0.0
        %2624 = vmatpush1.msra.mxu0 0.0
        %2625 = vmatprep.subr.mxu0 0.0
        %2626 = vmatpush1.msra.mxu0 0.0
        %2627 = vmatprep.subr.mxu0 0.0
        %2628 = vmatpush1.msra.mxu0 0.0
        %2629 = vmatprep.subr.mxu0 0.0
        %2630 = vmatpush1.msra.mxu0 0.0
        %2631 = vmatprep.subr.mxu0 0.0
        %2632 = vmatpush1.msra.mxu0 0.0
        %2633 = vmatprep.subr.mxu0 0.0
        %2634 = vmatpush1.msra.mxu0 0.0
        %2635 = vmatprep.subr.mxu0 0.0
        %2636 = vmatpush1.msra.mxu0 0.0
        %2637 = vmatprep.subr.mxu0 0.0
        %2638 = vmatpush1.msra.mxu0 0.0
        %2639 = vmatprep.subr.mxu0 0.0
        %2640 = vmatpush1.msra.mxu0 0.0
        %2641 = vmatprep.subr.mxu0 0.0
        %2642 = vmatpush1.msra.mxu0 0.0
        %2643 = vmatprep.subr.mxu0 0.0
        %2644 = vmatpush1.msra.mxu0 0.0
        %2645 = vmatprep.subr.mxu0 0.0
        %2646 = vmatpush1.msra.mxu0 0.0
        %2647 = vmatprep.subr.mxu0 0.0
        %2648 = vmatpush1.msra.mxu0 0.0
        %2649 = vmatprep.subr.mxu0 0.0
        %2650 = vmatpush1.msra.mxu0 0.0
        %2651 = vmatprep.subr.mxu0 0.0
        %2652 = vmatpush1.msra.mxu0 0.0
        %2653 = vmatprep.subr.mxu0 0.0
        %2654 = vmatpush1.msra.mxu0 0.0
        %2655 = vmatprep.subr.mxu0 0.0
        %2656 = vmatpush1.msra.mxu0 0.0
        %2657 = vmatprep.subr.mxu0 0.0
        %2658 = vmatpush1.msra.mxu0 0.0
        %2659 = vmatprep.subr.mxu0 0.0
        %2660 = vmatpush1.msra.mxu0 0.0
        %2661 = vmatprep.subr.mxu0 0.0
        %2662 = vmatpush1.msra.mxu0 0.0
        %2663 = vmatprep.subr.mxu0 0.0
        %2664 = vmatpush1.msra.mxu0 0.0
        %2665 = vmatprep.subr.mxu0 0.0
        %2666 = vmatpush1.msra.mxu0 0.0
        %2667 = vmatprep.subr.mxu0 0.0
        %2668 = vmatpush1.msra.mxu0 0.0
        %2669 = vmatprep.subr.mxu0 0.0
        %2670 = vmatpush1.msra.mxu0 0.0
        %2671 = vmatprep.subr.mxu0 0.0
        %2672 = vmatpush1.msra.mxu0 0.0
        %2673 = vmatprep.subr.mxu0 0.0
        %2674 = vmatpush1.msra.mxu0 0.0
        %2675 = vmatprep.subr.mxu0 0.0
        %2676 = vmatpush1.msra.mxu0 0.0
        %2677 = vmatprep.subr.mxu0 0.0
        %2678 = vmatpush1.msra.mxu0 0.0
        %2679 = vmatprep.subr.mxu0 0.0
        %2680 = vmatpush1.msra.mxu0 0.0
        %2681 = vmatprep.subr.mxu0 0.0
        %2682 = vmatpush1.msra.mxu0 0.0
        %2683 = vmatprep.subr.mxu0 0.0
        %2684 = vmatpush1.msra.mxu0 0.0
        %2685 = vmatprep.mubr.f32.mxu0 0.0
        %2686 = vmatmul.mubr.f32.gmra.mrb[0].mxu0 %v2616
        %v2687 = vpop.f32.mrb[0].mxu0
        %v2688 = vadd.f32 0.0, %v2687
        %v2689 = vpop.f32.mrb[0].mxu0
        %2690 = vmatprep.mubr.f32.mxu0 0.0
        %2691 = vmatmul.mubr.f32.gmra.mrb[0].mxu0 %v2619
        %v2692 = vpop.f32.mrb[0].mxu0
        %v2693 = vadd.f32 0.0, %v2692
        %v2694 = vpop.f32.mrb[0].mxu0
        %2695 = vdwg.mxu0
        %v2696 = vadd.f32 %v2607, %v2688
        %v2697 = vadd.f32 %v2608, %v2693
        %v2698 = vld [vmem:[%s4] sm:$0xff]
        %v2699 = vld [vmem:[%s4 + $0x8] sm:$0xff]
        %2701 = vset.pattern.permute.xlu0 0
        %2702 = vperm.xlu0 %2701, %v2698
        %v2703 = vpop.permute.xlu0 %2702
        %2706 = vset.pattern.permute.xlu0 0
        %2707 = vperm.xlu0 %2706, %v2699
        %v2708 = vpop.permute.xlu0 %2707
        %v2710 = vadd.f32 %v2696, %v2703
        %v2711 = vadd.f32 %v2697, %v2708
        %v2712 = vmax.f32 %v2710, 0.0
        %v2713 = vmax.f32 %v2711, 0.0
        %v2714 = vld [vmem:[%s5] sm:$0xff]
        %v2715 = vld [vmem:[%s5 + $0x8] sm:$0xff]
        %v2716 = vld [vmem:[%s5 + $0x10] sm:$0xff]
        %v2717 = vld [vmem:[%s5 + $0x18] sm:$0xff]
        %v2718 = vld [vmem:[%s5 + $0x20] sm:$0xff]
        %v2719 = vld [vmem:[%s5 + $0x28] sm:$0xff]
        %v2720 = vld [vmem:[%s5 + $0x30] sm:$0xff]
        %v2721 = vld [vmem:[%s5 + $0x38] sm:$0xff]
        %v2722 = vld [vmem:[%s5 + $0x40] sm:$0xff]
        %v2723 = vld [vmem:[%s5 + $0x48] sm:$0xff]
        %v2724 = vld [vmem:[%s5 + $0x50] sm:$0xff]
        %v2725 = vld [vmem:[%s5 + $0x58] sm:$0xff]
        %v2726 = vld [vmem:[%s5 + $0x60] sm:$0xff]
        %v2727 = vld [vmem:[%s5 + $0x68] sm:$0xff]
        %v2728 = vld [vmem:[%s5 + $0x70] sm:$0xff]
        %vm2729 = vcmask 982016
        %v2731 = vsel %vm2729, %v2712, 0
        %v2734 = vsel %vm2729, %v2713, 0
        %2736 = vmatprep.subr.mxu0 0.0
        %2737 = vmatpush1.msra.mxu0 %v2714
        %2738 = vmatprep.subr.mxu0 0.0
        %2739 = vmatpush1.msra.mxu0 %v2715
        %2740 = vmatprep.subr.mxu0 0.0
        %2741 = vmatpush1.msra.mxu0 %v2716
        %2742 = vmatprep.subr.mxu0 0.0
        %2743 = vmatpush1.msra.mxu0 %v2717
        %2744 = vmatprep.subr.mxu0 0.0
        %2745 = vmatpush1.msra.mxu0 %v2718
        %2746 = vmatprep.subr.mxu0 0.0
        %2747 = vmatpush1.msra.mxu0 %v2719
        %2748 = vmatprep.subr.mxu0 0.0
        %2749 = vmatpush1.msra.mxu0 %v2720
        %2750 = vmatprep.subr.mxu0 0.0
        %2751 = vmatpush1.msra.mxu0 %v2721
        %2752 = vmatprep.subr.mxu0 0.0
        %2753 = vmatpush1.msra.mxu0 %v2722
        %2754 = vmatprep.subr.mxu0 0.0
        %2755 = vmatpush1.msra.mxu0 %v2723
        %2756 = vmatprep.subr.mxu0 0.0
        %2757 = vmatpush1.msra.mxu0 %v2724
        %2758 = vmatprep.subr.mxu0 0.0
        %2759 = vmatpush1.msra.mxu0 %v2725
        %2760 = vmatprep.subr.mxu0 0.0
        %2761 = vmatpush1.msra.mxu0 %v2726
        %2762 = vmatprep.subr.mxu0 0.0
        %2763 = vmatpush1.msra.mxu0 %v2727
        %2764 = vmatprep.subr.mxu0 0.0
        %2765 = vmatpush1.msra.mxu0 %v2728
        %2766 = vmatprep.subr.mxu0 0.0
        %2767 = vmatpush1.msra.mxu0 0.0
        %2768 = vmatprep.subr.mxu0 0.0
        %2769 = vmatpush1.msra.mxu0 0.0
        %2770 = vmatprep.subr.mxu0 0.0
        %2771 = vmatpush1.msra.mxu0 0.0
        %2772 = vmatprep.subr.mxu0 0.0
        %2773 = vmatpush1.msra.mxu0 0.0
        %2774 = vmatprep.subr.mxu0 0.0
        %2775 = vmatpush1.msra.mxu0 0.0
        %2776 = vmatprep.subr.mxu0 0.0
        %2777 = vmatpush1.msra.mxu0 0.0
        %2778 = vmatprep.subr.mxu0 0.0
        %2779 = vmatpush1.msra.mxu0 0.0
        %2780 = vmatprep.subr.mxu0 0.0
        %2781 = vmatpush1.msra.mxu0 0.0
        %2782 = vmatprep.subr.mxu0 0.0
        %2783 = vmatpush1.msra.mxu0 0.0
        %2784 = vmatprep.subr.mxu0 0.0
        %2785 = vmatpush1.msra.mxu0 0.0
        %2786 = vmatprep.subr.mxu0 0.0
        %2787 = vmatpush1.msra.mxu0 0.0
        %2788 = vmatprep.subr.mxu0 0.0
        %2789 = vmatpush1.msra.mxu0 0.0
        %2790 = vmatprep.subr.mxu0 0.0
        %2791 = vmatpush1.msra.mxu0 0.0
        %2792 = vmatprep.subr.mxu0 0.0
        %2793 = vmatpush1.msra.mxu0 0.0
        %2794 = vmatprep.subr.mxu0 0.0
        %2795 = vmatpush1.msra.mxu0 0.0
        %2796 = vmatprep.subr.mxu0 0.0
        %2797 = vmatpush1.msra.mxu0 0.0
        %2798 = vmatprep.subr.mxu0 0.0
        %2799 = vmatpush1.msra.mxu0 0.0
        %2800 = vmatprep.mubr.f32.mxu0 0.0
        %2801 = vmatmul.mubr.f32.gmra.mrb[0].mxu0 %v2731
        %v2802 = vpop.f32.mrb[0].mxu0
        %v2803 = vadd.f32 0.0, %v2802
        %v2804 = vpop.f32.mrb[0].mxu0
        %2805 = vmatprep.mubr.f32.mxu0 0.0
        %2806 = vmatmul.mubr.f32.gmra.mrb[0].mxu0 %v2734
        %v2807 = vpop.f32.mrb[0].mxu0
        %v2808 = vadd.f32 0.0, %v2807
        %v2809 = vpop.f32.mrb[0].mxu0
        %2810 = vdwg.mxu0
        %v2811 = vld [vmem:[%s6] sm:$0xff]
        %v2812 = vld [vmem:[%s6 + $0x8] sm:$0xff]
        %v2813 = vld [vmem:[%s6 + $0x10] sm:$0xff]
        %v2814 = vld [vmem:[%s6 + $0x18] sm:$0xff]
        %v2815 = vld [vmem:[%s6 + $0x20] sm:$0xff]
        %v2816 = vld [vmem:[%s6 + $0x28] sm:$0xff]
        %v2817 = vld [vmem:[%s6 + $0x30] sm:$0xff]
        %v2818 = vld [vmem:[%s6 + $0x38] sm:$0xff]
        %v2819 = vld [vmem:[%s6 + $0x40] sm:$0xff]
        %v2820 = vld [vmem:[%s6 + $0x48] sm:$0xff]
        %v2821 = vld [vmem:[%s6 + $0x50] sm:$0xff]
        %v2822 = vld [vmem:[%s6 + $0x58] sm:$0xff]
        %v2823 = vld [vmem:[%s6 + $0x60] sm:$0xff]
        %v2824 = vld [vmem:[%s6 + $0x68] sm:$0xff]
        %v2825 = vld [vmem:[%s6 + $0x70] sm:$0xff]
        %2826 = vmatprep.subr.mxu0 0.0
        %2827 = vmatpush1.msra.mxu0 %v2811
        %2828 = vmatprep.subr.mxu0 0.0
        %2829 = vmatpush1.msra.mxu0 %v2812
        %2830 = vmatprep.subr.mxu0 0.0
        %2831 = vmatpush1.msra.mxu0 %v2813
        %2832 = vmatprep.subr.mxu0 0.0
        %2833 = vmatpush1.msra.mxu0 %v2814
        %2834 = vmatprep.subr.mxu0 0.0
        %2835 = vmatpush1.msra.mxu0 %v2815
        %2836 = vmatprep.subr.mxu0 0.0
        %2837 = vmatpush1.msra.mxu0 %v2816
        %2838 = vmatprep.subr.mxu0 0.0
        %2839 = vmatpush1.msra.mxu0 %v2817
        %2840 = vmatprep.subr.mxu0 0.0
        %2841 = vmatpush1.msra.mxu0 %v2818
        %2842 = vmatprep.subr.mxu0 0.0
        %2843 = vmatpush1.msra.mxu0 %v2819
        %2844 = vmatprep.subr.mxu0 0.0
        %2845 = vmatpush1.msra.mxu0 %v2820
        %2846 = vmatprep.subr.mxu0 0.0
        %2847 = vmatpush1.msra.mxu0 %v2821
        %2848 = vmatprep.subr.mxu0 0.0
        %2849 = vmatpush1.msra.mxu0 %v2822
        %2850 = vmatprep.subr.mxu0 0.0
        %2851 = vmatpush1.msra.mxu0 %v2823
        %2852 = vmatprep.subr.mxu0 0.0
        %2853 = vmatpush1.msra.mxu0 %v2824
        %2854 = vmatprep.subr.mxu0 0.0
        %2855 = vmatpush1.msra.mxu0 %v2825
        %2856 = vmatprep.subr.mxu0 0.0
        %2857 = vmatpush1.msra.mxu0 0.0
        %2858 = vmatprep.subr.mxu0 0.0
        %2859 = vmatpush1.msra.mxu0 0.0
        %2860 = vmatprep.subr.mxu0 0.0
        %2861 = vmatpush1.msra.mxu0 0.0
        %2862 = vmatprep.subr.mxu0 0.0
        %2863 = vmatpush1.msra.mxu0 0.0
        %2864 = vmatprep.subr.mxu0 0.0
        %2865 = vmatpush1.msra.mxu0 0.0
        %2866 = vmatprep.subr.mxu0 0.0
        %2867 = vmatpush1.msra.mxu0 0.0
        %2868 = vmatprep.subr.mxu0 0.0
        %2869 = vmatpush1.msra.mxu0 0.0
        %2870 = vmatprep.subr.mxu0 0.0
        %2871 = vmatpush1.msra.mxu0 0.0
        %2872 = vmatprep.subr.mxu0 0.0
        %2873 = vmatpush1.msra.mxu0 0.0
        %2874 = vmatprep.subr.mxu0 0.0
        %2875 = vmatpush1.msra.mxu0 0.0
        %2876 = vmatprep.subr.mxu0 0.0
        %2877 = vmatpush1.msra.mxu0 0.0
        %2878 = vmatprep.subr.mxu0 0.0
        %2879 = vmatpush1.msra.mxu0 0.0
        %2880 = vmatprep.subr.mxu0 0.0
        %2881 = vmatpush1.msra.mxu0 0.0
        %2882 = vmatprep.subr.mxu0 0.0
        %2883 = vmatpush1.msra.mxu0 0.0
        %2884 = vmatprep.subr.mxu0 0.0
        %2885 = vmatpush1.msra.mxu0 0.0
        %2886 = vmatprep.subr.mxu0 0.0
        %2887 = vmatpush1.msra.mxu0 0.0
        %2888 = vmatprep.subr.mxu0 0.0
        %2889 = vmatpush1.msra.mxu0 0.0
        %2890 = vmatprep.mubr.f32.mxu0 0.0
        %2891 = vmatmul.mubr.f32.gmra.mrb[0].mxu0 %v2731
        %v2892 = vpop.f32.mrb[0].mxu0
        %v2893 = vadd.f32 0.0, %v2892
        %v2894 = vpop.f32.mrb[0].mxu0
        %2895 = vmatprep.mubr.f32.mxu0 0.0
        %2896 = vmatmul.mubr.f32.gmra.mrb[0].mxu0 %v2734
        %v2897 = vpop.f32.mrb[0].mxu0
        %v2898 = vadd.f32 0.0, %v2897
        %v2899 = vpop.f32.mrb[0].mxu0
        %2900 = vdwg.mxu0
        %v2901 = vmax.f32 %v2803, %v2893
        %v2902 = vmax.f32 %v2808, %v2898
        %v2903 = vld [vmem:[%s7] sm:$0xff]
        %v2904 = vld [vmem:[%s7 + $0x8] sm:$0xff]
        %v2905 = vld [vmem:[%s7 + $0x10] sm:$0xff]
        %v2906 = vld [vmem:[%s7 + $0x18] sm:$0xff]
        %s2907 = scalar_lea.vmem %s7, 32
        %v2908 = vld [vmem:[%s2907] sm:$0xff]
        %v2909 = vld [vmem:[%s2907 + $0x8] sm:$0xff]
        %v2910 = vld [vmem:[%s2907 + $0x10] sm:$0xff]
        %v2911 = vld [vmem:[%s2907 + $0x18] sm:$0xff]
        %2914 = vrot.lane.b32.xlu0 %v2901, 125
        %v2915 = vpop.permute.xlu0 %2914
        %2916 = vrot.lane.b32.xlu0 %v2902, 125
        %v2917 = vpop.permute.xlu0 %2916
        %vm2920 = vcmask 130048
        %v2922 = vsel %vm2920, %v2908, 0
        %v2925 = vsel %vm2920, %v2909, 0
        %v2928 = vsel %vm2920, %v2910, 0
        %v2931 = vsel %vm2920, %v2911, 0
        %2933 = vmatprep.subr.mxu0 0.0
        %2934 = vmatpush1.msra.mxu0 %v2915
        %2935 = vmatprep.subr.mxu0 0.0
        %2936 = vmatpush1.msra.mxu0 %v2917
        %2937 = vmatprep.subr.mxu0 0.0
        %2938 = vmatpush1.msra.mxu0 0.0
        %2939 = vmatprep.subr.mxu0 0.0
        %2940 = vmatpush1.msra.mxu0 0.0
        %2941 = vmatprep.subr.mxu0 0.0
        %2942 = vmatpush1.msra.mxu0 0.0
        %2943 = vmatprep.subr.mxu0 0.0
        %2944 = vmatpush1.msra.mxu0 0.0
        %2945 = vmatprep.subr.mxu0 0.0
        %2946 = vmatpush1.msra.mxu0 0.0
        %2947 = vmatprep.subr.mxu0 0.0
        %2948 = vmatpush1.msra.mxu0 0.0
        %2949 = vmatprep.subr.mxu0 0.0
        %2950 = vmatpush1.msra.mxu0 0.0
        %2951 = vmatprep.subr.mxu0 0.0
        %2952 = vmatpush1.msra.mxu0 0.0
        %2953 = vmatprep.subr.mxu0 0.0
        %2954 = vmatpush1.msra.mxu0 0.0
        %2955 = vmatprep.subr.mxu0 0.0
        %2956 = vmatpush1.msra.mxu0 0.0
        %2957 = vmatprep.subr.mxu0 0.0
        %2958 = vmatpush1.msra.mxu0 0.0
        %2959 = vmatprep.subr.mxu0 0.0
        %2960 = vmatpush1.msra.mxu0 0.0
        %2961 = vmatprep.subr.mxu0 0.0
        %2962 = vmatpush1.msra.mxu0 0.0
        %2963 = vmatprep.subr.mxu0 0.0
        %2964 = vmatpush1.msra.mxu0 0.0
        %2965 = vmatprep.subr.mxu0 0.0
        %2966 = vmatpush1.msra.mxu0 0.0
        %2967 = vmatprep.subr.mxu0 0.0
        %2968 = vmatpush1.msra.mxu0 0.0
        %2969 = vmatprep.subr.mxu0 0.0
        %2970 = vmatpush1.msra.mxu0 0.0
        %2971 = vmatprep.subr.mxu0 0.0
        %2972 = vmatpush1.msra.mxu0 0.0
        %2973 = vmatprep.subr.mxu0 0.0
        %2974 = vmatpush1.msra.mxu0 0.0
        %2975 = vmatprep.subr.mxu0 0.0
        %2976 = vmatpush1.msra.mxu0 0.0
        %2977 = vmatprep.subr.mxu0 0.0
        %2978 = vmatpush1.msra.mxu0 0.0
        %2979 = vmatprep.subr.mxu0 0.0
        %2980 = vmatpush1.msra.mxu0 0.0
        %2981 = vmatprep.subr.mxu0 0.0
        %2982 = vmatpush1.msra.mxu0 0.0
        %2983 = vmatprep.subr.mxu0 0.0
        %2984 = vmatpush1.msra.mxu0 0.0
        %2985 = vmatprep.subr.mxu0 0.0
        %2986 = vmatpush1.msra.mxu0 0.0
        %2987 = vmatprep.subr.mxu0 0.0
        %2988 = vmatpush1.msra.mxu0 0.0
        %2989 = vmatprep.subr.mxu0 0.0
        %2990 = vmatpush1.msra.mxu0 0.0
        %2991 = vmatprep.subr.mxu0 0.0
        %2992 = vmatpush1.msra.mxu0 0.0
        %2993 = vmatprep.subr.mxu0 0.0
        %2994 = vmatpush1.msra.mxu0 0.0
        %2995 = vmatprep.subr.mxu0 0.0
        %2996 = vmatpush1.msra.mxu0 0.0
        %2997 = vmatprep.mubr.f32.mxu0 0.0
        %2998 = vmatmul.mubr.f32.gmra.mrb[0].mxu0 %v2922
        %v2999 = vpop.f32.mrb[0].mxu0
        %v3000 = vadd.f32 0.0, %v2999
        %v3001 = vpop.f32.mrb[0].mxu0
        %3002 = vmatprep.mubr.f32.mxu0 0.0
        %3003 = vmatmul.mubr.f32.gmra.mrb[0].mxu0 %v2925
        %v3004 = vpop.f32.mrb[0].mxu0
        %v3005 = vadd.f32 0.0, %v3004
        %v3006 = vpop.f32.mrb[0].mxu0
        %3007 = vmatprep.mubr.f32.mxu0 0.0
        %3008 = vmatmul.mubr.f32.gmra.mrb[0].mxu0 %v2928
        %v3009 = vpop.f32.mrb[0].mxu0
        %v3010 = vadd.f32 0.0, %v3009
        %v3011 = vpop.f32.mrb[0].mxu0
        %3012 = vmatprep.mubr.f32.mxu0 0.0
        %3013 = vmatmul.mubr.f32.gmra.mrb[0].mxu0 %v2931
        %v3014 = vpop.f32.mrb[0].mxu0
        %v3015 = vadd.f32 0.0, %v3014
        %v3016 = vpop.f32.mrb[0].mxu0
        %3017 = vdwg.mxu0
        %v3019 = vsel %vm2920, %v2903, 0
        %v3022 = vsel %vm2920, %v2904, 0
        %v3025 = vsel %vm2920, %v2905, 0
        %v3028 = vsel %vm2920, %v2906, 0
        %3030 = vmatprep.subr.mxu0 0.0
        %3031 = vmatpush1.msra.mxu0 %v2901
        %3032 = vmatprep.subr.mxu0 0.0
        %3033 = vmatpush1.msra.mxu0 %v2902
        %3034 = vmatprep.subr.mxu0 0.0
        %3035 = vmatpush1.msra.mxu0 0.0
        %3036 = vmatprep.subr.mxu0 0.0
        %3037 = vmatpush1.msra.mxu0 0.0
        %3038 = vmatprep.subr.mxu0 0.0
        %3039 = vmatpush1.msra.mxu0 0.0
        %3040 = vmatprep.subr.mxu0 0.0
        %3041 = vmatpush1.msra.mxu0 0.0
        %3042 = vmatprep.subr.mxu0 0.0
        %3043 = vmatpush1.msra.mxu0 0.0
        %3044 = vmatprep.subr.mxu0 0.0
        %3045 = vmatpush1.msra.mxu0 0.0
        %3046 = vmatprep.subr.mxu0 0.0
        %3047 = vmatpush1.msra.mxu0 0.0
        %3048 = vmatprep.subr.mxu0 0.0
        %3049 = vmatpush1.msra.mxu0 0.0
        %3050 = vmatprep.subr.mxu0 0.0
        %3051 = vmatpush1.msra.mxu0 0.0
        %3052 = vmatprep.subr.mxu0 0.0
        %3053 = vmatpush1.msra.mxu0 0.0
        %3054 = vmatprep.subr.mxu0 0.0
        %3055 = vmatpush1.msra.mxu0 0.0
        %3056 = vmatprep.subr.mxu0 0.0
        %3057 = vmatpush1.msra.mxu0 0.0
        %3058 = vmatprep.subr.mxu0 0.0
        %3059 = vmatpush1.msra.mxu0 0.0
        %3060 = vmatprep.subr.mxu0 0.0
        %3061 = vmatpush1.msra.mxu0 0.0
        %3062 = vmatprep.subr.mxu0 0.0
        %3063 = vmatpush1.msra.mxu0 0.0
        %3064 = vmatprep.subr.mxu0 0.0
        %3065 = vmatpush1.msra.mxu0 0.0
        %3066 = vmatprep.subr.mxu0 0.0
        %3067 = vmatpush1.msra.mxu0 0.0
        %3068 = vmatprep.subr.mxu0 0.0
        %3069 = vmatpush1.msra.mxu0 0.0
        %3070 = vmatprep.subr.mxu0 0.0
        %3071 = vmatpush1.msra.mxu0 0.0
        %3072 = vmatprep.subr.mxu0 0.0
        %3073 = vmatpush1.msra.mxu0 0.0
        %3074 = vmatprep.subr.mxu0 0.0
        %3075 = vmatpush1.msra.mxu0 0.0
        %3076 = vmatprep.subr.mxu0 0.0
        %3077 = vmatpush1.msra.mxu0 0.0
        %3078 = vmatprep.subr.mxu0 0.0
        %3079 = vmatpush1.msra.mxu0 0.0
        %3080 = vmatprep.subr.mxu0 0.0
        %3081 = vmatpush1.msra.mxu0 0.0
        %3082 = vmatprep.subr.mxu0 0.0
        %3083 = vmatpush1.msra.mxu0 0.0
        %3084 = vmatprep.subr.mxu0 0.0
        %3085 = vmatpush1.msra.mxu0 0.0
        %3086 = vmatprep.subr.mxu0 0.0
        %3087 = vmatpush1.msra.mxu0 0.0
        %3088 = vmatprep.subr.mxu0 0.0
        %3089 = vmatpush1.msra.mxu0 0.0
        %3090 = vmatprep.subr.mxu0 0.0
        %3091 = vmatpush1.msra.mxu0 0.0
        %3092 = vmatprep.subr.mxu0 0.0
        %3093 = vmatpush1.msra.mxu0 0.0
        %3094 = vmatprep.mubr.f32.mxu0 0.0
        %3095 = vmatmul.mubr.f32.gmra.mrb[0].mxu0 %v3019
        %v3096 = vpop.f32.mrb[0].mxu0
        %v3097 = vadd.f32 %v3000, %v3096
        %v3098 = vpop.f32.mrb[0].mxu0
        %3099 = vmatprep.mubr.f32.mxu0 0.0
        %3100 = vmatmul.mubr.f32.gmra.mrb[0].mxu0 %v3022
        %v3101 = vpop.f32.mrb[0].mxu0
        %v3102 = vadd.f32 %v3005, %v3101
        %v3103 = vpop.f32.mrb[0].mxu0
        %3104 = vmatprep.mubr.f32.mxu0 0.0
        %3105 = vmatmul.mubr.f32.gmra.mrb[0].mxu0 %v3025
        %v3106 = vpop.f32.mrb[0].mxu0
        %v3107 = vadd.f32 %v3010, %v3106
        %v3108 = vpop.f32.mrb[0].mxu0
        %3109 = vmatprep.mubr.f32.mxu0 0.0
        %3110 = vmatmul.mubr.f32.gmra.mrb[0].mxu0 %v3028
        %v3111 = vpop.f32.mrb[0].mxu0
        %v3112 = vadd.f32 %v3015, %v3111
        %v3113 = vpop.f32.mrb[0].mxu0
        %3114 = vdwg.mxu0
        %s3115 = scalar_lea.vmem %s7, 64
        %v3116 = vld [vmem:[%s3115] sm:$0xff]
        %v3117 = vld [vmem:[%s3115 + $0x8] sm:$0xff]
        %v3118 = vld [vmem:[%s3115 + $0x10] sm:$0xff]
        %v3119 = vld [vmem:[%s3115 + $0x18] sm:$0xff]
        %3120 = vrot.lane.b32.xlu0 %v2901, 122
        %v3121 = vpop.permute.xlu0 %3120
        %3122 = vrot.lane.b32.xlu0 %v2902, 122
        %v3123 = vpop.permute.xlu0 %3122
        %v3127 = vsel %vm2920, %v3116, 0
        %v3130 = vsel %vm2920, %v3117, 0
        %v3133 = vsel %vm2920, %v3118, 0
        %v3136 = vsel %vm2920, %v3119, 0
        %3138 = vmatprep.subr.mxu0 0.0
        %3139 = vmatpush1.msra.mxu0 %v3121
        %3140 = vmatprep.subr.mxu0 0.0
        %3141 = vmatpush1.msra.mxu0 %v3123
        %3142 = vmatprep.subr.mxu0 0.0
        %3143 = vmatpush1.msra.mxu0 0.0
        %3144 = vmatprep.subr.mxu0 0.0
        %3145 = vmatpush1.msra.mxu0 0.0
        %3146 = vmatprep.subr.mxu0 0.0
        %3147 = vmatpush1.msra.mxu0 0.0
        %3148 = vmatprep.subr.mxu0 0.0
        %3149 = vmatpush1.msra.mxu0 0.0
        %3150 = vmatprep.subr.mxu0 0.0
        %3151 = vmatpush1.msra.mxu0 0.0
        %3152 = vmatprep.subr.mxu0 0.0
        %3153 = vmatpush1.msra.mxu0 0.0
        %3154 = vmatprep.subr.mxu0 0.0
        %3155 = vmatpush1.msra.mxu0 0.0
        %3156 = vmatprep.subr.mxu0 0.0
        %3157 = vmatpush1.msra.mxu0 0.0
        %3158 = vmatprep.subr.mxu0 0.0
        %3159 = vmatpush1.msra.mxu0 0.0
        %3160 = vmatprep.subr.mxu0 0.0
        %3161 = vmatpush1.msra.mxu0 0.0
        %3162 = vmatprep.subr.mxu0 0.0
        %3163 = vmatpush1.msra.mxu0 0.0
        %3164 = vmatprep.subr.mxu0 0.0
        %3165 = vmatpush1.msra.mxu0 0.0
        %3166 = vmatprep.subr.mxu0 0.0
        %3167 = vmatpush1.msra.mxu0 0.0
        %3168 = vmatprep.subr.mxu0 0.0
        %3169 = vmatpush1.msra.mxu0 0.0
        %3170 = vmatprep.subr.mxu0 0.0
        %3171 = vmatpush1.msra.mxu0 0.0
        %3172 = vmatprep.subr.mxu0 0.0
        %3173 = vmatpush1.msra.mxu0 0.0
        %3174 = vmatprep.subr.mxu0 0.0
        %3175 = vmatpush1.msra.mxu0 0.0
        %3176 = vmatprep.subr.mxu0 0.0
        %3177 = vmatpush1.msra.mxu0 0.0
        %3178 = vmatprep.subr.mxu0 0.0
        %3179 = vmatpush1.msra.mxu0 0.0
        %3180 = vmatprep.subr.mxu0 0.0
        %3181 = vmatpush1.msra.mxu0 0.0
        %3182 = vmatprep.subr.mxu0 0.0
        %3183 = vmatpush1.msra.mxu0 0.0
        %3184 = vmatprep.subr.mxu0 0.0
        %3185 = vmatpush1.msra.mxu0 0.0
        %3186 = vmatprep.subr.mxu0 0.0
        %3187 = vmatpush1.msra.mxu0 0.0
        %3188 = vmatprep.subr.mxu0 0.0
        %3189 = vmatpush1.msra.mxu0 0.0
        %3190 = vmatprep.subr.mxu0 0.0
        %3191 = vmatpush1.msra.mxu0 0.0
        %3192 = vmatprep.subr.mxu0 0.0
        %3193 = vmatpush1.msra.mxu0 0.0
        %3194 = vmatprep.subr.mxu0 0.0
        %3195 = vmatpush1.msra.mxu0 0.0
        %3196 = vmatprep.subr.mxu0 0.0
        %3197 = vmatpush1.msra.mxu0 0.0
        %3198 = vmatprep.subr.mxu0 0.0
        %3199 = vmatpush1.msra.mxu0 0.0
        %3200 = vmatprep.subr.mxu0 0.0
        %3201 = vmatpush1.msra.mxu0 0.0
        %3202 = vmatprep.mubr.f32.mxu0 0.0
        %3203 = vmatmul.mubr.f32.gmra.mrb[0].mxu0 %v3127
        %v3204 = vpop.f32.mrb[0].mxu0
        %v3205 = vadd.f32 0.0, %v3204
        %v3206 = vpop.f32.mrb[0].mxu0
        %3207 = vmatprep.mubr.f32.mxu0 0.0
        %3208 = vmatmul.mubr.f32.gmra.mrb[0].mxu0 %v3130
        %v3209 = vpop.f32.mrb[0].mxu0
        %v3210 = vadd.f32 0.0, %v3209
        %v3211 = vpop.f32.mrb[0].mxu0
        %3212 = vmatprep.mubr.f32.mxu0 0.0
        %3213 = vmatmul.mubr.f32.gmra.mrb[0].mxu0 %v3133
        %v3214 = vpop.f32.mrb[0].mxu0
        %v3215 = vadd.f32 0.0, %v3214
        %v3216 = vpop.f32.mrb[0].mxu0
        %3217 = vmatprep.mubr.f32.mxu0 0.0
        %3218 = vmatmul.mubr.f32.gmra.mrb[0].mxu0 %v3136
        %v3219 = vpop.f32.mrb[0].mxu0
        %v3220 = vadd.f32 0.0, %v3219
        %v3221 = vpop.f32.mrb[0].mxu0
        %3222 = vdwg.mxu0
        %v3223 = vadd.f32 %v3097, %v3205
        %v3224 = vadd.f32 %v3102, %v3210
        %v3225 = vadd.f32 %v3107, %v3215
        %v3226 = vadd.f32 %v3112, %v3220
        %v3227 = vld [vmem:[%s8] sm:$0xff]
        %v3228 = vld [vmem:[%s8 + $0x8] sm:$0xff]
        %v3229 = vld [vmem:[%s8 + $0x10] sm:$0xff]
        %v3230 = vld [vmem:[%s8 + $0x18] sm:$0xff]
        %3232 = vset.pattern.permute.xlu0 0
        %3233 = vperm.xlu0 %3232, %v3227
        %v3234 = vpop.permute.xlu0 %3233
        %3237 = vset.pattern.permute.xlu0 0
        %3238 = vperm.xlu0 %3237, %v3228
        %v3239 = vpop.permute.xlu0 %3238
        %3242 = vset.pattern.permute.xlu0 0
        %3243 = vperm.xlu0 %3242, %v3229
        %v3244 = vpop.permute.xlu0 %3243
        %3247 = vset.pattern.permute.xlu0 0
        %3248 = vperm.xlu0 %3247, %v3230
        %v3249 = vpop.permute.xlu0 %3248
        %v3251 = vadd.f32 %v3223, %v3234
        %v3252 = vadd.f32 %v3224, %v3239
        %v3253 = vadd.f32 %v3225, %v3244
        %v3254 = vadd.f32 %v3226, %v3249
        %v3255 = vmax.f32 %v3251, 0.0
        %v3256 = vmax.f32 %v3252, 0.0
        %v3257 = vmax.f32 %v3253, 0.0
        %v3258 = vmax.f32 %v3254, 0.0
        %v3259 = vld [vmem:[%s9] sm:$0xff]
        %v3260 = vld [vmem:[%s9 + $0x8] sm:$0xff]
        %v3261 = vld [vmem:[%s9 + $0x10] sm:$0xff]
        %v3262 = vld [vmem:[%s9 + $0x18] sm:$0xff]
        %v3263 = vld [vmem:[%s9 + $0x20] sm:$0xff]
        %v3264 = vld [vmem:[%s9 + $0x28] sm:$0xff]
        %v3265 = vld [vmem:[%s9 + $0x30] sm:$0x3f]
        %vm3266 = vcmask 441344
        %v3268 = vsel %vm3266, %v3255, 0
        %v3271 = vsel %vm3266, %v3256, 0
        %v3274 = vsel %vm3266, %v3257, 0
        %v3277 = vsel %vm3266, %v3258, 0
        %vm3279 = vcmask 1045504
        %v3281 = vsel %vm3279, %v3265, 0
        %3283 = vmatprep.subr.mxu0 0.0
        %3284 = vmatpush1.msra.mxu0 %v3259
        %3285 = vmatprep.subr.mxu0 0.0
        %3286 = vmatpush1.msra.mxu0 %v3260
        %3287 = vmatprep.subr.mxu0 0.0
        %3288 = vmatpush1.msra.mxu0 %v3261
        %3289 = vmatprep.subr.mxu0 0.0
        %3290 = vmatpush1.msra.mxu0 %v3262
        %3291 = vmatprep.subr.mxu0 0.0
        %3292 = vmatpush1.msra.mxu0 %v3263
        %3293 = vmatprep.subr.mxu0 0.0
        %3294 = vmatpush1.msra.mxu0 %v3264
        %3295 = vmatprep.subr.mxu0 0.0
        %3296 = vmatpush1.msra.mxu0 %v3281
        %3297 = vmatprep.subr.mxu0 0.0
        %3298 = vmatpush1.msra.mxu0 0.0
        %3299 = vmatprep.subr.mxu0 0.0
        %3300 = vmatpush1.msra.mxu0 0.0
        %3301 = vmatprep.subr.mxu0 0.0
        %3302 = vmatpush1.msra.mxu0 0.0
        %3303 = vmatprep.subr.mxu0 0.0
        %3304 = vmatpush1.msra.mxu0 0.0
        %3305 = vmatprep.subr.mxu0 0.0
        %3306 = vmatpush1.msra.mxu0 0.0
        %3307 = vmatprep.subr.mxu0 0.0
        %3308 = vmatpush1.msra.mxu0 0.0
        %3309 = vmatprep.subr.mxu0 0.0
        %3310 = vmatpush1.msra.mxu0 0.0
        %3311 = vmatprep.subr.mxu0 0.0
        %3312 = vmatpush1.msra.mxu0 0.0
        %3313 = vmatprep.subr.mxu0 0.0
        %3314 = vmatpush1.msra.mxu0 0.0
        %3315 = vmatprep.subr.mxu0 0.0
        %3316 = vmatpush1.msra.mxu0 0.0
        %3317 = vmatprep.subr.mxu0 0.0
        %3318 = vmatpush1.msra.mxu0 0.0
        %3319 = vmatprep.subr.mxu0 0.0
        %3320 = vmatpush1.msra.mxu0 0.0
        %3321 = vmatprep.subr.mxu0 0.0
        %3322 = vmatpush1.msra.mxu0 0.0
        %3323 = vmatprep.subr.mxu0 0.0
        %3324 = vmatpush1.msra.mxu0 0.0
        %3325 = vmatprep.subr.mxu0 0.0
        %3326 = vmatpush1.msra.mxu0 0.0
        %3327 = vmatprep.subr.mxu0 0.0
        %3328 = vmatpush1.msra.mxu0 0.0
        %3329 = vmatprep.subr.mxu0 0.0
        %3330 = vmatpush1.msra.mxu0 0.0
        %3331 = vmatprep.subr.mxu0 0.0
        %3332 = vmatpush1.msra.mxu0 0.0
        %3333 = vmatprep.subr.mxu0 0.0
        %3334 = vmatpush1.msra.mxu0 0.0
        %3335 = vmatprep.subr.mxu0 0.0
        %3336 = vmatpush1.msra.mxu0 0.0
        %3337 = vmatprep.subr.mxu0 0.0
        %3338 = vmatpush1.msra.mxu0 0.0
        %3339 = vmatprep.subr.mxu0 0.0
        %3340 = vmatpush1.msra.mxu0 0.0
        %3341 = vmatprep.subr.mxu0 0.0
        %3342 = vmatpush1.msra.mxu0 0.0
        %3343 = vmatprep.subr.mxu0 0.0
        %3344 = vmatpush1.msra.mxu0 0.0
        %3345 = vmatprep.subr.mxu0 0.0
        %3346 = vmatpush1.msra.mxu0 0.0
        %3347 = vmatprep.mubr.f32.mxu0 0.0
        %3348 = vmatmul.mubr.f32.gmra.mrb[0].mxu0 %v3268
        %v3349 = vpop.f32.mrb[0].mxu0
        %v3350 = vadd.f32 0.0, %v3349
        %v3351 = vpop.f32.mrb[0].mxu0
        %3352 = vmatprep.mubr.f32.mxu0 0.0
        %3353 = vmatmul.mubr.f32.gmra.mrb[0].mxu0 %v3271
        %v3354 = vpop.f32.mrb[0].mxu0
        %v3355 = vadd.f32 0.0, %v3354
        %v3356 = vpop.f32.mrb[0].mxu0
        %3357 = vmatprep.mubr.f32.mxu0 0.0
        %3358 = vmatmul.mubr.f32.gmra.mrb[0].mxu0 %v3274
        %v3359 = vpop.f32.mrb[0].mxu0
        %v3360 = vadd.f32 0.0, %v3359
        %v3361 = vpop.f32.mrb[0].mxu0
        %3362 = vmatprep.mubr.f32.mxu0 0.0
        %3363 = vmatmul.mubr.f32.gmra.mrb[0].mxu0 %v3277
        %v3364 = vpop.f32.mrb[0].mxu0
        %v3365 = vadd.f32 0.0, %v3364
        %v3366 = vpop.f32.mrb[0].mxu0
        %3367 = vdwg.mxu0
        %v3368 = vld [vmem:[%s10] sm:$0xff]
        %v3369 = vld [vmem:[%s10 + $0x8] sm:$0xff]
        %v3370 = vld [vmem:[%s10 + $0x10] sm:$0xff]
        %v3371 = vld [vmem:[%s10 + $0x18] sm:$0xff]
        %v3372 = vld [vmem:[%s10 + $0x20] sm:$0xff]
        %v3373 = vld [vmem:[%s10 + $0x28] sm:$0xff]
        %v3374 = vld [vmem:[%s10 + $0x30] sm:$0x3f]
        %v3376 = vsel %vm3279, %v3374, 0
        %3378 = vmatprep.subr.mxu0 0.0
        %3379 = vmatpush1.msra.mxu0 %v3368
        %3380 = vmatprep.subr.mxu0 0.0
        %3381 = vmatpush1.msra.mxu0 %v3369
        %3382 = vmatprep.subr.mxu0 0.0
        %3383 = vmatpush1.msra.mxu0 %v3370
        %3384 = vmatprep.subr.mxu0 0.0
        %3385 = vmatpush1.msra.mxu0 %v3371
        %3386 = vmatprep.subr.mxu0 0.0
        %3387 = vmatpush1.msra.mxu0 %v3372
        %3388 = vmatprep.subr.mxu0 0.0
        %3389 = vmatpush1.msra.mxu0 %v3373
        %3390 = vmatprep.subr.mxu0 0.0
        %3391 = vmatpush1.msra.mxu0 %v3376
        %3392 = vmatprep.subr.mxu0 0.0
        %3393 = vmatpush1.msra.mxu0 0.0
        %3394 = vmatprep.subr.mxu0 0.0
        %3395 = vmatpush1.msra.mxu0 0.0
        %3396 = vmatprep.subr.mxu0 0.0
        %3397 = vmatpush1.msra.mxu0 0.0
        %3398 = vmatprep.subr.mxu0 0.0
        %3399 = vmatpush1.msra.mxu0 0.0
        %3400 = vmatprep.subr.mxu0 0.0
        %3401 = vmatpush1.msra.mxu0 0.0
        %3402 = vmatprep.subr.mxu0 0.0
        %3403 = vmatpush1.msra.mxu0 0.0
        %3404 = vmatprep.subr.mxu0 0.0
        %3405 = vmatpush1.msra.mxu0 0.0
        %3406 = vmatprep.subr.mxu0 0.0
        %3407 = vmatpush1.msra.mxu0 0.0
        %3408 = vmatprep.subr.mxu0 0.0
        %3409 = vmatpush1.msra.mxu0 0.0
        %3410 = vmatprep.subr.mxu0 0.0
        %3411 = vmatpush1.msra.mxu0 0.0
        %3412 = vmatprep.subr.mxu0 0.0
        %3413 = vmatpush1.msra.mxu0 0.0
        %3414 = vmatprep.subr.mxu0 0.0
        %3415 = vmatpush1.msra.mxu0 0.0
        %3416 = vmatprep.subr.mxu0 0.0
        %3417 = vmatpush1.msra.mxu0 0.0
        %3418 = vmatprep.subr.mxu0 0.0
        %3419 = vmatpush1.msra.mxu0 0.0
        %3420 = vmatprep.subr.mxu0 0.0
        %3421 = vmatpush1.msra.mxu0 0.0
        %3422 = vmatprep.subr.mxu0 0.0
        %3423 = vmatpush1.msra.mxu0 0.0
        %3424 = vmatprep.subr.mxu0 0.0
        %3425 = vmatpush1.msra.mxu0 0.0
        %3426 = vmatprep.subr.mxu0 0.0
        %3427 = vmatpush1.msra.mxu0 0.0
        %3428 = vmatprep.subr.mxu0 0.0
        %3429 = vmatpush1.msra.mxu0 0.0
        %3430 = vmatprep.subr.mxu0 0.0
        %3431 = vmatpush1.msra.mxu0 0.0
        %3432 = vmatprep.subr.mxu0 0.0
        %3433 = vmatpush1.msra.mxu0 0.0
        %3434 = vmatprep.subr.mxu0 0.0
        %3435 = vmatpush1.msra.mxu0 0.0
        %3436 = vmatprep.subr.mxu0 0.0
        %3437 = vmatpush1.msra.mxu0 0.0
        %3438 = vmatprep.subr.mxu0 0.0
        %3439 = vmatpush1.msra.mxu0 0.0
        %3440 = vmatprep.subr.mxu0 0.0
        %3441 = vmatpush1.msra.mxu0 0.0
        %3442 = vmatprep.mubr.f32.mxu0 0.0
        %3443 = vmatmul.mubr.f32.gmra.mrb[0].mxu0 %v3268
        %v3444 = vpop.f32.mrb[0].mxu0
        %v3445 = vadd.f32 0.0, %v3444
        %v3446 = vpop.f32.mrb[0].mxu0
        %3447 = vmatprep.mubr.f32.mxu0 0.0
        %3448 = vmatmul.mubr.f32.gmra.mrb[0].mxu0 %v3271
        %v3449 = vpop.f32.mrb[0].mxu0
        %v3450 = vadd.f32 0.0, %v3449
        %v3451 = vpop.f32.mrb[0].mxu0
        %3452 = vmatprep.mubr.f32.mxu0 0.0
        %3453 = vmatmul.mubr.f32.gmra.mrb[0].mxu0 %v3274
        %v3454 = vpop.f32.mrb[0].mxu0
        %v3455 = vadd.f32 0.0, %v3454
        %v3456 = vpop.f32.mrb[0].mxu0
        %3457 = vmatprep.mubr.f32.mxu0 0.0
        %3458 = vmatmul.mubr.f32.gmra.mrb[0].mxu0 %v3277
        %v3459 = vpop.f32.mrb[0].mxu0
        %v3460 = vadd.f32 0.0, %v3459
        %v3461 = vpop.f32.mrb[0].mxu0
        %3462 = vdwg.mxu0
        %v3463 = vmax.f32 %v3350, %v3445
        %v3464 = vmax.f32 %v3355, %v3450
        %v3465 = vmax.f32 %v3360, %v3455
        %v3466 = vmax.f32 %v3365, %v3460
        %v3467 = vld [vmem:[%s11] sm:$0xff]
        %v3468 = vld [vmem:[%s11 + $0x8] sm:$0xff]
        %v3469 = vld [vmem:[%s11 + $0x10] sm:$0xff]
        %v3470 = vld [vmem:[%s11 + $0x18] sm:$0xff]
        %v3471 = vld [vmem:[%s11 + $0x20] sm:$0xff]
        %v3472 = vld [vmem:[%s11 + $0x28] sm:$0xff]
        %v3473 = vld [vmem:[%s11 + $0x30] sm:$0xff]
        %v3474 = vld [vmem:[%s11 + $0x38] sm:$0xff]
        %v3475 = vld [vmem:[%s11 + $0x40] sm:$0xff]
        %v3476 = vld [vmem:[%s11 + $0x48] sm:$0xff]
        %v3477 = vld [vmem:[%s11 + $0x50] sm:$0xff]
        %v3478 = vld [vmem:[%s11 + $0x58] sm:$0xff]
        %v3479 = vld [vmem:[%s11 + $0x60] sm:$0xff]
        %v3480 = vld [vmem:[%s11 + $0x68] sm:$0xff]
        %v3481 = vld [vmem:[%s11 + $0x70] sm:$0xff]
        %v3482 = vld [vmem:[%s11 + $0x78] sm:$0xff]
        %v3483 = vld [vmem:[%s11 + $0x80] sm:$0xff]
        %v3484 = vld [vmem:[%s11 + $0x88] sm:$0xff]
        %v3485 = vld [vmem:[%s11 + $0x90] sm:$0xff]
        %v3486 = vld [vmem:[%s11 + $0x98] sm:$0xff]
        %v3487 = vld [vmem:[%s11 + $0xa0] sm:$0xff]
        %v3488 = vld [vmem:[%s11 + $0xa8] sm:$0x7]
        %v3489 = vld [vmem:[%s11 + $0xb0] sm:$0x7]
        %v3490 = vld [vmem:[%s11 + $0xb8] sm:$0x7]
        %v3491 = vld [vmem:[%s11 + $0xc0] sm:$0x7]
        %v3492 = vld [vmem:[%s11 + $0xc8] sm:$0x7]
        %v3493 = vld [vmem:[%s11 + $0xd0] sm:$0x7]
        %v3494 = vld [vmem:[%s11 + $0xd8] sm:$0x7]
        %vm3495 = vcmask 220160
        %v3497 = vsel %vm3495, %v3463, 0
        %v3500 = vsel %vm3495, %v3464, 0
        %v3503 = vsel %vm3495, %v3465, 0
        %v3506 = vsel %vm3495, %v3466, 0
        %v3509 = vsel %vm719, %v3488, 0
        %v3512 = vsel %vm719, %v3489, 0
        %v3515 = vsel %vm719, %v3490, 0
        %v3518 = vsel %vm719, %v3491, 0
        %v3521 = vsel %vm719, %v3492, 0
        %v3524 = vsel %vm719, %v3493, 0
        %v3527 = vsel %vm719, %v3494, 0
        %3529 = vmatprep.subr.mxu0 %v3468
        %3530 = vmatpush1.msra.mxu0 %v3467
        %3531 = vmatprep.subr.mxu0 %v3475
        %3532 = vmatpush1.msra.mxu0 %v3474
        %3533 = vmatprep.subr.mxu0 %v3482
        %3534 = vmatpush1.msra.mxu0 %v3481
        %3535 = vmatprep.subr.mxu0 %v3512
        %3536 = vmatpush1.msra.mxu0 %v3509
        %3537 = vmatprep.subr.mxu0 0.0
        %3538 = vmatpush1.msra.mxu0 0.0
        %3539 = vmatprep.subr.mxu0 0.0
        %3540 = vmatpush1.msra.mxu0 0.0
        %3541 = vmatprep.subr.mxu0 0.0
        %3542 = vmatpush1.msra.mxu0 0.0
        %3543 = vmatprep.subr.mxu0 0.0
        %3544 = vmatpush1.msra.mxu0 0.0
        %3545 = vmatprep.subr.mxu0 0.0
        %3546 = vmatpush1.msra.mxu0 0.0
        %3547 = vmatprep.subr.mxu0 0.0
        %3548 = vmatpush1.msra.mxu0 0.0
        %3549 = vmatprep.subr.mxu0 0.0
        %3550 = vmatpush1.msra.mxu0 0.0
        %3551 = vmatprep.subr.mxu0 0.0
        %3552 = vmatpush1.msra.mxu0 0.0
        %3553 = vmatprep.subr.mxu0 0.0
        %3554 = vmatpush1.msra.mxu0 0.0
        %3555 = vmatprep.subr.mxu0 0.0
        %3556 = vmatpush1.msra.mxu0 0.0
        %3557 = vmatprep.subr.mxu0 0.0
        %3558 = vmatpush1.msra.mxu0 0.0
        %3559 = vmatprep.subr.mxu0 0.0
        %3560 = vmatpush1.msra.mxu0 0.0
        %3561 = vmatprep.subr.mxu0 0.0
        %3562 = vmatpush1.msra.mxu0 0.0
        %3563 = vmatprep.subr.mxu0 0.0
        %3564 = vmatpush1.msra.mxu0 0.0
        %3565 = vmatprep.subr.mxu0 0.0
        %3566 = vmatpush1.msra.mxu0 0.0
        %3567 = vmatprep.subr.mxu0 0.0
        %3568 = vmatpush1.msra.mxu0 0.0
        %3569 = vmatprep.subr.mxu0 0.0
        %3570 = vmatpush1.msra.mxu0 0.0
        %3571 = vmatprep.subr.mxu0 0.0
        %3572 = vmatpush1.msra.mxu0 0.0
        %3573 = vmatprep.subr.mxu0 0.0
        %3574 = vmatpush1.msra.mxu0 0.0
        %3575 = vmatprep.subr.mxu0 0.0
        %3576 = vmatpush1.msra.mxu0 0.0
        %3577 = vmatprep.subr.mxu0 0.0
        %3578 = vmatpush1.msra.mxu0 0.0
        %3579 = vmatprep.subr.mxu0 0.0
        %3580 = vmatpush1.msra.mxu0 0.0
        %3581 = vmatprep.subr.mxu0 0.0
        %3582 = vmatpush1.msra.mxu0 0.0
        %3583 = vmatprep.subr.mxu0 0.0
        %3584 = vmatpush1.msra.mxu0 0.0
        %3585 = vmatprep.subr.mxu0 0.0
        %3586 = vmatpush1.msra.mxu0 0.0
        %3587 = vmatprep.subr.mxu0 0.0
        %3588 = vmatpush1.msra.mxu0 0.0
        %3589 = vmatprep.subr.mxu0 0.0
        %3590 = vmatpush1.msra.mxu0 0.0
        %3591 = vmatprep.subr.mxu0 0.0
        %3592 = vmatpush1.msra.mxu0 0.0
        %3593 = vmatprep.mubr.f32.mxu0 0.0
        %3594 = vmatmul.mubr.f32.gmra.mrb[0].mxu0 %v3497
        %v3595 = vpop.f32.mrb[0].mxu0
        %v3596 = vadd.f32 0.0, %v3595
        %v3597 = vpop.f32.mrb[0].mxu0
        %v3598 = vadd.f32 0.0, %v3597
        %3599 = vmatprep.mubr.f32.mxu0 0.0
        %3600 = vmatmul.mubr.f32.gmra.mrb[0].mxu0 %v3500
        %v3601 = vpop.f32.mrb[0].mxu0
        %v3602 = vadd.f32 0.0, %v3601
        %v3603 = vpop.f32.mrb[0].mxu0
        %v3604 = vadd.f32 0.0, %v3603
        %3605 = vmatprep.mubr.f32.mxu0 0.0
        %3606 = vmatmul.mubr.f32.gmra.mrb[0].mxu0 %v3503
        %v3607 = vpop.f32.mrb[0].mxu0
        %v3608 = vadd.f32 0.0, %v3607
        %v3609 = vpop.f32.mrb[0].mxu0
        %v3610 = vadd.f32 0.0, %v3609
        %3611 = vmatprep.mubr.f32.mxu0 0.0
        %3612 = vmatmul.mubr.f32.gmra.mrb[0].mxu0 %v3506
        %v3613 = vpop.f32.mrb[0].mxu0
        %v3614 = vadd.f32 0.0, %v3613
        %v3615 = vpop.f32.mrb[0].mxu0
        %v3616 = vadd.f32 0.0, %v3615
        %3617 = vdwg.mxu0
        %3618 = vmatprep.subr.mxu0 %v3470
        %3619 = vmatpush1.msra.mxu0 %v3469
        %3620 = vmatprep.subr.mxu0 %v3477
        %3621 = vmatpush1.msra.mxu0 %v3476
        %3622 = vmatprep.subr.mxu0 %v3484
        %3623 = vmatpush1.msra.mxu0 %v3483
        %3624 = vmatprep.subr.mxu0 %v3518
        %3625 = vmatpush1.msra.mxu0 %v3515
        %3626 = vmatprep.subr.mxu0 0.0
        %3627 = vmatpush1.msra.mxu0 0.0
        %3628 = vmatprep.subr.mxu0 0.0
        %3629 = vmatpush1.msra.mxu0 0.0
        %3630 = vmatprep.subr.mxu0 0.0
        %3631 = vmatpush1.msra.mxu0 0.0
        %3632 = vmatprep.subr.mxu0 0.0
        %3633 = vmatpush1.msra.mxu0 0.0
        %3634 = vmatprep.subr.mxu0 0.0
        %3635 = vmatpush1.msra.mxu0 0.0
        %3636 = vmatprep.subr.mxu0 0.0
        %3637 = vmatpush1.msra.mxu0 0.0
        %3638 = vmatprep.subr.mxu0 0.0
        %3639 = vmatpush1.msra.mxu0 0.0
        %3640 = vmatprep.subr.mxu0 0.0
        %3641 = vmatpush1.msra.mxu0 0.0
        %3642 = vmatprep.subr.mxu0 0.0
        %3643 = vmatpush1.msra.mxu0 0.0
        %3644 = vmatprep.subr.mxu0 0.0
        %3645 = vmatpush1.msra.mxu0 0.0
        %3646 = vmatprep.subr.mxu0 0.0
        %3647 = vmatpush1.msra.mxu0 0.0
        %3648 = vmatprep.subr.mxu0 0.0
        %3649 = vmatpush1.msra.mxu0 0.0
        %3650 = vmatprep.subr.mxu0 0.0
        %3651 = vmatpush1.msra.mxu0 0.0
        %3652 = vmatprep.subr.mxu0 0.0
        %3653 = vmatpush1.msra.mxu0 0.0
        %3654 = vmatprep.subr.mxu0 0.0
        %3655 = vmatpush1.msra.mxu0 0.0
        %3656 = vmatprep.subr.mxu0 0.0
        %3657 = vmatpush1.msra.mxu0 0.0
        %3658 = vmatprep.subr.mxu0 0.0
        %3659 = vmatpush1.msra.mxu0 0.0
        %3660 = vmatprep.subr.mxu0 0.0
        %3661 = vmatpush1.msra.mxu0 0.0
        %3662 = vmatprep.subr.mxu0 0.0
        %3663 = vmatpush1.msra.mxu0 0.0
        %3664 = vmatprep.subr.mxu0 0.0
        %3665 = vmatpush1.msra.mxu0 0.0
        %3666 = vmatprep.subr.mxu0 0.0
        %3667 = vmatpush1.msra.mxu0 0.0
        %3668 = vmatprep.subr.mxu0 0.0
        %3669 = vmatpush1.msra.mxu0 0.0
        %3670 = vmatprep.subr.mxu0 0.0
        %3671 = vmatpush1.msra.mxu0 0.0
        %3672 = vmatprep.subr.mxu0 0.0
        %3673 = vmatpush1.msra.mxu0 0.0
        %3674 = vmatprep.subr.mxu0 0.0
        %3675 = vmatpush1.msra.mxu0 0.0
        %3676 = vmatprep.subr.mxu0 0.0
        %3677 = vmatpush1.msra.mxu0 0.0
        %3678 = vmatprep.subr.mxu0 0.0
        %3679 = vmatpush1.msra.mxu0 0.0
        %3680 = vmatprep.subr.mxu0 0.0
        %3681 = vmatpush1.msra.mxu0 0.0
        %3682 = vmatprep.mubr.f32.mxu0 0.0
        %3683 = vmatmul.mubr.f32.gmra.mrb[0].mxu0 %v3497
        %v3684 = vpop.f32.mrb[0].mxu0
        %v3685 = vadd.f32 0.0, %v3684
        %v3686 = vpop.f32.mrb[0].mxu0
        %v3687 = vadd.f32 0.0, %v3686
        %3688 = vmatprep.mubr.f32.mxu0 0.0
        %3689 = vmatmul.mubr.f32.gmra.mrb[0].mxu0 %v3500
        %v3690 = vpop.f32.mrb[0].mxu0
        %v3691 = vadd.f32 0.0, %v3690
        %v3692 = vpop.f32.mrb[0].mxu0
        %v3693 = vadd.f32 0.0, %v3692
        %3694 = vmatprep.mubr.f32.mxu0 0.0
        %3695 = vmatmul.mubr.f32.gmra.mrb[0].mxu0 %v3503
        %v3696 = vpop.f32.mrb[0].mxu0
        %v3697 = vadd.f32 0.0, %v3696
        %v3698 = vpop.f32.mrb[0].mxu0
        %v3699 = vadd.f32 0.0, %v3698
        %3700 = vmatprep.mubr.f32.mxu0 0.0
        %3701 = vmatmul.mubr.f32.gmra.mrb[0].mxu0 %v3506
        %v3702 = vpop.f32.mrb[0].mxu0
        %v3703 = vadd.f32 0.0, %v3702
        %v3704 = vpop.f32.mrb[0].mxu0
        %v3705 = vadd.f32 0.0, %v3704
        %3706 = vdwg.mxu0
        %3707 = vmatprep.subr.mxu0 %v3472
        %3708 = vmatpush1.msra.mxu0 %v3471
        %3709 = vmatprep.subr.mxu0 %v3479
        %3710 = vmatpush1.msra.mxu0 %v3478
        %3711 = vmatprep.subr.mxu0 %v3486
        %3712 = vmatpush1.msra.mxu0 %v3485
        %3713 = vmatprep.subr.mxu0 %v3524
        %3714 = vmatpush1.msra.mxu0 %v3521
        %3715 = vmatprep.subr.mxu0 0.0
        %3716 = vmatpush1.msra.mxu0 0.0
        %3717 = vmatprep.subr.mxu0 0.0
        %3718 = vmatpush1.msra.mxu0 0.0
        %3719 = vmatprep.subr.mxu0 0.0
        %3720 = vmatpush1.msra.mxu0 0.0
        %3721 = vmatprep.subr.mxu0 0.0
        %3722 = vmatpush1.msra.mxu0 0.0
        %3723 = vmatprep.subr.mxu0 0.0
        %3724 = vmatpush1.msra.mxu0 0.0
        %3725 = vmatprep.subr.mxu0 0.0
        %3726 = vmatpush1.msra.mxu0 0.0
        %3727 = vmatprep.subr.mxu0 0.0
        %3728 = vmatpush1.msra.mxu0 0.0
        %3729 = vmatprep.subr.mxu0 0.0
        %3730 = vmatpush1.msra.mxu0 0.0
        %3731 = vmatprep.subr.mxu0 0.0
        %3732 = vmatpush1.msra.mxu0 0.0
        %3733 = vmatprep.subr.mxu0 0.0
        %3734 = vmatpush1.msra.mxu0 0.0
        %3735 = vmatprep.subr.mxu0 0.0
        %3736 = vmatpush1.msra.mxu0 0.0
        %3737 = vmatprep.subr.mxu0 0.0
        %3738 = vmatpush1.msra.mxu0 0.0
        %3739 = vmatprep.subr.mxu0 0.0
        %3740 = vmatpush1.msra.mxu0 0.0
        %3741 = vmatprep.subr.mxu0 0.0
        %3742 = vmatpush1.msra.mxu0 0.0
        %3743 = vmatprep.subr.mxu0 0.0
        %3744 = vmatpush1.msra.mxu0 0.0
        %3745 = vmatprep.subr.mxu0 0.0
        %3746 = vmatpush1.msra.mxu0 0.0
        %3747 = vmatprep.subr.mxu0 0.0
        %3748 = vmatpush1.msra.mxu0 0.0
        %3749 = vmatprep.subr.mxu0 0.0
        %3750 = vmatpush1.msra.mxu0 0.0
        %3751 = vmatprep.subr.mxu0 0.0
        %3752 = vmatpush1.msra.mxu0 0.0
        %3753 = vmatprep.subr.mxu0 0.0
        %3754 = vmatpush1.msra.mxu0 0.0
        %3755 = vmatprep.subr.mxu0 0.0
        %3756 = vmatpush1.msra.mxu0 0.0
        %3757 = vmatprep.subr.mxu0 0.0
        %3758 = vmatpush1.msra.mxu0 0.0
        %3759 = vmatprep.subr.mxu0 0.0
        %3760 = vmatpush1.msra.mxu0 0.0
        %3761 = vmatprep.subr.mxu0 0.0
        %3762 = vmatpush1.msra.mxu0 0.0
        %3763 = vmatprep.subr.mxu0 0.0
        %3764 = vmatpush1.msra.mxu0 0.0
        %3765 = vmatprep.subr.mxu0 0.0
        %3766 = vmatpush1.msra.mxu0 0.0
        %3767 = vmatprep.subr.mxu0 0.0
        %3768 = vmatpush1.msra.mxu0 0.0
        %3769 = vmatprep.subr.mxu0 0.0
        %3770 = vmatpush1.msra.mxu0 0.0
        %3771 = vmatprep.mubr.f32.mxu0 0.0
        %3772 = vmatmul.mubr.f32.gmra.mrb[0].mxu0 %v3497
        %v3773 = vpop.f32.mrb[0].mxu0
        %v3774 = vadd.f32 0.0, %v3773
        %v3775 = vpop.f32.mrb[0].mxu0
        %v3776 = vadd.f32 0.0, %v3775
        %3777 = vmatprep.mubr.f32.mxu0 0.0
        %3778 = vmatmul.mubr.f32.gmra.mrb[0].mxu0 %v3500
        %v3779 = vpop.f32.mrb[0].mxu0
        %v3780 = vadd.f32 0.0, %v3779
        %v3781 = vpop.f32.mrb[0].mxu0
        %v3782 = vadd.f32 0.0, %v3781
        %3783 = vmatprep.mubr.f32.mxu0 0.0
        %3784 = vmatmul.mubr.f32.gmra.mrb[0].mxu0 %v3503
        %v3785 = vpop.f32.mrb[0].mxu0
        %v3786 = vadd.f32 0.0, %v3785
        %v3787 = vpop.f32.mrb[0].mxu0
        %v3788 = vadd.f32 0.0, %v3787
        %3789 = vmatprep.mubr.f32.mxu0 0.0
        %3790 = vmatmul.mubr.f32.gmra.mrb[0].mxu0 %v3506
        %v3791 = vpop.f32.mrb[0].mxu0
        %v3792 = vadd.f32 0.0, %v3791
        %v3793 = vpop.f32.mrb[0].mxu0
        %v3794 = vadd.f32 0.0, %v3793
        %3795 = vdwg.mxu0
        %3796 = vmatprep.subr.mxu0 0.0
        %3797 = vmatpush1.msra.mxu0 %v3473
        %3798 = vmatprep.subr.mxu0 0.0
        %3799 = vmatpush1.msra.mxu0 %v3480
        %3800 = vmatprep.subr.mxu0 0.0
        %3801 = vmatpush1.msra.mxu0 %v3487
        %3802 = vmatprep.subr.mxu0 0.0
        %3803 = vmatpush1.msra.mxu0 %v3527
        %3804 = vmatprep.subr.mxu0 0.0
        %3805 = vmatpush1.msra.mxu0 0.0
        %3806 = vmatprep.subr.mxu0 0.0
        %3807 = vmatpush1.msra.mxu0 0.0
        %3808 = vmatprep.subr.mxu0 0.0
        %3809 = vmatpush1.msra.mxu0 0.0
        %3810 = vmatprep.subr.mxu0 0.0
        %3811 = vmatpush1.msra.mxu0 0.0
        %3812 = vmatprep.subr.mxu0 0.0
        %3813 = vmatpush1.msra.mxu0 0.0
        %3814 = vmatprep.subr.mxu0 0.0
        %3815 = vmatpush1.msra.mxu0 0.0
        %3816 = vmatprep.subr.mxu0 0.0
        %3817 = vmatpush1.msra.mxu0 0.0
        %3818 = vmatprep.subr.mxu0 0.0
        %3819 = vmatpush1.msra.mxu0 0.0
        %3820 = vmatprep.subr.mxu0 0.0
        %3821 = vmatpush1.msra.mxu0 0.0
        %3822 = vmatprep.subr.mxu0 0.0
        %3823 = vmatpush1.msra.mxu0 0.0
        %3824 = vmatprep.subr.mxu0 0.0
        %3825 = vmatpush1.msra.mxu0 0.0
        %3826 = vmatprep.subr.mxu0 0.0
        %3827 = vmatpush1.msra.mxu0 0.0
        %3828 = vmatprep.subr.mxu0 0.0
        %3829 = vmatpush1.msra.mxu0 0.0
        %3830 = vmatprep.subr.mxu0 0.0
        %3831 = vmatpush1.msra.mxu0 0.0
        %3832 = vmatprep.subr.mxu0 0.0
        %3833 = vmatpush1.msra.mxu0 0.0
        %3834 = vmatprep.subr.mxu0 0.0
        %3835 = vmatpush1.msra.mxu0 0.0
        %3836 = vmatprep.subr.mxu0 0.0
        %3837 = vmatpush1.msra.mxu0 0.0
        %3838 = vmatprep.subr.mxu0 0.0
        %3839 = vmatpush1.msra.mxu0 0.0
        %3840 = vmatprep.subr.mxu0 0.0
        %3841 = vmatpush1.msra.mxu0 0.0
        %3842 = vmatprep.subr.mxu0 0.0
        %3843 = vmatpush1.msra.mxu0 0.0
        %3844 = vmatprep.subr.mxu0 0.0
        %3845 = vmatpush1.msra.mxu0 0.0
        %3846 = vmatprep.subr.mxu0 0.0
        %3847 = vmatpush1.msra.mxu0 0.0
        %3848 = vmatprep.subr.mxu0 0.0
        %3849 = vmatpush1.msra.mxu0 0.0
        %3850 = vmatprep.subr.mxu0 0.0
        %3851 = vmatpush1.msra.mxu0 0.0
        %3852 = vmatprep.subr.mxu0 0.0
        %3853 = vmatpush1.msra.mxu0 0.0
        %3854 = vmatprep.subr.mxu0 0.0
        %3855 = vmatpush1.msra.mxu0 0.0
        %3856 = vmatprep.subr.mxu0 0.0
        %3857 = vmatpush1.msra.mxu0 0.0
        %3858 = vmatprep.subr.mxu0 0.0
        %3859 = vmatpush1.msra.mxu0 0.0
        %3860 = vmatprep.mubr.f32.mxu0 0.0
        %3861 = vmatmul.mubr.f32.gmra.mrb[0].mxu0 %v3497
        %v3862 = vpop.f32.mrb[0].mxu0
        %v3863 = vadd.f32 0.0, %v3862
        %v3864 = vpop.f32.mrb[0].mxu0
        %3865 = vmatprep.mubr.f32.mxu0 0.0
        %3866 = vmatmul.mubr.f32.gmra.mrb[0].mxu0 %v3500
        %v3867 = vpop.f32.mrb[0].mxu0
        %v3868 = vadd.f32 0.0, %v3867
        %v3869 = vpop.f32.mrb[0].mxu0
        %3870 = vmatprep.mubr.f32.mxu0 0.0
        %3871 = vmatmul.mubr.f32.gmra.mrb[0].mxu0 %v3503
        %v3872 = vpop.f32.mrb[0].mxu0
        %v3873 = vadd.f32 0.0, %v3872
        %v3874 = vpop.f32.mrb[0].mxu0
        %3875 = vmatprep.mubr.f32.mxu0 0.0
        %3876 = vmatmul.mubr.f32.gmra.mrb[0].mxu0 %v3506
        %v3877 = vpop.f32.mrb[0].mxu0
        %v3878 = vadd.f32 0.0, %v3877
        %v3879 = vpop.f32.mrb[0].mxu0
        %3880 = vdwg.mxu0
        %v3881 = vld [vmem:[%s12] sm:$0xff]
        %v3882 = vld [vmem:[%s12 + $0x8] sm:$0xff]
        %v3883 = vld [vmem:[%s12 + $0x10] sm:$0xff]
        %v3884 = vld [vmem:[%s12 + $0x18] sm:$0xff]
        %v3885 = vld [vmem:[%s12 + $0x20] sm:$0xff]
        %v3886 = vld [vmem:[%s12 + $0x28] sm:$0xff]
        %v3887 = vld [vmem:[%s12 + $0x30] sm:$0xff]
        %v3888 = vld [vmem:[%s12 + $0x38] sm:$0xff]
        %v3889 = vld [vmem:[%s12 + $0x40] sm:$0xff]
        %v3890 = vld [vmem:[%s12 + $0x48] sm:$0xff]
        %v3891 = vld [vmem:[%s12 + $0x50] sm:$0xff]
        %v3892 = vld [vmem:[%s12 + $0x58] sm:$0xff]
        %v3893 = vld [vmem:[%s12 + $0x60] sm:$0xff]
        %v3894 = vld [vmem:[%s12 + $0x68] sm:$0xff]
        %v3895 = vld [vmem:[%s12 + $0x70] sm:$0xff]
        %v3896 = vld [vmem:[%s12 + $0x78] sm:$0xff]
        %v3897 = vld [vmem:[%s12 + $0x80] sm:$0xff]
        %v3898 = vld [vmem:[%s12 + $0x88] sm:$0xff]
        %v3899 = vld [vmem:[%s12 + $0x90] sm:$0xff]
        %v3900 = vld [vmem:[%s12 + $0x98] sm:$0xff]
        %v3901 = vld [vmem:[%s12 + $0xa0] sm:$0xff]
        %v3902 = vld [vmem:[%s12 + $0xa8] sm:$0xff]
        %v3903 = vld [vmem:[%s12 + $0xb0] sm:$0xff]
        %v3904 = vld [vmem:[%s12 + $0xb8] sm:$0xff]
        %v3905 = vld [vmem:[%s12 + $0xc0] sm:$0xff]
        %v3906 = vld [vmem:[%s12 + $0xc8] sm:$0xff]
        %v3907 = vld [vmem:[%s12 + $0xd0] sm:$0xff]
        %v3908 = vld [vmem:[%s12 + $0xd8] sm:$0xff]
        %v3909 = vmul.f32 %v3596, %v3881
        %v3910 = vmul.f32 %v3598, %v3882
        %v3911 = vmul.f32 %v3685, %v3883
        %v3912 = vmul.f32 %v3687, %v3884
        %v3913 = vmul.f32 %v3774, %v3885
        %v3914 = vmul.f32 %v3776, %v3886
        %v3915 = vmul.f32 %v3863, %v3887
        %v3916 = vmul.f32 %v3602, %v3888
        %v3917 = vmul.f32 %v3604, %v3889
        %v3918 = vmul.f32 %v3691, %v3890
        %v3919 = vmul.f32 %v3693, %v3891
        %v3920 = vmul.f32 %v3780, %v3892
        %v3921 = vmul.f32 %v3782, %v3893
        %v3922 = vmul.f32 %v3868, %v3894
        %v3923 = vmul.f32 %v3608, %v3895
        %v3924 = vmul.f32 %v3610, %v3896
        %v3925 = vmul.f32 %v3697, %v3897
        %v3926 = vmul.f32 %v3699, %v3898
        %v3927 = vmul.f32 %v3786, %v3899
        %v3928 = vmul.f32 %v3788, %v3900
        %v3929 = vmul.f32 %v3873, %v3901
        %v3930 = vmul.f32 %v3614, %v3902
        %v3931 = vmul.f32 %v3616, %v3903
        %v3932 = vmul.f32 %v3703, %v3904
        %v3933 = vmul.f32 %v3705, %v3905
        %v3934 = vmul.f32 %v3792, %v3906
        %v3935 = vmul.f32 %v3794, %v3907
        %v3936 = vmul.f32 %v3878, %v3908
        %v3937 = vadd.f32 %v3909, %v3916
        %v3938 = vadd.f32 %v3937, %v3923
        %v3939 = vadd.f32 %v3938, %v3930
        %v3940 = vrot.slane %v3939, 4
        %v3941 = vadd.f32 %v3939, %v3940
        %v3942 = vrot.slane %v3941, 2
        %v3943 = vadd.f32 %v3941, %v3942
        %v3944 = vrot.slane %v3943, 1
        %v3945 = vadd.f32 %v3943, %v3944
        %v3946 = vadd.f32 %v3910, %v3917
        %v3947 = vadd.f32 %v3946, %v3924
        %v3948 = vadd.f32 %v3947, %v3931
        %v3949 = vrot.slane %v3948, 4
        %v3950 = vadd.f32 %v3948, %v3949
        %v3951 = vrot.slane %v3950, 2
        %v3952 = vadd.f32 %v3950, %v3951
        %v3953 = vrot.slane %v3952, 1
        %v3954 = vadd.f32 %v3952, %v3953
        %v3955 = vadd.f32 %v3911, %v3918
        %v3956 = vadd.f32 %v3955, %v3925
        %v3957 = vadd.f32 %v3956, %v3932
        %v3958 = vrot.slane %v3957, 4
        %v3959 = vadd.f32 %v3957, %v3958
        %v3960 = vrot.slane %v3959, 2
        %v3961 = vadd.f32 %v3959, %v3960
        %v3962 = vrot.slane %v3961, 1
        %v3963 = vadd.f32 %v3961, %v3962
        %v3964 = vadd.f32 %v3912, %v3919
        %v3965 = vadd.f32 %v3964, %v3926
        %v3966 = vadd.f32 %v3965, %v3933
        %v3967 = vrot.slane %v3966, 4
        %v3968 = vadd.f32 %v3966, %v3967
        %v3969 = vrot.slane %v3968, 2
        %v3970 = vadd.f32 %v3968, %v3969
        %v3971 = vrot.slane %v3970, 1
        %v3972 = vadd.f32 %v3970, %v3971
        %v3973 = vadd.f32 %v3913, %v3920
        %v3974 = vadd.f32 %v3973, %v3927
        %v3975 = vadd.f32 %v3974, %v3934
        %v3976 = vrot.slane %v3975, 4
        %v3977 = vadd.f32 %v3975, %v3976
        %v3978 = vrot.slane %v3977, 2
        %v3979 = vadd.f32 %v3977, %v3978
        %v3980 = vrot.slane %v3979, 1
        %v3981 = vadd.f32 %v3979, %v3980
        %v3982 = vadd.f32 %v3914, %v3921
        %v3983 = vadd.f32 %v3982, %v3928
        %v3984 = vadd.f32 %v3983, %v3935
        %v3985 = vrot.slane %v3984, 4
        %v3986 = vadd.f32 %v3984, %v3985
        %v3987 = vrot.slane %v3986, 2
        %v3988 = vadd.f32 %v3986, %v3987
        %v3989 = vrot.slane %v3988, 1
        %v3990 = vadd.f32 %v3988, %v3989
        %vm3991 = vcmask 785408
        %v3992 = vsel %vm3991, %v3915, 0.0
        %v3993 = vsel %vm3991, %v3922, 0.0
        %v3994 = vadd.f32 %v3992, %v3993
        %v3995 = vsel %vm3991, %v3929, 0.0
        %v3996 = vadd.f32 %v3994, %v3995
        %v3997 = vsel %vm3991, %v3936, 0.0
        %v3998 = vadd.f32 %v3996, %v3997
        %v3999 = vrot.slane %v3998, 4
        %v4000 = vadd.f32 %v3998, %v3999
        %v4001 = vrot.slane %v4000, 2
        %v4002 = vadd.f32 %v4000, %v4001
        %v4003 = vrot.slane %v4002, 1
        %v4004 = vadd.f32 %v4002, %v4003
        %v4005 = vld [vmem:[%s13] sm:$0xff]
        %v4006 = vld [vmem:[%s13 + $0x8] sm:$0xff]
        %v4007 = vld [vmem:[%s13 + $0x10] sm:$0xff]
        %v4008 = vld [vmem:[%s13 + $0x18] sm:$0xff]
        %v4009 = vld [vmem:[%s13 + $0x20] sm:$0xff]
        %v4010 = vld [vmem:[%s13 + $0x28] sm:$0xff]
        %v4011 = vld [vmem:[%s13 + $0x30] sm:$0xff]
        %v4012 = vld [vmem:[%s13 + $0x38] sm:$0xff]
        %v4013 = vld [vmem:[%s13 + $0x40] sm:$0xff]
        %v4014 = vld [vmem:[%s13 + $0x48] sm:$0xff]
        %v4015 = vld [vmem:[%s13 + $0x50] sm:$0xff]
        %v4016 = vld [vmem:[%s13 + $0x58] sm:$0xff]
        %v4017 = vld [vmem:[%s13 + $0x60] sm:$0xff]
        %v4018 = vld [vmem:[%s13 + $0x68] sm:$0xff]
        %v4019 = vld [vmem:[%s13 + $0x70] sm:$0xff]
        %v4020 = vld [vmem:[%s13 + $0x78] sm:$0xff]
        %v4021 = vld [vmem:[%s13 + $0x80] sm:$0xff]
        %v4022 = vld [vmem:[%s13 + $0x88] sm:$0xff]
        %v4023 = vld [vmem:[%s13 + $0x90] sm:$0xff]
        %v4024 = vld [vmem:[%s13 + $0x98] sm:$0xff]
        %v4025 = vld [vmem:[%s13 + $0xa0] sm:$0xff]
        %v4026 = vld [vmem:[%s13 + $0xa8] sm:$0xff]
        %v4027 = vld [vmem:[%s13 + $0xb0] sm:$0xff]
        %v4028 = vld [vmem:[%s13 + $0xb8] sm:$0xff]
        %v4029 = vld [vmem:[%s13 + $0xc0] sm:$0xff]
        %v4030 = vld [vmem:[%s13 + $0xc8] sm:$0xff]
        %v4031 = vld [vmem:[%s13 + $0xd0] sm:$0xff]
        %v4032 = vld [vmem:[%s13 + $0xd8] sm:$0xff]
        %v4033 = vld [vmem:[%s13 + $0xe0] sm:$0xff]
        %v4034 = vld [vmem:[%s13 + $0xe8] sm:$0xff]
        %v4035 = vld [vmem:[%s13 + $0xf0] sm:$0xff]
        %v4036 = vld [vmem:[%s13 + $0xf8] sm:$0xff]
        %v4037 = vld [vmem:[%s13 + $0x100] sm:$0xff]
        %v4038 = vld [vmem:[%s13 + $0x108] sm:$0xff]
        %v4039 = vld [vmem:[%s13 + $0x110] sm:$0xff]
        %v4040 = vld [vmem:[%s13 + $0x118] sm:$0xff]
        %v4041 = vld [vmem:[%s13 + $0x120] sm:$0xff]
        %v4042 = vld [vmem:[%s13 + $0x128] sm:$0xff]
        %v4043 = vld [vmem:[%s13 + $0x130] sm:$0xff]
        %v4044 = vld [vmem:[%s13 + $0x138] sm:$0xff]
        %v4045 = vld [vmem:[%s13 + $0x140] sm:$0xff]
        %v4046 = vld [vmem:[%s13 + $0x148] sm:$0xff]
        %v4047 = vld [vmem:[%s13 + $0x150] sm:$0xff]
        %v4048 = vld [vmem:[%s13 + $0x158] sm:$0xff]
        %v4049 = vld [vmem:[%s13 + $0x160] sm:$0xff]
        %v4050 = vld [vmem:[%s13 + $0x168] sm:$0xff]
        %v4051 = vld [vmem:[%s13 + $0x170] sm:$0xff]
        %v4052 = vld [vmem:[%s13 + $0x178] sm:$0xff]
        %v4053 = vld [vmem:[%s13 + $0x180] sm:$0xff]
        %v4054 = vld [vmem:[%s13 + $0x188] sm:$0xff]
        %v4055 = vld [vmem:[%s13 + $0x190] sm:$0xff]
        %v4056 = vld [vmem:[%s13 + $0x198] sm:$0xff]
        %v4057 = vld [vmem:[%s13 + $0x1a0] sm:$0xff]
        %v4058 = vld [vmem:[%s13 + $0x1a8] sm:$0xff]
        %v4059 = vld [vmem:[%s13 + $0x1b0] sm:$0xff]
        %v4060 = vld [vmem:[%s13 + $0x1b8] sm:$0xff]
        %v4061 = vld [vmem:[%s13 + $0x1c0] sm:$0xff]
        %v4062 = vld [vmem:[%s13 + $0x1c8] sm:$0xff]
        %v4063 = vld [vmem:[%s13 + $0x1d0] sm:$0xff]
        %v4064 = vld [vmem:[%s13 + $0x1d8] sm:$0xff]
        %v4065 = vld [vmem:[%s13 + $0x1e0] sm:$0xff]
        %v4066 = vld [vmem:[%s13 + $0x1e8] sm:$0xff]
        %v4067 = vld [vmem:[%s13 + $0x1f0] sm:$0xff]
        %v4068 = vld [vmem:[%s13 + $0x1f8] sm:$0xff]
        %v4069 = vld [vmem:[%s13 + $0x200] sm:$0xff]
        %v4070 = vld [vmem:[%s13 + $0x208] sm:$0xff]
        %v4071 = vld [vmem:[%s13 + $0x210] sm:$0xff]
        %v4072 = vld [vmem:[%s13 + $0x218] sm:$0xff]
        %v4073 = vld [vmem:[%s13 + $0x220] sm:$0xff]
        %v4074 = vld [vmem:[%s13 + $0x228] sm:$0xff]
        %v4075 = vld [vmem:[%s13 + $0x230] sm:$0xff]
        %v4076 = vld [vmem:[%s13 + $0x238] sm:$0xff]
        %v4077 = vld [vmem:[%s13 + $0x240] sm:$0xff]
        %v4078 = vld [vmem:[%s13 + $0x248] sm:$0xff]
        %v4079 = vld [vmem:[%s13 + $0x250] sm:$0xff]
        %v4080 = vld [vmem:[%s13 + $0x258] sm:$0xff]
        %v4081 = vld [vmem:[%s13 + $0x260] sm:$0xff]
        %v4082 = vld [vmem:[%s13 + $0x268] sm:$0xff]
        %v4083 = vld [vmem:[%s13 + $0x270] sm:$0xff]
        %v4084 = vld [vmem:[%s13 + $0x278] sm:$0xff]
        %v4085 = vld [vmem:[%s13 + $0x280] sm:$0xff]
        %v4086 = vld [vmem:[%s13 + $0x288] sm:$0xff]
        %v4087 = vld [vmem:[%s13 + $0x290] sm:$0xff]
        %v4088 = vld [vmem:[%s13 + $0x298] sm:$0xff]
        %v4089 = vld [vmem:[%s13 + $0x2a0] sm:$0xff]
        %v4090 = vld [vmem:[%s13 + $0x2a8] sm:$0xff]
        %v4091 = vld [vmem:[%s13 + $0x2b0] sm:$0xff]
        %v4092 = vld [vmem:[%s13 + $0x2b8] sm:$0xff]
        %v4093 = vld [vmem:[%s13 + $0x2c0] sm:$0xff]
        %v4094 = vld [vmem:[%s13 + $0x2c8] sm:$0xff]
        %v4095 = vld [vmem:[%s13 + $0x2d0] sm:$0xff]
        %v4096 = vld [vmem:[%s13 + $0x2d8] sm:$0xff]
        %v4097 = vld [vmem:[%s13 + $0x2e0] sm:$0xff]
        %v4098 = vld [vmem:[%s13 + $0x2e8] sm:$0xff]
        %v4099 = vld [vmem:[%s13 + $0x2f0] sm:$0xff]
        %v4100 = vld [vmem:[%s13 + $0x2f8] sm:$0xff]
        %v4101 = vld [vmem:[%s13 + $0x300] sm:$0xff]
        %v4102 = vld [vmem:[%s13 + $0x308] sm:$0xff]
        %v4103 = vld [vmem:[%s13 + $0x310] sm:$0xff]
        %v4104 = vld [vmem:[%s13 + $0x318] sm:$0xff]
        %v4105 = vld [vmem:[%s13 + $0x320] sm:$0xff]
        %v4106 = vld [vmem:[%s13 + $0x328] sm:$0xff]
        %v4107 = vld [vmem:[%s13 + $0x330] sm:$0xff]
        %v4108 = vld [vmem:[%s13 + $0x338] sm:$0xff]
        %v4109 = vld [vmem:[%s13 + $0x340] sm:$0xff]
        %v4110 = vld [vmem:[%s13 + $0x348] sm:$0xff]
        %v4111 = vld [vmem:[%s13 + $0x350] sm:$0xff]
        %v4112 = vld [vmem:[%s13 + $0x358] sm:$0xff]
        %v4113 = vld [vmem:[%s13 + $0x360] sm:$0xff]
        %v4114 = vld [vmem:[%s13 + $0x368] sm:$0xff]
        %v4115 = vld [vmem:[%s13 + $0x370] sm:$0xff]
        %v4116 = vld [vmem:[%s13 + $0x378] sm:$0xff]
        %v4117 = vld [vmem:[%s13 + $0x380] sm:$0xff]
        %v4118 = vld [vmem:[%s13 + $0x388] sm:$0xff]
        %v4119 = vld [vmem:[%s13 + $0x390] sm:$0xff]
        %v4120 = vld [vmem:[%s13 + $0x398] sm:$0xff]
        %v4121 = vld [vmem:[%s13 + $0x3a0] sm:$0xff]
        %v4122 = vld [vmem:[%s13 + $0x3a8] sm:$0xff]
        %v4123 = vld [vmem:[%s13 + $0x3b0] sm:$0xff]
        %v4124 = vld [vmem:[%s13 + $0x3b8] sm:$0xff]
        %v4125 = vld [vmem:[%s13 + $0x3c0] sm:$0xff]
        %v4126 = vld [vmem:[%s13 + $0x3c8] sm:$0xff]
        %v4127 = vld [vmem:[%s13 + $0x3d0] sm:$0xff]
        %v4128 = vld [vmem:[%s13 + $0x3d8] sm:$0xff]
        %v4129 = vld [vmem:[%s13 + $0x3e0] sm:$0xff]
        %v4130 = vld [vmem:[%s13 + $0x3e8] sm:$0xff]
        %v4131 = vld [vmem:[%s13 + $0x3f0] sm:$0xff]
        %v4132 = vld [vmem:[%s13 + $0x3f8] sm:$0xff]
        %v4133 = vld [vmem:[%s13 + $0x400] sm:$0xff]
        %v4134 = vld [vmem:[%s13 + $0x408] sm:$0xff]
        %v4135 = vld [vmem:[%s13 + $0x410] sm:$0xff]
        %v4136 = vld [vmem:[%s13 + $0x418] sm:$0xff]
        %v4137 = vld [vmem:[%s13 + $0x420] sm:$0xff]
        %v4138 = vld [vmem:[%s13 + $0x428] sm:$0xff]
        %v4139 = vld [vmem:[%s13 + $0x430] sm:$0xff]
        %v4140 = vld [vmem:[%s13 + $0x438] sm:$0xff]
        %v4141 = vld [vmem:[%s13 + $0x440] sm:$0xff]
        %v4142 = vld [vmem:[%s13 + $0x448] sm:$0xff]
        %v4143 = vld [vmem:[%s13 + $0x450] sm:$0xff]
        %v4144 = vld [vmem:[%s13 + $0x458] sm:$0xff]
        %v4145 = vld [vmem:[%s13 + $0x460] sm:$0xff]
        %v4146 = vld [vmem:[%s13 + $0x468] sm:$0xff]
        %v4147 = vld [vmem:[%s13 + $0x470] sm:$0xff]
        %v4148 = vld [vmem:[%s13 + $0x478] sm:$0xff]
        %v4149 = vld [vmem:[%s13 + $0x480] sm:$0xff]
        %v4150 = vld [vmem:[%s13 + $0x488] sm:$0xff]
        %v4151 = vld [vmem:[%s13 + $0x490] sm:$0xff]
        %v4152 = vld [vmem:[%s13 + $0x498] sm:$0xff]
        %v4153 = vld [vmem:[%s13 + $0x4a0] sm:$0xff]
        %v4154 = vld [vmem:[%s13 + $0x4a8] sm:$0xff]
        %v4155 = vld [vmem:[%s13 + $0x4b0] sm:$0xff]
        %v4156 = vld [vmem:[%s13 + $0x4b8] sm:$0xff]
        %v4157 = vld [vmem:[%s13 + $0x4c0] sm:$0xff]
        %v4158 = vld [vmem:[%s13 + $0x4c8] sm:$0xff]
        %v4159 = vld [vmem:[%s13 + $0x4d0] sm:$0xff]
        %v4160 = vld [vmem:[%s13 + $0x4d8] sm:$0xff]
        %v4161 = vld [vmem:[%s13 + $0x4e0] sm:$0xff]
        %v4162 = vld [vmem:[%s13 + $0x4e8] sm:$0xff]
        %v4163 = vld [vmem:[%s13 + $0x4f0] sm:$0xff]
        %v4164 = vld [vmem:[%s13 + $0x4f8] sm:$0xff]
        %v4165 = vld [vmem:[%s13 + $0x500] sm:$0xff]
        %v4166 = vld [vmem:[%s13 + $0x508] sm:$0xff]
        %v4167 = vld [vmem:[%s13 + $0x510] sm:$0xff]
        %v4168 = vld [vmem:[%s13 + $0x518] sm:$0xff]
        %v4169 = vld [vmem:[%s13 + $0x520] sm:$0xff]
        %v4170 = vld [vmem:[%s13 + $0x528] sm:$0xff]
        %v4171 = vld [vmem:[%s13 + $0x530] sm:$0xff]
        %v4172 = vld [vmem:[%s13 + $0x538] sm:$0xff]
        %v4173 = vld [vmem:[%s13 + $0x540] sm:$0xff]
        %v4174 = vld [vmem:[%s13 + $0x548] sm:$0xff]
        %v4175 = vld [vmem:[%s13 + $0x550] sm:$0xff]
        %v4176 = vld [vmem:[%s13 + $0x558] sm:$0xff]
        %v4177 = vld [vmem:[%s13 + $0x560] sm:$0xff]
        %v4178 = vld [vmem:[%s13 + $0x568] sm:$0xff]
        %v4179 = vld [vmem:[%s13 + $0x570] sm:$0xff]
        %v4180 = vld [vmem:[%s13 + $0x578] sm:$0xff]
        %v4181 = vld [vmem:[%s13 + $0x580] sm:$0xff]
        %v4182 = vld [vmem:[%s13 + $0x588] sm:$0xff]
        %v4183 = vld [vmem:[%s13 + $0x590] sm:$0xff]
        %v4184 = vld [vmem:[%s13 + $0x598] sm:$0xff]
        %v4185 = vld [vmem:[%s13 + $0x5a0] sm:$0xff]
        %v4186 = vld [vmem:[%s13 + $0x5a8] sm:$0xff]
        %v4187 = vld [vmem:[%s13 + $0x5b0] sm:$0xff]
        %v4188 = vld [vmem:[%s13 + $0x5b8] sm:$0xff]
        %v4189 = vld [vmem:[%s13 + $0x5c0] sm:$0xff]
        %v4190 = vld [vmem:[%s13 + $0x5c8] sm:$0xff]
        %v4191 = vld [vmem:[%s13 + $0x5d0] sm:$0xff]
        %v4192 = vld [vmem:[%s13 + $0x5d8] sm:$0xff]
        %v4193 = vld [vmem:[%s13 + $0x5e0] sm:$0xff]
        %v4194 = vld [vmem:[%s13 + $0x5e8] sm:$0xff]
        %v4195 = vld [vmem:[%s13 + $0x5f0] sm:$0xff]
        %v4196 = vld [vmem:[%s13 + $0x5f8] sm:$0xff]
        %v4197 = vld [vmem:[%s13 + $0x600] sm:$0xff]
        %v4198 = vld [vmem:[%s13 + $0x608] sm:$0xff]
        %v4199 = vld [vmem:[%s13 + $0x610] sm:$0xff]
        %v4200 = vld [vmem:[%s13 + $0x618] sm:$0xff]
        %v4201 = vld [vmem:[%s13 + $0x620] sm:$0xff]
        %v4202 = vld [vmem:[%s13 + $0x628] sm:$0xff]
        %v4203 = vld [vmem:[%s13 + $0x630] sm:$0xff]
        %v4204 = vld [vmem:[%s13 + $0x638] sm:$0xff]
        %v4205 = vld [vmem:[%s13 + $0x640] sm:$0xff]
        %v4206 = vld [vmem:[%s13 + $0x648] sm:$0xff]
        %v4207 = vld [vmem:[%s13 + $0x650] sm:$0xff]
        %v4208 = vld [vmem:[%s13 + $0x658] sm:$0xff]
        %v4209 = vld [vmem:[%s13 + $0x660] sm:$0xff]
        %v4210 = vld [vmem:[%s13 + $0x668] sm:$0xff]
        %v4211 = vld [vmem:[%s13 + $0x670] sm:$0xff]
        %v4212 = vld [vmem:[%s13 + $0x678] sm:$0xff]
        %v4213 = vld [vmem:[%s13 + $0x680] sm:$0xff]
        %v4214 = vld [vmem:[%s13 + $0x688] sm:$0xff]
        %v4215 = vld [vmem:[%s13 + $0x690] sm:$0xff]
        %v4216 = vld [vmem:[%s13 + $0x698] sm:$0xff]
        %v4217 = vld [vmem:[%s13 + $0x6a0] sm:$0xff]
        %v4218 = vld [vmem:[%s13 + $0x6a8] sm:$0xff]
        %v4219 = vld [vmem:[%s13 + $0x6b0] sm:$0xff]
        %v4220 = vld [vmem:[%s13 + $0x6b8] sm:$0xff]
        %v4221 = vld [vmem:[%s13 + $0x6c0] sm:$0xff]
        %v4222 = vld [vmem:[%s13 + $0x6c8] sm:$0xff]
        %v4223 = vld [vmem:[%s13 + $0x6d0] sm:$0xff]
        %v4224 = vld [vmem:[%s13 + $0x6d8] sm:$0xff]
        %v4225 = vld [vmem:[%s13 + $0x6e0] sm:$0xff]
        %v4226 = vld [vmem:[%s13 + $0x6e8] sm:$0xff]
        %v4227 = vld [vmem:[%s13 + $0x6f0] sm:$0xff]
        %v4228 = vld [vmem:[%s13 + $0x6f8] sm:$0xff]
        %v4229 = vld [vmem:[%s13 + $0x700] sm:$0xff]
        %v4230 = vld [vmem:[%s13 + $0x708] sm:$0xff]
        %v4231 = vld [vmem:[%s13 + $0x710] sm:$0xff]
        %v4232 = vld [vmem:[%s13 + $0x718] sm:$0xff]
        %v4233 = vld [vmem:[%s13 + $0x720] sm:$0xff]
        %v4234 = vld [vmem:[%s13 + $0x728] sm:$0xff]
        %v4235 = vld [vmem:[%s13 + $0x730] sm:$0xff]
        %v4236 = vld [vmem:[%s13 + $0x738] sm:$0xff]
        %v4237 = vld [vmem:[%s13 + $0x740] sm:$0xff]
        %v4238 = vld [vmem:[%s13 + $0x748] sm:$0xff]
        %v4239 = vld [vmem:[%s13 + $0x750] sm:$0xff]
        %v4240 = vld [vmem:[%s13 + $0x758] sm:$0xff]
        %v4241 = vld [vmem:[%s13 + $0x760] sm:$0xff]
        %v4242 = vld [vmem:[%s13 + $0x768] sm:$0xff]
        %v4243 = vld [vmem:[%s13 + $0x770] sm:$0xff]
        %v4244 = vld [vmem:[%s13 + $0x778] sm:$0xff]
        %v4245 = vld [vmem:[%s13 + $0x780] sm:$0xff]
        %v4246 = vld [vmem:[%s13 + $0x788] sm:$0xff]
        %v4247 = vld [vmem:[%s13 + $0x790] sm:$0xff]
        %v4248 = vld [vmem:[%s13 + $0x798] sm:$0xff]
        %v4249 = vld [vmem:[%s13 + $0x7a0] sm:$0xff]
        %v4250 = vld [vmem:[%s13 + $0x7a8] sm:$0xff]
        %v4251 = vld [vmem:[%s13 + $0x7b0] sm:$0xff]
        %v4252 = vld [vmem:[%s13 + $0x7b8] sm:$0xff]
        %v4253 = vld [vmem:[%s13 + $0x7c0] sm:$0xff]
        %v4254 = vld [vmem:[%s13 + $0x7c8] sm:$0xff]
        %v4255 = vld [vmem:[%s13 + $0x7d0] sm:$0xff]
        %v4256 = vld [vmem:[%s13 + $0x7d8] sm:$0xff]
        %v4257 = vld [vmem:[%s13 + $0x7e0] sm:$0xff]
        %v4258 = vld [vmem:[%s13 + $0x7e8] sm:$0xff]
        %v4259 = vld [vmem:[%s13 + $0x7f0] sm:$0xff]
        %v4260 = vld [vmem:[%s13 + $0x7f8] sm:$0xff]
        %v4261 = vld [vmem:[%s13 + $0x800] sm:$0xff]
        %v4262 = vld [vmem:[%s13 + $0x808] sm:$0xff]
        %v4263 = vld [vmem:[%s13 + $0x810] sm:$0xff]
        %v4264 = vld [vmem:[%s13 + $0x818] sm:$0xff]
        %v4265 = vld [vmem:[%s13 + $0x820] sm:$0xff]
        %v4266 = vld [vmem:[%s13 + $0x828] sm:$0xff]
        %v4267 = vld [vmem:[%s13 + $0x830] sm:$0xff]
        %v4268 = vld [vmem:[%s13 + $0x838] sm:$0xff]
        %v4269 = vld [vmem:[%s13 + $0x840] sm:$0xff]
        %v4270 = vld [vmem:[%s13 + $0x848] sm:$0xff]
        %v4271 = vld [vmem:[%s13 + $0x850] sm:$0xff]
        %v4272 = vld [vmem:[%s13 + $0x858] sm:$0xff]
        %v4273 = vld [vmem:[%s13 + $0x860] sm:$0xff]
        %v4274 = vld [vmem:[%s13 + $0x868] sm:$0xff]
        %v4275 = vld [vmem:[%s13 + $0x870] sm:$0xff]
        %v4276 = vld [vmem:[%s13 + $0x878] sm:$0xff]
        %v4277 = vld [vmem:[%s13 + $0x880] sm:$0xff]
        %v4278 = vld [vmem:[%s13 + $0x888] sm:$0xff]
        %v4279 = vld [vmem:[%s13 + $0x890] sm:$0xff]
        %v4280 = vld [vmem:[%s13 + $0x898] sm:$0xff]
        %v4281 = vld [vmem:[%s13 + $0x8a0] sm:$0xff]
        %v4282 = vld [vmem:[%s13 + $0x8a8] sm:$0xff]
        %v4283 = vld [vmem:[%s13 + $0x8b0] sm:$0xff]
        %v4284 = vld [vmem:[%s13 + $0x8b8] sm:$0xff]
        %v4285 = vld [vmem:[%s13 + $0x8c0] sm:$0xff]
        %v4286 = vld [vmem:[%s13 + $0x8c8] sm:$0xff]
        %v4287 = vld [vmem:[%s13 + $0x8d0] sm:$0xff]
        %v4288 = vld [vmem:[%s13 + $0x8d8] sm:$0xff]
        %v4289 = vld [vmem:[%s13 + $0x8e0] sm:$0xff]
        %v4290 = vld [vmem:[%s13 + $0x8e8] sm:$0xff]
        %v4291 = vld [vmem:[%s13 + $0x8f0] sm:$0xff]
        %v4292 = vld [vmem:[%s13 + $0x8f8] sm:$0xff]
        %v4293 = vld [vmem:[%s13 + $0x900] sm:$0xff]
        %v4294 = vld [vmem:[%s13 + $0x908] sm:$0xff]
        %v4295 = vld [vmem:[%s13 + $0x910] sm:$0xff]
        %v4296 = vld [vmem:[%s13 + $0x918] sm:$0xff]
        %v4297 = vld [vmem:[%s13 + $0x920] sm:$0xff]
        %v4298 = vld [vmem:[%s13 + $0x928] sm:$0xff]
        %v4299 = vld [vmem:[%s13 + $0x930] sm:$0xff]
        %v4300 = vld [vmem:[%s13 + $0x938] sm:$0xff]
        %v4301 = vld [vmem:[%s13 + $0x940] sm:$0xff]
        %v4302 = vld [vmem:[%s13 + $0x948] sm:$0xff]
        %v4303 = vld [vmem:[%s13 + $0x950] sm:$0xff]
        %v4304 = vld [vmem:[%s13 + $0x958] sm:$0xff]
        %v4305 = vld [vmem:[%s13 + $0x960] sm:$0xff]
        %v4306 = vld [vmem:[%s13 + $0x968] sm:$0xff]
        %v4307 = vld [vmem:[%s13 + $0x970] sm:$0xff]
        %v4308 = vld [vmem:[%s13 + $0x978] sm:$0xff]
        %v4309 = vld [vmem:[%s13 + $0x980] sm:$0xff]
        %v4310 = vld [vmem:[%s13 + $0x988] sm:$0xff]
        %v4311 = vld [vmem:[%s13 + $0x990] sm:$0xff]
        %v4312 = vld [vmem:[%s13 + $0x998] sm:$0xff]
        %v4313 = vld [vmem:[%s13 + $0x9a0] sm:$0xff]
        %v4314 = vld [vmem:[%s13 + $0x9a8] sm:$0xff]
        %v4315 = vld [vmem:[%s13 + $0x9b0] sm:$0xff]
        %v4316 = vld [vmem:[%s13 + $0x9b8] sm:$0xff]
        %v4317 = vld [vmem:[%s13 + $0x9c0] sm:$0xff]
        %v4318 = vld [vmem:[%s13 + $0x9c8] sm:$0xff]
        %v4319 = vld [vmem:[%s13 + $0x9d0] sm:$0xff]
        %v4320 = vld [vmem:[%s13 + $0x9d8] sm:$0xff]
        %v4321 = vld [vmem:[%s13 + $0x9e0] sm:$0xff]
        %v4322 = vld [vmem:[%s13 + $0x9e8] sm:$0xff]
        %v4323 = vld [vmem:[%s13 + $0x9f0] sm:$0xff]
        %v4324 = vld [vmem:[%s13 + $0x9f8] sm:$0xff]
        %v4325 = vld [vmem:[%s13 + $0xa00] sm:$0xff]
        %v4326 = vld [vmem:[%s13 + $0xa08] sm:$0xff]
        %v4327 = vld [vmem:[%s13 + $0xa10] sm:$0xff]
        %v4328 = vld [vmem:[%s13 + $0xa18] sm:$0xff]
        %v4329 = vld [vmem:[%s13 + $0xa20] sm:$0xff]
        %v4330 = vld [vmem:[%s13 + $0xa28] sm:$0xff]
        %v4331 = vld [vmem:[%s13 + $0xa30] sm:$0xff]
        %v4332 = vld [vmem:[%s13 + $0xa38] sm:$0xff]
        %v4333 = vld [vmem:[%s13 + $0xa40] sm:$0xff]
        %v4334 = vld [vmem:[%s13 + $0xa48] sm:$0xff]
        %v4335 = vld [vmem:[%s13 + $0xa50] sm:$0xff]
        %v4336 = vld [vmem:[%s13 + $0xa58] sm:$0xff]
        %v4337 = vld [vmem:[%s13 + $0xa60] sm:$0xff]
        %v4338 = vld [vmem:[%s13 + $0xa68] sm:$0xff]
        %v4339 = vld [vmem:[%s13 + $0xa70] sm:$0xff]
        %v4340 = vld [vmem:[%s13 + $0xa78] sm:$0xff]
        %v4341 = vld [vmem:[%s13 + $0xa80] sm:$0xff]
        %v4342 = vld [vmem:[%s13 + $0xa88] sm:$0xff]
        %v4343 = vld [vmem:[%s13 + $0xa90] sm:$0xff]
        %v4344 = vld [vmem:[%s13 + $0xa98] sm:$0xff]
        %v4345 = vld [vmem:[%s13 + $0xaa0] sm:$0xff]
        %v4346 = vld [vmem:[%s13 + $0xaa8] sm:$0xff]
        %v4347 = vld [vmem:[%s13 + $0xab0] sm:$0xff]
        %v4348 = vld [vmem:[%s13 + $0xab8] sm:$0xff]
        %v4349 = vld [vmem:[%s13 + $0xac0] sm:$0xff]
        %v4350 = vld [vmem:[%s13 + $0xac8] sm:$0xff]
        %v4351 = vld [vmem:[%s13 + $0xad0] sm:$0xff]
        %v4352 = vld [vmem:[%s13 + $0xad8] sm:$0xff]
        %v4353 = vld [vmem:[%s13 + $0xae0] sm:$0xff]
        %v4354 = vld [vmem:[%s13 + $0xae8] sm:$0xff]
        %v4355 = vld [vmem:[%s13 + $0xaf0] sm:$0xff]
        %v4356 = vld [vmem:[%s13 + $0xaf8] sm:$0xff]
        %v4357 = vld [vmem:[%s13 + $0xb00] sm:$0xff]
        %v4358 = vld [vmem:[%s13 + $0xb08] sm:$0xff]
        %v4359 = vld [vmem:[%s13 + $0xb10] sm:$0xff]
        %v4360 = vld [vmem:[%s13 + $0xb18] sm:$0xff]
        %v4361 = vld [vmem:[%s13 + $0xb20] sm:$0xff]
        %v4362 = vld [vmem:[%s13 + $0xb28] sm:$0xff]
        %v4363 = vld [vmem:[%s13 + $0xb30] sm:$0xff]
        %v4364 = vld [vmem:[%s13 + $0xb38] sm:$0xff]
        %v4365 = vld [vmem:[%s13 + $0xb40] sm:$0xff]
        %v4366 = vld [vmem:[%s13 + $0xb48] sm:$0xff]
        %v4367 = vld [vmem:[%s13 + $0xb50] sm:$0xff]
        %v4368 = vld [vmem:[%s13 + $0xb58] sm:$0xff]
        %v4369 = vld [vmem:[%s13 + $0xb60] sm:$0xff]
        %v4370 = vld [vmem:[%s13 + $0xb68] sm:$0xff]
        %v4371 = vld [vmem:[%s13 + $0xb70] sm:$0xff]
        %v4372 = vld [vmem:[%s13 + $0xb78] sm:$0xff]
        %v4373 = vld [vmem:[%s13 + $0xb80] sm:$0xff]
        %v4374 = vld [vmem:[%s13 + $0xb88] sm:$0xff]
        %v4375 = vld [vmem:[%s13 + $0xb90] sm:$0xff]
        %v4376 = vld [vmem:[%s13 + $0xb98] sm:$0xff]
        %v4377 = vld [vmem:[%s13 + $0xba0] sm:$0xff]
        %v4378 = vld [vmem:[%s13 + $0xba8] sm:$0xff]
        %v4379 = vld [vmem:[%s13 + $0xbb0] sm:$0xff]
        %v4380 = vld [vmem:[%s13 + $0xbb8] sm:$0xff]
        %v4381 = vld [vmem:[%s13 + $0xbc0] sm:$0xff]
        %v4382 = vld [vmem:[%s13 + $0xbc8] sm:$0xff]
        %v4383 = vld [vmem:[%s13 + $0xbd0] sm:$0xff]
        %v4384 = vld [vmem:[%s13 + $0xbd8] sm:$0xff]
        %v4385 = vld [vmem:[%s13 + $0xbe0] sm:$0xff]
        %v4386 = vld [vmem:[%s13 + $0xbe8] sm:$0xff]
        %v4387 = vld [vmem:[%s13 + $0xbf0] sm:$0xff]
        %v4388 = vld [vmem:[%s13 + $0xbf8] sm:$0xff]
        %v4389 = vld [vmem:[%s13 + $0xc00] sm:$0xff]
        %v4390 = vld [vmem:[%s13 + $0xc08] sm:$0xff]
        %v4391 = vld [vmem:[%s13 + $0xc10] sm:$0xff]
        %v4392 = vld [vmem:[%s13 + $0xc18] sm:$0xff]
        %v4393 = vld [vmem:[%s13 + $0xc20] sm:$0xff]
        %v4394 = vld [vmem:[%s13 + $0xc28] sm:$0xff]
        %v4395 = vld [vmem:[%s13 + $0xc30] sm:$0xff]
        %v4396 = vld [vmem:[%s13 + $0xc38] sm:$0xff]
        %v4397 = vld [vmem:[%s13 + $0xc40] sm:$0xff]
        %v4398 = vld [vmem:[%s13 + $0xc48] sm:$0xff]
        %v4399 = vld [vmem:[%s13 + $0xc50] sm:$0xff]
        %v4400 = vld [vmem:[%s13 + $0xc58] sm:$0xff]
        %v4401 = vld [vmem:[%s13 + $0xc60] sm:$0xff]
        %v4402 = vld [vmem:[%s13 + $0xc68] sm:$0xff]
        %v4403 = vld [vmem:[%s13 + $0xc70] sm:$0xff]
        %v4404 = vld [vmem:[%s13 + $0xc78] sm:$0xff]
        %v4405 = vld [vmem:[%s13 + $0xc80] sm:$0xff]
        %v4406 = vld [vmem:[%s13 + $0xc88] sm:$0xff]
        %v4407 = vld [vmem:[%s13 + $0xc90] sm:$0xff]
        %v4408 = vld [vmem:[%s13 + $0xc98] sm:$0xff]
        %v4409 = vld [vmem:[%s13 + $0xca0] sm:$0xff]
        %v4410 = vld [vmem:[%s13 + $0xca8] sm:$0xff]
        %v4411 = vld [vmem:[%s13 + $0xcb0] sm:$0xff]
        %v4412 = vld [vmem:[%s13 + $0xcb8] sm:$0xff]
        %v4413 = vld [vmem:[%s13 + $0xcc0] sm:$0xff]
        %v4414 = vld [vmem:[%s13 + $0xcc8] sm:$0xff]
        %v4415 = vld [vmem:[%s13 + $0xcd0] sm:$0xff]
        %v4416 = vld [vmem:[%s13 + $0xcd8] sm:$0xff]
        %v4417 = vld [vmem:[%s13 + $0xce0] sm:$0xff]
        %v4418 = vld [vmem:[%s13 + $0xce8] sm:$0xff]
        %v4419 = vld [vmem:[%s13 + $0xcf0] sm:$0xff]
        %v4420 = vld [vmem:[%s13 + $0xcf8] sm:$0xff]
        %v4421 = vld [vmem:[%s13 + $0xd00] sm:$0xff]
        %v4422 = vld [vmem:[%s13 + $0xd08] sm:$0xff]
        %v4423 = vld [vmem:[%s13 + $0xd10] sm:$0xff]
        %v4424 = vld [vmem:[%s13 + $0xd18] sm:$0xff]
        %v4425 = vld [vmem:[%s13 + $0xd20] sm:$0xff]
        %v4426 = vld [vmem:[%s13 + $0xd28] sm:$0xff]
        %v4427 = vld [vmem:[%s13 + $0xd30] sm:$0xff]
        %v4428 = vld [vmem:[%s13 + $0xd38] sm:$0xff]
        %v4429 = vld [vmem:[%s13 + $0xd40] sm:$0xff]
        %v4430 = vld [vmem:[%s13 + $0xd48] sm:$0xff]
        %v4431 = vld [vmem:[%s13 + $0xd50] sm:$0xff]
        %v4432 = vld [vmem:[%s13 + $0xd58] sm:$0xff]
        %v4433 = vld [vmem:[%s13 + $0xd60] sm:$0xff]
        %v4434 = vld [vmem:[%s13 + $0xd68] sm:$0xff]
        %v4435 = vld [vmem:[%s13 + $0xd70] sm:$0xff]
        %v4436 = vld [vmem:[%s13 + $0xd78] sm:$0xff]
        %v4437 = vld [vmem:[%s14] sm:$0xf]
        %v4439 = vlaneseq
        %v4440 = vshrl.u32 %v4439, 7
        %v4441 = vsub.s32 0, %v4440
        %v4442 = vrot.slane %v4437, %v4441
        %v4443 = vlaneseq
        %v4444 = vshrl.u32 %v4443, 7
        %v4445 = vsub.s32 1, %v4444
        %v4446 = vrot.slane %v4437, %v4445
        %v4447 = vlaneseq
        %v4448 = vshrl.u32 %v4447, 7
        %v4449 = vsub.s32 2, %v4448
        %v4450 = vrot.slane %v4437, %v4449
        %v4451 = vlaneseq
        %v4452 = vshrl.u32 %v4451, 7
        %v4453 = vsub.s32 3, %v4452
        %v4454 = vrot.slane %v4437, %v4453
        %v4460 = vsel %vm3991, %v4004, 0
        %4462 = vmatprep.subr.mxu0 %v4006
        %4463 = vmatpush1.msra.mxu0 %v4005
        %4464 = vmatprep.subr.mxu0 %v4010
        %4465 = vmatpush1.msra.mxu0 %v4009
        %4466 = vmatprep.subr.mxu0 %v4014
        %4467 = vmatpush1.msra.mxu0 %v4013
        %4468 = vmatprep.subr.mxu0 %v4018
        %4469 = vmatpush1.msra.mxu0 %v4017
        %4470 = vmatprep.subr.mxu0 %v4022
        %4471 = vmatpush1.msra.mxu0 %v4021
        %4472 = vmatprep.subr.mxu0 %v4026
        %4473 = vmatpush1.msra.mxu0 %v4025
        %4474 = vmatprep.subr.mxu0 %v4030
        %4475 = vmatpush1.msra.mxu0 %v4029
        %4476 = vmatprep.subr.mxu0 %v4034
        %4477 = vmatpush1.msra.mxu0 %v4033
        %4478 = vmatprep.subr.mxu0 %v4038
        %4479 = vmatpush1.msra.mxu0 %v4037
        %4480 = vmatprep.subr.mxu0 %v4042
        %4481 = vmatpush1.msra.mxu0 %v4041
        %4482 = vmatprep.subr.mxu0 %v4046
        %4483 = vmatpush1.msra.mxu0 %v4045
        %4484 = vmatprep.subr.mxu0 %v4050
        %4485 = vmatpush1.msra.mxu0 %v4049
        %4486 = vmatprep.subr.mxu0 %v4054
        %4487 = vmatpush1.msra.mxu0 %v4053
        %4488 = vmatprep.subr.mxu0 %v4058
        %4489 = vmatpush1.msra.mxu0 %v4057
        %4490 = vmatprep.subr.mxu0 %v4062
        %4491 = vmatpush1.msra.mxu0 %v4061
        %4492 = vmatprep.subr.mxu0 %v4066
        %4493 = vmatpush1.msra.mxu0 %v4065
        %4494 = vmatprep.subr.mxu0 %v4070
        %4495 = vmatpush1.msra.mxu0 %v4069
        %4496 = vmatprep.subr.mxu0 %v4074
        %4497 = vmatpush1.msra.mxu0 %v4073
        %4498 = vmatprep.subr.mxu0 %v4078
        %4499 = vmatpush1.msra.mxu0 %v4077
        %4500 = vmatprep.subr.mxu0 %v4082
        %4501 = vmatpush1.msra.mxu0 %v4081
        %4502 = vmatprep.subr.mxu0 %v4086
        %4503 = vmatpush1.msra.mxu0 %v4085
        %4504 = vmatprep.subr.mxu0 %v4090
        %4505 = vmatpush1.msra.mxu0 %v4089
        %4506 = vmatprep.subr.mxu0 %v4094
        %4507 = vmatpush1.msra.mxu0 %v4093
        %4508 = vmatprep.subr.mxu0 %v4098
        %4509 = vmatpush1.msra.mxu0 %v4097
        %4510 = vmatprep.subr.mxu0 %v4102
        %4511 = vmatpush1.msra.mxu0 %v4101
        %4512 = vmatprep.subr.mxu0 %v4106
        %4513 = vmatpush1.msra.mxu0 %v4105
        %4514 = vmatprep.subr.mxu0 %v4110
        %4515 = vmatpush1.msra.mxu0 %v4109
        %4516 = vmatprep.subr.mxu0 %v4114
        %4517 = vmatpush1.msra.mxu0 %v4113
        %4518 = vmatprep.subr.mxu0 %v4118
        %4519 = vmatpush1.msra.mxu0 %v4117
        %4520 = vmatprep.subr.mxu0 %v4122
        %4521 = vmatpush1.msra.mxu0 %v4121
        %4522 = vmatprep.subr.mxu0 %v4126
        %4523 = vmatpush1.msra.mxu0 %v4125
        %4524 = vmatprep.subr.mxu0 %v4130
        %4525 = vmatpush1.msra.mxu0 %v4129
        %4526 = vmatprep.mubr.f32.mxu0 %v3954
        %4527 = vmatmul.mubr.f32.gmra.mrb[0].mxu0 %v3945
        %v4528 = vpop.f32.mrb[0].mxu0
        %v4529 = vadd.f32 %v4442, %v4528
        %v4530 = vpop.f32.mrb[0].mxu0
        %v4531 = vadd.f32 %v4446, %v4530
        %4532 = vdwg.mxu0
        %4533 = vmatprep.subr.mxu0 %v4134
        %4534 = vmatpush1.msra.mxu0 %v4133
        %4535 = vmatprep.subr.mxu0 %v4138
        %4536 = vmatpush1.msra.mxu0 %v4137
        %4537 = vmatprep.subr.mxu0 %v4142
        %4538 = vmatpush1.msra.mxu0 %v4141
        %4539 = vmatprep.subr.mxu0 %v4146
        %4540 = vmatpush1.msra.mxu0 %v4145
        %4541 = vmatprep.subr.mxu0 %v4150
        %4542 = vmatpush1.msra.mxu0 %v4149
        %4543 = vmatprep.subr.mxu0 %v4154
        %4544 = vmatpush1.msra.mxu0 %v4153
        %4545 = vmatprep.subr.mxu0 %v4158
        %4546 = vmatpush1.msra.mxu0 %v4157
        %4547 = vmatprep.subr.mxu0 %v4162
        %4548 = vmatpush1.msra.mxu0 %v4161
        %4549 = vmatprep.subr.mxu0 %v4166
        %4550 = vmatpush1.msra.mxu0 %v4165
        %4551 = vmatprep.subr.mxu0 %v4170
        %4552 = vmatpush1.msra.mxu0 %v4169
        %4553 = vmatprep.subr.mxu0 %v4174
        %4554 = vmatpush1.msra.mxu0 %v4173
        %4555 = vmatprep.subr.mxu0 %v4178
        %4556 = vmatpush1.msra.mxu0 %v4177
        %4557 = vmatprep.subr.mxu0 %v4182
        %4558 = vmatpush1.msra.mxu0 %v4181
        %4559 = vmatprep.subr.mxu0 %v4186
        %4560 = vmatpush1.msra.mxu0 %v4185
        %4561 = vmatprep.subr.mxu0 %v4190
        %4562 = vmatpush1.msra.mxu0 %v4189
        %4563 = vmatprep.subr.mxu0 %v4194
        %4564 = vmatpush1.msra.mxu0 %v4193
        %4565 = vmatprep.subr.mxu0 %v4198
        %4566 = vmatpush1.msra.mxu0 %v4197
        %4567 = vmatprep.subr.mxu0 %v4202
        %4568 = vmatpush1.msra.mxu0 %v4201
        %4569 = vmatprep.subr.mxu0 %v4206
        %4570 = vmatpush1.msra.mxu0 %v4205
        %4571 = vmatprep.subr.mxu0 %v4210
        %4572 = vmatpush1.msra.mxu0 %v4209
        %4573 = vmatprep.subr.mxu0 %v4214
        %4574 = vmatpush1.msra.mxu0 %v4213
        %4575 = vmatprep.subr.mxu0 %v4218
        %4576 = vmatpush1.msra.mxu0 %v4217
        %4577 = vmatprep.subr.mxu0 %v4222
        %4578 = vmatpush1.msra.mxu0 %v4221
        %4579 = vmatprep.subr.mxu0 %v4226
        %4580 = vmatpush1.msra.mxu0 %v4225
        %4581 = vmatprep.subr.mxu0 %v4230
        %4582 = vmatpush1.msra.mxu0 %v4229
        %4583 = vmatprep.subr.mxu0 %v4234
        %4584 = vmatpush1.msra.mxu0 %v4233
        %4585 = vmatprep.subr.mxu0 %v4238
        %4586 = vmatpush1.msra.mxu0 %v4237
        %4587 = vmatprep.subr.mxu0 %v4242
        %4588 = vmatpush1.msra.mxu0 %v4241
        %4589 = vmatprep.subr.mxu0 %v4246
        %4590 = vmatpush1.msra.mxu0 %v4245
        %4591 = vmatprep.subr.mxu0 %v4250
        %4592 = vmatpush1.msra.mxu0 %v4249
        %4593 = vmatprep.subr.mxu0 %v4254
        %4594 = vmatpush1.msra.mxu0 %v4253
        %4595 = vmatprep.subr.mxu0 %v4258
        %4596 = vmatpush1.msra.mxu0 %v4257
        %4597 = vmatprep.mubr.f32.mxu0 %v3972
        %4598 = vmatmul.mubr.f32.gmra.mrb[0].mxu0 %v3963
        %v4599 = vpop.f32.mrb[0].mxu0
        %v4600 = vadd.f32 %v4529, %v4599
        %v4601 = vpop.f32.mrb[0].mxu0
        %v4602 = vadd.f32 %v4531, %v4601
        %4603 = vdwg.mxu0
        %4604 = vmatprep.subr.mxu0 %v4262
        %4605 = vmatpush1.msra.mxu0 %v4261
        %4606 = vmatprep.subr.mxu0 %v4266
        %4607 = vmatpush1.msra.mxu0 %v4265
        %4608 = vmatprep.subr.mxu0 %v4270
        %4609 = vmatpush1.msra.mxu0 %v4269
        %4610 = vmatprep.subr.mxu0 %v4274
        %4611 = vmatpush1.msra.mxu0 %v4273
        %4612 = vmatprep.subr.mxu0 %v4278
        %4613 = vmatpush1.msra.mxu0 %v4277
        %4614 = vmatprep.subr.mxu0 %v4282
        %4615 = vmatpush1.msra.mxu0 %v4281
        %4616 = vmatprep.subr.mxu0 %v4286
        %4617 = vmatpush1.msra.mxu0 %v4285
        %4618 = vmatprep.subr.mxu0 %v4290
        %4619 = vmatpush1.msra.mxu0 %v4289
        %4620 = vmatprep.subr.mxu0 %v4294
        %4621 = vmatpush1.msra.mxu0 %v4293
        %4622 = vmatprep.subr.mxu0 %v4298
        %4623 = vmatpush1.msra.mxu0 %v4297
        %4624 = vmatprep.subr.mxu0 %v4302
        %4625 = vmatpush1.msra.mxu0 %v4301
        %4626 = vmatprep.subr.mxu0 %v4306
        %4627 = vmatpush1.msra.mxu0 %v4305
        %4628 = vmatprep.subr.mxu0 %v4310
        %4629 = vmatpush1.msra.mxu0 %v4309
        %4630 = vmatprep.subr.mxu0 %v4314
        %4631 = vmatpush1.msra.mxu0 %v4313
        %4632 = vmatprep.subr.mxu0 %v4318
        %4633 = vmatpush1.msra.mxu0 %v4317
        %4634 = vmatprep.subr.mxu0 %v4322
        %4635 = vmatpush1.msra.mxu0 %v4321
        %4636 = vmatprep.subr.mxu0 %v4326
        %4637 = vmatpush1.msra.mxu0 %v4325
        %4638 = vmatprep.subr.mxu0 %v4330
        %4639 = vmatpush1.msra.mxu0 %v4329
        %4640 = vmatprep.subr.mxu0 %v4334
        %4641 = vmatpush1.msra.mxu0 %v4333
        %4642 = vmatprep.subr.mxu0 %v4338
        %4643 = vmatpush1.msra.mxu0 %v4337
        %4644 = vmatprep.subr.mxu0 %v4342
        %4645 = vmatpush1.msra.mxu0 %v4341
        %4646 = vmatprep.subr.mxu0 %v4346
        %4647 = vmatpush1.msra.mxu0 %v4345
        %4648 = vmatprep.subr.mxu0 %v4350
        %4649 = vmatpush1.msra.mxu0 %v4349
        %4650 = vmatprep.subr.mxu0 %v4354
        %4651 = vmatpush1.msra.mxu0 %v4353
        %4652 = vmatprep.subr.mxu0 %v4358
        %4653 = vmatpush1.msra.mxu0 %v4357
        %4654 = vmatprep.subr.mxu0 %v4362
        %4655 = vmatpush1.msra.mxu0 %v4361
        %4656 = vmatprep.subr.mxu0 %v4366
        %4657 = vmatpush1.msra.mxu0 %v4365
        %4658 = vmatprep.subr.mxu0 %v4370
        %4659 = vmatpush1.msra.mxu0 %v4369
        %4660 = vmatprep.subr.mxu0 %v4374
        %4661 = vmatpush1.msra.mxu0 %v4373
        %4662 = vmatprep.subr.mxu0 %v4378
        %4663 = vmatpush1.msra.mxu0 %v4377
        %4664 = vmatprep.subr.mxu0 %v4382
        %4665 = vmatpush1.msra.mxu0 %v4381
        %4666 = vmatprep.subr.mxu0 %v4386
        %4667 = vmatpush1.msra.mxu0 %v4385
        %4668 = vmatprep.mubr.f32.mxu0 %v3990
        %4669 = vmatmul.mubr.f32.gmra.mrb[0].mxu0 %v3981
        %v4670 = vpop.f32.mrb[0].mxu0
        %v4671 = vadd.f32 %v4600, %v4670
        %v4672 = vpop.f32.mrb[0].mxu0
        %v4673 = vadd.f32 %v4602, %v4672
        %4674 = vdwg.mxu0
        %4675 = vmatprep.subr.mxu0 %v4390
        %4676 = vmatpush1.msra.mxu0 %v4389
        %4677 = vmatprep.subr.mxu0 %v4394
        %4678 = vmatpush1.msra.mxu0 %v4393
        %4679 = vmatprep.subr.mxu0 %v4398
        %4680 = vmatpush1.msra.mxu0 %v4397
        %4681 = vmatprep.subr.mxu0 %v4402
        %4682 = vmatpush1.msra.mxu0 %v4401
        %4683 = vmatprep.subr.mxu0 %v4406
        %4684 = vmatpush1.msra.mxu0 %v4405
        %4685 = vmatprep.subr.mxu0 %v4410
        %4686 = vmatpush1.msra.mxu0 %v4409
        %4687 = vmatprep.subr.mxu0 %v4414
        %4688 = vmatpush1.msra.mxu0 %v4413
        %4689 = vmatprep.subr.mxu0 %v4418
        %4690 = vmatpush1.msra.mxu0 %v4417
        %4691 = vmatprep.subr.mxu0 %v4422
        %4692 = vmatpush1.msra.mxu0 %v4421
        %4693 = vmatprep.subr.mxu0 %v4426
        %4694 = vmatpush1.msra.mxu0 %v4425
        %4695 = vmatprep.subr.mxu0 %v4430
        %4696 = vmatpush1.msra.mxu0 %v4429
        %4697 = vmatprep.subr.mxu0 %v4434
        %4698 = vmatpush1.msra.mxu0 %v4433
        %4699 = vmatprep.subr.mxu0 0.0
        %4700 = vmatpush1.msra.mxu0 0.0
        %4701 = vmatprep.subr.mxu0 0.0
        %4702 = vmatpush1.msra.mxu0 0.0
        %4703 = vmatprep.subr.mxu0 0.0
        %4704 = vmatpush1.msra.mxu0 0.0
        %4705 = vmatprep.subr.mxu0 0.0
        %4706 = vmatpush1.msra.mxu0 0.0
        %4707 = vmatprep.subr.mxu0 0.0
        %4708 = vmatpush1.msra.mxu0 0.0
        %4709 = vmatprep.subr.mxu0 0.0
        %4710 = vmatpush1.msra.mxu0 0.0
        %4711 = vmatprep.subr.mxu0 0.0
        %4712 = vmatpush1.msra.mxu0 0.0
        %4713 = vmatprep.subr.mxu0 0.0
        %4714 = vmatpush1.msra.mxu0 0.0
        %4715 = vmatprep.subr.mxu0 0.0
        %4716 = vmatpush1.msra.mxu0 0.0
        %4717 = vmatprep.subr.mxu0 0.0
        %4718 = vmatpush1.msra.mxu0 0.0
        %4719 = vmatprep.subr.mxu0 0.0
        %4720 = vmatpush1.msra.mxu0 0.0
        %4721 = vmatprep.subr.mxu0 0.0
        %4722 = vmatpush1.msra.mxu0 0.0
        %4723 = vmatprep.subr.mxu0 0.0
        %4724 = vmatpush1.msra.mxu0 0.0
        %4725 = vmatprep.subr.mxu0 0.0
        %4726 = vmatpush1.msra.mxu0 0.0
        %4727 = vmatprep.subr.mxu0 0.0
        %4728 = vmatpush1.msra.mxu0 0.0
        %4729 = vmatprep.subr.mxu0 0.0
        %4730 = vmatpush1.msra.mxu0 0.0
        %4731 = vmatprep.subr.mxu0 0.0
        %4732 = vmatpush1.msra.mxu0 0.0
        %4733 = vmatprep.subr.mxu0 0.0
        %4734 = vmatpush1.msra.mxu0 0.0
        %4735 = vmatprep.subr.mxu0 0.0
        %4736 = vmatpush1.msra.mxu0 0.0
        %4737 = vmatprep.subr.mxu0 0.0
        %4738 = vmatpush1.msra.mxu0 0.0
        %4739 = vmatprep.mubr.f32.mxu0 0.0
        %4740 = vmatmul.mubr.f32.gmra.mrb[0].mxu0 %v4460
        %v4741 = vpop.f32.mrb[0].mxu0
        %v4742 = vadd.f32 %v4671, %v4741
        %v4743 = vpop.f32.mrb[0].mxu0
        %v4744 = vadd.f32 %v4673, %v4743
        %4745 = vdwg.mxu0
        %4746 = vmatprep.subr.mxu0 %v4008
        %4747 = vmatpush1.msra.mxu0 %v4007
        %4748 = vmatprep.subr.mxu0 %v4012
        %4749 = vmatpush1.msra.mxu0 %v4011
        %4750 = vmatprep.subr.mxu0 %v4016
        %4751 = vmatpush1.msra.mxu0 %v4015
        %4752 = vmatprep.subr.mxu0 %v4020
        %4753 = vmatpush1.msra.mxu0 %v4019
        %4754 = vmatprep.subr.mxu0 %v4024
        %4755 = vmatpush1.msra.mxu0 %v4023
        %4756 = vmatprep.subr.mxu0 %v4028
        %4757 = vmatpush1.msra.mxu0 %v4027
        %4758 = vmatprep.subr.mxu0 %v4032
        %4759 = vmatpush1.msra.mxu0 %v4031
        %4760 = vmatprep.subr.mxu0 %v4036
        %4761 = vmatpush1.msra.mxu0 %v4035
        %4762 = vmatprep.subr.mxu0 %v4040
        %4763 = vmatpush1.msra.mxu0 %v4039
        %4764 = vmatprep.subr.mxu0 %v4044
        %4765 = vmatpush1.msra.mxu0 %v4043
        %4766 = vmatprep.subr.mxu0 %v4048
        %4767 = vmatpush1.msra.mxu0 %v4047
        %4768 = vmatprep.subr.mxu0 %v4052
        %4769 = vmatpush1.msra.mxu0 %v4051
        %4770 = vmatprep.subr.mxu0 %v4056
        %4771 = vmatpush1.msra.mxu0 %v4055
        %4772 = vmatprep.subr.mxu0 %v4060
        %4773 = vmatpush1.msra.mxu0 %v4059
        %4774 = vmatprep.subr.mxu0 %v4064
        %4775 = vmatpush1.msra.mxu0 %v4063
        %4776 = vmatprep.subr.mxu0 %v4068
        %4777 = vmatpush1.msra.mxu0 %v4067
        %4778 = vmatprep.subr.mxu0 %v4072
        %4779 = vmatpush1.msra.mxu0 %v4071
        %4780 = vmatprep.subr.mxu0 %v4076
        %4781 = vmatpush1.msra.mxu0 %v4075
        %4782 = vmatprep.subr.mxu0 %v4080
        %4783 = vmatpush1.msra.mxu0 %v4079
        %4784 = vmatprep.subr.mxu0 %v4084
        %4785 = vmatpush1.msra.mxu0 %v4083
        %4786 = vmatprep.subr.mxu0 %v4088
        %4787 = vmatpush1.msra.mxu0 %v4087
        %4788 = vmatprep.subr.mxu0 %v4092
        %4789 = vmatpush1.msra.mxu0 %v4091
        %4790 = vmatprep.subr.mxu0 %v4096
        %4791 = vmatpush1.msra.mxu0 %v4095
        %4792 = vmatprep.subr.mxu0 %v4100
        %4793 = vmatpush1.msra.mxu0 %v4099
        %4794 = vmatprep.subr.mxu0 %v4104
        %4795 = vmatpush1.msra.mxu0 %v4103
        %4796 = vmatprep.subr.mxu0 %v4108
        %4797 = vmatpush1.msra.mxu0 %v4107
        %4798 = vmatprep.subr.mxu0 %v4112
        %4799 = vmatpush1.msra.mxu0 %v4111
        %4800 = vmatprep.subr.mxu0 %v4116
        %4801 = vmatpush1.msra.mxu0 %v4115
        %4802 = vmatprep.subr.mxu0 %v4120
        %4803 = vmatpush1.msra.mxu0 %v4119
        %4804 = vmatprep.subr.mxu0 %v4124
        %4805 = vmatpush1.msra.mxu0 %v4123
        %4806 = vmatprep.subr.mxu0 %v4128
        %4807 = vmatpush1.msra.mxu0 %v4127
        %4808 = vmatprep.subr.mxu0 %v4132
        %4809 = vmatpush1.msra.mxu0 %v4131
        %4810 = vmatprep.mubr.f32.mxu0 %v3954
        %4811 = vmatmul.mubr.f32.gmra.mrb[0].mxu0 %v3945
        %v4812 = vpop.f32.mrb[0].mxu0
        %v4813 = vadd.f32 %v4450, %v4812
        %v4814 = vpop.f32.mrb[0].mxu0
        %v4815 = vadd.f32 %v4454, %v4814
        %4816 = vdwg.mxu0
        %4817 = vmatprep.subr.mxu0 %v4136
        %4818 = vmatpush1.msra.mxu0 %v4135
        %4819 = vmatprep.subr.mxu0 %v4140
        %4820 = vmatpush1.msra.mxu0 %v4139
        %4821 = vmatprep.subr.mxu0 %v4144
        %4822 = vmatpush1.msra.mxu0 %v4143
        %4823 = vmatprep.subr.mxu0 %v4148
        %4824 = vmatpush1.msra.mxu0 %v4147
        %4825 = vmatprep.subr.mxu0 %v4152
        %4826 = vmatpush1.msra.mxu0 %v4151
        %4827 = vmatprep.subr.mxu0 %v4156
        %4828 = vmatpush1.msra.mxu0 %v4155
        %4829 = vmatprep.subr.mxu0 %v4160
        %4830 = vmatpush1.msra.mxu0 %v4159
        %4831 = vmatprep.subr.mxu0 %v4164
        %4832 = vmatpush1.msra.mxu0 %v4163
        %4833 = vmatprep.subr.mxu0 %v4168
        %4834 = vmatpush1.msra.mxu0 %v4167
        %4835 = vmatprep.subr.mxu0 %v4172
        %4836 = vmatpush1.msra.mxu0 %v4171
        %4837 = vmatprep.subr.mxu0 %v4176
        %4838 = vmatpush1.msra.mxu0 %v4175
        %4839 = vmatprep.subr.mxu0 %v4180
        %4840 = vmatpush1.msra.mxu0 %v4179
        %4841 = vmatprep.subr.mxu0 %v4184
        %4842 = vmatpush1.msra.mxu0 %v4183
        %4843 = vmatprep.subr.mxu0 %v4188
        %4844 = vmatpush1.msra.mxu0 %v4187
        %4845 = vmatprep.subr.mxu0 %v4192
        %4846 = vmatpush1.msra.mxu0 %v4191
        %4847 = vmatprep.subr.mxu0 %v4196
        %4848 = vmatpush1.msra.mxu0 %v4195
        %4849 = vmatprep.subr.mxu0 %v4200
        %4850 = vmatpush1.msra.mxu0 %v4199
        %4851 = vmatprep.subr.mxu0 %v4204
        %4852 = vmatpush1.msra.mxu0 %v4203
        %4853 = vmatprep.subr.mxu0 %v4208
        %4854 = vmatpush1.msra.mxu0 %v4207
        %4855 = vmatprep.subr.mxu0 %v4212
        %4856 = vmatpush1.msra.mxu0 %v4211
        %4857 = vmatprep.subr.mxu0 %v4216
        %4858 = vmatpush1.msra.mxu0 %v4215
        %4859 = vmatprep.subr.mxu0 %v4220
        %4860 = vmatpush1.msra.mxu0 %v4219
        %4861 = vmatprep.subr.mxu0 %v4224
        %4862 = vmatpush1.msra.mxu0 %v4223
        %4863 = vmatprep.subr.mxu0 %v4228
        %4864 = vmatpush1.msra.mxu0 %v4227
        %4865 = vmatprep.subr.mxu0 %v4232
        %4866 = vmatpush1.msra.mxu0 %v4231
        %4867 = vmatprep.subr.mxu0 %v4236
        %4868 = vmatpush1.msra.mxu0 %v4235
        %4869 = vmatprep.subr.mxu0 %v4240
        %4870 = vmatpush1.msra.mxu0 %v4239
        %4871 = vmatprep.subr.mxu0 %v4244
        %4872 = vmatpush1.msra.mxu0 %v4243
        %4873 = vmatprep.subr.mxu0 %v4248
        %4874 = vmatpush1.msra.mxu0 %v4247
        %4875 = vmatprep.subr.mxu0 %v4252
        %4876 = vmatpush1.msra.mxu0 %v4251
        %4877 = vmatprep.subr.mxu0 %v4256
        %4878 = vmatpush1.msra.mxu0 %v4255
        %4879 = vmatprep.subr.mxu0 %v4260
        %4880 = vmatpush1.msra.mxu0 %v4259
        %4881 = vmatprep.mubr.f32.mxu0 %v3972
        %4882 = vmatmul.mubr.f32.gmra.mrb[0].mxu0 %v3963
        %v4883 = vpop.f32.mrb[0].mxu0
        %v4884 = vadd.f32 %v4813, %v4883
        %v4885 = vpop.f32.mrb[0].mxu0
        %v4886 = vadd.f32 %v4815, %v4885
        %4887 = vdwg.mxu0
        %4888 = vmatprep.subr.mxu0 %v4264
        %4889 = vmatpush1.msra.mxu0 %v4263
        %4890 = vmatprep.subr.mxu0 %v4268
        %4891 = vmatpush1.msra.mxu0 %v4267
        %4892 = vmatprep.subr.mxu0 %v4272
        %4893 = vmatpush1.msra.mxu0 %v4271
        %4894 = vmatprep.subr.mxu0 %v4276
        %4895 = vmatpush1.msra.mxu0 %v4275
        %4896 = vmatprep.subr.mxu0 %v4280
        %4897 = vmatpush1.msra.mxu0 %v4279
        %4898 = vmatprep.subr.mxu0 %v4284
        %4899 = vmatpush1.msra.mxu0 %v4283
        %4900 = vmatprep.subr.mxu0 %v4288
        %4901 = vmatpush1.msra.mxu0 %v4287
        %4902 = vmatprep.subr.mxu0 %v4292
        %4903 = vmatpush1.msra.mxu0 %v4291
        %4904 = vmatprep.subr.mxu0 %v4296
        %4905 = vmatpush1.msra.mxu0 %v4295
        %4906 = vmatprep.subr.mxu0 %v4300
        %4907 = vmatpush1.msra.mxu0 %v4299
        %4908 = vmatprep.subr.mxu0 %v4304
        %4909 = vmatpush1.msra.mxu0 %v4303
        %4910 = vmatprep.subr.mxu0 %v4308
        %4911 = vmatpush1.msra.mxu0 %v4307
        %4912 = vmatprep.subr.mxu0 %v4312
        %4913 = vmatpush1.msra.mxu0 %v4311
        %4914 = vmatprep.subr.mxu0 %v4316
        %4915 = vmatpush1.msra.mxu0 %v4315
        %4916 = vmatprep.subr.mxu0 %v4320
        %4917 = vmatpush1.msra.mxu0 %v4319
        %4918 = vmatprep.subr.mxu0 %v4324
        %4919 = vmatpush1.msra.mxu0 %v4323
        %4920 = vmatprep.subr.mxu0 %v4328
        %4921 = vmatpush1.msra.mxu0 %v4327
        %4922 = vmatprep.subr.mxu0 %v4332
        %4923 = vmatpush1.msra.mxu0 %v4331
        %4924 = vmatprep.subr.mxu0 %v4336
        %4925 = vmatpush1.msra.mxu0 %v4335
        %4926 = vmatprep.subr.mxu0 %v4340
        %4927 = vmatpush1.msra.mxu0 %v4339
        %4928 = vmatprep.subr.mxu0 %v4344
        %4929 = vmatpush1.msra.mxu0 %v4343
        %4930 = vmatprep.subr.mxu0 %v4348
        %4931 = vmatpush1.msra.mxu0 %v4347
        %4932 = vmatprep.subr.mxu0 %v4352
        %4933 = vmatpush1.msra.mxu0 %v4351
        %4934 = vmatprep.subr.mxu0 %v4356
        %4935 = vmatpush1.msra.mxu0 %v4355
        %4936 = vmatprep.subr.mxu0 %v4360
        %4937 = vmatpush1.msra.mxu0 %v4359
        %4938 = vmatprep.subr.mxu0 %v4364
        %4939 = vmatpush1.msra.mxu0 %v4363
        %4940 = vmatprep.subr.mxu0 %v4368
        %4941 = vmatpush1.msra.mxu0 %v4367
        %4942 = vmatprep.subr.mxu0 %v4372
        %4943 = vmatpush1.msra.mxu0 %v4371
        %4944 = vmatprep.subr.mxu0 %v4376
        %4945 = vmatpush1.msra.mxu0 %v4375
        %4946 = vmatprep.subr.mxu0 %v4380
        %4947 = vmatpush1.msra.mxu0 %v4379
        %4948 = vmatprep.subr.mxu0 %v4384
        %4949 = vmatpush1.msra.mxu0 %v4383
        %4950 = vmatprep.subr.mxu0 %v4388
        %4951 = vmatpush1.msra.mxu0 %v4387
        %4952 = vmatprep.mubr.f32.mxu0 %v3990
        %4953 = vmatmul.mubr.f32.gmra.mrb[0].mxu0 %v3981
        %v4954 = vpop.f32.mrb[0].mxu0
        %v4955 = vadd.f32 %v4884, %v4954
        %v4956 = vpop.f32.mrb[0].mxu0
        %v4957 = vadd.f32 %v4886, %v4956
        %4958 = vdwg.mxu0
        %4959 = vmatprep.subr.mxu0 %v4392
        %4960 = vmatpush1.msra.mxu0 %v4391
        %4961 = vmatprep.subr.mxu0 %v4396
        %4962 = vmatpush1.msra.mxu0 %v4395
        %4963 = vmatprep.subr.mxu0 %v4400
        %4964 = vmatpush1.msra.mxu0 %v4399
        %4965 = vmatprep.subr.mxu0 %v4404
        %4966 = vmatpush1.msra.mxu0 %v4403
        %4967 = vmatprep.subr.mxu0 %v4408
        %4968 = vmatpush1.msra.mxu0 %v4407
        %4969 = vmatprep.subr.mxu0 %v4412
        %4970 = vmatpush1.msra.mxu0 %v4411
        %4971 = vmatprep.subr.mxu0 %v4416
        %4972 = vmatpush1.msra.mxu0 %v4415
        %4973 = vmatprep.subr.mxu0 %v4420
        %4974 = vmatpush1.msra.mxu0 %v4419
        %4975 = vmatprep.subr.mxu0 %v4424
        %4976 = vmatpush1.msra.mxu0 %v4423
        %4977 = vmatprep.subr.mxu0 %v4428
        %4978 = vmatpush1.msra.mxu0 %v4427
        %4979 = vmatprep.subr.mxu0 %v4432
        %4980 = vmatpush1.msra.mxu0 %v4431
        %4981 = vmatprep.subr.mxu0 %v4436
        %4982 = vmatpush1.msra.mxu0 %v4435
        %4983 = vmatprep.subr.mxu0 0.0
        %4984 = vmatpush1.msra.mxu0 0.0
        %4985 = vmatprep.subr.mxu0 0.0
        %4986 = vmatpush1.msra.mxu0 0.0
        %4987 = vmatprep.subr.mxu0 0.0
        %4988 = vmatpush1.msra.mxu0 0.0
        %4989 = vmatprep.subr.mxu0 0.0
        %4990 = vmatpush1.msra.mxu0 0.0
        %4991 = vmatprep.subr.mxu0 0.0
        %4992 = vmatpush1.msra.mxu0 0.0
        %4993 = vmatprep.subr.mxu0 0.0
        %4994 = vmatpush1.msra.mxu0 0.0
        %4995 = vmatprep.subr.mxu0 0.0
        %4996 = vmatpush1.msra.mxu0 0.0
        %4997 = vmatprep.subr.mxu0 0.0
        %4998 = vmatpush1.msra.mxu0 0.0
        %4999 = vmatprep.subr.mxu0 0.0
        %5000 = vmatpush1.msra.mxu0 0.0
        %5001 = vmatprep.subr.mxu0 0.0
        %5002 = vmatpush1.msra.mxu0 0.0
        %5003 = vmatprep.subr.mxu0 0.0
        %5004 = vmatpush1.msra.mxu0 0.0
        %5005 = vmatprep.subr.mxu0 0.0
        %5006 = vmatpush1.msra.mxu0 0.0
        %5007 = vmatprep.subr.mxu0 0.0
        %5008 = vmatpush1.msra.mxu0 0.0
        %5009 = vmatprep.subr.mxu0 0.0
        %5010 = vmatpush1.msra.mxu0 0.0
        %5011 = vmatprep.subr.mxu0 0.0
        %5012 = vmatpush1.msra.mxu0 0.0
        %5013 = vmatprep.subr.mxu0 0.0
        %5014 = vmatpush1.msra.mxu0 0.0
        %5015 = vmatprep.subr.mxu0 0.0
        %5016 = vmatpush1.msra.mxu0 0.0
        %5017 = vmatprep.subr.mxu0 0.0
        %5018 = vmatpush1.msra.mxu0 0.0
        %5019 = vmatprep.subr.mxu0 0.0
        %5020 = vmatpush1.msra.mxu0 0.0
        %5021 = vmatprep.subr.mxu0 0.0
        %5022 = vmatpush1.msra.mxu0 0.0
        %5023 = vmatprep.mubr.f32.mxu0 0.0
        %5024 = vmatmul.mubr.f32.gmra.mrb[0].mxu0 %v4460
        %v5025 = vpop.f32.mrb[0].mxu0
        %v5026 = vadd.f32 %v4955, %v5025
        %v5027 = vpop.f32.mrb[0].mxu0
        %v5028 = vadd.f32 %v4957, %v5027
        %5029 = vdwg.mxu0
        %v5030 = vmax.f32 %v4742, 0.0
        %v5031 = vmax.f32 %v4744, 0.0
        %v5032 = vmax.f32 %v5026, 0.0
        %v5033 = vmax.f32 %v5028, 0.0
        %v5034 = vld [vmem:[%s15] sm:$0xff]
        %v5035 = vld [vmem:[%s15 + $0x8] sm:$0xff]
        %v5036 = vld [vmem:[%s15 + $0x10] sm:$0xff]
        %v5037 = vld [vmem:[%s15 + $0x18] sm:$0xff]
        %v5038 = vld [vmem:[%s15 + $0x20] sm:$0xff]
        %v5039 = vld [vmem:[%s15 + $0x28] sm:$0xff]
        %v5040 = vld [vmem:[%s15 + $0x30] sm:$0xff]
        %v5041 = vld [vmem:[%s15 + $0x38] sm:$0xff]
        %v5042 = vld [vmem:[%s15 + $0x40] sm:$0xff]
        %v5043 = vld [vmem:[%s15 + $0x48] sm:$0xff]
        %v5044 = vld [vmem:[%s15 + $0x50] sm:$0xff]
        %v5045 = vld [vmem:[%s15 + $0x58] sm:$0xff]
        %v5046 = vld [vmem:[%s15 + $0x60] sm:$0xff]
        %v5047 = vld [vmem:[%s15 + $0x68] sm:$0xff]
        %v5048 = vld [vmem:[%s15 + $0x70] sm:$0xff]
        %v5049 = vld [vmem:[%s15 + $0x78] sm:$0xff]
        %v5050 = vld [vmem:[%s15 + $0x80] sm:$0xff]
        %v5051 = vld [vmem:[%s15 + $0x88] sm:$0xff]
        %v5052 = vld [vmem:[%s15 + $0x90] sm:$0xff]
        %v5053 = vld [vmem:[%s15 + $0x98] sm:$0xff]
        %v5054 = vld [vmem:[%s15 + $0xa0] sm:$0xff]
        %v5055 = vld [vmem:[%s15 + $0xa8] sm:$0xff]
        %v5056 = vld [vmem:[%s15 + $0xb0] sm:$0xff]
        %v5057 = vld [vmem:[%s15 + $0xb8] sm:$0xff]
        %v5058 = vld [vmem:[%s15 + $0xc0] sm:$0xff]
        %v5059 = vld [vmem:[%s15 + $0xc8] sm:$0xff]
        %v5060 = vld [vmem:[%s15 + $0xd0] sm:$0xff]
        %v5061 = vld [vmem:[%s15 + $0xd8] sm:$0xff]
        %v5062 = vld [vmem:[%s15 + $0xe0] sm:$0xff]
        %v5063 = vld [vmem:[%s15 + $0xe8] sm:$0xff]
        %v5064 = vld [vmem:[%s15 + $0xf0] sm:$0xff]
        %v5065 = vld [vmem:[%s15 + $0xf8] sm:$0xff]
        %v5066 = vld [vmem:[%s15 + $0x100] sm:$0xff]
        %v5067 = vld [vmem:[%s15 + $0x108] sm:$0xff]
        %v5068 = vld [vmem:[%s15 + $0x110] sm:$0xff]
        %v5069 = vld [vmem:[%s15 + $0x118] sm:$0xff]
        %v5070 = vld [vmem:[%s15 + $0x120] sm:$0xff]
        %v5071 = vld [vmem:[%s15 + $0x128] sm:$0xff]
        %v5072 = vld [vmem:[%s15 + $0x130] sm:$0xff]
        %v5073 = vld [vmem:[%s15 + $0x138] sm:$0xff]
        %v5074 = vld [vmem:[%s15 + $0x140] sm:$0xff]
        %v5075 = vld [vmem:[%s15 + $0x148] sm:$0xff]
        %v5076 = vld [vmem:[%s15 + $0x150] sm:$0xff]
        %v5077 = vld [vmem:[%s15 + $0x158] sm:$0xff]
        %v5078 = vld [vmem:[%s15 + $0x160] sm:$0xff]
        %v5079 = vld [vmem:[%s15 + $0x168] sm:$0xff]
        %v5080 = vld [vmem:[%s15 + $0x170] sm:$0xff]
        %v5081 = vld [vmem:[%s15 + $0x178] sm:$0xff]
        %v5082 = vld [vmem:[%s15 + $0x180] sm:$0xff]
        %v5083 = vld [vmem:[%s15 + $0x188] sm:$0xff]
        %v5084 = vld [vmem:[%s15 + $0x190] sm:$0xff]
        %v5085 = vld [vmem:[%s15 + $0x198] sm:$0xff]
        %v5086 = vld [vmem:[%s15 + $0x1a0] sm:$0xff]
        %v5087 = vld [vmem:[%s15 + $0x1a8] sm:$0xff]
        %v5088 = vld [vmem:[%s15 + $0x1b0] sm:$0xff]
        %v5089 = vld [vmem:[%s15 + $0x1b8] sm:$0xff]
        %v5090 = vld [vmem:[%s15 + $0x1c0] sm:$0xff]
        %v5091 = vld [vmem:[%s15 + $0x1c8] sm:$0xff]
        %v5092 = vld [vmem:[%s15 + $0x1d0] sm:$0xff]
        %v5093 = vld [vmem:[%s15 + $0x1d8] sm:$0xff]
        %v5094 = vld [vmem:[%s15 + $0x1e0] sm:$0xff]
        %v5095 = vld [vmem:[%s15 + $0x1e8] sm:$0xff]
        %v5096 = vld [vmem:[%s15 + $0x1f0] sm:$0xff]
        %v5097 = vld [vmem:[%s15 + $0x1f8] sm:$0xff]
        %v5098 = vld [vmem:[%s15 + $0x200] sm:$0xff]
        %v5099 = vld [vmem:[%s15 + $0x208] sm:$0xff]
        %v5100 = vld [vmem:[%s15 + $0x210] sm:$0xff]
        %v5101 = vld [vmem:[%s15 + $0x218] sm:$0xff]
        %v5102 = vld [vmem:[%s15 + $0x220] sm:$0xff]
        %v5103 = vld [vmem:[%s15 + $0x228] sm:$0xff]
        %v5104 = vld [vmem:[%s15 + $0x230] sm:$0xff]
        %v5105 = vld [vmem:[%s15 + $0x238] sm:$0xff]
        %v5106 = vld [vmem:[%s15 + $0x240] sm:$0xff]
        %v5107 = vld [vmem:[%s15 + $0x248] sm:$0xff]
        %v5108 = vld [vmem:[%s15 + $0x250] sm:$0xff]
        %v5109 = vld [vmem:[%s15 + $0x258] sm:$0xff]
        %v5110 = vld [vmem:[%s15 + $0x260] sm:$0xff]
        %v5111 = vld [vmem:[%s15 + $0x268] sm:$0xff]
        %v5112 = vld [vmem:[%s15 + $0x270] sm:$0xff]
        %v5113 = vld [vmem:[%s15 + $0x278] sm:$0xff]
        %v5114 = vld [vmem:[%s15 + $0x280] sm:$0xff]
        %v5115 = vld [vmem:[%s15 + $0x288] sm:$0xff]
        %v5116 = vld [vmem:[%s15 + $0x290] sm:$0xff]
        %v5117 = vld [vmem:[%s15 + $0x298] sm:$0xff]
        %v5118 = vld [vmem:[%s15 + $0x2a0] sm:$0xff]
        %v5119 = vld [vmem:[%s15 + $0x2a8] sm:$0xff]
        %v5120 = vld [vmem:[%s15 + $0x2b0] sm:$0xff]
        %v5121 = vld [vmem:[%s15 + $0x2b8] sm:$0xff]
        %v5122 = vld [vmem:[%s15 + $0x2c0] sm:$0xff]
        %v5123 = vld [vmem:[%s15 + $0x2c8] sm:$0xff]
        %v5124 = vld [vmem:[%s15 + $0x2d0] sm:$0xff]
        %v5125 = vld [vmem:[%s15 + $0x2d8] sm:$0xff]
        %v5126 = vld [vmem:[%s15 + $0x2e0] sm:$0xff]
        %v5127 = vld [vmem:[%s15 + $0x2e8] sm:$0xff]
        %v5128 = vld [vmem:[%s15 + $0x2f0] sm:$0xff]
        %v5129 = vld [vmem:[%s15 + $0x2f8] sm:$0xff]
        %v5130 = vld [vmem:[%s15 + $0x300] sm:$0xff]
        %v5131 = vld [vmem:[%s15 + $0x308] sm:$0xff]
        %v5132 = vld [vmem:[%s15 + $0x310] sm:$0xff]
        %v5133 = vld [vmem:[%s15 + $0x318] sm:$0xff]
        %v5134 = vld [vmem:[%s15 + $0x320] sm:$0xff]
        %v5135 = vld [vmem:[%s15 + $0x328] sm:$0xff]
        %v5136 = vld [vmem:[%s15 + $0x330] sm:$0xff]
        %v5137 = vld [vmem:[%s15 + $0x338] sm:$0xff]
        %v5138 = vld [vmem:[%s15 + $0x340] sm:$0xff]
        %v5139 = vld [vmem:[%s15 + $0x348] sm:$0xff]
        %v5140 = vld [vmem:[%s15 + $0x350] sm:$0xff]
        %v5141 = vld [vmem:[%s15 + $0x358] sm:$0xff]
        %v5142 = vld [vmem:[%s15 + $0x360] sm:$0xff]
        %v5143 = vld [vmem:[%s15 + $0x368] sm:$0xff]
        %v5144 = vld [vmem:[%s15 + $0x370] sm:$0xff]
        %v5145 = vld [vmem:[%s15 + $0x378] sm:$0xff]
        %v5146 = vld [vmem:[%s15 + $0x380] sm:$0xff]
        %v5147 = vld [vmem:[%s15 + $0x388] sm:$0xff]
        %v5148 = vld [vmem:[%s15 + $0x390] sm:$0xff]
        %v5149 = vld [vmem:[%s15 + $0x398] sm:$0xff]
        %v5150 = vld [vmem:[%s15 + $0x3a0] sm:$0xff]
        %v5151 = vld [vmem:[%s15 + $0x3a8] sm:$0xff]
        %v5152 = vld [vmem:[%s15 + $0x3b0] sm:$0xff]
        %v5153 = vld [vmem:[%s15 + $0x3b8] sm:$0xff]
        %v5154 = vld [vmem:[%s15 + $0x3c0] sm:$0xff]
        %v5155 = vld [vmem:[%s15 + $0x3c8] sm:$0xff]
        %v5156 = vld [vmem:[%s15 + $0x3d0] sm:$0xff]
        %v5157 = vld [vmem:[%s15 + $0x3d8] sm:$0xff]
        %v5158 = vld [vmem:[%s15 + $0x3e0] sm:$0xff]
        %v5159 = vld [vmem:[%s15 + $0x3e8] sm:$0xff]
        %v5160 = vld [vmem:[%s15 + $0x3f0] sm:$0xff]
        %v5161 = vld [vmem:[%s15 + $0x3f8] sm:$0xff]
        %v5162 = vld [vmem:[%s16] sm:$0x3]
        %v5164 = vlaneseq
        %v5165 = vshrl.u32 %v5164, 7
        %v5166 = vsub.s32 0, %v5165
        %v5167 = vrot.slane %v5162, %v5166
        %v5168 = vlaneseq
        %v5169 = vshrl.u32 %v5168, 7
        %v5170 = vsub.s32 1, %v5169
        %v5171 = vrot.slane %v5162, %v5170
        %5174 = vmatprep.subr.mxu0 %v5035
        %5175 = vmatpush1.msra.mxu0 %v5034
        %5176 = vmatprep.subr.mxu0 %v5037
        %5177 = vmatpush1.msra.mxu0 %v5036
        %5178 = vmatprep.subr.mxu0 %v5039
        %5179 = vmatpush1.msra.mxu0 %v5038
        %5180 = vmatprep.subr.mxu0 %v5041
        %5181 = vmatpush1.msra.mxu0 %v5040
        %5182 = vmatprep.subr.mxu0 %v5043
        %5183 = vmatpush1.msra.mxu0 %v5042
        %5184 = vmatprep.subr.mxu0 %v5045
        %5185 = vmatpush1.msra.mxu0 %v5044
        %5186 = vmatprep.subr.mxu0 %v5047
        %5187 = vmatpush1.msra.mxu0 %v5046
        %5188 = vmatprep.subr.mxu0 %v5049
        %5189 = vmatpush1.msra.mxu0 %v5048
        %5190 = vmatprep.subr.mxu0 %v5051
        %5191 = vmatpush1.msra.mxu0 %v5050
        %5192 = vmatprep.subr.mxu0 %v5053
        %5193 = vmatpush1.msra.mxu0 %v5052
        %5194 = vmatprep.subr.mxu0 %v5055
        %5195 = vmatpush1.msra.mxu0 %v5054
        %5196 = vmatprep.subr.mxu0 %v5057
        %5197 = vmatpush1.msra.mxu0 %v5056
        %5198 = vmatprep.subr.mxu0 %v5059
        %5199 = vmatpush1.msra.mxu0 %v5058
        %5200 = vmatprep.subr.mxu0 %v5061
        %5201 = vmatpush1.msra.mxu0 %v5060
        %5202 = vmatprep.subr.mxu0 %v5063
        %5203 = vmatpush1.msra.mxu0 %v5062
        %5204 = vmatprep.subr.mxu0 %v5065
        %5205 = vmatpush1.msra.mxu0 %v5064
        %5206 = vmatprep.subr.mxu0 %v5067
        %5207 = vmatpush1.msra.mxu0 %v5066
        %5208 = vmatprep.subr.mxu0 %v5069
        %5209 = vmatpush1.msra.mxu0 %v5068
        %5210 = vmatprep.subr.mxu0 %v5071
        %5211 = vmatpush1.msra.mxu0 %v5070
        %5212 = vmatprep.subr.mxu0 %v5073
        %5213 = vmatpush1.msra.mxu0 %v5072
        %5214 = vmatprep.subr.mxu0 %v5075
        %5215 = vmatpush1.msra.mxu0 %v5074
        %5216 = vmatprep.subr.mxu0 %v5077
        %5217 = vmatpush1.msra.mxu0 %v5076
        %5218 = vmatprep.subr.mxu0 %v5079
        %5219 = vmatpush1.msra.mxu0 %v5078
        %5220 = vmatprep.subr.mxu0 %v5081
        %5221 = vmatpush1.msra.mxu0 %v5080
        %5222 = vmatprep.subr.mxu0 %v5083
        %5223 = vmatpush1.msra.mxu0 %v5082
        %5224 = vmatprep.subr.mxu0 %v5085
        %5225 = vmatpush1.msra.mxu0 %v5084
        %5226 = vmatprep.subr.mxu0 %v5087
        %5227 = vmatpush1.msra.mxu0 %v5086
        %5228 = vmatprep.subr.mxu0 %v5089
        %5229 = vmatpush1.msra.mxu0 %v5088
        %5230 = vmatprep.subr.mxu0 %v5091
        %5231 = vmatpush1.msra.mxu0 %v5090
        %5232 = vmatprep.subr.mxu0 %v5093
        %5233 = vmatpush1.msra.mxu0 %v5092
        %5234 = vmatprep.subr.mxu0 %v5095
        %5235 = vmatpush1.msra.mxu0 %v5094
        %5236 = vmatprep.subr.mxu0 %v5097
        %5237 = vmatpush1.msra.mxu0 %v5096
        %5238 = vmatprep.mubr.f32.mxu0 %v5031
        %5239 = vmatmul.mubr.f32.gmra.mrb[0].mxu0 %v5030
        %v5240 = vpop.f32.mrb[0].mxu0
        %v5241 = vadd.f32 %v5167, %v5240
        %v5242 = vpop.f32.mrb[0].mxu0
        %v5243 = vadd.f32 %v5171, %v5242
        %5244 = vdwg.mxu0
        %5245 = vmatprep.subr.mxu0 %v5099
        %5246 = vmatpush1.msra.mxu0 %v5098
        %5247 = vmatprep.subr.mxu0 %v5101
        %5248 = vmatpush1.msra.mxu0 %v5100
        %5249 = vmatprep.subr.mxu0 %v5103
        %5250 = vmatpush1.msra.mxu0 %v5102
        %5251 = vmatprep.subr.mxu0 %v5105
        %5252 = vmatpush1.msra.mxu0 %v5104
        %5253 = vmatprep.subr.mxu0 %v5107
        %5254 = vmatpush1.msra.mxu0 %v5106
        %5255 = vmatprep.subr.mxu0 %v5109
        %5256 = vmatpush1.msra.mxu0 %v5108
        %5257 = vmatprep.subr.mxu0 %v5111
        %5258 = vmatpush1.msra.mxu0 %v5110
        %5259 = vmatprep.subr.mxu0 %v5113
        %5260 = vmatpush1.msra.mxu0 %v5112
        %5261 = vmatprep.subr.mxu0 %v5115
        %5262 = vmatpush1.msra.mxu0 %v5114
        %5263 = vmatprep.subr.mxu0 %v5117
        %5264 = vmatpush1.msra.mxu0 %v5116
        %5265 = vmatprep.subr.mxu0 %v5119
        %5266 = vmatpush1.msra.mxu0 %v5118
        %5267 = vmatprep.subr.mxu0 %v5121
        %5268 = vmatpush1.msra.mxu0 %v5120
        %5269 = vmatprep.subr.mxu0 %v5123
        %5270 = vmatpush1.msra.mxu0 %v5122
        %5271 = vmatprep.subr.mxu0 %v5125
        %5272 = vmatpush1.msra.mxu0 %v5124
        %5273 = vmatprep.subr.mxu0 %v5127
        %5274 = vmatpush1.msra.mxu0 %v5126
        %5275 = vmatprep.subr.mxu0 %v5129
        %5276 = vmatpush1.msra.mxu0 %v5128
        %5277 = vmatprep.subr.mxu0 %v5131
        %5278 = vmatpush1.msra.mxu0 %v5130
        %5279 = vmatprep.subr.mxu0 %v5133
        %5280 = vmatpush1.msra.mxu0 %v5132
        %5281 = vmatprep.subr.mxu0 %v5135
        %5282 = vmatpush1.msra.mxu0 %v5134
        %5283 = vmatprep.subr.mxu0 %v5137
        %5284 = vmatpush1.msra.mxu0 %v5136
        %5285 = vmatprep.subr.mxu0 %v5139
        %5286 = vmatpush1.msra.mxu0 %v5138
        %5287 = vmatprep.subr.mxu0 %v5141
        %5288 = vmatpush1.msra.mxu0 %v5140
        %5289 = vmatprep.subr.mxu0 %v5143
        %5290 = vmatpush1.msra.mxu0 %v5142
        %5291 = vmatprep.subr.mxu0 %v5145
        %5292 = vmatpush1.msra.mxu0 %v5144
        %5293 = vmatprep.subr.mxu0 %v5147
        %5294 = vmatpush1.msra.mxu0 %v5146
        %5295 = vmatprep.subr.mxu0 %v5149
        %5296 = vmatpush1.msra.mxu0 %v5148
        %5297 = vmatprep.subr.mxu0 %v5151
        %5298 = vmatpush1.msra.mxu0 %v5150
        %5299 = vmatprep.subr.mxu0 %v5153
        %5300 = vmatpush1.msra.mxu0 %v5152
        %5301 = vmatprep.subr.mxu0 %v5155
        %5302 = vmatpush1.msra.mxu0 %v5154
        %5303 = vmatprep.subr.mxu0 %v5157
        %5304 = vmatpush1.msra.mxu0 %v5156
        %5305 = vmatprep.subr.mxu0 %v5159
        %5306 = vmatpush1.msra.mxu0 %v5158
        %5307 = vmatprep.subr.mxu0 %v5161
        %5308 = vmatpush1.msra.mxu0 %v5160
        %5309 = vmatprep.mubr.f32.mxu0 %v5033
        %5310 = vmatmul.mubr.f32.gmra.mrb[0].mxu0 %v5032
        %v5311 = vpop.f32.mrb[0].mxu0
        %v5312 = vadd.f32 %v5241, %v5311
        %v5313 = vpop.f32.mrb[0].mxu0
        %v5314 = vadd.f32 %v5243, %v5313
        %5315 = vdwg.mxu0
        %v5316 = vmax.f32 %v5312, 0.0
        %v5317 = vmax.f32 %v5314, 0.0
        %v5318 = vld [vmem:[%s17] sm:$0xff]
        %v5319 = vld [vmem:[%s17 + $0x8] sm:$0xff]
        %v5320 = vld [vmem:[%s17 + $0x10] sm:$0xff]
        %v5321 = vld [vmem:[%s17 + $0x18] sm:$0xff]
        %v5322 = vld [vmem:[%s17 + $0x20] sm:$0xff]
        %v5323 = vld [vmem:[%s17 + $0x28] sm:$0xff]
        %v5324 = vld [vmem:[%s17 + $0x30] sm:$0xff]
        %v5325 = vld [vmem:[%s17 + $0x38] sm:$0xff]
        %v5326 = vld [vmem:[%s17 + $0x40] sm:$0xff]
        %v5327 = vld [vmem:[%s17 + $0x48] sm:$0xff]
        %v5328 = vld [vmem:[%s17 + $0x50] sm:$0xff]
        %v5329 = vld [vmem:[%s17 + $0x58] sm:$0xff]
        %v5330 = vld [vmem:[%s17 + $0x60] sm:$0xff]
        %v5331 = vld [vmem:[%s17 + $0x68] sm:$0xff]
        %v5332 = vld [vmem:[%s17 + $0x70] sm:$0xff]
        %v5333 = vld [vmem:[%s17 + $0x78] sm:$0xff]
        %v5334 = vld [vmem:[%s17 + $0x80] sm:$0xff]
        %v5335 = vld [vmem:[%s17 + $0x88] sm:$0xff]
        %v5336 = vld [vmem:[%s17 + $0x90] sm:$0xff]
        %v5337 = vld [vmem:[%s17 + $0x98] sm:$0xff]
        %v5338 = vld [vmem:[%s17 + $0xa0] sm:$0xff]
        %v5339 = vld [vmem:[%s17 + $0xa8] sm:$0xff]
        %v5340 = vld [vmem:[%s17 + $0xb0] sm:$0xff]
        %v5341 = vld [vmem:[%s17 + $0xb8] sm:$0xff]
        %v5342 = vld [vmem:[%s17 + $0xc0] sm:$0xff]
        %v5343 = vld [vmem:[%s17 + $0xc8] sm:$0xff]
        %v5344 = vld [vmem:[%s17 + $0xd0] sm:$0xff]
        %v5345 = vld [vmem:[%s17 + $0xd8] sm:$0xff]
        %v5346 = vld [vmem:[%s17 + $0xe0] sm:$0xff]
        %v5347 = vld [vmem:[%s17 + $0xe8] sm:$0xff]
        %v5348 = vld [vmem:[%s17 + $0xf0] sm:$0xff]
        %v5349 = vld [vmem:[%s17 + $0xf8] sm:$0xff]
        %v5350 = vld [vmem:[%s18] sm:$0x1]
        %5351 = vmatprep.subr.mxu0 0.0
        %5352 = vmatpush1.msra.mxu0 %v5318
        %5353 = vmatprep.subr.mxu0 0.0
        %5354 = vmatpush1.msra.mxu0 %v5319
        %5355 = vmatprep.subr.mxu0 0.0
        %5356 = vmatpush1.msra.mxu0 %v5320
        %5357 = vmatprep.subr.mxu0 0.0
        %5358 = vmatpush1.msra.mxu0 %v5321
        %5359 = vmatprep.subr.mxu0 0.0
        %5360 = vmatpush1.msra.mxu0 %v5322
        %5361 = vmatprep.subr.mxu0 0.0
        %5362 = vmatpush1.msra.mxu0 %v5323
        %5363 = vmatprep.subr.mxu0 0.0
        %5364 = vmatpush1.msra.mxu0 %v5324
        %5365 = vmatprep.subr.mxu0 0.0
        %5366 = vmatpush1.msra.mxu0 %v5325
        %5367 = vmatprep.subr.mxu0 0.0
        %5368 = vmatpush1.msra.mxu0 %v5326
        %5369 = vmatprep.subr.mxu0 0.0
        %5370 = vmatpush1.msra.mxu0 %v5327
        %5371 = vmatprep.subr.mxu0 0.0
        %5372 = vmatpush1.msra.mxu0 %v5328
        %5373 = vmatprep.subr.mxu0 0.0
        %5374 = vmatpush1.msra.mxu0 %v5329
        %5375 = vmatprep.subr.mxu0 0.0
        %5376 = vmatpush1.msra.mxu0 %v5330
        %5377 = vmatprep.subr.mxu0 0.0
        %5378 = vmatpush1.msra.mxu0 %v5331
        %5379 = vmatprep.subr.mxu0 0.0
        %5380 = vmatpush1.msra.mxu0 %v5332
        %5381 = vmatprep.subr.mxu0 0.0
        %5382 = vmatpush1.msra.mxu0 %v5333
        %5383 = vmatprep.subr.mxu0 0.0
        %5384 = vmatpush1.msra.mxu0 %v5334
        %5385 = vmatprep.subr.mxu0 0.0
        %5386 = vmatpush1.msra.mxu0 %v5335
        %5387 = vmatprep.subr.mxu0 0.0
        %5388 = vmatpush1.msra.mxu0 %v5336
        %5389 = vmatprep.subr.mxu0 0.0
        %5390 = vmatpush1.msra.mxu0 %v5337
        %5391 = vmatprep.subr.mxu0 0.0
        %5392 = vmatpush1.msra.mxu0 %v5338
        %5393 = vmatprep.subr.mxu0 0.0
        %5394 = vmatpush1.msra.mxu0 %v5339
        %5395 = vmatprep.subr.mxu0 0.0
        %5396 = vmatpush1.msra.mxu0 %v5340
        %5397 = vmatprep.subr.mxu0 0.0
        %5398 = vmatpush1.msra.mxu0 %v5341
        %5399 = vmatprep.subr.mxu0 0.0
        %5400 = vmatpush1.msra.mxu0 %v5342
        %5401 = vmatprep.subr.mxu0 0.0
        %5402 = vmatpush1.msra.mxu0 %v5343
        %5403 = vmatprep.subr.mxu0 0.0
        %5404 = vmatpush1.msra.mxu0 %v5344
        %5405 = vmatprep.subr.mxu0 0.0
        %5406 = vmatpush1.msra.mxu0 %v5345
        %5407 = vmatprep.subr.mxu0 0.0
        %5408 = vmatpush1.msra.mxu0 %v5346
        %5409 = vmatprep.subr.mxu0 0.0
        %5410 = vmatpush1.msra.mxu0 %v5347
        %5411 = vmatprep.subr.mxu0 0.0
        %5412 = vmatpush1.msra.mxu0 %v5348
        %5413 = vmatprep.subr.mxu0 0.0
        %5414 = vmatpush1.msra.mxu0 %v5349
        %5415 = vmatprep.mubr.f32.mxu0 %v5317
        %5416 = vmatmul.mubr.f32.gmra.mrb[0].mxu0 %v5316
        %v5417 = vpop.f32.mrb[0].mxu0
        %v5418 = vadd.f32 %v5350, %v5417
        %v5419 = vpop.f32.mrb[0].mxu0
        %5420 = vdwg.mxu0
        %v5421 = vmax.f32 %v5418, 0.0
        %v5422 = vld [vmem:[%s19] sm:$0xff]
        %v5423 = vld [vmem:[%s19 + $0x8] sm:$0xff]
        %v5424 = vld [vmem:[%s19 + $0x10] sm:$0xff]
        %v5425 = vld [vmem:[%s19 + $0x18] sm:$0xff]
        %v5426 = vld [vmem:[%s19 + $0x20] sm:$0xff]
        %v5427 = vld [vmem:[%s19 + $0x28] sm:$0xff]
        %v5428 = vld [vmem:[%s19 + $0x30] sm:$0xff]
        %v5429 = vld [vmem:[%s19 + $0x38] sm:$0xff]
        %v5430 = vld [vmem:[%s19 + $0x40] sm:$0xff]
        %v5431 = vld [vmem:[%s19 + $0x48] sm:$0xff]
        %v5432 = vld [vmem:[%s19 + $0x50] sm:$0xff]
        %v5433 = vld [vmem:[%s19 + $0x58] sm:$0xff]
        %v5434 = vld [vmem:[%s19 + $0x60] sm:$0xff]
        %v5435 = vld [vmem:[%s19 + $0x68] sm:$0xff]
        %v5436 = vld [vmem:[%s19 + $0x70] sm:$0xff]
        %v5437 = vld [vmem:[%s19 + $0x78] sm:$0xff]
        %v5438 = vld [vmem:[%s20] sm:$0x1]
        %5439 = vmatprep.subr.mxu0 0.0
        %5440 = vmatpush1.msra.mxu0 %v5422
        %5441 = vmatprep.subr.mxu0 0.0
        %5442 = vmatpush1.msra.mxu0 %v5423
        %5443 = vmatprep.subr.mxu0 0.0
        %5444 = vmatpush1.msra.mxu0 %v5424
        %5445 = vmatprep.subr.mxu0 0.0
        %5446 = vmatpush1.msra.mxu0 %v5425
        %5447 = vmatprep.subr.mxu0 0.0
        %5448 = vmatpush1.msra.mxu0 %v5426
        %5449 = vmatprep.subr.mxu0 0.0
        %5450 = vmatpush1.msra.mxu0 %v5427
        %5451 = vmatprep.subr.mxu0 0.0
        %5452 = vmatpush1.msra.mxu0 %v5428
        %5453 = vmatprep.subr.mxu0 0.0
        %5454 = vmatpush1.msra.mxu0 %v5429
        %5455 = vmatprep.subr.mxu0 0.0
        %5456 = vmatpush1.msra.mxu0 %v5430
        %5457 = vmatprep.subr.mxu0 0.0
        %5458 = vmatpush1.msra.mxu0 %v5431
        %5459 = vmatprep.subr.mxu0 0.0
        %5460 = vmatpush1.msra.mxu0 %v5432
        %5461 = vmatprep.subr.mxu0 0.0
        %5462 = vmatpush1.msra.mxu0 %v5433
        %5463 = vmatprep.subr.mxu0 0.0
        %5464 = vmatpush1.msra.mxu0 %v5434
        %5465 = vmatprep.subr.mxu0 0.0
        %5466 = vmatpush1.msra.mxu0 %v5435
        %5467 = vmatprep.subr.mxu0 0.0
        %5468 = vmatpush1.msra.mxu0 %v5436
        %5469 = vmatprep.subr.mxu0 0.0
        %5470 = vmatpush1.msra.mxu0 %v5437
        %5471 = vmatprep.subr.mxu0 0.0
        %5472 = vmatpush1.msra.mxu0 0.0
        %5473 = vmatprep.subr.mxu0 0.0
        %5474 = vmatpush1.msra.mxu0 0.0
        %5475 = vmatprep.subr.mxu0 0.0
        %5476 = vmatpush1.msra.mxu0 0.0
        %5477 = vmatprep.subr.mxu0 0.0
        %5478 = vmatpush1.msra.mxu0 0.0
        %5479 = vmatprep.subr.mxu0 0.0
        %5480 = vmatpush1.msra.mxu0 0.0
        %5481 = vmatprep.subr.mxu0 0.0
        %5482 = vmatpush1.msra.mxu0 0.0
        %5483 = vmatprep.subr.mxu0 0.0
        %5484 = vmatpush1.msra.mxu0 0.0
        %5485 = vmatprep.subr.mxu0 0.0
        %5486 = vmatpush1.msra.mxu0 0.0
        %5487 = vmatprep.subr.mxu0 0.0
        %5488 = vmatpush1.msra.mxu0 0.0
        %5489 = vmatprep.subr.mxu0 0.0
        %5490 = vmatpush1.msra.mxu0 0.0
        %5491 = vmatprep.subr.mxu0 0.0
        %5492 = vmatpush1.msra.mxu0 0.0
        %5493 = vmatprep.subr.mxu0 0.0
        %5494 = vmatpush1.msra.mxu0 0.0
        %5495 = vmatprep.subr.mxu0 0.0
        %5496 = vmatpush1.msra.mxu0 0.0
        %5497 = vmatprep.subr.mxu0 0.0
        %5498 = vmatpush1.msra.mxu0 0.0
        %5499 = vmatprep.subr.mxu0 0.0
        %5500 = vmatpush1.msra.mxu0 0.0
        %5501 = vmatprep.subr.mxu0 0.0
        %5502 = vmatpush1.msra.mxu0 0.0
        %5503 = vmatprep.mubr.f32.mxu0 0.0
        %5504 = vmatmul.mubr.f32.gmra.mrb[0].mxu0 %v5421
        %v5505 = vpop.f32.mrb[0].mxu0
        %v5506 = vadd.f32 %v5438, %v5505
        %v5507 = vpop.f32.mrb[0].mxu0
        %5508 = vdwg.mxu0
        %v5509 = vmax.f32 %v5506, 0.0
        %v5510 = vld [vmem:[%s21] sm:$0xff]
        %v5511 = vld [vmem:[%s21 + $0x8] sm:$0xff]
        %v5512 = vld [vmem:[%s21 + $0x10] sm:$0xff]
        %v5513 = vld [vmem:[%s21 + $0x18] sm:$0xff]
        %v5514 = vld [vmem:[%s21 + $0x20] sm:$0xff]
        %v5515 = vld [vmem:[%s21 + $0x28] sm:$0xff]
        %v5516 = vld [vmem:[%s21 + $0x30] sm:$0xff]
        %v5517 = vld [vmem:[%s21 + $0x38] sm:$0xff]
        %v5518 = vld [vmem:[%s21 + $0x40] sm:$0xff]
        %v5519 = vld [vmem:[%s21 + $0x48] sm:$0xff]
        %v5520 = vld [vmem:[%s21 + $0x50] sm:$0xff]
        %v5521 = vld [vmem:[%s21 + $0x58] sm:$0xff]
        %v5522 = vld [vmem:[%s21 + $0x60] sm:$0xff]
        %v5523 = vld [vmem:[%s21 + $0x68] sm:$0xff]
        %v5524 = vld [vmem:[%s21 + $0x70] sm:$0xff]
        %v5525 = vld [vmem:[%s21 + $0x78] sm:$0xff]
        %v5526 = vld [vmem:[%s22] sm:$0x1]
        %5527 = vmatprep.subr.mxu0 0.0
        %5528 = vmatpush1.msra.mxu0 %v5510
        %5529 = vmatprep.subr.mxu0 0.0
        %5530 = vmatpush1.msra.mxu0 %v5511
        %5531 = vmatprep.subr.mxu0 0.0
        %5532 = vmatpush1.msra.mxu0 %v5512
        %5533 = vmatprep.subr.mxu0 0.0
        %5534 = vmatpush1.msra.mxu0 %v5513
        %5535 = vmatprep.subr.mxu0 0.0
        %5536 = vmatpush1.msra.mxu0 %v5514
        %5537 = vmatprep.subr.mxu0 0.0
        %5538 = vmatpush1.msra.mxu0 %v5515
        %5539 = vmatprep.subr.mxu0 0.0
        %5540 = vmatpush1.msra.mxu0 %v5516
        %5541 = vmatprep.subr.mxu0 0.0
        %5542 = vmatpush1.msra.mxu0 %v5517
        %5543 = vmatprep.subr.mxu0 0.0
        %5544 = vmatpush1.msra.mxu0 %v5518
        %5545 = vmatprep.subr.mxu0 0.0
        %5546 = vmatpush1.msra.mxu0 %v5519
        %5547 = vmatprep.subr.mxu0 0.0
        %5548 = vmatpush1.msra.mxu0 %v5520
        %5549 = vmatprep.subr.mxu0 0.0
        %5550 = vmatpush1.msra.mxu0 %v5521
        %5551 = vmatprep.subr.mxu0 0.0
        %5552 = vmatpush1.msra.mxu0 %v5522
        %5553 = vmatprep.subr.mxu0 0.0
        %5554 = vmatpush1.msra.mxu0 %v5523
        %5555 = vmatprep.subr.mxu0 0.0
        %5556 = vmatpush1.msra.mxu0 %v5524
        %5557 = vmatprep.subr.mxu0 0.0
        %5558 = vmatpush1.msra.mxu0 %v5525
        %5559 = vmatprep.subr.mxu0 0.0
        %5560 = vmatpush1.msra.mxu0 0.0
        %5561 = vmatprep.subr.mxu0 0.0
        %5562 = vmatpush1.msra.mxu0 0.0
        %5563 = vmatprep.subr.mxu0 0.0
        %5564 = vmatpush1.msra.mxu0 0.0
        %5565 = vmatprep.subr.mxu0 0.0
        %5566 = vmatpush1.msra.mxu0 0.0
        %5567 = vmatprep.subr.mxu0 0.0
        %5568 = vmatpush1.msra.mxu0 0.0
        %5569 = vmatprep.subr.mxu0 0.0
        %5570 = vmatpush1.msra.mxu0 0.0
        %5571 = vmatprep.subr.mxu0 0.0
        %5572 = vmatpush1.msra.mxu0 0.0
        %5573 = vmatprep.subr.mxu0 0.0
        %5574 = vmatpush1.msra.mxu0 0.0
        %5575 = vmatprep.subr.mxu0 0.0
        %5576 = vmatpush1.msra.mxu0 0.0
        %5577 = vmatprep.subr.mxu0 0.0
        %5578 = vmatpush1.msra.mxu0 0.0
        %5579 = vmatprep.subr.mxu0 0.0
        %5580 = vmatpush1.msra.mxu0 0.0
        %5581 = vmatprep.subr.mxu0 0.0
        %5582 = vmatpush1.msra.mxu0 0.0
        %5583 = vmatprep.subr.mxu0 0.0
        %5584 = vmatpush1.msra.mxu0 0.0
        %5585 = vmatprep.subr.mxu0 0.0
        %5586 = vmatpush1.msra.mxu0 0.0
        %5587 = vmatprep.subr.mxu0 0.0
        %5588 = vmatpush1.msra.mxu0 0.0
        %5589 = vmatprep.subr.mxu0 0.0
        %5590 = vmatpush1.msra.mxu0 0.0
        %5591 = vmatprep.mubr.f32.mxu0 0.0
        %5592 = vmatmul.mubr.f32.gmra.mrb[0].mxu0 %v5509
        %v5593 = vpop.f32.mrb[0].mxu0
        %v5594 = vadd.f32 %v5526, %v5593
        %v5595 = vpop.f32.mrb[0].mxu0
        %5596 = vdwg.mxu0
        %vm5597 = vcmask 24576
        %5598 = vst.msk [vmem:[%s702] sm:$0x1] %vm5597, %v5594
        %s5599 = sand.u32 %s533, 1
        %s5600 = scalar_lea.sflag [#allocation3], %s5599
        %s5601 = sand.u32 %s533, 1
        %s5602 = scalar_lea.vmem [#allocation2], %s5601
        // Predicated region
        $region113: #{dqn_forward.1} parent=111 // pred_check
          %p5603 = pneg %p543
        $region114: #{dqn_forward.1} parent=111 // pred_check_branch
          %5605 = sbr.rel (%p5603) target = $region116
        $region115: #{dqn_forward.1} parent=111 // pred_region
          %s5607 = ssub.s32 16, 16
          %5608 = vsyncadd %s5600, %s5607
          %s5609 = smul.addr %s37, 16
          %s5610 = scalar_lea.hbm %s23, %s5609
          %s5612 = sshll.u32 %s5602, 4
          %s5613 = int_to_ptr.vmem [resolvable:$true] %s5612
          %5615 = dma.vmem_to_hbm [thread:$0]  %s5613, 16, %s5610, %s5600
        $region116: #{dqn_forward.1} parent=111 // pred_fallthru
          _
      $region112: #{dqn_forward.1} parent=5 // pred_fallthru
        _
      %p5616 = scmp.le.s32.totalorder 2, %s32
      // Predicated region
      $region117: #{dqn_forward.1} parent=5 // pred_check
        %p5617 = pneg %p5616
      $region118: #{dqn_forward.1} parent=5 // pred_check_branch
        %5619 = sbr.rel (%p5617) target = $region120
      $region119: #{dqn_forward.1} parent=5 // pred_region
        %s5620 = ssub.s32 %s32, 2
        // Predicated region
        $region121: #{dqn_forward.1} parent=119 // pred_check
          %p5621 = pneg %p549
        $region122: #{dqn_forward.1} parent=119 // pred_check_branch
          %5623 = sbr.rel (%p5621) target = $region124
        $region123: #{dqn_forward.1} parent=119 // pred_region
          %s5624 = sand.u32 %s534, 1
          %s5625 = scalar_lea.sflag [#allocation3], %s5624
          %s5626 = sand.u32 %s534, 1
          %s5627 = scalar_lea.vmem [#allocation2], %s5626
          %5628 = dma.done %s5625, 16
        $region124: #{dqn_forward.1} parent=119 // pred_fallthru
          _
      $region120: #{dqn_forward.1} parent=5 // pred_fallthru
        _
    $region6: #{dqn_forward.1} parent=1 // loop_footer
      %s36 = sadd.s32 1, %s32
    $region7: #{dqn_forward.1} parent=1 // loop_footer_branch
      %31 = sbr.rel target = $region3
    $region8: #{dqn_forward.1} parent=1 // loop_exit
      _
    %5629 = vsyncpa [#allocation3], 1
    %s5630 = scalar_lea.sflag [#allocation3], 1
    %5631 = vsyncpa %s5630, 1

</llo_original>
